<compile_context>
chip_gen: v7x
topology: tpu7x:2x2x1
jax: 0.10.0
libtpu: 0.0.40
codegen_flags: <defaults>
</compile_context>

<pallas_src>
import functools

import jax
import jax.numpy as jnp
from jax.experimental import pallas as pl
from jax.experimental.pallas import tpu as pltpu


def _round_up(x, m):
    return (x + m - 1) // m * m


def _make_neumf_kernel(num_fc, layer_sizes, ld_mlp, ld_mf, tb):
    """Kernel closed over the (static) layer widths and the batch tile size."""

    mlp_in_w = 2 * ld_mlp

    def kernel(stream_ref, *rest):
        # rest layout: fc weight refs [0 .. L-1], pack_ref, out_ref
        w_refs = rest[:num_fc]
        pack_ref = rest[num_fc]
        out_ref = rest[num_fc + 1]
        f32 = jnp.float32

        s = stream_ref[...]                                   # (tb, 32) bf16
        # static lane slices: all stay inside one (8,128) tile -> no relayout
        mlp_in = s[:, :mlp_in_w]                              # (tb, 2*d_mlp) bf16
        ue_mf = s[:, mlp_in_w:mlp_in_w + ld_mf].astype(f32)
        ie_mf = s[:, mlp_in_w + ld_mf:].astype(f32)

        # --- MLP branch: bf16 MXU feed, f32 accumulation, f32 VPU epilogue ---
        h = jnp.dot(mlp_in, w_refs[0][...], preferred_element_type=f32)
        h = jnp.maximum(h + pack_ref[0:1, :layer_sizes[1]], 0.0)
        for idx in range(1, num_fc):
            out_size = layer_sizes[idx + 1]
            h = jnp.dot(h.astype(jnp.bfloat16), w_refs[idx][...],
                        preferred_element_type=f32)
            h = jnp.maximum(h + pack_ref[idx:idx + 1, :out_size], 0.0)

        # --- GMF branch: elementwise product (f32 VPU; v5e-safe) --------------
        mf = ue_mf * ie_mf

        # --- Affine head: split VPU multiply + lane reduce (no N=1 matmul) ----
        wa_h = pack_ref[num_fc:num_fc + 1, :layer_sizes[-1]]
        wa_mf = pack_ref[num_fc + 1:num_fc + 2, :ld_mf]
        b_aff = pack_ref[num_fc + 2:num_fc + 3, 0:1]          # (1, 1)
        logits = (jnp.sum(h * wa_h, axis=-1, keepdims=True)
                  + jnp.sum(mf * wa_mf, axis=-1, keepdims=True)
                  + b_aff)                                    # (tb, 1)
        rating = jax.nn.sigmoid(logits)

        # lane-dense store: (tb,1) -> (tb//128, 128) so the writeback uses full
        # vector stores instead of 1/128-lane masked stores (XLU has slack here)
        out_ref[...] = rating.reshape(tb // 128, 128)

    return kernel


def neumf_pallas(ue_mlp, ie_mlp, ue_mf, ie_mf,
                 fc_weights, fc_biases, w_affine, b_affine,
                 *, block_batch=None):
    """Fused MLP + GMF + affine + sigmoid, batch-tiled Pallas kernel."""
    num_fc = len(fc_weights)
    assert num_fc >= 1
    layer_sizes = [fc_weights[0].shape[0]] + [w.shape[1] for w in fc_weights]
    ld_mlp = ue_mlp.shape[-1]
    ld_mf = ue_mf.shape[-1]
    assert layer_sizes[0] == 2 * ld_mlp, "layers[0] must be 2*latent_dim_mlp"
    f32, bf16 = jnp.float32, jnp.bfloat16

    batch = ue_mlp.shape[0]

    # ---- batch tile selection ------------------------------------------------
    # Big tiles amortize the ~0.35us / ~600-cycle per-grid-step fixed cost; for
    # large batches the default gives many blocks so the "parallel" axis shards
    # across both v7x TensorCores.  Multi-block tiles are rounded to 1024 so the
    # lane-dense output block (tb//128, 128) keeps its sublane dim a multiple
    # of 8; a single block always equals the full (padded) array, so any
    # 128-multiple works there.
    if block_batch is None:
        block_batch = 4096
    tb = max(128, _round_up(block_batch, 128))
    if tb < batch:
        tb = _round_up(tb, 1024)
    num_blocks = pl.cdiv(batch, tb)
    if num_blocks == 1:
        tb = _round_up(batch, 128)
    b_pad = num_blocks * tb

    # ---- merged activation stream: one DMA per step, [ue_mlp|ie_mlp|ue_mf|ie_mf]
    streams = jnp.concatenate([ue_mlp, ie_mlp, ue_mf, ie_mf],
                              axis=-1).astype(bf16)
    if b_pad != batch:
        streams = jnp.pad(streams, ((0, b_pad - batch), (0, 0)))
    feat = streams.shape[-1]

    # ---- pack all small params (biases, affine weight halves, affine bias) ---
    widths = [w.shape[1] for w in fc_weights]
    max_w = max(widths + [layer_sizes[-1], ld_mf, 1])
    pack = jnp.zeros((num_fc + 3, max_w), f32)
    for idx, b in enumerate(fc_biases):
        pack = pack.at[idx, :b.shape[0]].set(b.astype(f32))
    pack = pack.at[num_fc, :layer_sizes[-1]].set(
        w_affine[:layer_sizes[-1], 0].astype(f32))
    pack = pack.at[num_fc + 1, :ld_mf].set(
        w_affine[layer_sizes[-1]:, 0].astype(f32))
    pack = pack.at[num_fc + 2, 0].set(b_affine.reshape(-1)[0].astype(f32))

    # bf16 fc weights: native MXU feed on v6e/v7x, halves resident weight VMEM
    # and first-step weight DMA; f32 accumulation keeps numerics tight.
    operands = [streams] + [w.astype(bf16) for w in fc_weights] + [pack]

    in_specs = [pl.BlockSpec((tb, feat), lambda i: (i, 0))]        # streamed
    in_specs += [pl.BlockSpec(op.shape, lambda i: (0, 0))          # resident
                 for op in operands[1:]]

    kernel = _make_neumf_kernel(num_fc, layer_sizes, ld_mlp, ld_mf, tb)

    out = pl.pallas_call(
        kernel,
        out_shape=jax.ShapeDtypeStruct((b_pad // 128, 128), f32),
        grid=(num_blocks,),
        in_specs=in_specs,
        out_specs=pl.BlockSpec((tb // 128, 128), lambda i: (i, 0)),
        compiler_params=pltpu.CompilerParams(
            dimension_semantics=("parallel",),
            vmem_limit_bytes=48 * 1024 * 1024),
    )(*operands)

    # lane-dense (b_pad//128, 128) -> (b_pad, 1); drop padded rows.
    return out.reshape(b_pad, 1)[:batch]


def neumf_forward(params, user_indices, item_indices, *, block_batch=None):
    """Full NeuMF forward; embedding gathers are plain-JAX glue."""
    # NOTE: the streamed embedding rows are rounded to bf16 inside
    # neumf_pallas to halve HBM traffic — a deliberate precision cut vs the
    # f32 PyTorch model (see the mirrored reference below).
    # TODO(synk): for embedding tables that fit VMEM, move the gather into the
    # kernel (resident tables + streamed int32 index blocks) to avoid the HBM
    # round-trip of the gathered rows; kept as XLA take here.
    ue_mlp = params["emb_user_mlp"][user_indices]
    ie_mlp = params["emb_item_mlp"][item_indices]
    ue_mf = params["emb_user_mf"][user_indices]
    ie_mf = params["emb_item_mf"][item_indices]
    return neumf_pallas(ue_mlp, ie_mlp, ue_mf, ie_mf,
                        params["fc_w"], params["fc_b"],
                        params["affine_w"], params["affine_b"],
                        block_batch=block_batch)


def init_params(key, config):
    """Deterministic synthetic parameter init (shapes match the torch module)."""
    num_users = config["num_users"]
    num_items = config["num_items"]
    ld_mlp = config["latent_dim_mlp"]
    ld_mf = config["latent_dim_mf"]
    layers = config["layers"]

    keys = jax.random.split(key, 6 + 2 * (len(layers) - 1))
    ki = iter(keys)

    def normal(k, shape, scale=0.1):
        return (scale * jax.random.normal(k, shape)).astype(jnp.float32)

    params = {
        "emb_user_mlp": normal(next(ki), (num_users, ld_mlp)),
        "emb_item_mlp": normal(next(ki), (num_items, ld_mlp)),
        "emb_user_mf": normal(next(ki), (num_users, ld_mf)),
        "emb_item_mf": normal(next(ki), (num_items, ld_mf)),
        "fc_w": [],
        "fc_b": [],
    }
    for in_size, out_size in zip(layers[:-1], layers[1:]):
        # stored [in, out] (transposed vs torch nn.Linear's [out, in])
        params["fc_w"].append(normal(next(ki), (in_size, out_size)))
        params["fc_b"].append(normal(next(ki), (out_size,)))
    params["affine_w"] = normal(next(ki), (layers[-1] + ld_mf, 1))
    params["affine_b"] = normal(next(ki), (1,))
    return params


def neumf_reference(params, user_indices, item_indices):
    """Pure-JAX reference mirroring the kernel's bf16 stream/weight rounding."""
    f32, bf16 = jnp.float32, jnp.bfloat16
    ue_mlp = params["emb_user_mlp"][user_indices].astype(bf16).astype(f32)
    ie_mlp = params["emb_item_mlp"][item_indices].astype(bf16).astype(f32)
    ue_mf = params["emb_user_mf"][user_indices].astype(bf16).astype(f32)
    ie_mf = params["emb_item_mf"][item_indices].astype(bf16).astype(f32)
    h = jnp.concatenate([ue_mlp, ie_mlp], axis=-1)
    mf = ue_mf * ie_mf
    for w, b in zip(params["fc_w"], params["fc_b"]):
        w = w.astype(bf16).astype(f32)
        h = jnp.maximum(h.astype(bf16).astype(f32) @ w + b, 0.0)
    v = jnp.concatenate([h, mf], axis=-1)
    return jax.nn.sigmoid(v @ params["affine_w"] + params["affine_b"])


def neumf_reference_f32(params, user_indices, item_indices):
    """Exact f32 reference matching the PyTorch module's math."""
    h = jnp.concatenate([params["emb_user_mlp"][user_indices],
                         params["emb_item_mlp"][item_indices]], axis=-1)
    mf = params["emb_user_mf"][user_indices] * params["emb_item_mf"][item_indices]
    for w, b in zip(params["fc_w"], params["fc_b"]):
        h = jnp.maximum(h @ w + b, 0.0)
    v = jnp.concatenate([h, mf], axis=-1)
    return jax.nn.sigmoid(v @ params["affine_w"] + params["affine_b"])


if __name__ == "__main__":
    config = {
        "num_users": 64,
        "num_items": 128,
        "latent_dim_mlp": 8,
        "latent_dim_mf": 8,
        "layers": [16, 32, 16, 8],   # layers[0] == 2 * latent_dim_mlp
    }

    key = jax.random.PRNGKey(0)
    pkey, ukey, ikey = jax.random.split(key, 3)
    params = init_params(pkey, config)

    # batch + block_batch chosen so the run exercises a 3-step (pipelined,
    # "parallel") batch grid with padding of the last tile and the lane-dense
    # (tb//128, 128) output blocks.
    batch = 2600
    user_indices = jax.random.randint(ukey, (batch,), 0, config["num_users"])
    item_indices = jax.random.randint(ikey, (batch,), 0, config["num_items"])

    fwd = jax.jit(functools.partial(neumf_forward, params, block_batch=1024))
    rating = jax.block_until_ready(fwd(user_indices, item_indices))

    expected = neumf_reference(params, user_indices, item_indices)
    expected_f32 = neumf_reference_f32(params, user_indices, item_indices)
    assert rating.shape == (batch, 1)
    assert jnp.allclose(rating, expected, atol=1e-4, rtol=1e-4), (
        float(jnp.max(jnp.abs(rating - expected))))
    # sanity vs the exact-f32 PyTorch-equivalent math (bf16 streams/weights are
    # a documented precision cut; difference stays far below this bound here).
    assert float(jnp.max(jnp.abs(rating - expected_f32))) < 2e-2, (
        float(jnp.max(jnp.abs(rating - expected_f32))))

    print("KERNEL_OK")
</pallas_src>

<mosaic_0001>
module attributes {stable_mosaic.version = 11 : i64} {
  func.func @kernel(%arg0: i32, %arg1: memref<1024x32xbf16, #tpu.memory_space<vmem>>, %arg2: memref<16x32xbf16, #tpu.memory_space<vmem>>, %arg3: memref<32x16xbf16, #tpu.memory_space<vmem>>, %arg4: memref<16x8xbf16, #tpu.memory_space<vmem>>, %arg5: memref<6x32xf32, #tpu.memory_space<vmem>>, %arg6: memref<8x128xf32, #tpu.memory_space<vmem>>) attributes {dimension_semantics = [#tpu.dimension_semantics<parallel>], iteration_bounds = array<i64: 3>, scalar_prefetch = 0 : i64, scratch_operands = 0 : i64, tpu.core_type = #tpu.core_type<tc>, window_params = [{transform_indices = @transform_0, window_bounds = array<i64: 1024, 32>}, {pipeline_mode = #tpu.pipeline_mode<synchronous>, transform_indices = @transform_1, window_bounds = array<i64: 16, 32>}, {pipeline_mode = #tpu.pipeline_mode<synchronous>, transform_indices = @transform_2, window_bounds = array<i64: 32, 16>}, {pipeline_mode = #tpu.pipeline_mode<synchronous>, transform_indices = @transform_3, window_bounds = array<i64: 16, 8>}, {pipeline_mode = #tpu.pipeline_mode<synchronous>, transform_indices = @transform_4, window_bounds = array<i64: 6, 32>}, {transform_indices = @transform_5, window_bounds = array<i64: 8, 128>}]} {
    %c0 = arith.constant 0 : index
    %c0_0 = arith.constant 0 : index
    %0 = vector.load %arg1[%c0, %c0_0] : memref<1024x32xbf16, #tpu.memory_space<vmem>>, vector<1024x32xbf16>
    %1 = vector.extract_strided_slice %0 {offsets = [0, 0], sizes = [1024, 16], strides = [1, 1]} : vector<1024x32xbf16> to vector<1024x16xbf16>
    %2 = vector.extract_strided_slice %0 {offsets = [0, 16], sizes = [1024, 8], strides = [1, 1]} : vector<1024x32xbf16> to vector<1024x8xbf16>
    %3 = arith.extf %2 : vector<1024x8xbf16> to vector<1024x8xf32>
    %4 = vector.extract_strided_slice %0 {offsets = [0, 24], sizes = [1024, 8], strides = [1, 1]} : vector<1024x32xbf16> to vector<1024x8xbf16>
    %5 = arith.extf %4 : vector<1024x8xbf16> to vector<1024x8xf32>
    %c0_1 = arith.constant 0 : index
    %c0_2 = arith.constant 0 : index
    %6 = vector.load %arg2[%c0_1, %c0_2] : memref<16x32xbf16, #tpu.memory_space<vmem>>, vector<16x32xbf16>
    %cst = arith.constant dense<0.000000e+00> : vector<1024x32xf32>
    %7 = tpu.matmul %1, %6, %cst {dimension_numbers = #tpu.dot_dimension_numbers<[1], [0], [0], [1], [0, 0, 1, 1], [], []>} : vector<1024x16xbf16>, vector<16x32xbf16>, vector<1024x32xf32> -> vector<1024x32xf32>
    %c0_3 = arith.constant 0 : index
    %c0_4 = arith.constant 0 : index
    %8 = vector.load %arg5[%c0_3, %c0_4] : memref<6x32xf32, #tpu.memory_space<vmem>>, vector<1x32xf32>
    %9 = vector.broadcast %8 : vector<1x32xf32> to vector<1024x32xf32>
    %10 = arith.addf %7, %9 : vector<1024x32xf32>
    %cst_5 = arith.constant 0.000000e+00 : f32
    %11 = vector.broadcast %cst_5 : f32 to vector<1024x32xf32>
    %12 = arith.maximumf %10, %11 : vector<1024x32xf32>
    %13 = arith.truncf %12 : vector<1024x32xf32> to vector<1024x32xbf16>
    %c0_6 = arith.constant 0 : index
    %c0_7 = arith.constant 0 : index
    %14 = vector.load %arg3[%c0_6, %c0_7] : memref<32x16xbf16, #tpu.memory_space<vmem>>, vector<32x16xbf16>
    %cst_8 = arith.constant dense<0.000000e+00> : vector<1024x16xf32>
    %15 = tpu.matmul %13, %14, %cst_8 {dimension_numbers = #tpu.dot_dimension_numbers<[1], [0], [0], [1], [0, 0, 1, 1], [], []>} : vector<1024x32xbf16>, vector<32x16xbf16>, vector<1024x16xf32> -> vector<1024x16xf32>
    %c1 = arith.constant 1 : index
    %c0_9 = arith.constant 0 : index
    %16 = vector.load %arg5[%c1, %c0_9] : memref<6x32xf32, #tpu.memory_space<vmem>>, vector<1x16xf32>
    %17 = vector.broadcast %16 : vector<1x16xf32> to vector<1024x16xf32>
    %18 = arith.addf %15, %17 : vector<1024x16xf32>
    %cst_10 = arith.constant 0.000000e+00 : f32
    %19 = vector.broadcast %cst_10 : f32 to vector<1024x16xf32>
    %20 = arith.maximumf %18, %19 : vector<1024x16xf32>
    %21 = arith.truncf %20 : vector<1024x16xf32> to vector<1024x16xbf16>
    %c0_11 = arith.constant 0 : index
    %c0_12 = arith.constant 0 : index
    %22 = vector.load %arg4[%c0_11, %c0_12] : memref<16x8xbf16, #tpu.memory_space<vmem>>, vector<16x8xbf16>
    %cst_13 = arith.constant dense<0.000000e+00> : vector<1024x8xf32>
    %23 = tpu.matmul %21, %22, %cst_13 {dimension_numbers = #tpu.dot_dimension_numbers<[1], [0], [0], [1], [0, 0, 1, 1], [], []>} : vector<1024x16xbf16>, vector<16x8xbf16>, vector<1024x8xf32> -> vector<1024x8xf32>
    %c2 = arith.constant 2 : index
    %c0_14 = arith.constant 0 : index
    %24 = vector.load %arg5[%c2, %c0_14] : memref<6x32xf32, #tpu.memory_space<vmem>>, vector<1x8xf32>
    %25 = vector.broadcast %24 : vector<1x8xf32> to vector<1024x8xf32>
    %26 = arith.addf %23, %25 : vector<1024x8xf32>
    %cst_15 = arith.constant 0.000000e+00 : f32
    %27 = vector.broadcast %cst_15 : f32 to vector<1024x8xf32>
    %28 = arith.maximumf %26, %27 : vector<1024x8xf32>
    %29 = arith.mulf %3, %5 : vector<1024x8xf32>
    %c3 = arith.constant 3 : index
    %c0_16 = arith.constant 0 : index
    %30 = vector.load %arg5[%c3, %c0_16] : memref<6x32xf32, #tpu.memory_space<vmem>>, vector<1x8xf32>
    %c4 = arith.constant 4 : index
    %c0_17 = arith.constant 0 : index
    %31 = vector.load %arg5[%c4, %c0_17] : memref<6x32xf32, #tpu.memory_space<vmem>>, vector<1x8xf32>
    %c5 = arith.constant 5 : index
    %c0_18 = arith.constant 0 : index
    %32 = vector.load %arg5[%c5, %c0_18] : memref<6x32xf32, #tpu.memory_space<vmem>>, vector<1x1xf32>
    %33 = vector.broadcast %30 : vector<1x8xf32> to vector<1024x8xf32>
    %34 = arith.mulf %28, %33 : vector<1024x8xf32>
    %cst_19 = arith.constant dense<0.000000e+00> : vector<1024xf32>
    %35 = vector.multi_reduction <add>, %34, %cst_19 [1] : vector<1024x8xf32> to vector<1024xf32>
    %36 = vector.shape_cast %35 : vector<1024xf32> to vector<1024x1xf32>
    %37 = vector.broadcast %31 : vector<1x8xf32> to vector<1024x8xf32>
    %38 = arith.mulf %29, %37 : vector<1024x8xf32>
    %cst_20 = arith.constant dense<0.000000e+00> : vector<1024xf32>
    %39 = vector.multi_reduction <add>, %38, %cst_20 [1] : vector<1024x8xf32> to vector<1024xf32>
    %40 = vector.shape_cast %39 : vector<1024xf32> to vector<1024x1xf32>
    %41 = arith.addf %36, %40 : vector<1024x1xf32>
    %42 = vector.broadcast %32 : vector<1x1xf32> to vector<1024x1xf32>
    %43 = arith.addf %41, %42 : vector<1024x1xf32>
    %44 = arith.negf %43 : vector<1024x1xf32>
    %45 = math.exp %44 : vector<1024x1xf32>
    %cst_21 = arith.constant 1.000000e+00 : f32
    %46 = vector.broadcast %cst_21 : f32 to vector<1024x1xf32>
    %47 = arith.addf %46, %45 : vector<1024x1xf32>
    %48 = arith.divf %46, %47 : vector<1024x1xf32>
    %49 = vector.shape_cast %48 : vector<1024x1xf32> to vector<8x128xf32>
    %c0_22 = arith.constant 0 : index
    %c0_23 = arith.constant 0 : index
    %50 = vector.load %arg6[%c0_22, %c0_23] : memref<8x128xf32, #tpu.memory_space<vmem>>, vector<8x128xf32>
    tpu.vector_store %arg6[%c0_22, %c0_23], %49 {strides = array<i32>} : memref<8x128xf32, #tpu.memory_space<vmem>>, vector<8x128xf32>,
    return
  }
  func.func @transform_0(%arg0: i32) -> (i32, i32) {
    %c0_i32 = arith.constant 0 : i32
    %c0_i32_0 = arith.constant 0 : i32
    return %arg0, %c0_i32 : i32, i32
  }
  func.func @transform_1(%arg0: i32) -> (i32, i32) {
    %c0_i32 = arith.constant 0 : i32
    %c0_i32_0 = arith.constant 0 : i32
    %c0_i32_1 = arith.constant 0 : i32
    return %c0_i32, %c0_i32_0 : i32, i32
  }
  func.func @transform_2(%arg0: i32) -> (i32, i32) {
    %c0_i32 = arith.constant 0 : i32
    %c0_i32_0 = arith.constant 0 : i32
    %c0_i32_1 = arith.constant 0 : i32
    return %c0_i32, %c0_i32_0 : i32, i32
  }
  func.func @transform_3(%arg0: i32) -> (i32, i32) {
    %c0_i32 = arith.constant 0 : i32
    %c0_i32_0 = arith.constant 0 : i32
    %c0_i32_1 = arith.constant 0 : i32
    return %c0_i32, %c0_i32_0 : i32, i32
  }
  func.func @transform_4(%arg0: i32) -> (i32, i32) {
    %c0_i32 = arith.constant 0 : i32
    %c0_i32_0 = arith.constant 0 : i32
    %c0_i32_1 = arith.constant 0 : i32
    return %c0_i32, %c0_i32_0 : i32, i32
  }
  func.func @transform_5(%arg0: i32) -> (i32, i32) {
    %c0_i32 = arith.constant 0 : i32
    %c0_i32_0 = arith.constant 0 : i32
    return %arg0, %c0_i32 : i32, i32
  }
}

</mosaic_0001>

<llo_original>
// kernel: neumf_forward.1
$region0: #{neumf_forward.1}
  #allocation0 [shape = 'u32[]', space=smem, size = 0x4, offset = 0x4, fixed_abs, tag = 'smem constant byte address 0x4 - core index']
  #allocation1 [shape = 'u32[144,128]{1,0:T(1,128)}', space=vmem, size = 0x12000, scoped, tag = 'internal scratch']
  %s0 = inlined_call_operand.vmem [shape: bf16[3072,32], index: 0, kind: input, shape index: {}]
  %s1 = inlined_call_operand.vmem [shape: bf16[16,32], index: 1, kind: input, shape index: {}]
  %s2 = inlined_call_operand.vmem [shape: bf16[32,16], index: 2, kind: input, shape index: {}]
  %s3 = inlined_call_operand.vmem [shape: bf16[16,8], index: 3, kind: input, shape index: {}]
  %s4 = inlined_call_operand.vmem [shape: f32[6,32], index: 4, kind: input, shape index: {}]
  %s5 = inlined_call_operand.vmem [shape: f32[24,128], index: 5, kind: output, shape index: {}]
  %s6 = sld [smem:[#allocation0]]
  $region53: #{neumf_forward.1} parent=0
    _
  %s8 = ssub.s32 1, %s6
  %s9 = scalar_select 0, %s8, %s6
  loop: start=0, step=1, limit=5
  $region2: #{neumf_forward.1} parent=0 // loop_pre_header
    _
  $region3: #{neumf_forward.1} parent=0 // loop_header
    %s11 = sphi 0, %s15
    %p12 = scmp.ge.s32.totalorder %s11, 5
    %s21 = sphi 0, %s23
    %s24 = sphi 0, %s21
    %s25 = sphi 0, %s24
    %s41 = sphi 0, %s25
    %s45 = sphi 0, %s45
    %s47 = sphi 0, %s45
    %s48 = sphi 0, %s47
    %s62 = sphi 0, %s48
    %s66 = sphi 0, %s66
    %s68 = sphi 0, %s66
    %s69 = sphi 0, %s68
    %s83 = sphi 0, %s69
    %s87 = sphi 0, %s87
    %s89 = sphi 0, %s87
    %s90 = sphi 0, %s89
    %s104 = sphi 0, %s90
    %s108 = sphi 0, %s108
    %s110 = sphi 0, %s108
    %s111 = sphi 0, %s110
    %s125 = sphi 0, %s111
    %s131 = sphi 0, %s133
    %s134 = sphi 0, %s131
    %s135 = sphi 0, %s134
    %s151 = sphi 0, %s135
  $region4: #{neumf_forward.1} parent=0 // loop_header_branch
    %14 = sbr.rel (%p12) target = $region8
  $region5: #{neumf_forward.1} parent=0 // loop_body
    %s16 = ssub.s32 %s11, 1
    %s17 = ssub.s32 %s11, 2
    %s18 = sadd.s32 %s11, 1
    %s19 = ssub.s32 %s11, %s18
    %p20 = scmp.eq.s32.totalorder %s19, 0
    %s22 = sadd.s32 %s21, 1
    %s23 = scalar_select %p20, %s21, %s22
    %p26 = pneg %p20
    %p27 = scmp.eq.s32.totalorder %s11, 2
    %p28 = por %p26, %p27
    %p29 = scmp.ne.s32.totalorder %s21, %s24
    %p30 = scmp.eq.s32.totalorder %s11, 0
    %p31 = por %p29, %p30
    %p32 = scmp.ne.s32.totalorder %s21, %s24
    %p33 = scmp.eq.s32.totalorder %s16, 2
    %p34 = por %p32, %p33
    %p35 = scmp.ne.s32.totalorder %s24, %s25
    %p36 = scmp.eq.s32.totalorder %s16, 0
    %p37 = por %p35, %p36
    %p38 = scmp.ne.s32.totalorder %s24, %s25
    %p39 = scmp.eq.s32.totalorder %s17, 2
    %p40 = por %p38, %p39
    %p42 = scmp.ne.s32.totalorder %s25, %s41
    %p43 = scmp.eq.s32.totalorder %s17, 0
    %p44 = por %p42, %p43
    %s46 = sadd.s32 %s45, 1
    %p49 = scmp.eq.s32.totalorder %s11, 2
    %p50 = scmp.ne.s32.totalorder %s45, %s47
    %p51 = scmp.eq.s32.totalorder %s11, 0
    %p52 = por %p50, %p51
    %p53 = scmp.ne.s32.totalorder %s45, %s47
    %p54 = scmp.eq.s32.totalorder %s16, 2
    %p55 = por %p53, %p54
    %p56 = scmp.ne.s32.totalorder %s47, %s48
    %p57 = scmp.eq.s32.totalorder %s16, 0
    %p58 = por %p56, %p57
    %p59 = scmp.ne.s32.totalorder %s47, %s48
    %p60 = scmp.eq.s32.totalorder %s17, 2
    %p61 = por %p59, %p60
    %p63 = scmp.ne.s32.totalorder %s48, %s62
    %p64 = scmp.eq.s32.totalorder %s17, 0
    %p65 = por %p63, %p64
    %s67 = sadd.s32 %s66, 1
    %p70 = scmp.eq.s32.totalorder %s11, 2
    %p71 = scmp.ne.s32.totalorder %s66, %s68
    %p72 = scmp.eq.s32.totalorder %s11, 0
    %p73 = por %p71, %p72
    %p74 = scmp.ne.s32.totalorder %s66, %s68
    %p75 = scmp.eq.s32.totalorder %s16, 2
    %p76 = por %p74, %p75
    %p77 = scmp.ne.s32.totalorder %s68, %s69
    %p78 = scmp.eq.s32.totalorder %s16, 0
    %p79 = por %p77, %p78
    %p80 = scmp.ne.s32.totalorder %s68, %s69
    %p81 = scmp.eq.s32.totalorder %s17, 2
    %p82 = por %p80, %p81
    %p84 = scmp.ne.s32.totalorder %s69, %s83
    %p85 = scmp.eq.s32.totalorder %s17, 0
    %p86 = por %p84, %p85
    %s88 = sadd.s32 %s87, 1
    %p91 = scmp.eq.s32.totalorder %s11, 2
    %p92 = scmp.ne.s32.totalorder %s87, %s89
    %p93 = scmp.eq.s32.totalorder %s11, 0
    %p94 = por %p92, %p93
    %p95 = scmp.ne.s32.totalorder %s87, %s89
    %p96 = scmp.eq.s32.totalorder %s16, 2
    %p97 = por %p95, %p96
    %p98 = scmp.ne.s32.totalorder %s89, %s90
    %p99 = scmp.eq.s32.totalorder %s16, 0
    %p100 = por %p98, %p99
    %p101 = scmp.ne.s32.totalorder %s89, %s90
    %p102 = scmp.eq.s32.totalorder %s17, 2
    %p103 = por %p101, %p102
    %p105 = scmp.ne.s32.totalorder %s90, %s104
    %p106 = scmp.eq.s32.totalorder %s17, 0
    %p107 = por %p105, %p106
    %s109 = sadd.s32 %s108, 1
    %p112 = scmp.eq.s32.totalorder %s11, 2
    %p113 = scmp.ne.s32.totalorder %s108, %s110
    %p114 = scmp.eq.s32.totalorder %s11, 0
    %p115 = por %p113, %p114
    %p116 = scmp.ne.s32.totalorder %s108, %s110
    %p117 = scmp.eq.s32.totalorder %s16, 2
    %p118 = por %p116, %p117
    %p119 = scmp.ne.s32.totalorder %s110, %s111
    %p120 = scmp.eq.s32.totalorder %s16, 0
    %p121 = por %p119, %p120
    %p122 = scmp.ne.s32.totalorder %s110, %s111
    %p123 = scmp.eq.s32.totalorder %s17, 2
    %p124 = por %p122, %p123
    %p126 = scmp.ne.s32.totalorder %s111, %s125
    %p127 = scmp.eq.s32.totalorder %s17, 0
    %p128 = por %p126, %p127
    %s129 = ssub.s32 %s11, %s18
    %p130 = scmp.eq.s32.totalorder %s129, 0
    %s132 = sadd.s32 %s131, 1
    %s133 = scalar_select %p130, %s131, %s132
    %p136 = pneg %p130
    %p137 = scmp.eq.s32.totalorder %s11, 2
    %p138 = por %p136, %p137
    %p139 = scmp.ne.s32.totalorder %s131, %s134
    %p140 = scmp.eq.s32.totalorder %s11, 0
    %p141 = por %p139, %p140
    %p142 = scmp.ne.s32.totalorder %s131, %s134
    %p143 = scmp.eq.s32.totalorder %s16, 2
    %p144 = por %p142, %p143
    %p145 = scmp.ne.s32.totalorder %s134, %s135
    %p146 = scmp.eq.s32.totalorder %s16, 0
    %p147 = por %p145, %p146
    %p148 = scmp.ne.s32.totalorder %s134, %s135
    %p149 = scmp.eq.s32.totalorder %s17, 2
    %p150 = por %p148, %p149
    %p152 = scmp.ne.s32.totalorder %s135, %s151
    %p153 = scmp.eq.s32.totalorder %s17, 0
    %p154 = por %p152, %p153
    %p155 = scmp.le.s32.totalorder 1, %s11
    %p156 = scmp.lt.s32.totalorder %s11, 4
    %p157 = pnand %p155, %p156
    %p158 = pneg %p157
    // Predicated region
    $region9: #{neumf_forward.1} parent=5 // pred_check
      _
    $region10: #{neumf_forward.1} parent=5 // pred_check_branch
      %160 = sbr.rel (%p157) target = $region12
    $region11: #{neumf_forward.1} parent=5 // pred_region
      %s161 = ssub.s32 %s11, 1
      // Predicated region
      $region13: #{neumf_forward.1} parent=11 // pred_check
        %p162 = pneg %p58
      $region14: #{neumf_forward.1} parent=11 // pred_check_branch
        %164 = sbr.rel (%p162) target = $region16
      $region15: #{neumf_forward.1} parent=11 // pred_region
        _
      $region16: #{neumf_forward.1} parent=11 // pred_fallthru
        _
      // Predicated region
      $region17: #{neumf_forward.1} parent=11 // pred_check
        %p165 = pneg %p79
      $region18: #{neumf_forward.1} parent=11 // pred_check_branch
        %167 = sbr.rel (%p165) target = $region20
      $region19: #{neumf_forward.1} parent=11 // pred_region
        _
      $region20: #{neumf_forward.1} parent=11 // pred_fallthru
        _
      // Predicated region
      $region21: #{neumf_forward.1} parent=11 // pred_check
        %p168 = pneg %p100
      $region22: #{neumf_forward.1} parent=11 // pred_check_branch
        %170 = sbr.rel (%p168) target = $region24
      $region23: #{neumf_forward.1} parent=11 // pred_region
        _
      $region24: #{neumf_forward.1} parent=11 // pred_fallthru
        _
      // Predicated region
      $region25: #{neumf_forward.1} parent=11 // pred_check
        %p171 = pneg %p121
      $region26: #{neumf_forward.1} parent=11 // pred_check_branch
        %173 = sbr.rel (%p171) target = $region28
      $region27: #{neumf_forward.1} parent=11 // pred_region
        _
      $region28: #{neumf_forward.1} parent=11 // pred_fallthru
        _
    $region12: #{neumf_forward.1} parent=5 // pred_fallthru
      _
    %p174 = scmp.lt.s32.totalorder %s11, 3
    // Predicated region
    $region29: #{neumf_forward.1} parent=5 // pred_check
      %p175 = pneg %p174
    $region30: #{neumf_forward.1} parent=5 // pred_check_branch
      %177 = sbr.rel (%p175) target = $region32
    $region31: #{neumf_forward.1} parent=5 // pred_region
      // Predicated region
      $region33: #{neumf_forward.1} parent=31 // pred_check
        %p178 = pneg %p31
      $region34: #{neumf_forward.1} parent=31 // pred_check_branch
        %180 = sbr.rel (%p178) target = $region36
      $region35: #{neumf_forward.1} parent=31 // pred_region
        %s181 = smul.u32 128, %s11
        %p182 = scmp.lt.s32.totalorder %s181, 383
        %s183 = scalar_select %p182, %s181, 383
        %s184 = smul.addr %s183, 4
        %s185 = scalar_lea.vmem %s0, %s184
        %s186 = smul.u32 128, %s11
      $region36: #{neumf_forward.1} parent=31 // pred_fallthru
        _
    $region32: #{neumf_forward.1} parent=5 // pred_fallthru
      _
    %p187 = scmp.le.s32.totalorder 1, %s11
    %p188 = scmp.lt.s32.totalorder %s11, 4
    %p189 = pnand %p187, %p188
    %p190 = pneg %p189
    // Predicated region
    $region37: #{neumf_forward.1} parent=5 // pred_check
      _
    $region38: #{neumf_forward.1} parent=5 // pred_check_branch
      %192 = sbr.rel (%p189) target = $region40
    $region39: #{neumf_forward.1} parent=5 // pred_region
      %s193 = ssub.s32 %s11, 1
      %s194 = smul.u32 128, %s16
      %p195 = scmp.lt.s32.totalorder %s194, 383
      %s196 = scalar_select %p195, %s194, 383
      %s197 = smul.addr %s196, 4
      %s198 = scalar_lea.vmem %s0, %s197
      %p199 = pneg %p37
      %p200 = pneg %p34
      %p201 = pneg %p58
      %p202 = pneg %p55
      %p203 = pneg %p79
      %p204 = pneg %p76
      %p205 = pneg %p100
      %p206 = pneg %p97
      %p207 = pneg %p121
      %p208 = pneg %p118
      %p209 = pneg %p147
      %p210 = pneg %p144
      %p211 = scmp.lt.s32.totalorder %s16, 2
      %s212 = scalar_select %p211, %s16, 2
      %s213 = smul.addr %s212, 8
      %s214 = scalar_lea.vmem %s5, %s213
      %s215 = smul.u32 128, %s16
      %p216 = scmp.lt.s32.totalorder %s215, 383
      %s217 = scalar_select %p216, %s215, 383
      %s218 = smul.addr %s217, 4
      %s219 = scalar_lea.vmem %s0, %s218
      %s220 = smul.u32 128, %s16
      %p221 = scmp.lt.s32.totalorder %s16, 2
      %s222 = scalar_select %p221, %s16, 2
      %s223 = smul.addr %s222, 8
      %s224 = scalar_lea.vmem %s5, %s223
      %v226 = vld [vmem:[%s219] sm:$0xf]
      %v227 = vld [vmem:[%s219 + $0x4] sm:$0xf]
      %v228 = vld [vmem:[%s219 + $0x8] sm:$0xf]
      %v229 = vld [vmem:[%s219 + $0xc] sm:$0xf]
      %v230 = vld [vmem:[%s219 + $0x10] sm:$0xf]
      %v231 = vld [vmem:[%s219 + $0x14] sm:$0xf]
      %v232 = vld [vmem:[%s219 + $0x18] sm:$0xf]
      %v233 = vld [vmem:[%s219 + $0x1c] sm:$0xf]
      %v234 = vld [vmem:[%s219 + $0x20] sm:$0xf]
      %v235 = vld [vmem:[%s219 + $0x24] sm:$0xf]
      %v236 = vld [vmem:[%s219 + $0x28] sm:$0xf]
      %v237 = vld [vmem:[%s219 + $0x2c] sm:$0xf]
      %v238 = vld [vmem:[%s219 + $0x30] sm:$0xf]
      %v239 = vld [vmem:[%s219 + $0x34] sm:$0xf]
      %v240 = vld [vmem:[%s219 + $0x38] sm:$0xf]
      %v241 = vld [vmem:[%s219 + $0x3c] sm:$0xf]
      %v242 = vld [vmem:[%s219 + $0x40] sm:$0xf]
      %v243 = vld [vmem:[%s219 + $0x44] sm:$0xf]
      %v244 = vld [vmem:[%s219 + $0x48] sm:$0xf]
      %v245 = vld [vmem:[%s219 + $0x4c] sm:$0xf]
      %v246 = vld [vmem:[%s219 + $0x50] sm:$0xf]
      %v247 = vld [vmem:[%s219 + $0x54] sm:$0xf]
      %v248 = vld [vmem:[%s219 + $0x58] sm:$0xf]
      %v249 = vld [vmem:[%s219 + $0x5c] sm:$0xf]
      %v250 = vld [vmem:[%s219 + $0x60] sm:$0xf]
      %v251 = vld [vmem:[%s219 + $0x64] sm:$0xf]
      %v252 = vld [vmem:[%s219 + $0x68] sm:$0xf]
      %v253 = vld [vmem:[%s219 + $0x6c] sm:$0xf]
      %v254 = vld [vmem:[%s219 + $0x70] sm:$0xf]
      %v255 = vld [vmem:[%s219 + $0x74] sm:$0xf]
      %v256 = vld [vmem:[%s219 + $0x78] sm:$0xf]
      %v257 = vld [vmem:[%s219 + $0x7c] sm:$0xf]
      %v258 = vld [vmem:[%s219 + $0x80] sm:$0xf]
      %v259 = vld [vmem:[%s219 + $0x84] sm:$0xf]
      %v260 = vld [vmem:[%s219 + $0x88] sm:$0xf]
      %v261 = vld [vmem:[%s219 + $0x8c] sm:$0xf]
      %v262 = vld [vmem:[%s219 + $0x90] sm:$0xf]
      %v263 = vld [vmem:[%s219 + $0x94] sm:$0xf]
      %v264 = vld [vmem:[%s219 + $0x98] sm:$0xf]
      %v265 = vld [vmem:[%s219 + $0x9c] sm:$0xf]
      %v266 = vld [vmem:[%s219 + $0xa0] sm:$0xf]
      %v267 = vld [vmem:[%s219 + $0xa4] sm:$0xf]
      %v268 = vld [vmem:[%s219 + $0xa8] sm:$0xf]
      %v269 = vld [vmem:[%s219 + $0xac] sm:$0xf]
      %v270 = vld [vmem:[%s219 + $0xb0] sm:$0xf]
      %v271 = vld [vmem:[%s219 + $0xb4] sm:$0xf]
      %v272 = vld [vmem:[%s219 + $0xb8] sm:$0xf]
      %v273 = vld [vmem:[%s219 + $0xbc] sm:$0xf]
      %v274 = vld [vmem:[%s219 + $0xc0] sm:$0xf]
      %v275 = vld [vmem:[%s219 + $0xc4] sm:$0xf]
      %v276 = vld [vmem:[%s219 + $0xc8] sm:$0xf]
      %v277 = vld [vmem:[%s219 + $0xcc] sm:$0xf]
      %v278 = vld [vmem:[%s219 + $0xd0] sm:$0xf]
      %v279 = vld [vmem:[%s219 + $0xd4] sm:$0xf]
      %v280 = vld [vmem:[%s219 + $0xd8] sm:$0xf]
      %v281 = vld [vmem:[%s219 + $0xdc] sm:$0xf]
      %v282 = vld [vmem:[%s219 + $0xe0] sm:$0xf]
      %v283 = vld [vmem:[%s219 + $0xe4] sm:$0xf]
      %v284 = vld [vmem:[%s219 + $0xe8] sm:$0xf]
      %v285 = vld [vmem:[%s219 + $0xec] sm:$0xf]
      %v286 = vld [vmem:[%s219 + $0xf0] sm:$0xf]
      %v287 = vld [vmem:[%s219 + $0xf4] sm:$0xf]
      %v288 = vld [vmem:[%s219 + $0xf8] sm:$0xf]
      %v289 = vld [vmem:[%s219 + $0xfc] sm:$0xf]
      %v290 = vld [vmem:[%s219 + $0x100] sm:$0xf]
      %v291 = vld [vmem:[%s219 + $0x104] sm:$0xf]
      %v292 = vld [vmem:[%s219 + $0x108] sm:$0xf]
      %v293 = vld [vmem:[%s219 + $0x10c] sm:$0xf]
      %v294 = vld [vmem:[%s219 + $0x110] sm:$0xf]
      %v295 = vld [vmem:[%s219 + $0x114] sm:$0xf]
      %v296 = vld [vmem:[%s219 + $0x118] sm:$0xf]
      %v297 = vld [vmem:[%s219 + $0x11c] sm:$0xf]
      %v298 = vld [vmem:[%s219 + $0x120] sm:$0xf]
      %v299 = vld [vmem:[%s219 + $0x124] sm:$0xf]
      %v300 = vld [vmem:[%s219 + $0x128] sm:$0xf]
      %v301 = vld [vmem:[%s219 + $0x12c] sm:$0xf]
      %v302 = vld [vmem:[%s219 + $0x130] sm:$0xf]
      %v303 = vld [vmem:[%s219 + $0x134] sm:$0xf]
      %v304 = vld [vmem:[%s219 + $0x138] sm:$0xf]
      %v305 = vld [vmem:[%s219 + $0x13c] sm:$0xf]
      %v306 = vld [vmem:[%s219 + $0x140] sm:$0xf]
      %v307 = vld [vmem:[%s219 + $0x144] sm:$0xf]
      %v308 = vld [vmem:[%s219 + $0x148] sm:$0xf]
      %v309 = vld [vmem:[%s219 + $0x14c] sm:$0xf]
      %v310 = vld [vmem:[%s219 + $0x150] sm:$0xf]
      %v311 = vld [vmem:[%s219 + $0x154] sm:$0xf]
      %v312 = vld [vmem:[%s219 + $0x158] sm:$0xf]
      %v313 = vld [vmem:[%s219 + $0x15c] sm:$0xf]
      %v314 = vld [vmem:[%s219 + $0x160] sm:$0xf]
      %v315 = vld [vmem:[%s219 + $0x164] sm:$0xf]
      %v316 = vld [vmem:[%s219 + $0x168] sm:$0xf]
      %v317 = vld [vmem:[%s219 + $0x16c] sm:$0xf]
      %v318 = vld [vmem:[%s219 + $0x170] sm:$0xf]
      %v319 = vld [vmem:[%s219 + $0x174] sm:$0xf]
      %v320 = vld [vmem:[%s219 + $0x178] sm:$0xf]
      %v321 = vld [vmem:[%s219 + $0x17c] sm:$0xf]
      %v322 = vld [vmem:[%s219 + $0x180] sm:$0xf]
      %v323 = vld [vmem:[%s219 + $0x184] sm:$0xf]
      %v324 = vld [vmem:[%s219 + $0x188] sm:$0xf]
      %v325 = vld [vmem:[%s219 + $0x18c] sm:$0xf]
      %v326 = vld [vmem:[%s219 + $0x190] sm:$0xf]
      %v327 = vld [vmem:[%s219 + $0x194] sm:$0xf]
      %v328 = vld [vmem:[%s219 + $0x198] sm:$0xf]
      %v329 = vld [vmem:[%s219 + $0x19c] sm:$0xf]
      %v330 = vld [vmem:[%s219 + $0x1a0] sm:$0xf]
      %v331 = vld [vmem:[%s219 + $0x1a4] sm:$0xf]
      %v332 = vld [vmem:[%s219 + $0x1a8] sm:$0xf]
      %v333 = vld [vmem:[%s219 + $0x1ac] sm:$0xf]
      %v334 = vld [vmem:[%s219 + $0x1b0] sm:$0xf]
      %v335 = vld [vmem:[%s219 + $0x1b4] sm:$0xf]
      %v336 = vld [vmem:[%s219 + $0x1b8] sm:$0xf]
      %v337 = vld [vmem:[%s219 + $0x1bc] sm:$0xf]
      %v338 = vld [vmem:[%s219 + $0x1c0] sm:$0xf]
      %v339 = vld [vmem:[%s219 + $0x1c4] sm:$0xf]
      %v340 = vld [vmem:[%s219 + $0x1c8] sm:$0xf]
      %v341 = vld [vmem:[%s219 + $0x1cc] sm:$0xf]
      %v342 = vld [vmem:[%s219 + $0x1d0] sm:$0xf]
      %v343 = vld [vmem:[%s219 + $0x1d4] sm:$0xf]
      %v344 = vld [vmem:[%s219 + $0x1d8] sm:$0xf]
      %v345 = vld [vmem:[%s219 + $0x1dc] sm:$0xf]
      %v346 = vld [vmem:[%s219 + $0x1e0] sm:$0xf]
      %v347 = vld [vmem:[%s219 + $0x1e4] sm:$0xf]
      %v348 = vld [vmem:[%s219 + $0x1e8] sm:$0xf]
      %v349 = vld [vmem:[%s219 + $0x1ec] sm:$0xf]
      %v350 = vld [vmem:[%s219 + $0x1f0] sm:$0xf]
      %v351 = vld [vmem:[%s219 + $0x1f4] sm:$0xf]
      %v352 = vld [vmem:[%s219 + $0x1f8] sm:$0xf]
      %v353 = vld [vmem:[%s219 + $0x1fc] sm:$0xf]
      %v354 = vunpack.c.l.bf16 %v226
      %v355 = vunpack.c.l.bf16 %v227
      %v356 = vunpack.c.l.bf16 %v228
      %v357 = vunpack.c.l.bf16 %v229
      %v358 = vunpack.c.l.bf16 %v230
      %v359 = vunpack.c.l.bf16 %v231
      %v360 = vunpack.c.l.bf16 %v232
      %v361 = vunpack.c.l.bf16 %v233
      %v362 = vunpack.c.l.bf16 %v234
      %v363 = vunpack.c.l.bf16 %v235
      %v364 = vunpack.c.l.bf16 %v236
      %v365 = vunpack.c.l.bf16 %v237
      %v366 = vunpack.c.l.bf16 %v238
      %v367 = vunpack.c.l.bf16 %v239
      %v368 = vunpack.c.l.bf16 %v240
      %v369 = vunpack.c.l.bf16 %v241
      %v370 = vunpack.c.l.bf16 %v242
      %v371 = vunpack.c.l.bf16 %v243
      %v372 = vunpack.c.l.bf16 %v244
      %v373 = vunpack.c.l.bf16 %v245
      %v374 = vunpack.c.l.bf16 %v246
      %v375 = vunpack.c.l.bf16 %v247
      %v376 = vunpack.c.l.bf16 %v248
      %v377 = vunpack.c.l.bf16 %v249
      %v378 = vunpack.c.l.bf16 %v250
      %v379 = vunpack.c.l.bf16 %v251
      %v380 = vunpack.c.l.bf16 %v252
      %v381 = vunpack.c.l.bf16 %v253
      %v382 = vunpack.c.l.bf16 %v254
      %v383 = vunpack.c.l.bf16 %v255
      %v384 = vunpack.c.l.bf16 %v256
      %v385 = vunpack.c.l.bf16 %v257
      %v386 = vunpack.c.l.bf16 %v258
      %v387 = vunpack.c.l.bf16 %v259
      %v388 = vunpack.c.l.bf16 %v260
      %v389 = vunpack.c.l.bf16 %v261
      %v390 = vunpack.c.l.bf16 %v262
      %v391 = vunpack.c.l.bf16 %v263
      %v392 = vunpack.c.l.bf16 %v264
      %v393 = vunpack.c.l.bf16 %v265
      %v394 = vunpack.c.l.bf16 %v266
      %v395 = vunpack.c.l.bf16 %v267
      %v396 = vunpack.c.l.bf16 %v268
      %v397 = vunpack.c.l.bf16 %v269
      %v398 = vunpack.c.l.bf16 %v270
      %v399 = vunpack.c.l.bf16 %v271
      %v400 = vunpack.c.l.bf16 %v272
      %v401 = vunpack.c.l.bf16 %v273
      %v402 = vunpack.c.l.bf16 %v274
      %v403 = vunpack.c.l.bf16 %v275
      %v404 = vunpack.c.l.bf16 %v276
      %v405 = vunpack.c.l.bf16 %v277
      %v406 = vunpack.c.l.bf16 %v278
      %v407 = vunpack.c.l.bf16 %v279
      %v408 = vunpack.c.l.bf16 %v280
      %v409 = vunpack.c.l.bf16 %v281
      %v410 = vunpack.c.l.bf16 %v282
      %v411 = vunpack.c.l.bf16 %v283
      %v412 = vunpack.c.l.bf16 %v284
      %v413 = vunpack.c.l.bf16 %v285
      %v414 = vunpack.c.l.bf16 %v286
      %v415 = vunpack.c.l.bf16 %v287
      %v416 = vunpack.c.l.bf16 %v288
      %v417 = vunpack.c.l.bf16 %v289
      %v418 = vunpack.c.l.bf16 %v290
      %v419 = vunpack.c.l.bf16 %v291
      %v420 = vunpack.c.l.bf16 %v292
      %v421 = vunpack.c.l.bf16 %v293
      %v422 = vunpack.c.l.bf16 %v294
      %v423 = vunpack.c.l.bf16 %v295
      %v424 = vunpack.c.l.bf16 %v296
      %v425 = vunpack.c.l.bf16 %v297
      %v426 = vunpack.c.l.bf16 %v298
      %v427 = vunpack.c.l.bf16 %v299
      %v428 = vunpack.c.l.bf16 %v300
      %v429 = vunpack.c.l.bf16 %v301
      %v430 = vunpack.c.l.bf16 %v302
      %v431 = vunpack.c.l.bf16 %v303
      %v432 = vunpack.c.l.bf16 %v304
      %v433 = vunpack.c.l.bf16 %v305
      %v434 = vunpack.c.l.bf16 %v306
      %v435 = vunpack.c.l.bf16 %v307
      %v436 = vunpack.c.l.bf16 %v308
      %v437 = vunpack.c.l.bf16 %v309
      %v438 = vunpack.c.l.bf16 %v310
      %v439 = vunpack.c.l.bf16 %v311
      %v440 = vunpack.c.l.bf16 %v312
      %v441 = vunpack.c.l.bf16 %v313
      %v442 = vunpack.c.l.bf16 %v314
      %v443 = vunpack.c.l.bf16 %v315
      %v444 = vunpack.c.l.bf16 %v316
      %v445 = vunpack.c.l.bf16 %v317
      %v446 = vunpack.c.l.bf16 %v318
      %v447 = vunpack.c.l.bf16 %v319
      %v448 = vunpack.c.l.bf16 %v320
      %v449 = vunpack.c.l.bf16 %v321
      %v450 = vunpack.c.l.bf16 %v322
      %v451 = vunpack.c.l.bf16 %v323
      %v452 = vunpack.c.l.bf16 %v324
      %v453 = vunpack.c.l.bf16 %v325
      %v454 = vunpack.c.l.bf16 %v326
      %v455 = vunpack.c.l.bf16 %v327
      %v456 = vunpack.c.l.bf16 %v328
      %v457 = vunpack.c.l.bf16 %v329
      %v458 = vunpack.c.l.bf16 %v330
      %v459 = vunpack.c.l.bf16 %v331
      %v460 = vunpack.c.l.bf16 %v332
      %v461 = vunpack.c.l.bf16 %v333
      %v462 = vunpack.c.l.bf16 %v334
      %v463 = vunpack.c.l.bf16 %v335
      %v464 = vunpack.c.l.bf16 %v336
      %v465 = vunpack.c.l.bf16 %v337
      %v466 = vunpack.c.l.bf16 %v338
      %v467 = vunpack.c.l.bf16 %v339
      %v468 = vunpack.c.l.bf16 %v340
      %v469 = vunpack.c.l.bf16 %v341
      %v470 = vunpack.c.l.bf16 %v342
      %v471 = vunpack.c.l.bf16 %v343
      %v472 = vunpack.c.l.bf16 %v344
      %v473 = vunpack.c.l.bf16 %v345
      %v474 = vunpack.c.l.bf16 %v346
      %v475 = vunpack.c.l.bf16 %v347
      %v476 = vunpack.c.l.bf16 %v348
      %v477 = vunpack.c.l.bf16 %v349
      %v478 = vunpack.c.l.bf16 %v350
      %v479 = vunpack.c.l.bf16 %v351
      %v480 = vunpack.c.l.bf16 %v352
      %v481 = vunpack.c.l.bf16 %v353
      %v482 = vld [vmem:[%s1] sm:$0xf]
      %v483 = vld [vmem:[%s1 + $0x4] sm:$0xf]
      %v484 = vld [vmem:[%s4] sm:$0x1]
      %v485 = vlaneseq
      %v486 = vshrl.u32 %v485, 7
      %v487 = vsub.s32 0, %v486
      %v488 = vrot.slane %v484, %v487
      %v617 = vunpack.c.l.b16 %v226
      %v618 = vunpack.c.l.b16 %v227
      %v619 = vunpack.c.l.b16 %v228
      %v620 = vunpack.c.l.b16 %v229
      %v621 = vunpack.c.l.b16 %v230
      %v622 = vunpack.c.l.b16 %v231
      %v623 = vunpack.c.l.b16 %v232
      %v624 = vunpack.c.l.b16 %v233
      %v625 = vunpack.c.l.b16 %v234
      %v626 = vunpack.c.l.b16 %v235
      %v627 = vunpack.c.l.b16 %v236
      %v628 = vunpack.c.l.b16 %v237
      %v629 = vunpack.c.l.b16 %v238
      %v630 = vunpack.c.l.b16 %v239
      %v631 = vunpack.c.l.b16 %v240
      %v632 = vunpack.c.l.b16 %v241
      %v633 = vunpack.c.l.b16 %v242
      %v634 = vunpack.c.l.b16 %v243
      %v635 = vunpack.c.l.b16 %v244
      %v636 = vunpack.c.l.b16 %v245
      %v637 = vunpack.c.l.b16 %v246
      %v638 = vunpack.c.l.b16 %v247
      %v639 = vunpack.c.l.b16 %v248
      %v640 = vunpack.c.l.b16 %v249
      %v641 = vunpack.c.l.b16 %v250
      %v642 = vunpack.c.l.b16 %v251
      %v643 = vunpack.c.l.b16 %v252
      %v644 = vunpack.c.l.b16 %v253
      %v645 = vunpack.c.l.b16 %v254
      %v646 = vunpack.c.l.b16 %v255
      %v647 = vunpack.c.l.b16 %v256
      %v648 = vunpack.c.l.b16 %v257
      %v649 = vunpack.c.l.b16 %v258
      %v650 = vunpack.c.l.b16 %v259
      %v651 = vunpack.c.l.b16 %v260
      %v652 = vunpack.c.l.b16 %v261
      %v653 = vunpack.c.l.b16 %v262
      %v654 = vunpack.c.l.b16 %v263
      %v655 = vunpack.c.l.b16 %v264
      %v656 = vunpack.c.l.b16 %v265
      %v657 = vunpack.c.l.b16 %v266
      %v658 = vunpack.c.l.b16 %v267
      %v659 = vunpack.c.l.b16 %v268
      %v660 = vunpack.c.l.b16 %v269
      %v661 = vunpack.c.l.b16 %v270
      %v662 = vunpack.c.l.b16 %v271
      %v663 = vunpack.c.l.b16 %v272
      %v664 = vunpack.c.l.b16 %v273
      %v665 = vunpack.c.l.b16 %v274
      %v666 = vunpack.c.l.b16 %v275
      %v667 = vunpack.c.l.b16 %v276
      %v668 = vunpack.c.l.b16 %v277
      %v669 = vunpack.c.l.b16 %v278
      %v670 = vunpack.c.l.b16 %v279
      %v671 = vunpack.c.l.b16 %v280
      %v672 = vunpack.c.l.b16 %v281
      %v673 = vunpack.c.l.b16 %v282
      %v674 = vunpack.c.l.b16 %v283
      %v675 = vunpack.c.l.b16 %v284
      %v676 = vunpack.c.l.b16 %v285
      %v677 = vunpack.c.l.b16 %v286
      %v678 = vunpack.c.l.b16 %v287
      %v679 = vunpack.c.l.b16 %v288
      %v680 = vunpack.c.l.b16 %v289
      %v681 = vunpack.c.l.b16 %v290
      %v682 = vunpack.c.l.b16 %v291
      %v683 = vunpack.c.l.b16 %v292
      %v684 = vunpack.c.l.b16 %v293
      %v685 = vunpack.c.l.b16 %v294
      %v686 = vunpack.c.l.b16 %v295
      %v687 = vunpack.c.l.b16 %v296
      %v688 = vunpack.c.l.b16 %v297
      %v689 = vunpack.c.l.b16 %v298
      %v690 = vunpack.c.l.b16 %v299
      %v691 = vunpack.c.l.b16 %v300
      %v692 = vunpack.c.l.b16 %v301
      %v693 = vunpack.c.l.b16 %v302
      %v694 = vunpack.c.l.b16 %v303
      %v695 = vunpack.c.l.b16 %v304
      %v696 = vunpack.c.l.b16 %v305
      %v697 = vunpack.c.l.b16 %v306
      %v698 = vunpack.c.l.b16 %v307
      %v699 = vunpack.c.l.b16 %v308
      %v700 = vunpack.c.l.b16 %v309
      %v701 = vunpack.c.l.b16 %v310
      %v702 = vunpack.c.l.b16 %v311
      %v703 = vunpack.c.l.b16 %v312
      %v704 = vunpack.c.l.b16 %v313
      %v705 = vunpack.c.l.b16 %v314
      %v706 = vunpack.c.l.b16 %v315
      %v707 = vunpack.c.l.b16 %v316
      %v708 = vunpack.c.l.b16 %v317
      %v709 = vunpack.c.l.b16 %v318
      %v710 = vunpack.c.l.b16 %v319
      %v711 = vunpack.c.l.b16 %v320
      %v712 = vunpack.c.l.b16 %v321
      %v713 = vunpack.c.l.b16 %v322
      %v714 = vunpack.c.l.b16 %v323
      %v715 = vunpack.c.l.b16 %v324
      %v716 = vunpack.c.l.b16 %v325
      %v717 = vunpack.c.l.b16 %v326
      %v718 = vunpack.c.l.b16 %v327
      %v719 = vunpack.c.l.b16 %v328
      %v720 = vunpack.c.l.b16 %v329
      %v721 = vunpack.c.l.b16 %v330
      %v722 = vunpack.c.l.b16 %v331
      %v723 = vunpack.c.l.b16 %v332
      %v724 = vunpack.c.l.b16 %v333
      %v725 = vunpack.c.l.b16 %v334
      %v726 = vunpack.c.l.b16 %v335
      %v727 = vunpack.c.l.b16 %v336
      %v728 = vunpack.c.l.b16 %v337
      %v729 = vunpack.c.l.b16 %v338
      %v730 = vunpack.c.l.b16 %v339
      %v731 = vunpack.c.l.b16 %v340
      %v732 = vunpack.c.l.b16 %v341
      %v733 = vunpack.c.l.b16 %v342
      %v734 = vunpack.c.l.b16 %v343
      %v735 = vunpack.c.l.b16 %v344
      %v736 = vunpack.c.l.b16 %v345
      %v737 = vunpack.c.l.b16 %v346
      %v738 = vunpack.c.l.b16 %v347
      %v739 = vunpack.c.l.b16 %v348
      %v740 = vunpack.c.l.b16 %v349
      %v741 = vunpack.c.l.b16 %v350
      %v742 = vunpack.c.l.b16 %v351
      %v743 = vunpack.c.l.b16 %v352
      %v744 = vunpack.c.l.b16 %v353
      %v745 = vpack.c.b16 %v618, %v617
      %v746 = vpack.c.b16 %v620, %v619
      %v747 = vpack.c.b16 %v622, %v621
      %v748 = vpack.c.b16 %v624, %v623
      %v749 = vpack.c.b16 %v626, %v625
      %v750 = vpack.c.b16 %v628, %v627
      %v751 = vpack.c.b16 %v630, %v629
      %v752 = vpack.c.b16 %v632, %v631
      %v753 = vpack.c.b16 %v634, %v633
      %v754 = vpack.c.b16 %v636, %v635
      %v755 = vpack.c.b16 %v638, %v637
      %v756 = vpack.c.b16 %v640, %v639
      %v757 = vpack.c.b16 %v642, %v641
      %v758 = vpack.c.b16 %v644, %v643
      %v759 = vpack.c.b16 %v646, %v645
      %v760 = vpack.c.b16 %v648, %v647
      %v761 = vpack.c.b16 %v650, %v649
      %v762 = vpack.c.b16 %v652, %v651
      %v763 = vpack.c.b16 %v654, %v653
      %v764 = vpack.c.b16 %v656, %v655
      %v765 = vpack.c.b16 %v658, %v657
      %v766 = vpack.c.b16 %v660, %v659
      %v767 = vpack.c.b16 %v662, %v661
      %v768 = vpack.c.b16 %v664, %v663
      %v769 = vpack.c.b16 %v666, %v665
      %v770 = vpack.c.b16 %v668, %v667
      %v771 = vpack.c.b16 %v670, %v669
      %v772 = vpack.c.b16 %v672, %v671
      %v773 = vpack.c.b16 %v674, %v673
      %v774 = vpack.c.b16 %v676, %v675
      %v775 = vpack.c.b16 %v678, %v677
      %v776 = vpack.c.b16 %v680, %v679
      %v777 = vpack.c.b16 %v682, %v681
      %v778 = vpack.c.b16 %v684, %v683
      %v779 = vpack.c.b16 %v686, %v685
      %v780 = vpack.c.b16 %v688, %v687
      %v781 = vpack.c.b16 %v690, %v689
      %v782 = vpack.c.b16 %v692, %v691
      %v783 = vpack.c.b16 %v694, %v693
      %v784 = vpack.c.b16 %v696, %v695
      %v785 = vpack.c.b16 %v698, %v697
      %v786 = vpack.c.b16 %v700, %v699
      %v787 = vpack.c.b16 %v702, %v701
      %v788 = vpack.c.b16 %v704, %v703
      %v789 = vpack.c.b16 %v706, %v705
      %v790 = vpack.c.b16 %v708, %v707
      %v791 = vpack.c.b16 %v710, %v709
      %v792 = vpack.c.b16 %v712, %v711
      %v793 = vpack.c.b16 %v714, %v713
      %v794 = vpack.c.b16 %v716, %v715
      %v795 = vpack.c.b16 %v718, %v717
      %v796 = vpack.c.b16 %v720, %v719
      %v797 = vpack.c.b16 %v722, %v721
      %v798 = vpack.c.b16 %v724, %v723
      %v799 = vpack.c.b16 %v726, %v725
      %v800 = vpack.c.b16 %v728, %v727
      %v801 = vpack.c.b16 %v730, %v729
      %v802 = vpack.c.b16 %v732, %v731
      %v803 = vpack.c.b16 %v734, %v733
      %v804 = vpack.c.b16 %v736, %v735
      %v805 = vpack.c.b16 %v738, %v737
      %v806 = vpack.c.b16 %v740, %v739
      %v807 = vpack.c.b16 %v742, %v741
      %v808 = vpack.c.b16 %v744, %v743
      %v811 = vunpack.c.l.b16 %v482
      %v812 = vunpack.c.l.b16 %v483
      %v813 = vpack.c.b16 %v812, %v811
      %vm815 = vcmask 130048
      %v817 = vsel %vm815, %v745, 0
      %v820 = vsel %vm815, %v746, 0
      %v823 = vsel %vm815, %v747, 0
      %v826 = vsel %vm815, %v748, 0
      %v829 = vsel %vm815, %v749, 0
      %v832 = vsel %vm815, %v750, 0
      %v835 = vsel %vm815, %v751, 0
      %v838 = vsel %vm815, %v752, 0
      %v841 = vsel %vm815, %v753, 0
      %v844 = vsel %vm815, %v754, 0
      %v847 = vsel %vm815, %v755, 0
      %v850 = vsel %vm815, %v756, 0
      %v853 = vsel %vm815, %v757, 0
      %v856 = vsel %vm815, %v758, 0
      %v859 = vsel %vm815, %v759, 0
      %v862 = vsel %vm815, %v760, 0
      %v865 = vsel %vm815, %v761, 0
      %v868 = vsel %vm815, %v762, 0
      %v871 = vsel %vm815, %v763, 0
      %v874 = vsel %vm815, %v764, 0
      %v877 = vsel %vm815, %v765, 0
      %v880 = vsel %vm815, %v766, 0
      %v883 = vsel %vm815, %v767, 0
      %v886 = vsel %vm815, %v768, 0
      %v889 = vsel %vm815, %v769, 0
      %v892 = vsel %vm815, %v770, 0
      %v895 = vsel %vm815, %v771, 0
      %v898 = vsel %vm815, %v772, 0
      %v901 = vsel %vm815, %v773, 0
      %v904 = vsel %vm815, %v774, 0
      %v907 = vsel %vm815, %v775, 0
      %v910 = vsel %vm815, %v776, 0
      %v913 = vsel %vm815, %v777, 0
      %v916 = vsel %vm815, %v778, 0
      %v919 = vsel %vm815, %v779, 0
      %v922 = vsel %vm815, %v780, 0
      %v925 = vsel %vm815, %v781, 0
      %v928 = vsel %vm815, %v782, 0
      %v931 = vsel %vm815, %v783, 0
      %v934 = vsel %vm815, %v784, 0
      %v937 = vsel %vm815, %v785, 0
      %v940 = vsel %vm815, %v786, 0
      %v943 = vsel %vm815, %v787, 0
      %v946 = vsel %vm815, %v788, 0
      %v949 = vsel %vm815, %v789, 0
      %v952 = vsel %vm815, %v790, 0
      %v955 = vsel %vm815, %v791, 0
      %v958 = vsel %vm815, %v792, 0
      %v961 = vsel %vm815, %v793, 0
      %v964 = vsel %vm815, %v794, 0
      %v967 = vsel %vm815, %v795, 0
      %v970 = vsel %vm815, %v796, 0
      %v973 = vsel %vm815, %v797, 0
      %v976 = vsel %vm815, %v798, 0
      %v979 = vsel %vm815, %v799, 0
      %v982 = vsel %vm815, %v800, 0
      %v985 = vsel %vm815, %v801, 0
      %v988 = vsel %vm815, %v802, 0
      %v991 = vsel %vm815, %v803, 0
      %v994 = vsel %vm815, %v804, 0
      %v997 = vsel %vm815, %v805, 0
      %v1000 = vsel %vm815, %v806, 0
      %v1003 = vsel %vm815, %v807, 0
      %v1006 = vsel %vm815, %v808, 0
      %1008 = vmatprep.subr.bf16.mxu0 0
      %1009 = vmatpush1.bf16.msra.mxu0 %v813
      %1010 = vmatprep.subr.bf16.mxu0 0
      %1011 = vmatpush1.bf16.msra.mxu0 0
      %1012 = vmatprep.subr.bf16.mxu0 0
      %1013 = vmatpush1.bf16.msra.mxu0 0
      %1014 = vmatprep.subr.bf16.mxu0 0
      %1015 = vmatpush1.bf16.msra.mxu0 0
      %1016 = vmatprep.subr.bf16.mxu0 0
      %1017 = vmatpush1.bf16.msra.mxu0 0
      %1018 = vmatprep.subr.bf16.mxu0 0
      %1019 = vmatpush1.bf16.msra.mxu0 0
      %1020 = vmatprep.subr.bf16.mxu0 0
      %1021 = vmatpush1.bf16.msra.mxu0 0
      %1022 = vmatprep.subr.bf16.mxu0 0
      %1023 = vmatpush1.bf16.msra.mxu0 0
      %1024 = vmatprep.subr.bf16.mxu0 0
      %1025 = vmatpush1.bf16.msra.mxu0 0
      %1026 = vmatprep.subr.bf16.mxu0 0
      %1027 = vmatpush1.bf16.msra.mxu0 0
      %1028 = vmatprep.subr.bf16.mxu0 0
      %1029 = vmatpush1.bf16.msra.mxu0 0
      %1030 = vmatprep.subr.bf16.mxu0 0
      %1031 = vmatpush1.bf16.msra.mxu0 0
      %1032 = vmatprep.subr.bf16.mxu0 0
      %1033 = vmatpush1.bf16.msra.mxu0 0
      %1034 = vmatprep.subr.bf16.mxu0 0
      %1035 = vmatpush1.bf16.msra.mxu0 0
      %1036 = vmatprep.subr.bf16.mxu0 0
      %1037 = vmatpush1.bf16.msra.mxu0 0
      %1038 = vmatprep.subr.bf16.mxu0 0
      %1039 = vmatpush1.bf16.msra.mxu0 0
      %1040 = vmatprep.mubr.bf16.mxu0 0
      %1041 = vmatmul.mubr.bf16.gmra.mrb[0].mxu0 %v817
      %v1042 = vpop.f32.mrb[0].mxu0
      %v1043 = vadd.f32 %v488, %v1042
      %v1044 = vpop.f32.mrb[0].mxu0
      %v1045 = vpop.f32.mrb[0].mxu0
      %v1046 = vadd.f32 %v488, %v1045
      %v1047 = vpop.f32.mrb[0].mxu0
      %1048 = vmatprep.mubr.bf16.mxu0 0
      %1049 = vmatmul.mubr.bf16.gmra.mrb[0].mxu0 %v820
      %v1050 = vpop.f32.mrb[0].mxu0
      %v1051 = vadd.f32 %v488, %v1050
      %v1052 = vpop.f32.mrb[0].mxu0
      %v1053 = vpop.f32.mrb[0].mxu0
      %v1054 = vadd.f32 %v488, %v1053
      %v1055 = vpop.f32.mrb[0].mxu0
      %1056 = vmatprep.mubr.bf16.mxu0 0
      %1057 = vmatmul.mubr.bf16.gmra.mrb[0].mxu0 %v823
      %v1058 = vpop.f32.mrb[0].mxu0
      %v1059 = vadd.f32 %v488, %v1058
      %v1060 = vpop.f32.mrb[0].mxu0
      %v1061 = vpop.f32.mrb[0].mxu0
      %v1062 = vadd.f32 %v488, %v1061
      %v1063 = vpop.f32.mrb[0].mxu0
      %1064 = vmatprep.mubr.bf16.mxu0 0
      %1065 = vmatmul.mubr.bf16.gmra.mrb[0].mxu0 %v826
      %v1066 = vpop.f32.mrb[0].mxu0
      %v1067 = vadd.f32 %v488, %v1066
      %v1068 = vpop.f32.mrb[0].mxu0
      %v1069 = vpop.f32.mrb[0].mxu0
      %v1070 = vadd.f32 %v488, %v1069
      %v1071 = vpop.f32.mrb[0].mxu0
      %1072 = vmatprep.mubr.bf16.mxu0 0
      %1073 = vmatmul.mubr.bf16.gmra.mrb[0].mxu0 %v829
      %v1074 = vpop.f32.mrb[0].mxu0
      %v1075 = vadd.f32 %v488, %v1074
      %v1076 = vpop.f32.mrb[0].mxu0
      %v1077 = vpop.f32.mrb[0].mxu0
      %v1078 = vadd.f32 %v488, %v1077
      %v1079 = vpop.f32.mrb[0].mxu0
      %1080 = vmatprep.mubr.bf16.mxu0 0
      %1081 = vmatmul.mubr.bf16.gmra.mrb[0].mxu0 %v832
      %v1082 = vpop.f32.mrb[0].mxu0
      %v1083 = vadd.f32 %v488, %v1082
      %v1084 = vpop.f32.mrb[0].mxu0
      %v1085 = vpop.f32.mrb[0].mxu0
      %v1086 = vadd.f32 %v488, %v1085
      %v1087 = vpop.f32.mrb[0].mxu0
      %1088 = vmatprep.mubr.bf16.mxu0 0
      %1089 = vmatmul.mubr.bf16.gmra.mrb[0].mxu0 %v835
      %v1090 = vpop.f32.mrb[0].mxu0
      %v1091 = vadd.f32 %v488, %v1090
      %v1092 = vpop.f32.mrb[0].mxu0
      %v1093 = vpop.f32.mrb[0].mxu0
      %v1094 = vadd.f32 %v488, %v1093
      %v1095 = vpop.f32.mrb[0].mxu0
      %1096 = vmatprep.mubr.bf16.mxu0 0
      %1097 = vmatmul.mubr.bf16.gmra.mrb[0].mxu0 %v838
      %v1098 = vpop.f32.mrb[0].mxu0
      %v1099 = vadd.f32 %v488, %v1098
      %v1100 = vpop.f32.mrb[0].mxu0
      %v1101 = vpop.f32.mrb[0].mxu0
      %v1102 = vadd.f32 %v488, %v1101
      %v1103 = vpop.f32.mrb[0].mxu0
      %1104 = vmatprep.mubr.bf16.mxu0 0
      %1105 = vmatmul.mubr.bf16.gmra.mrb[0].mxu0 %v841
      %v1106 = vpop.f32.mrb[0].mxu0
      %v1107 = vadd.f32 %v488, %v1106
      %v1108 = vpop.f32.mrb[0].mxu0
      %v1109 = vpop.f32.mrb[0].mxu0
      %v1110 = vadd.f32 %v488, %v1109
      %v1111 = vpop.f32.mrb[0].mxu0
      %1112 = vmatprep.mubr.bf16.mxu0 0
      %1113 = vmatmul.mubr.bf16.gmra.mrb[0].mxu0 %v844
      %v1114 = vpop.f32.mrb[0].mxu0
      %v1115 = vadd.f32 %v488, %v1114
      %v1116 = vpop.f32.mrb[0].mxu0
      %v1117 = vpop.f32.mrb[0].mxu0
      %v1118 = vadd.f32 %v488, %v1117
      %v1119 = vpop.f32.mrb[0].mxu0
      %1120 = vmatprep.mubr.bf16.mxu0 0
      %1121 = vmatmul.mubr.bf16.gmra.mrb[0].mxu0 %v847
      %v1122 = vpop.f32.mrb[0].mxu0
      %v1123 = vadd.f32 %v488, %v1122
      %v1124 = vpop.f32.mrb[0].mxu0
      %v1125 = vpop.f32.mrb[0].mxu0
      %v1126 = vadd.f32 %v488, %v1125
      %v1127 = vpop.f32.mrb[0].mxu0
      %1128 = vmatprep.mubr.bf16.mxu0 0
      %1129 = vmatmul.mubr.bf16.gmra.mrb[0].mxu0 %v850
      %v1130 = vpop.f32.mrb[0].mxu0
      %v1131 = vadd.f32 %v488, %v1130
      %v1132 = vpop.f32.mrb[0].mxu0
      %v1133 = vpop.f32.mrb[0].mxu0
      %v1134 = vadd.f32 %v488, %v1133
      %v1135 = vpop.f32.mrb[0].mxu0
      %1136 = vmatprep.mubr.bf16.mxu0 0
      %1137 = vmatmul.mubr.bf16.gmra.mrb[0].mxu0 %v853
      %v1138 = vpop.f32.mrb[0].mxu0
      %v1139 = vadd.f32 %v488, %v1138
      %v1140 = vpop.f32.mrb[0].mxu0
      %v1141 = vpop.f32.mrb[0].mxu0
      %v1142 = vadd.f32 %v488, %v1141
      %v1143 = vpop.f32.mrb[0].mxu0
      %1144 = vmatprep.mubr.bf16.mxu0 0
      %1145 = vmatmul.mubr.bf16.gmra.mrb[0].mxu0 %v856
      %v1146 = vpop.f32.mrb[0].mxu0
      %v1147 = vadd.f32 %v488, %v1146
      %v1148 = vpop.f32.mrb[0].mxu0
      %v1149 = vpop.f32.mrb[0].mxu0
      %v1150 = vadd.f32 %v488, %v1149
      %v1151 = vpop.f32.mrb[0].mxu0
      %1152 = vmatprep.mubr.bf16.mxu0 0
      %1153 = vmatmul.mubr.bf16.gmra.mrb[0].mxu0 %v859
      %v1154 = vpop.f32.mrb[0].mxu0
      %v1155 = vadd.f32 %v488, %v1154
      %v1156 = vpop.f32.mrb[0].mxu0
      %v1157 = vpop.f32.mrb[0].mxu0
      %v1158 = vadd.f32 %v488, %v1157
      %v1159 = vpop.f32.mrb[0].mxu0
      %1160 = vmatprep.mubr.bf16.mxu0 0
      %1161 = vmatmul.mubr.bf16.gmra.mrb[0].mxu0 %v862
      %v1162 = vpop.f32.mrb[0].mxu0
      %v1163 = vadd.f32 %v488, %v1162
      %v1164 = vpop.f32.mrb[0].mxu0
      %v1165 = vpop.f32.mrb[0].mxu0
      %v1166 = vadd.f32 %v488, %v1165
      %v1167 = vpop.f32.mrb[0].mxu0
      %1168 = vmatprep.mubr.bf16.mxu0 0
      %1169 = vmatmul.mubr.bf16.gmra.mrb[0].mxu0 %v865
      %v1170 = vpop.f32.mrb[0].mxu0
      %v1171 = vadd.f32 %v488, %v1170
      %v1172 = vpop.f32.mrb[0].mxu0
      %v1173 = vpop.f32.mrb[0].mxu0
      %v1174 = vadd.f32 %v488, %v1173
      %v1175 = vpop.f32.mrb[0].mxu0
      %1176 = vmatprep.mubr.bf16.mxu0 0
      %1177 = vmatmul.mubr.bf16.gmra.mrb[0].mxu0 %v868
      %v1178 = vpop.f32.mrb[0].mxu0
      %v1179 = vadd.f32 %v488, %v1178
      %v1180 = vpop.f32.mrb[0].mxu0
      %v1181 = vpop.f32.mrb[0].mxu0
      %v1182 = vadd.f32 %v488, %v1181
      %v1183 = vpop.f32.mrb[0].mxu0
      %1184 = vmatprep.mubr.bf16.mxu0 0
      %1185 = vmatmul.mubr.bf16.gmra.mrb[0].mxu0 %v871
      %v1186 = vpop.f32.mrb[0].mxu0
      %v1187 = vadd.f32 %v488, %v1186
      %v1188 = vpop.f32.mrb[0].mxu0
      %v1189 = vpop.f32.mrb[0].mxu0
      %v1190 = vadd.f32 %v488, %v1189
      %v1191 = vpop.f32.mrb[0].mxu0
      %1192 = vmatprep.mubr.bf16.mxu0 0
      %1193 = vmatmul.mubr.bf16.gmra.mrb[0].mxu0 %v874
      %v1194 = vpop.f32.mrb[0].mxu0
      %v1195 = vadd.f32 %v488, %v1194
      %v1196 = vpop.f32.mrb[0].mxu0
      %v1197 = vpop.f32.mrb[0].mxu0
      %v1198 = vadd.f32 %v488, %v1197
      %v1199 = vpop.f32.mrb[0].mxu0
      %1200 = vmatprep.mubr.bf16.mxu0 0
      %1201 = vmatmul.mubr.bf16.gmra.mrb[0].mxu0 %v877
      %v1202 = vpop.f32.mrb[0].mxu0
      %v1203 = vadd.f32 %v488, %v1202
      %v1204 = vpop.f32.mrb[0].mxu0
      %v1205 = vpop.f32.mrb[0].mxu0
      %v1206 = vadd.f32 %v488, %v1205
      %v1207 = vpop.f32.mrb[0].mxu0
      %1208 = vmatprep.mubr.bf16.mxu0 0
      %1209 = vmatmul.mubr.bf16.gmra.mrb[0].mxu0 %v880
      %v1210 = vpop.f32.mrb[0].mxu0
      %v1211 = vadd.f32 %v488, %v1210
      %v1212 = vpop.f32.mrb[0].mxu0
      %v1213 = vpop.f32.mrb[0].mxu0
      %v1214 = vadd.f32 %v488, %v1213
      %v1215 = vpop.f32.mrb[0].mxu0
      %1216 = vmatprep.mubr.bf16.mxu0 0
      %1217 = vmatmul.mubr.bf16.gmra.mrb[0].mxu0 %v883
      %v1218 = vpop.f32.mrb[0].mxu0
      %v1219 = vadd.f32 %v488, %v1218
      %v1220 = vpop.f32.mrb[0].mxu0
      %v1221 = vpop.f32.mrb[0].mxu0
      %v1222 = vadd.f32 %v488, %v1221
      %v1223 = vpop.f32.mrb[0].mxu0
      %1224 = vmatprep.mubr.bf16.mxu0 0
      %1225 = vmatmul.mubr.bf16.gmra.mrb[0].mxu0 %v886
      %v1226 = vpop.f32.mrb[0].mxu0
      %v1227 = vadd.f32 %v488, %v1226
      %v1228 = vpop.f32.mrb[0].mxu0
      %v1229 = vpop.f32.mrb[0].mxu0
      %v1230 = vadd.f32 %v488, %v1229
      %v1231 = vpop.f32.mrb[0].mxu0
      %1232 = vmatprep.mubr.bf16.mxu0 0
      %1233 = vmatmul.mubr.bf16.gmra.mrb[0].mxu0 %v889
      %v1234 = vpop.f32.mrb[0].mxu0
      %v1235 = vadd.f32 %v488, %v1234
      %v1236 = vpop.f32.mrb[0].mxu0
      %v1237 = vpop.f32.mrb[0].mxu0
      %v1238 = vadd.f32 %v488, %v1237
      %v1239 = vpop.f32.mrb[0].mxu0
      %1240 = vmatprep.mubr.bf16.mxu0 0
      %1241 = vmatmul.mubr.bf16.gmra.mrb[0].mxu0 %v892
      %v1242 = vpop.f32.mrb[0].mxu0
      %v1243 = vadd.f32 %v488, %v1242
      %v1244 = vpop.f32.mrb[0].mxu0
      %v1245 = vpop.f32.mrb[0].mxu0
      %v1246 = vadd.f32 %v488, %v1245
      %v1247 = vpop.f32.mrb[0].mxu0
      %1248 = vmatprep.mubr.bf16.mxu0 0
      %1249 = vmatmul.mubr.bf16.gmra.mrb[0].mxu0 %v895
      %v1250 = vpop.f32.mrb[0].mxu0
      %v1251 = vadd.f32 %v488, %v1250
      %v1252 = vpop.f32.mrb[0].mxu0
      %v1253 = vpop.f32.mrb[0].mxu0
      %v1254 = vadd.f32 %v488, %v1253
      %v1255 = vpop.f32.mrb[0].mxu0
      %1256 = vmatprep.mubr.bf16.mxu0 0
      %1257 = vmatmul.mubr.bf16.gmra.mrb[0].mxu0 %v898
      %v1258 = vpop.f32.mrb[0].mxu0
      %v1259 = vadd.f32 %v488, %v1258
      %v1260 = vpop.f32.mrb[0].mxu0
      %v1261 = vpop.f32.mrb[0].mxu0
      %v1262 = vadd.f32 %v488, %v1261
      %v1263 = vpop.f32.mrb[0].mxu0
      %1264 = vmatprep.mubr.bf16.mxu0 0
      %1265 = vmatmul.mubr.bf16.gmra.mrb[0].mxu0 %v901
      %v1266 = vpop.f32.mrb[0].mxu0
      %v1267 = vadd.f32 %v488, %v1266
      %v1268 = vpop.f32.mrb[0].mxu0
      %v1269 = vpop.f32.mrb[0].mxu0
      %v1270 = vadd.f32 %v488, %v1269
      %v1271 = vpop.f32.mrb[0].mxu0
      %1272 = vmatprep.mubr.bf16.mxu0 0
      %1273 = vmatmul.mubr.bf16.gmra.mrb[0].mxu0 %v904
      %v1274 = vpop.f32.mrb[0].mxu0
      %v1275 = vadd.f32 %v488, %v1274
      %v1276 = vpop.f32.mrb[0].mxu0
      %v1277 = vpop.f32.mrb[0].mxu0
      %v1278 = vadd.f32 %v488, %v1277
      %v1279 = vpop.f32.mrb[0].mxu0
      %1280 = vmatprep.mubr.bf16.mxu0 0
      %1281 = vmatmul.mubr.bf16.gmra.mrb[0].mxu0 %v907
      %v1282 = vpop.f32.mrb[0].mxu0
      %v1283 = vadd.f32 %v488, %v1282
      %v1284 = vpop.f32.mrb[0].mxu0
      %v1285 = vpop.f32.mrb[0].mxu0
      %v1286 = vadd.f32 %v488, %v1285
      %v1287 = vpop.f32.mrb[0].mxu0
      %1288 = vmatprep.mubr.bf16.mxu0 0
      %1289 = vmatmul.mubr.bf16.gmra.mrb[0].mxu0 %v910
      %v1290 = vpop.f32.mrb[0].mxu0
      %v1291 = vadd.f32 %v488, %v1290
      %v1292 = vpop.f32.mrb[0].mxu0
      %v1293 = vpop.f32.mrb[0].mxu0
      %v1294 = vadd.f32 %v488, %v1293
      %v1295 = vpop.f32.mrb[0].mxu0
      %1296 = vmatprep.mubr.bf16.mxu0 0
      %1297 = vmatmul.mubr.bf16.gmra.mrb[0].mxu0 %v913
      %v1298 = vpop.f32.mrb[0].mxu0
      %v1299 = vadd.f32 %v488, %v1298
      %v1300 = vpop.f32.mrb[0].mxu0
      %v1301 = vpop.f32.mrb[0].mxu0
      %v1302 = vadd.f32 %v488, %v1301
      %v1303 = vpop.f32.mrb[0].mxu0
      %1304 = vmatprep.mubr.bf16.mxu0 0
      %1305 = vmatmul.mubr.bf16.gmra.mrb[0].mxu0 %v916
      %v1306 = vpop.f32.mrb[0].mxu0
      %v1307 = vadd.f32 %v488, %v1306
      %v1308 = vpop.f32.mrb[0].mxu0
      %v1309 = vpop.f32.mrb[0].mxu0
      %v1310 = vadd.f32 %v488, %v1309
      %v1311 = vpop.f32.mrb[0].mxu0
      %1312 = vmatprep.mubr.bf16.mxu0 0
      %1313 = vmatmul.mubr.bf16.gmra.mrb[0].mxu0 %v919
      %v1314 = vpop.f32.mrb[0].mxu0
      %v1315 = vadd.f32 %v488, %v1314
      %v1316 = vpop.f32.mrb[0].mxu0
      %v1317 = vpop.f32.mrb[0].mxu0
      %v1318 = vadd.f32 %v488, %v1317
      %v1319 = vpop.f32.mrb[0].mxu0
      %1320 = vmatprep.mubr.bf16.mxu0 0
      %1321 = vmatmul.mubr.bf16.gmra.mrb[0].mxu0 %v922
      %v1322 = vpop.f32.mrb[0].mxu0
      %v1323 = vadd.f32 %v488, %v1322
      %v1324 = vpop.f32.mrb[0].mxu0
      %v1325 = vpop.f32.mrb[0].mxu0
      %v1326 = vadd.f32 %v488, %v1325
      %v1327 = vpop.f32.mrb[0].mxu0
      %1328 = vmatprep.mubr.bf16.mxu0 0
      %1329 = vmatmul.mubr.bf16.gmra.mrb[0].mxu0 %v925
      %v1330 = vpop.f32.mrb[0].mxu0
      %v1331 = vadd.f32 %v488, %v1330
      %v1332 = vpop.f32.mrb[0].mxu0
      %v1333 = vpop.f32.mrb[0].mxu0
      %v1334 = vadd.f32 %v488, %v1333
      %v1335 = vpop.f32.mrb[0].mxu0
      %1336 = vmatprep.mubr.bf16.mxu0 0
      %1337 = vmatmul.mubr.bf16.gmra.mrb[0].mxu0 %v928
      %v1338 = vpop.f32.mrb[0].mxu0
      %v1339 = vadd.f32 %v488, %v1338
      %v1340 = vpop.f32.mrb[0].mxu0
      %v1341 = vpop.f32.mrb[0].mxu0
      %v1342 = vadd.f32 %v488, %v1341
      %v1343 = vpop.f32.mrb[0].mxu0
      %1344 = vmatprep.mubr.bf16.mxu0 0
      %1345 = vmatmul.mubr.bf16.gmra.mrb[0].mxu0 %v931
      %v1346 = vpop.f32.mrb[0].mxu0
      %v1347 = vadd.f32 %v488, %v1346
      %v1348 = vpop.f32.mrb[0].mxu0
      %v1349 = vpop.f32.mrb[0].mxu0
      %v1350 = vadd.f32 %v488, %v1349
      %v1351 = vpop.f32.mrb[0].mxu0
      %1352 = vmatprep.mubr.bf16.mxu0 0
      %1353 = vmatmul.mubr.bf16.gmra.mrb[0].mxu0 %v934
      %v1354 = vpop.f32.mrb[0].mxu0
      %v1355 = vadd.f32 %v488, %v1354
      %v1356 = vpop.f32.mrb[0].mxu0
      %v1357 = vpop.f32.mrb[0].mxu0
      %v1358 = vadd.f32 %v488, %v1357
      %v1359 = vpop.f32.mrb[0].mxu0
      %1360 = vmatprep.mubr.bf16.mxu0 0
      %1361 = vmatmul.mubr.bf16.gmra.mrb[0].mxu0 %v937
      %v1362 = vpop.f32.mrb[0].mxu0
      %v1363 = vadd.f32 %v488, %v1362
      %v1364 = vpop.f32.mrb[0].mxu0
      %v1365 = vpop.f32.mrb[0].mxu0
      %v1366 = vadd.f32 %v488, %v1365
      %v1367 = vpop.f32.mrb[0].mxu0
      %1368 = vmatprep.mubr.bf16.mxu0 0
      %1369 = vmatmul.mubr.bf16.gmra.mrb[0].mxu0 %v940
      %v1370 = vpop.f32.mrb[0].mxu0
      %v1371 = vadd.f32 %v488, %v1370
      %v1372 = vpop.f32.mrb[0].mxu0
      %v1373 = vpop.f32.mrb[0].mxu0
      %v1374 = vadd.f32 %v488, %v1373
      %v1375 = vpop.f32.mrb[0].mxu0
      %1376 = vmatprep.mubr.bf16.mxu0 0
      %1377 = vmatmul.mubr.bf16.gmra.mrb[0].mxu0 %v943
      %v1378 = vpop.f32.mrb[0].mxu0
      %v1379 = vadd.f32 %v488, %v1378
      %v1380 = vpop.f32.mrb[0].mxu0
      %v1381 = vpop.f32.mrb[0].mxu0
      %v1382 = vadd.f32 %v488, %v1381
      %v1383 = vpop.f32.mrb[0].mxu0
      %1384 = vmatprep.mubr.bf16.mxu0 0
      %1385 = vmatmul.mubr.bf16.gmra.mrb[0].mxu0 %v946
      %v1386 = vpop.f32.mrb[0].mxu0
      %v1387 = vadd.f32 %v488, %v1386
      %v1388 = vpop.f32.mrb[0].mxu0
      %v1389 = vpop.f32.mrb[0].mxu0
      %v1390 = vadd.f32 %v488, %v1389
      %v1391 = vpop.f32.mrb[0].mxu0
      %1392 = vmatprep.mubr.bf16.mxu0 0
      %1393 = vmatmul.mubr.bf16.gmra.mrb[0].mxu0 %v949
      %v1394 = vpop.f32.mrb[0].mxu0
      %v1395 = vadd.f32 %v488, %v1394
      %v1396 = vpop.f32.mrb[0].mxu0
      %v1397 = vpop.f32.mrb[0].mxu0
      %v1398 = vadd.f32 %v488, %v1397
      %v1399 = vpop.f32.mrb[0].mxu0
      %1400 = vmatprep.mubr.bf16.mxu0 0
      %1401 = vmatmul.mubr.bf16.gmra.mrb[0].mxu0 %v952
      %v1402 = vpop.f32.mrb[0].mxu0
      %v1403 = vadd.f32 %v488, %v1402
      %v1404 = vpop.f32.mrb[0].mxu0
      %v1405 = vpop.f32.mrb[0].mxu0
      %v1406 = vadd.f32 %v488, %v1405
      %v1407 = vpop.f32.mrb[0].mxu0
      %1408 = vmatprep.mubr.bf16.mxu0 0
      %1409 = vmatmul.mubr.bf16.gmra.mrb[0].mxu0 %v955
      %v1410 = vpop.f32.mrb[0].mxu0
      %v1411 = vadd.f32 %v488, %v1410
      %v1412 = vpop.f32.mrb[0].mxu0
      %v1413 = vpop.f32.mrb[0].mxu0
      %v1414 = vadd.f32 %v488, %v1413
      %v1415 = vpop.f32.mrb[0].mxu0
      %1416 = vmatprep.mubr.bf16.mxu0 0
      %1417 = vmatmul.mubr.bf16.gmra.mrb[0].mxu0 %v958
      %v1418 = vpop.f32.mrb[0].mxu0
      %v1419 = vadd.f32 %v488, %v1418
      %v1420 = vpop.f32.mrb[0].mxu0
      %v1421 = vpop.f32.mrb[0].mxu0
      %v1422 = vadd.f32 %v488, %v1421
      %v1423 = vpop.f32.mrb[0].mxu0
      %1424 = vmatprep.mubr.bf16.mxu0 0
      %1425 = vmatmul.mubr.bf16.gmra.mrb[0].mxu0 %v961
      %v1426 = vpop.f32.mrb[0].mxu0
      %v1427 = vadd.f32 %v488, %v1426
      %v1428 = vpop.f32.mrb[0].mxu0
      %v1429 = vpop.f32.mrb[0].mxu0
      %v1430 = vadd.f32 %v488, %v1429
      %v1431 = vpop.f32.mrb[0].mxu0
      %1432 = vmatprep.mubr.bf16.mxu0 0
      %1433 = vmatmul.mubr.bf16.gmra.mrb[0].mxu0 %v964
      %v1434 = vpop.f32.mrb[0].mxu0
      %v1435 = vadd.f32 %v488, %v1434
      %v1436 = vpop.f32.mrb[0].mxu0
      %v1437 = vpop.f32.mrb[0].mxu0
      %v1438 = vadd.f32 %v488, %v1437
      %v1439 = vpop.f32.mrb[0].mxu0
      %1440 = vmatprep.mubr.bf16.mxu0 0
      %1441 = vmatmul.mubr.bf16.gmra.mrb[0].mxu0 %v967
      %v1442 = vpop.f32.mrb[0].mxu0
      %v1443 = vadd.f32 %v488, %v1442
      %v1444 = vpop.f32.mrb[0].mxu0
      %v1445 = vpop.f32.mrb[0].mxu0
      %v1446 = vadd.f32 %v488, %v1445
      %v1447 = vpop.f32.mrb[0].mxu0
      %1448 = vmatprep.mubr.bf16.mxu0 0
      %1449 = vmatmul.mubr.bf16.gmra.mrb[0].mxu0 %v970
      %v1450 = vpop.f32.mrb[0].mxu0
      %v1451 = vadd.f32 %v488, %v1450
      %v1452 = vpop.f32.mrb[0].mxu0
      %v1453 = vpop.f32.mrb[0].mxu0
      %v1454 = vadd.f32 %v488, %v1453
      %v1455 = vpop.f32.mrb[0].mxu0
      %1456 = vmatprep.mubr.bf16.mxu0 0
      %1457 = vmatmul.mubr.bf16.gmra.mrb[0].mxu0 %v973
      %v1458 = vpop.f32.mrb[0].mxu0
      %v1459 = vadd.f32 %v488, %v1458
      %v1460 = vpop.f32.mrb[0].mxu0
      %v1461 = vpop.f32.mrb[0].mxu0
      %v1462 = vadd.f32 %v488, %v1461
      %v1463 = vpop.f32.mrb[0].mxu0
      %1464 = vmatprep.mubr.bf16.mxu0 0
      %1465 = vmatmul.mubr.bf16.gmra.mrb[0].mxu0 %v976
      %v1466 = vpop.f32.mrb[0].mxu0
      %v1467 = vadd.f32 %v488, %v1466
      %v1468 = vpop.f32.mrb[0].mxu0
      %v1469 = vpop.f32.mrb[0].mxu0
      %v1470 = vadd.f32 %v488, %v1469
      %v1471 = vpop.f32.mrb[0].mxu0
      %1472 = vmatprep.mubr.bf16.mxu0 0
      %1473 = vmatmul.mubr.bf16.gmra.mrb[0].mxu0 %v979
      %v1474 = vpop.f32.mrb[0].mxu0
      %v1475 = vadd.f32 %v488, %v1474
      %v1476 = vpop.f32.mrb[0].mxu0
      %v1477 = vpop.f32.mrb[0].mxu0
      %v1478 = vadd.f32 %v488, %v1477
      %v1479 = vpop.f32.mrb[0].mxu0
      %1480 = vmatprep.mubr.bf16.mxu0 0
      %1481 = vmatmul.mubr.bf16.gmra.mrb[0].mxu0 %v982
      %v1482 = vpop.f32.mrb[0].mxu0
      %v1483 = vadd.f32 %v488, %v1482
      %v1484 = vpop.f32.mrb[0].mxu0
      %v1485 = vpop.f32.mrb[0].mxu0
      %v1486 = vadd.f32 %v488, %v1485
      %v1487 = vpop.f32.mrb[0].mxu0
      %1488 = vmatprep.mubr.bf16.mxu0 0
      %1489 = vmatmul.mubr.bf16.gmra.mrb[0].mxu0 %v985
      %v1490 = vpop.f32.mrb[0].mxu0
      %v1491 = vadd.f32 %v488, %v1490
      %v1492 = vpop.f32.mrb[0].mxu0
      %v1493 = vpop.f32.mrb[0].mxu0
      %v1494 = vadd.f32 %v488, %v1493
      %v1495 = vpop.f32.mrb[0].mxu0
      %1496 = vmatprep.mubr.bf16.mxu0 0
      %1497 = vmatmul.mubr.bf16.gmra.mrb[0].mxu0 %v988
      %v1498 = vpop.f32.mrb[0].mxu0
      %v1499 = vadd.f32 %v488, %v1498
      %v1500 = vpop.f32.mrb[0].mxu0
      %v1501 = vpop.f32.mrb[0].mxu0
      %v1502 = vadd.f32 %v488, %v1501
      %v1503 = vpop.f32.mrb[0].mxu0
      %1504 = vmatprep.mubr.bf16.mxu0 0
      %1505 = vmatmul.mubr.bf16.gmra.mrb[0].mxu0 %v991
      %v1506 = vpop.f32.mrb[0].mxu0
      %v1507 = vadd.f32 %v488, %v1506
      %v1508 = vpop.f32.mrb[0].mxu0
      %v1509 = vpop.f32.mrb[0].mxu0
      %v1510 = vadd.f32 %v488, %v1509
      %v1511 = vpop.f32.mrb[0].mxu0
      %1512 = vmatprep.mubr.bf16.mxu0 0
      %1513 = vmatmul.mubr.bf16.gmra.mrb[0].mxu0 %v994
      %v1514 = vpop.f32.mrb[0].mxu0
      %v1515 = vadd.f32 %v488, %v1514
      %v1516 = vpop.f32.mrb[0].mxu0
      %v1517 = vpop.f32.mrb[0].mxu0
      %v1518 = vadd.f32 %v488, %v1517
      %v1519 = vpop.f32.mrb[0].mxu0
      %1520 = vmatprep.mubr.bf16.mxu0 0
      %1521 = vmatmul.mubr.bf16.gmra.mrb[0].mxu0 %v997
      %v1522 = vpop.f32.mrb[0].mxu0
      %v1523 = vadd.f32 %v488, %v1522
      %v1524 = vpop.f32.mrb[0].mxu0
      %v1525 = vpop.f32.mrb[0].mxu0
      %v1526 = vadd.f32 %v488, %v1525
      %v1527 = vpop.f32.mrb[0].mxu0
      %1528 = vmatprep.mubr.bf16.mxu0 0
      %1529 = vmatmul.mubr.bf16.gmra.mrb[0].mxu0 %v1000
      %v1530 = vpop.f32.mrb[0].mxu0
      %v1531 = vadd.f32 %v488, %v1530
      %v1532 = vpop.f32.mrb[0].mxu0
      %v1533 = vpop.f32.mrb[0].mxu0
      %v1534 = vadd.f32 %v488, %v1533
      %v1535 = vpop.f32.mrb[0].mxu0
      %1536 = vmatprep.mubr.bf16.mxu0 0
      %1537 = vmatmul.mubr.bf16.gmra.mrb[0].mxu0 %v1003
      %v1538 = vpop.f32.mrb[0].mxu0
      %v1539 = vadd.f32 %v488, %v1538
      %v1540 = vpop.f32.mrb[0].mxu0
      %v1541 = vpop.f32.mrb[0].mxu0
      %v1542 = vadd.f32 %v488, %v1541
      %v1543 = vpop.f32.mrb[0].mxu0
      %1544 = vmatprep.mubr.bf16.mxu0 0
      %1545 = vmatmul.mubr.bf16.gmra.mrb[0].mxu0 %v1006
      %v1546 = vpop.f32.mrb[0].mxu0
      %v1547 = vadd.f32 %v488, %v1546
      %v1548 = vpop.f32.mrb[0].mxu0
      %v1549 = vpop.f32.mrb[0].mxu0
      %v1550 = vadd.f32 %v488, %v1549
      %v1551 = vpop.f32.mrb[0].mxu0
      %1552 = vdwg.mxu0
      %v1553 = vmax.f32 %v1043, 0.0
      %v1554 = vmax.f32 %v1046, 0.0
      %v1555 = vmax.f32 %v1051, 0.0
      %v1556 = vmax.f32 %v1054, 0.0
      %v1557 = vmax.f32 %v1059, 0.0
      %v1558 = vmax.f32 %v1062, 0.0
      %v1559 = vmax.f32 %v1067, 0.0
      %v1560 = vmax.f32 %v1070, 0.0
      %v1561 = vmax.f32 %v1075, 0.0
      %v1562 = vmax.f32 %v1078, 0.0
      %v1563 = vmax.f32 %v1083, 0.0
      %v1564 = vmax.f32 %v1086, 0.0
      %v1565 = vmax.f32 %v1091, 0.0
      %v1566 = vmax.f32 %v1094, 0.0
      %v1567 = vmax.f32 %v1099, 0.0
      %v1568 = vmax.f32 %v1102, 0.0
      %v1569 = vmax.f32 %v1107, 0.0
      %v1570 = vmax.f32 %v1110, 0.0
      %v1571 = vmax.f32 %v1115, 0.0
      %v1572 = vmax.f32 %v1118, 0.0
      %v1573 = vmax.f32 %v1123, 0.0
      %v1574 = vmax.f32 %v1126, 0.0
      %v1575 = vmax.f32 %v1131, 0.0
      %v1576 = vmax.f32 %v1134, 0.0
      %v1577 = vmax.f32 %v1139, 0.0
      %v1578 = vmax.f32 %v1142, 0.0
      %v1579 = vmax.f32 %v1147, 0.0
      %v1580 = vmax.f32 %v1150, 0.0
      %v1581 = vmax.f32 %v1155, 0.0
      %v1582 = vmax.f32 %v1158, 0.0
      %v1583 = vmax.f32 %v1163, 0.0
      %v1584 = vmax.f32 %v1166, 0.0
      %v1585 = vmax.f32 %v1171, 0.0
      %v1586 = vmax.f32 %v1174, 0.0
      %v1587 = vmax.f32 %v1179, 0.0
      %v1588 = vmax.f32 %v1182, 0.0
      %v1589 = vmax.f32 %v1187, 0.0
      %v1590 = vmax.f32 %v1190, 0.0
      %v1591 = vmax.f32 %v1195, 0.0
      %v1592 = vmax.f32 %v1198, 0.0
      %v1593 = vmax.f32 %v1203, 0.0
      %v1594 = vmax.f32 %v1206, 0.0
      %v1595 = vmax.f32 %v1211, 0.0
      %v1596 = vmax.f32 %v1214, 0.0
      %v1597 = vmax.f32 %v1219, 0.0
      %v1598 = vmax.f32 %v1222, 0.0
      %v1599 = vmax.f32 %v1227, 0.0
      %v1600 = vmax.f32 %v1230, 0.0
      %v1601 = vmax.f32 %v1235, 0.0
      %v1602 = vmax.f32 %v1238, 0.0
      %v1603 = vmax.f32 %v1243, 0.0
      %v1604 = vmax.f32 %v1246, 0.0
      %v1605 = vmax.f32 %v1251, 0.0
      %v1606 = vmax.f32 %v1254, 0.0
      %v1607 = vmax.f32 %v1259, 0.0
      %v1608 = vmax.f32 %v1262, 0.0
      %v1609 = vmax.f32 %v1267, 0.0
      %v1610 = vmax.f32 %v1270, 0.0
      %v1611 = vmax.f32 %v1275, 0.0
      %v1612 = vmax.f32 %v1278, 0.0
      %v1613 = vmax.f32 %v1283, 0.0
      %v1614 = vmax.f32 %v1286, 0.0
      %v1615 = vmax.f32 %v1291, 0.0
      %v1616 = vmax.f32 %v1294, 0.0
      %v1617 = vmax.f32 %v1299, 0.0
      %v1618 = vmax.f32 %v1302, 0.0
      %v1619 = vmax.f32 %v1307, 0.0
      %v1620 = vmax.f32 %v1310, 0.0
      %v1621 = vmax.f32 %v1315, 0.0
      %v1622 = vmax.f32 %v1318, 0.0
      %v1623 = vmax.f32 %v1323, 0.0
      %v1624 = vmax.f32 %v1326, 0.0
      %v1625 = vmax.f32 %v1331, 0.0
      %v1626 = vmax.f32 %v1334, 0.0
      %v1627 = vmax.f32 %v1339, 0.0
      %v1628 = vmax.f32 %v1342, 0.0
      %v1629 = vmax.f32 %v1347, 0.0
      %v1630 = vmax.f32 %v1350, 0.0
      %v1631 = vmax.f32 %v1355, 0.0
      %v1632 = vmax.f32 %v1358, 0.0
      %v1633 = vmax.f32 %v1363, 0.0
      %v1634 = vmax.f32 %v1366, 0.0
      %v1635 = vmax.f32 %v1371, 0.0
      %v1636 = vmax.f32 %v1374, 0.0
      %v1637 = vmax.f32 %v1379, 0.0
      %v1638 = vmax.f32 %v1382, 0.0
      %v1639 = vmax.f32 %v1387, 0.0
      %v1640 = vmax.f32 %v1390, 0.0
      %v1641 = vmax.f32 %v1395, 0.0
      %v1642 = vmax.f32 %v1398, 0.0
      %v1643 = vmax.f32 %v1403, 0.0
      %v1644 = vmax.f32 %v1406, 0.0
      %v1645 = vmax.f32 %v1411, 0.0
      %v1646 = vmax.f32 %v1414, 0.0
      %v1647 = vmax.f32 %v1419, 0.0
      %v1648 = vmax.f32 %v1422, 0.0
      %v1649 = vmax.f32 %v1427, 0.0
      %v1650 = vmax.f32 %v1430, 0.0
      %v1651 = vmax.f32 %v1435, 0.0
      %v1652 = vmax.f32 %v1438, 0.0
      %v1653 = vmax.f32 %v1443, 0.0
      %v1654 = vmax.f32 %v1446, 0.0
      %v1655 = vmax.f32 %v1451, 0.0
      %v1656 = vmax.f32 %v1454, 0.0
      %v1657 = vmax.f32 %v1459, 0.0
      %v1658 = vmax.f32 %v1462, 0.0
      %v1659 = vmax.f32 %v1467, 0.0
      %v1660 = vmax.f32 %v1470, 0.0
      %v1661 = vmax.f32 %v1475, 0.0
      %v1662 = vmax.f32 %v1478, 0.0
      %v1663 = vmax.f32 %v1483, 0.0
      %v1664 = vmax.f32 %v1486, 0.0
      %v1665 = vmax.f32 %v1491, 0.0
      %v1666 = vmax.f32 %v1494, 0.0
      %v1667 = vmax.f32 %v1499, 0.0
      %v1668 = vmax.f32 %v1502, 0.0
      %v1669 = vmax.f32 %v1507, 0.0
      %v1670 = vmax.f32 %v1510, 0.0
      %v1671 = vmax.f32 %v1515, 0.0
      %v1672 = vmax.f32 %v1518, 0.0
      %v1673 = vmax.f32 %v1523, 0.0
      %v1674 = vmax.f32 %v1526, 0.0
      %v1675 = vmax.f32 %v1531, 0.0
      %v1676 = vmax.f32 %v1534, 0.0
      %v1677 = vmax.f32 %v1539, 0.0
      %v1678 = vmax.f32 %v1542, 0.0
      %v1679 = vmax.f32 %v1547, 0.0
      %v1680 = vmax.f32 %v1550, 0.0
      %v1681 = vpack.c.bf16 %v1554, %v1553
      %v1682 = vpack.c.bf16 %v1556, %v1555
      %v1683 = vpack.c.bf16 %v1558, %v1557
      %v1684 = vpack.c.bf16 %v1560, %v1559
      %v1685 = vpack.c.bf16 %v1562, %v1561
      %v1686 = vpack.c.bf16 %v1564, %v1563
      %v1687 = vpack.c.bf16 %v1566, %v1565
      %v1688 = vpack.c.bf16 %v1568, %v1567
      %v1689 = vpack.c.bf16 %v1570, %v1569
      %v1690 = vpack.c.bf16 %v1572, %v1571
      %v1691 = vpack.c.bf16 %v1574, %v1573
      %v1692 = vpack.c.bf16 %v1576, %v1575
      %v1693 = vpack.c.bf16 %v1578, %v1577
      %v1694 = vpack.c.bf16 %v1580, %v1579
      %v1695 = vpack.c.bf16 %v1582, %v1581
      %v1696 = vpack.c.bf16 %v1584, %v1583
      %v1697 = vpack.c.bf16 %v1586, %v1585
      %v1698 = vpack.c.bf16 %v1588, %v1587
      %v1699 = vpack.c.bf16 %v1590, %v1589
      %v1700 = vpack.c.bf16 %v1592, %v1591
      %v1701 = vpack.c.bf16 %v1594, %v1593
      %v1702 = vpack.c.bf16 %v1596, %v1595
      %v1703 = vpack.c.bf16 %v1598, %v1597
      %v1704 = vpack.c.bf16 %v1600, %v1599
      %v1705 = vpack.c.bf16 %v1602, %v1601
      %v1706 = vpack.c.bf16 %v1604, %v1603
      %v1707 = vpack.c.bf16 %v1606, %v1605
      %v1708 = vpack.c.bf16 %v1608, %v1607
      %v1709 = vpack.c.bf16 %v1610, %v1609
      %v1710 = vpack.c.bf16 %v1612, %v1611
      %v1711 = vpack.c.bf16 %v1614, %v1613
      %v1712 = vpack.c.bf16 %v1616, %v1615
      %v1713 = vpack.c.bf16 %v1618, %v1617
      %v1714 = vpack.c.bf16 %v1620, %v1619
      %v1715 = vpack.c.bf16 %v1622, %v1621
      %v1716 = vpack.c.bf16 %v1624, %v1623
      %v1717 = vpack.c.bf16 %v1626, %v1625
      %v1718 = vpack.c.bf16 %v1628, %v1627
      %v1719 = vpack.c.bf16 %v1630, %v1629
      %v1720 = vpack.c.bf16 %v1632, %v1631
      %v1721 = vpack.c.bf16 %v1634, %v1633
      %v1722 = vpack.c.bf16 %v1636, %v1635
      %v1723 = vpack.c.bf16 %v1638, %v1637
      %v1724 = vpack.c.bf16 %v1640, %v1639
      %v1725 = vpack.c.bf16 %v1642, %v1641
      %v1726 = vpack.c.bf16 %v1644, %v1643
      %v1727 = vpack.c.bf16 %v1646, %v1645
      %v1728 = vpack.c.bf16 %v1648, %v1647
      %v1729 = vpack.c.bf16 %v1650, %v1649
      %v1730 = vpack.c.bf16 %v1652, %v1651
      %v1731 = vpack.c.bf16 %v1654, %v1653
      %v1732 = vpack.c.bf16 %v1656, %v1655
      %v1733 = vpack.c.bf16 %v1658, %v1657
      %v1734 = vpack.c.bf16 %v1660, %v1659
      %v1735 = vpack.c.bf16 %v1662, %v1661
      %v1736 = vpack.c.bf16 %v1664, %v1663
      %v1737 = vpack.c.bf16 %v1666, %v1665
      %v1738 = vpack.c.bf16 %v1668, %v1667
      %v1739 = vpack.c.bf16 %v1670, %v1669
      %v1740 = vpack.c.bf16 %v1672, %v1671
      %v1741 = vpack.c.bf16 %v1674, %v1673
      %v1742 = vpack.c.bf16 %v1676, %v1675
      %v1743 = vpack.c.bf16 %v1678, %v1677
      %v1744 = vpack.c.bf16 %v1680, %v1679
      %v1745 = vld [vmem:[%s2] sm:$0xf]
      %v1746 = vld [vmem:[%s2 + $0x4] sm:$0xf]
      %v1747 = vld [vmem:[%s2 + $0x8] sm:$0xf]
      %v1748 = vld [vmem:[%s2 + $0xc] sm:$0xf]
      %v1749 = vld [vmem:[%s4 + $0x1] sm:$0x1]
      %v1750 = vlaneseq
      %v1751 = vshrl.u32 %v1750, 7
      %v1752 = vsub.s32 0, %v1751
      %v1753 = vrot.slane %v1749, %v1752
      %v1758 = vunpack.c.l.b16 %v1745
      %v1759 = vunpack.c.l.b16 %v1746
      %v1760 = vunpack.c.l.b16 %v1747
      %v1761 = vunpack.c.l.b16 %v1748
      %v1762 = vpack.c.b16 %v1759, %v1758
      %v1763 = vpack.c.b16 %v1761, %v1760
      %vm1766 = vcmask 261120
      %v1768 = vsel %vm1766, %v1681, 0
      %v1771 = vsel %vm1766, %v1682, 0
      %v1774 = vsel %vm1766, %v1683, 0
      %v1777 = vsel %vm1766, %v1684, 0
      %v1780 = vsel %vm1766, %v1685, 0
      %v1783 = vsel %vm1766, %v1686, 0
      %v1786 = vsel %vm1766, %v1687, 0
      %v1789 = vsel %vm1766, %v1688, 0
      %v1792 = vsel %vm1766, %v1689, 0
      %v1795 = vsel %vm1766, %v1690, 0
      %v1798 = vsel %vm1766, %v1691, 0
      %v1801 = vsel %vm1766, %v1692, 0
      %v1804 = vsel %vm1766, %v1693, 0
      %v1807 = vsel %vm1766, %v1694, 0
      %v1810 = vsel %vm1766, %v1695, 0
      %v1813 = vsel %vm1766, %v1696, 0
      %v1816 = vsel %vm1766, %v1697, 0
      %v1819 = vsel %vm1766, %v1698, 0
      %v1822 = vsel %vm1766, %v1699, 0
      %v1825 = vsel %vm1766, %v1700, 0
      %v1828 = vsel %vm1766, %v1701, 0
      %v1831 = vsel %vm1766, %v1702, 0
      %v1834 = vsel %vm1766, %v1703, 0
      %v1837 = vsel %vm1766, %v1704, 0
      %v1840 = vsel %vm1766, %v1705, 0
      %v1843 = vsel %vm1766, %v1706, 0
      %v1846 = vsel %vm1766, %v1707, 0
      %v1849 = vsel %vm1766, %v1708, 0
      %v1852 = vsel %vm1766, %v1709, 0
      %v1855 = vsel %vm1766, %v1710, 0
      %v1858 = vsel %vm1766, %v1711, 0
      %v1861 = vsel %vm1766, %v1712, 0
      %v1864 = vsel %vm1766, %v1713, 0
      %v1867 = vsel %vm1766, %v1714, 0
      %v1870 = vsel %vm1766, %v1715, 0
      %v1873 = vsel %vm1766, %v1716, 0
      %v1876 = vsel %vm1766, %v1717, 0
      %v1879 = vsel %vm1766, %v1718, 0
      %v1882 = vsel %vm1766, %v1719, 0
      %v1885 = vsel %vm1766, %v1720, 0
      %v1888 = vsel %vm1766, %v1721, 0
      %v1891 = vsel %vm1766, %v1722, 0
      %v1894 = vsel %vm1766, %v1723, 0
      %v1897 = vsel %vm1766, %v1724, 0
      %v1900 = vsel %vm1766, %v1725, 0
      %v1903 = vsel %vm1766, %v1726, 0
      %v1906 = vsel %vm1766, %v1727, 0
      %v1909 = vsel %vm1766, %v1728, 0
      %v1912 = vsel %vm1766, %v1729, 0
      %v1915 = vsel %vm1766, %v1730, 0
      %v1918 = vsel %vm1766, %v1731, 0
      %v1921 = vsel %vm1766, %v1732, 0
      %v1924 = vsel %vm1766, %v1733, 0
      %v1927 = vsel %vm1766, %v1734, 0
      %v1930 = vsel %vm1766, %v1735, 0
      %v1933 = vsel %vm1766, %v1736, 0
      %v1936 = vsel %vm1766, %v1737, 0
      %v1939 = vsel %vm1766, %v1738, 0
      %v1942 = vsel %vm1766, %v1739, 0
      %v1945 = vsel %vm1766, %v1740, 0
      %v1948 = vsel %vm1766, %v1741, 0
      %v1951 = vsel %vm1766, %v1742, 0
      %v1954 = vsel %vm1766, %v1743, 0
      %v1957 = vsel %vm1766, %v1744, 0
      %1959 = vmatprep.subr.bf16.mxu0 0
      %1960 = vmatpush1.bf16.msra.mxu0 %v1762
      %1961 = vmatprep.subr.bf16.mxu0 0
      %1962 = vmatpush1.bf16.msra.mxu0 %v1763
      %1963 = vmatprep.subr.bf16.mxu0 0
      %1964 = vmatpush1.bf16.msra.mxu0 0
      %1965 = vmatprep.subr.bf16.mxu0 0
      %1966 = vmatpush1.bf16.msra.mxu0 0
      %1967 = vmatprep.subr.bf16.mxu0 0
      %1968 = vmatpush1.bf16.msra.mxu0 0
      %1969 = vmatprep.subr.bf16.mxu0 0
      %1970 = vmatpush1.bf16.msra.mxu0 0
      %1971 = vmatprep.subr.bf16.mxu0 0
      %1972 = vmatpush1.bf16.msra.mxu0 0
      %1973 = vmatprep.subr.bf16.mxu0 0
      %1974 = vmatpush1.bf16.msra.mxu0 0
      %1975 = vmatprep.subr.bf16.mxu0 0
      %1976 = vmatpush1.bf16.msra.mxu0 0
      %1977 = vmatprep.subr.bf16.mxu0 0
      %1978 = vmatpush1.bf16.msra.mxu0 0
      %1979 = vmatprep.subr.bf16.mxu0 0
      %1980 = vmatpush1.bf16.msra.mxu0 0
      %1981 = vmatprep.subr.bf16.mxu0 0
      %1982 = vmatpush1.bf16.msra.mxu0 0
      %1983 = vmatprep.subr.bf16.mxu0 0
      %1984 = vmatpush1.bf16.msra.mxu0 0
      %1985 = vmatprep.subr.bf16.mxu0 0
      %1986 = vmatpush1.bf16.msra.mxu0 0
      %1987 = vmatprep.subr.bf16.mxu0 0
      %1988 = vmatpush1.bf16.msra.mxu0 0
      %1989 = vmatprep.subr.bf16.mxu0 0
      %1990 = vmatpush1.bf16.msra.mxu0 0
      %1991 = vmatprep.mubr.bf16.mxu0 0
      %1992 = vmatmul.mubr.bf16.gmra.mrb[0].mxu0 %v1768
      %v1993 = vpop.f32.mrb[0].mxu0
      %v1994 = vadd.f32 %v1753, %v1993
      %v1995 = vpop.f32.mrb[0].mxu0
      %v1996 = vpop.f32.mrb[0].mxu0
      %v1997 = vadd.f32 %v1753, %v1996
      %v1998 = vpop.f32.mrb[0].mxu0
      %1999 = vmatprep.mubr.bf16.mxu0 0
      %2000 = vmatmul.mubr.bf16.gmra.mrb[0].mxu0 %v1771
      %v2001 = vpop.f32.mrb[0].mxu0
      %v2002 = vadd.f32 %v1753, %v2001
      %v2003 = vpop.f32.mrb[0].mxu0
      %v2004 = vpop.f32.mrb[0].mxu0
      %v2005 = vadd.f32 %v1753, %v2004
      %v2006 = vpop.f32.mrb[0].mxu0
      %2007 = vmatprep.mubr.bf16.mxu0 0
      %2008 = vmatmul.mubr.bf16.gmra.mrb[0].mxu0 %v1774
      %v2009 = vpop.f32.mrb[0].mxu0
      %v2010 = vadd.f32 %v1753, %v2009
      %v2011 = vpop.f32.mrb[0].mxu0
      %v2012 = vpop.f32.mrb[0].mxu0
      %v2013 = vadd.f32 %v1753, %v2012
      %v2014 = vpop.f32.mrb[0].mxu0
      %2015 = vmatprep.mubr.bf16.mxu0 0
      %2016 = vmatmul.mubr.bf16.gmra.mrb[0].mxu0 %v1777
      %v2017 = vpop.f32.mrb[0].mxu0
      %v2018 = vadd.f32 %v1753, %v2017
      %v2019 = vpop.f32.mrb[0].mxu0
      %v2020 = vpop.f32.mrb[0].mxu0
      %v2021 = vadd.f32 %v1753, %v2020
      %v2022 = vpop.f32.mrb[0].mxu0
      %2023 = vmatprep.mubr.bf16.mxu0 0
      %2024 = vmatmul.mubr.bf16.gmra.mrb[0].mxu0 %v1780
      %v2025 = vpop.f32.mrb[0].mxu0
      %v2026 = vadd.f32 %v1753, %v2025
      %v2027 = vpop.f32.mrb[0].mxu0
      %v2028 = vpop.f32.mrb[0].mxu0
      %v2029 = vadd.f32 %v1753, %v2028
      %v2030 = vpop.f32.mrb[0].mxu0
      %2031 = vmatprep.mubr.bf16.mxu0 0
      %2032 = vmatmul.mubr.bf16.gmra.mrb[0].mxu0 %v1783
      %v2033 = vpop.f32.mrb[0].mxu0
      %v2034 = vadd.f32 %v1753, %v2033
      %v2035 = vpop.f32.mrb[0].mxu0
      %v2036 = vpop.f32.mrb[0].mxu0
      %v2037 = vadd.f32 %v1753, %v2036
      %v2038 = vpop.f32.mrb[0].mxu0
      %2039 = vmatprep.mubr.bf16.mxu0 0
      %2040 = vmatmul.mubr.bf16.gmra.mrb[0].mxu0 %v1786
      %v2041 = vpop.f32.mrb[0].mxu0
      %v2042 = vadd.f32 %v1753, %v2041
      %v2043 = vpop.f32.mrb[0].mxu0
      %v2044 = vpop.f32.mrb[0].mxu0
      %v2045 = vadd.f32 %v1753, %v2044
      %v2046 = vpop.f32.mrb[0].mxu0
      %2047 = vmatprep.mubr.bf16.mxu0 0
      %2048 = vmatmul.mubr.bf16.gmra.mrb[0].mxu0 %v1789
      %v2049 = vpop.f32.mrb[0].mxu0
      %v2050 = vadd.f32 %v1753, %v2049
      %v2051 = vpop.f32.mrb[0].mxu0
      %v2052 = vpop.f32.mrb[0].mxu0
      %v2053 = vadd.f32 %v1753, %v2052
      %v2054 = vpop.f32.mrb[0].mxu0
      %2055 = vmatprep.mubr.bf16.mxu0 0
      %2056 = vmatmul.mubr.bf16.gmra.mrb[0].mxu0 %v1792
      %v2057 = vpop.f32.mrb[0].mxu0
      %v2058 = vadd.f32 %v1753, %v2057
      %v2059 = vpop.f32.mrb[0].mxu0
      %v2060 = vpop.f32.mrb[0].mxu0
      %v2061 = vadd.f32 %v1753, %v2060
      %v2062 = vpop.f32.mrb[0].mxu0
      %2063 = vmatprep.mubr.bf16.mxu0 0
      %2064 = vmatmul.mubr.bf16.gmra.mrb[0].mxu0 %v1795
      %v2065 = vpop.f32.mrb[0].mxu0
      %v2066 = vadd.f32 %v1753, %v2065
      %v2067 = vpop.f32.mrb[0].mxu0
      %v2068 = vpop.f32.mrb[0].mxu0
      %v2069 = vadd.f32 %v1753, %v2068
      %v2070 = vpop.f32.mrb[0].mxu0
      %2071 = vmatprep.mubr.bf16.mxu0 0
      %2072 = vmatmul.mubr.bf16.gmra.mrb[0].mxu0 %v1798
      %v2073 = vpop.f32.mrb[0].mxu0
      %v2074 = vadd.f32 %v1753, %v2073
      %v2075 = vpop.f32.mrb[0].mxu0
      %v2076 = vpop.f32.mrb[0].mxu0
      %v2077 = vadd.f32 %v1753, %v2076
      %v2078 = vpop.f32.mrb[0].mxu0
      %2079 = vmatprep.mubr.bf16.mxu0 0
      %2080 = vmatmul.mubr.bf16.gmra.mrb[0].mxu0 %v1801
      %v2081 = vpop.f32.mrb[0].mxu0
      %v2082 = vadd.f32 %v1753, %v2081
      %v2083 = vpop.f32.mrb[0].mxu0
      %v2084 = vpop.f32.mrb[0].mxu0
      %v2085 = vadd.f32 %v1753, %v2084
      %v2086 = vpop.f32.mrb[0].mxu0
      %2087 = vmatprep.mubr.bf16.mxu0 0
      %2088 = vmatmul.mubr.bf16.gmra.mrb[0].mxu0 %v1804
      %v2089 = vpop.f32.mrb[0].mxu0
      %v2090 = vadd.f32 %v1753, %v2089
      %v2091 = vpop.f32.mrb[0].mxu0
      %v2092 = vpop.f32.mrb[0].mxu0
      %v2093 = vadd.f32 %v1753, %v2092
      %v2094 = vpop.f32.mrb[0].mxu0
      %2095 = vmatprep.mubr.bf16.mxu0 0
      %2096 = vmatmul.mubr.bf16.gmra.mrb[0].mxu0 %v1807
      %v2097 = vpop.f32.mrb[0].mxu0
      %v2098 = vadd.f32 %v1753, %v2097
      %v2099 = vpop.f32.mrb[0].mxu0
      %v2100 = vpop.f32.mrb[0].mxu0
      %v2101 = vadd.f32 %v1753, %v2100
      %v2102 = vpop.f32.mrb[0].mxu0
      %2103 = vmatprep.mubr.bf16.mxu0 0
      %2104 = vmatmul.mubr.bf16.gmra.mrb[0].mxu0 %v1810
      %v2105 = vpop.f32.mrb[0].mxu0
      %v2106 = vadd.f32 %v1753, %v2105
      %v2107 = vpop.f32.mrb[0].mxu0
      %v2108 = vpop.f32.mrb[0].mxu0
      %v2109 = vadd.f32 %v1753, %v2108
      %v2110 = vpop.f32.mrb[0].mxu0
      %2111 = vmatprep.mubr.bf16.mxu0 0
      %2112 = vmatmul.mubr.bf16.gmra.mrb[0].mxu0 %v1813
      %v2113 = vpop.f32.mrb[0].mxu0
      %v2114 = vadd.f32 %v1753, %v2113
      %v2115 = vpop.f32.mrb[0].mxu0
      %v2116 = vpop.f32.mrb[0].mxu0
      %v2117 = vadd.f32 %v1753, %v2116
      %v2118 = vpop.f32.mrb[0].mxu0
      %2119 = vmatprep.mubr.bf16.mxu0 0
      %2120 = vmatmul.mubr.bf16.gmra.mrb[0].mxu0 %v1816
      %v2121 = vpop.f32.mrb[0].mxu0
      %v2122 = vadd.f32 %v1753, %v2121
      %v2123 = vpop.f32.mrb[0].mxu0
      %v2124 = vpop.f32.mrb[0].mxu0
      %v2125 = vadd.f32 %v1753, %v2124
      %v2126 = vpop.f32.mrb[0].mxu0
      %2127 = vmatprep.mubr.bf16.mxu0 0
      %2128 = vmatmul.mubr.bf16.gmra.mrb[0].mxu0 %v1819
      %v2129 = vpop.f32.mrb[0].mxu0
      %v2130 = vadd.f32 %v1753, %v2129
      %v2131 = vpop.f32.mrb[0].mxu0
      %v2132 = vpop.f32.mrb[0].mxu0
      %v2133 = vadd.f32 %v1753, %v2132
      %v2134 = vpop.f32.mrb[0].mxu0
      %2135 = vmatprep.mubr.bf16.mxu0 0
      %2136 = vmatmul.mubr.bf16.gmra.mrb[0].mxu0 %v1822
      %v2137 = vpop.f32.mrb[0].mxu0
      %v2138 = vadd.f32 %v1753, %v2137
      %v2139 = vpop.f32.mrb[0].mxu0
      %v2140 = vpop.f32.mrb[0].mxu0
      %v2141 = vadd.f32 %v1753, %v2140
      %v2142 = vpop.f32.mrb[0].mxu0
      %2143 = vmatprep.mubr.bf16.mxu0 0
      %2144 = vmatmul.mubr.bf16.gmra.mrb[0].mxu0 %v1825
      %v2145 = vpop.f32.mrb[0].mxu0
      %v2146 = vadd.f32 %v1753, %v2145
      %v2147 = vpop.f32.mrb[0].mxu0
      %v2148 = vpop.f32.mrb[0].mxu0
      %v2149 = vadd.f32 %v1753, %v2148
      %v2150 = vpop.f32.mrb[0].mxu0
      %2151 = vmatprep.mubr.bf16.mxu0 0
      %2152 = vmatmul.mubr.bf16.gmra.mrb[0].mxu0 %v1828
      %v2153 = vpop.f32.mrb[0].mxu0
      %v2154 = vadd.f32 %v1753, %v2153
      %v2155 = vpop.f32.mrb[0].mxu0
      %v2156 = vpop.f32.mrb[0].mxu0
      %v2157 = vadd.f32 %v1753, %v2156
      %v2158 = vpop.f32.mrb[0].mxu0
      %2159 = vmatprep.mubr.bf16.mxu0 0
      %2160 = vmatmul.mubr.bf16.gmra.mrb[0].mxu0 %v1831
      %v2161 = vpop.f32.mrb[0].mxu0
      %v2162 = vadd.f32 %v1753, %v2161
      %v2163 = vpop.f32.mrb[0].mxu0
      %v2164 = vpop.f32.mrb[0].mxu0
      %v2165 = vadd.f32 %v1753, %v2164
      %v2166 = vpop.f32.mrb[0].mxu0
      %2167 = vmatprep.mubr.bf16.mxu0 0
      %2168 = vmatmul.mubr.bf16.gmra.mrb[0].mxu0 %v1834
      %v2169 = vpop.f32.mrb[0].mxu0
      %v2170 = vadd.f32 %v1753, %v2169
      %v2171 = vpop.f32.mrb[0].mxu0
      %v2172 = vpop.f32.mrb[0].mxu0
      %v2173 = vadd.f32 %v1753, %v2172
      %v2174 = vpop.f32.mrb[0].mxu0
      %2175 = vmatprep.mubr.bf16.mxu0 0
      %2176 = vmatmul.mubr.bf16.gmra.mrb[0].mxu0 %v1837
      %v2177 = vpop.f32.mrb[0].mxu0
      %v2178 = vadd.f32 %v1753, %v2177
      %v2179 = vpop.f32.mrb[0].mxu0
      %v2180 = vpop.f32.mrb[0].mxu0
      %v2181 = vadd.f32 %v1753, %v2180
      %v2182 = vpop.f32.mrb[0].mxu0
      %2183 = vmatprep.mubr.bf16.mxu0 0
      %2184 = vmatmul.mubr.bf16.gmra.mrb[0].mxu0 %v1840
      %v2185 = vpop.f32.mrb[0].mxu0
      %v2186 = vadd.f32 %v1753, %v2185
      %v2187 = vpop.f32.mrb[0].mxu0
      %v2188 = vpop.f32.mrb[0].mxu0
      %v2189 = vadd.f32 %v1753, %v2188
      %v2190 = vpop.f32.mrb[0].mxu0
      %2191 = vmatprep.mubr.bf16.mxu0 0
      %2192 = vmatmul.mubr.bf16.gmra.mrb[0].mxu0 %v1843
      %v2193 = vpop.f32.mrb[0].mxu0
      %v2194 = vadd.f32 %v1753, %v2193
      %v2195 = vpop.f32.mrb[0].mxu0
      %v2196 = vpop.f32.mrb[0].mxu0
      %v2197 = vadd.f32 %v1753, %v2196
      %v2198 = vpop.f32.mrb[0].mxu0
      %2199 = vmatprep.mubr.bf16.mxu0 0
      %2200 = vmatmul.mubr.bf16.gmra.mrb[0].mxu0 %v1846
      %v2201 = vpop.f32.mrb[0].mxu0
      %v2202 = vadd.f32 %v1753, %v2201
      %v2203 = vpop.f32.mrb[0].mxu0
      %v2204 = vpop.f32.mrb[0].mxu0
      %v2205 = vadd.f32 %v1753, %v2204
      %v2206 = vpop.f32.mrb[0].mxu0
      %2207 = vmatprep.mubr.bf16.mxu0 0
      %2208 = vmatmul.mubr.bf16.gmra.mrb[0].mxu0 %v1849
      %v2209 = vpop.f32.mrb[0].mxu0
      %v2210 = vadd.f32 %v1753, %v2209
      %v2211 = vpop.f32.mrb[0].mxu0
      %v2212 = vpop.f32.mrb[0].mxu0
      %v2213 = vadd.f32 %v1753, %v2212
      %v2214 = vpop.f32.mrb[0].mxu0
      %2215 = vmatprep.mubr.bf16.mxu0 0
      %2216 = vmatmul.mubr.bf16.gmra.mrb[0].mxu0 %v1852
      %v2217 = vpop.f32.mrb[0].mxu0
      %v2218 = vadd.f32 %v1753, %v2217
      %v2219 = vpop.f32.mrb[0].mxu0
      %v2220 = vpop.f32.mrb[0].mxu0
      %v2221 = vadd.f32 %v1753, %v2220
      %v2222 = vpop.f32.mrb[0].mxu0
      %2223 = vmatprep.mubr.bf16.mxu0 0
      %2224 = vmatmul.mubr.bf16.gmra.mrb[0].mxu0 %v1855
      %v2225 = vpop.f32.mrb[0].mxu0
      %v2226 = vadd.f32 %v1753, %v2225
      %v2227 = vpop.f32.mrb[0].mxu0
      %v2228 = vpop.f32.mrb[0].mxu0
      %v2229 = vadd.f32 %v1753, %v2228
      %v2230 = vpop.f32.mrb[0].mxu0
      %2231 = vmatprep.mubr.bf16.mxu0 0
      %2232 = vmatmul.mubr.bf16.gmra.mrb[0].mxu0 %v1858
      %v2233 = vpop.f32.mrb[0].mxu0
      %v2234 = vadd.f32 %v1753, %v2233
      %v2235 = vpop.f32.mrb[0].mxu0
      %v2236 = vpop.f32.mrb[0].mxu0
      %v2237 = vadd.f32 %v1753, %v2236
      %v2238 = vpop.f32.mrb[0].mxu0
      %2239 = vmatprep.mubr.bf16.mxu0 0
      %2240 = vmatmul.mubr.bf16.gmra.mrb[0].mxu0 %v1861
      %v2241 = vpop.f32.mrb[0].mxu0
      %v2242 = vadd.f32 %v1753, %v2241
      %v2243 = vpop.f32.mrb[0].mxu0
      %v2244 = vpop.f32.mrb[0].mxu0
      %v2245 = vadd.f32 %v1753, %v2244
      %v2246 = vpop.f32.mrb[0].mxu0
      %2247 = vmatprep.mubr.bf16.mxu0 0
      %2248 = vmatmul.mubr.bf16.gmra.mrb[0].mxu0 %v1864
      %v2249 = vpop.f32.mrb[0].mxu0
      %v2250 = vadd.f32 %v1753, %v2249
      %v2251 = vpop.f32.mrb[0].mxu0
      %v2252 = vpop.f32.mrb[0].mxu0
      %v2253 = vadd.f32 %v1753, %v2252
      %v2254 = vpop.f32.mrb[0].mxu0
      %2255 = vmatprep.mubr.bf16.mxu0 0
      %2256 = vmatmul.mubr.bf16.gmra.mrb[0].mxu0 %v1867
      %v2257 = vpop.f32.mrb[0].mxu0
      %v2258 = vadd.f32 %v1753, %v2257
      %v2259 = vpop.f32.mrb[0].mxu0
      %v2260 = vpop.f32.mrb[0].mxu0
      %v2261 = vadd.f32 %v1753, %v2260
      %v2262 = vpop.f32.mrb[0].mxu0
      %2263 = vmatprep.mubr.bf16.mxu0 0
      %2264 = vmatmul.mubr.bf16.gmra.mrb[0].mxu0 %v1870
      %v2265 = vpop.f32.mrb[0].mxu0
      %v2266 = vadd.f32 %v1753, %v2265
      %v2267 = vpop.f32.mrb[0].mxu0
      %v2268 = vpop.f32.mrb[0].mxu0
      %v2269 = vadd.f32 %v1753, %v2268
      %v2270 = vpop.f32.mrb[0].mxu0
      %2271 = vmatprep.mubr.bf16.mxu0 0
      %2272 = vmatmul.mubr.bf16.gmra.mrb[0].mxu0 %v1873
      %v2273 = vpop.f32.mrb[0].mxu0
      %v2274 = vadd.f32 %v1753, %v2273
      %v2275 = vpop.f32.mrb[0].mxu0
      %v2276 = vpop.f32.mrb[0].mxu0
      %v2277 = vadd.f32 %v1753, %v2276
      %v2278 = vpop.f32.mrb[0].mxu0
      %2279 = vmatprep.mubr.bf16.mxu0 0
      %2280 = vmatmul.mubr.bf16.gmra.mrb[0].mxu0 %v1876
      %v2281 = vpop.f32.mrb[0].mxu0
      %v2282 = vadd.f32 %v1753, %v2281
      %v2283 = vpop.f32.mrb[0].mxu0
      %v2284 = vpop.f32.mrb[0].mxu0
      %v2285 = vadd.f32 %v1753, %v2284
      %v2286 = vpop.f32.mrb[0].mxu0
      %2287 = vmatprep.mubr.bf16.mxu0 0
      %2288 = vmatmul.mubr.bf16.gmra.mrb[0].mxu0 %v1879
      %v2289 = vpop.f32.mrb[0].mxu0
      %v2290 = vadd.f32 %v1753, %v2289
      %v2291 = vpop.f32.mrb[0].mxu0
      %v2292 = vpop.f32.mrb[0].mxu0
      %v2293 = vadd.f32 %v1753, %v2292
      %v2294 = vpop.f32.mrb[0].mxu0
      %2295 = vmatprep.mubr.bf16.mxu0 0
      %2296 = vmatmul.mubr.bf16.gmra.mrb[0].mxu0 %v1882
      %v2297 = vpop.f32.mrb[0].mxu0
      %v2298 = vadd.f32 %v1753, %v2297
      %v2299 = vpop.f32.mrb[0].mxu0
      %v2300 = vpop.f32.mrb[0].mxu0
      %v2301 = vadd.f32 %v1753, %v2300
      %v2302 = vpop.f32.mrb[0].mxu0
      %2303 = vmatprep.mubr.bf16.mxu0 0
      %2304 = vmatmul.mubr.bf16.gmra.mrb[0].mxu0 %v1885
      %v2305 = vpop.f32.mrb[0].mxu0
      %v2306 = vadd.f32 %v1753, %v2305
      %v2307 = vpop.f32.mrb[0].mxu0
      %v2308 = vpop.f32.mrb[0].mxu0
      %v2309 = vadd.f32 %v1753, %v2308
      %v2310 = vpop.f32.mrb[0].mxu0
      %2311 = vmatprep.mubr.bf16.mxu0 0
      %2312 = vmatmul.mubr.bf16.gmra.mrb[0].mxu0 %v1888
      %v2313 = vpop.f32.mrb[0].mxu0
      %v2314 = vadd.f32 %v1753, %v2313
      %v2315 = vpop.f32.mrb[0].mxu0
      %v2316 = vpop.f32.mrb[0].mxu0
      %v2317 = vadd.f32 %v1753, %v2316
      %v2318 = vpop.f32.mrb[0].mxu0
      %2319 = vmatprep.mubr.bf16.mxu0 0
      %2320 = vmatmul.mubr.bf16.gmra.mrb[0].mxu0 %v1891
      %v2321 = vpop.f32.mrb[0].mxu0
      %v2322 = vadd.f32 %v1753, %v2321
      %v2323 = vpop.f32.mrb[0].mxu0
      %v2324 = vpop.f32.mrb[0].mxu0
      %v2325 = vadd.f32 %v1753, %v2324
      %v2326 = vpop.f32.mrb[0].mxu0
      %2327 = vmatprep.mubr.bf16.mxu0 0
      %2328 = vmatmul.mubr.bf16.gmra.mrb[0].mxu0 %v1894
      %v2329 = vpop.f32.mrb[0].mxu0
      %v2330 = vadd.f32 %v1753, %v2329
      %v2331 = vpop.f32.mrb[0].mxu0
      %v2332 = vpop.f32.mrb[0].mxu0
      %v2333 = vadd.f32 %v1753, %v2332
      %v2334 = vpop.f32.mrb[0].mxu0
      %2335 = vmatprep.mubr.bf16.mxu0 0
      %2336 = vmatmul.mubr.bf16.gmra.mrb[0].mxu0 %v1897
      %v2337 = vpop.f32.mrb[0].mxu0
      %v2338 = vadd.f32 %v1753, %v2337
      %v2339 = vpop.f32.mrb[0].mxu0
      %v2340 = vpop.f32.mrb[0].mxu0
      %v2341 = vadd.f32 %v1753, %v2340
      %v2342 = vpop.f32.mrb[0].mxu0
      %2343 = vmatprep.mubr.bf16.mxu0 0
      %2344 = vmatmul.mubr.bf16.gmra.mrb[0].mxu0 %v1900
      %v2345 = vpop.f32.mrb[0].mxu0
      %v2346 = vadd.f32 %v1753, %v2345
      %v2347 = vpop.f32.mrb[0].mxu0
      %v2348 = vpop.f32.mrb[0].mxu0
      %v2349 = vadd.f32 %v1753, %v2348
      %v2350 = vpop.f32.mrb[0].mxu0
      %2351 = vmatprep.mubr.bf16.mxu0 0
      %2352 = vmatmul.mubr.bf16.gmra.mrb[0].mxu0 %v1903
      %v2353 = vpop.f32.mrb[0].mxu0
      %v2354 = vadd.f32 %v1753, %v2353
      %v2355 = vpop.f32.mrb[0].mxu0
      %v2356 = vpop.f32.mrb[0].mxu0
      %v2357 = vadd.f32 %v1753, %v2356
      %v2358 = vpop.f32.mrb[0].mxu0
      %2359 = vmatprep.mubr.bf16.mxu0 0
      %2360 = vmatmul.mubr.bf16.gmra.mrb[0].mxu0 %v1906
      %v2361 = vpop.f32.mrb[0].mxu0
      %v2362 = vadd.f32 %v1753, %v2361
      %v2363 = vpop.f32.mrb[0].mxu0
      %v2364 = vpop.f32.mrb[0].mxu0
      %v2365 = vadd.f32 %v1753, %v2364
      %v2366 = vpop.f32.mrb[0].mxu0
      %2367 = vmatprep.mubr.bf16.mxu0 0
      %2368 = vmatmul.mubr.bf16.gmra.mrb[0].mxu0 %v1909
      %v2369 = vpop.f32.mrb[0].mxu0
      %v2370 = vadd.f32 %v1753, %v2369
      %v2371 = vpop.f32.mrb[0].mxu0
      %v2372 = vpop.f32.mrb[0].mxu0
      %v2373 = vadd.f32 %v1753, %v2372
      %v2374 = vpop.f32.mrb[0].mxu0
      %2375 = vmatprep.mubr.bf16.mxu0 0
      %2376 = vmatmul.mubr.bf16.gmra.mrb[0].mxu0 %v1912
      %v2377 = vpop.f32.mrb[0].mxu0
      %v2378 = vadd.f32 %v1753, %v2377
      %v2379 = vpop.f32.mrb[0].mxu0
      %v2380 = vpop.f32.mrb[0].mxu0
      %v2381 = vadd.f32 %v1753, %v2380
      %v2382 = vpop.f32.mrb[0].mxu0
      %2383 = vmatprep.mubr.bf16.mxu0 0
      %2384 = vmatmul.mubr.bf16.gmra.mrb[0].mxu0 %v1915
      %v2385 = vpop.f32.mrb[0].mxu0
      %v2386 = vadd.f32 %v1753, %v2385
      %v2387 = vpop.f32.mrb[0].mxu0
      %v2388 = vpop.f32.mrb[0].mxu0
      %v2389 = vadd.f32 %v1753, %v2388
      %v2390 = vpop.f32.mrb[0].mxu0
      %2391 = vmatprep.mubr.bf16.mxu0 0
      %2392 = vmatmul.mubr.bf16.gmra.mrb[0].mxu0 %v1918
      %v2393 = vpop.f32.mrb[0].mxu0
      %v2394 = vadd.f32 %v1753, %v2393
      %v2395 = vpop.f32.mrb[0].mxu0
      %v2396 = vpop.f32.mrb[0].mxu0
      %v2397 = vadd.f32 %v1753, %v2396
      %v2398 = vpop.f32.mrb[0].mxu0
      %2399 = vmatprep.mubr.bf16.mxu0 0
      %2400 = vmatmul.mubr.bf16.gmra.mrb[0].mxu0 %v1921
      %v2401 = vpop.f32.mrb[0].mxu0
      %v2402 = vadd.f32 %v1753, %v2401
      %v2403 = vpop.f32.mrb[0].mxu0
      %v2404 = vpop.f32.mrb[0].mxu0
      %v2405 = vadd.f32 %v1753, %v2404
      %v2406 = vpop.f32.mrb[0].mxu0
      %2407 = vmatprep.mubr.bf16.mxu0 0
      %2408 = vmatmul.mubr.bf16.gmra.mrb[0].mxu0 %v1924
      %v2409 = vpop.f32.mrb[0].mxu0
      %v2410 = vadd.f32 %v1753, %v2409
      %v2411 = vpop.f32.mrb[0].mxu0
      %v2412 = vpop.f32.mrb[0].mxu0
      %v2413 = vadd.f32 %v1753, %v2412
      %v2414 = vpop.f32.mrb[0].mxu0
      %2415 = vmatprep.mubr.bf16.mxu0 0
      %2416 = vmatmul.mubr.bf16.gmra.mrb[0].mxu0 %v1927
      %v2417 = vpop.f32.mrb[0].mxu0
      %v2418 = vadd.f32 %v1753, %v2417
      %v2419 = vpop.f32.mrb[0].mxu0
      %v2420 = vpop.f32.mrb[0].mxu0
      %v2421 = vadd.f32 %v1753, %v2420
      %v2422 = vpop.f32.mrb[0].mxu0
      %2423 = vmatprep.mubr.bf16.mxu0 0
      %2424 = vmatmul.mubr.bf16.gmra.mrb[0].mxu0 %v1930
      %v2425 = vpop.f32.mrb[0].mxu0
      %v2426 = vadd.f32 %v1753, %v2425
      %v2427 = vpop.f32.mrb[0].mxu0
      %v2428 = vpop.f32.mrb[0].mxu0
      %v2429 = vadd.f32 %v1753, %v2428
      %v2430 = vpop.f32.mrb[0].mxu0
      %2431 = vmatprep.mubr.bf16.mxu0 0
      %2432 = vmatmul.mubr.bf16.gmra.mrb[0].mxu0 %v1933
      %v2433 = vpop.f32.mrb[0].mxu0
      %v2434 = vadd.f32 %v1753, %v2433
      %v2435 = vpop.f32.mrb[0].mxu0
      %v2436 = vpop.f32.mrb[0].mxu0
      %v2437 = vadd.f32 %v1753, %v2436
      %v2438 = vpop.f32.mrb[0].mxu0
      %2439 = vmatprep.mubr.bf16.mxu0 0
      %2440 = vmatmul.mubr.bf16.gmra.mrb[0].mxu0 %v1936
      %v2441 = vpop.f32.mrb[0].mxu0
      %v2442 = vadd.f32 %v1753, %v2441
      %v2443 = vpop.f32.mrb[0].mxu0
      %v2444 = vpop.f32.mrb[0].mxu0
      %v2445 = vadd.f32 %v1753, %v2444
      %v2446 = vpop.f32.mrb[0].mxu0
      %2447 = vmatprep.mubr.bf16.mxu0 0
      %2448 = vmatmul.mubr.bf16.gmra.mrb[0].mxu0 %v1939
      %v2449 = vpop.f32.mrb[0].mxu0
      %v2450 = vadd.f32 %v1753, %v2449
      %v2451 = vpop.f32.mrb[0].mxu0
      %v2452 = vpop.f32.mrb[0].mxu0
      %v2453 = vadd.f32 %v1753, %v2452
      %v2454 = vpop.f32.mrb[0].mxu0
      %2455 = vmatprep.mubr.bf16.mxu0 0
      %2456 = vmatmul.mubr.bf16.gmra.mrb[0].mxu0 %v1942
      %v2457 = vpop.f32.mrb[0].mxu0
      %v2458 = vadd.f32 %v1753, %v2457
      %v2459 = vpop.f32.mrb[0].mxu0
      %v2460 = vpop.f32.mrb[0].mxu0
      %v2461 = vadd.f32 %v1753, %v2460
      %v2462 = vpop.f32.mrb[0].mxu0
      %2463 = vmatprep.mubr.bf16.mxu0 0
      %2464 = vmatmul.mubr.bf16.gmra.mrb[0].mxu0 %v1945
      %v2465 = vpop.f32.mrb[0].mxu0
      %v2466 = vadd.f32 %v1753, %v2465
      %v2467 = vpop.f32.mrb[0].mxu0
      %v2468 = vpop.f32.mrb[0].mxu0
      %v2469 = vadd.f32 %v1753, %v2468
      %v2470 = vpop.f32.mrb[0].mxu0
      %2471 = vmatprep.mubr.bf16.mxu0 0
      %2472 = vmatmul.mubr.bf16.gmra.mrb[0].mxu0 %v1948
      %v2473 = vpop.f32.mrb[0].mxu0
      %v2474 = vadd.f32 %v1753, %v2473
      %v2475 = vpop.f32.mrb[0].mxu0
      %v2476 = vpop.f32.mrb[0].mxu0
      %v2477 = vadd.f32 %v1753, %v2476
      %v2478 = vpop.f32.mrb[0].mxu0
      %2479 = vmatprep.mubr.bf16.mxu0 0
      %2480 = vmatmul.mubr.bf16.gmra.mrb[0].mxu0 %v1951
      %v2481 = vpop.f32.mrb[0].mxu0
      %v2482 = vadd.f32 %v1753, %v2481
      %v2483 = vpop.f32.mrb[0].mxu0
      %v2484 = vpop.f32.mrb[0].mxu0
      %v2485 = vadd.f32 %v1753, %v2484
      %v2486 = vpop.f32.mrb[0].mxu0
      %2487 = vmatprep.mubr.bf16.mxu0 0
      %2488 = vmatmul.mubr.bf16.gmra.mrb[0].mxu0 %v1954
      %v2489 = vpop.f32.mrb[0].mxu0
      %v2490 = vadd.f32 %v1753, %v2489
      %v2491 = vpop.f32.mrb[0].mxu0
      %v2492 = vpop.f32.mrb[0].mxu0
      %v2493 = vadd.f32 %v1753, %v2492
      %v2494 = vpop.f32.mrb[0].mxu0
      %2495 = vmatprep.mubr.bf16.mxu0 0
      %2496 = vmatmul.mubr.bf16.gmra.mrb[0].mxu0 %v1957
      %v2497 = vpop.f32.mrb[0].mxu0
      %v2498 = vadd.f32 %v1753, %v2497
      %v2499 = vpop.f32.mrb[0].mxu0
      %v2500 = vpop.f32.mrb[0].mxu0
      %v2501 = vadd.f32 %v1753, %v2500
      %v2502 = vpop.f32.mrb[0].mxu0
      %2503 = vdwg.mxu0
      %v2504 = vmax.f32 %v1994, 0.0
      %v2505 = vmax.f32 %v1997, 0.0
      %v2506 = vmax.f32 %v2002, 0.0
      %v2507 = vmax.f32 %v2005, 0.0
      %v2508 = vmax.f32 %v2010, 0.0
      %v2509 = vmax.f32 %v2013, 0.0
      %v2510 = vmax.f32 %v2018, 0.0
      %v2511 = vmax.f32 %v2021, 0.0
      %v2512 = vmax.f32 %v2026, 0.0
      %v2513 = vmax.f32 %v2029, 0.0
      %v2514 = vmax.f32 %v2034, 0.0
      %v2515 = vmax.f32 %v2037, 0.0
      %v2516 = vmax.f32 %v2042, 0.0
      %v2517 = vmax.f32 %v2045, 0.0
      %v2518 = vmax.f32 %v2050, 0.0
      %v2519 = vmax.f32 %v2053, 0.0
      %v2520 = vmax.f32 %v2058, 0.0
      %v2521 = vmax.f32 %v2061, 0.0
      %v2522 = vmax.f32 %v2066, 0.0
      %v2523 = vmax.f32 %v2069, 0.0
      %v2524 = vmax.f32 %v2074, 0.0
      %v2525 = vmax.f32 %v2077, 0.0
      %v2526 = vmax.f32 %v2082, 0.0
      %v2527 = vmax.f32 %v2085, 0.0
      %v2528 = vmax.f32 %v2090, 0.0
      %v2529 = vmax.f32 %v2093, 0.0
      %v2530 = vmax.f32 %v2098, 0.0
      %v2531 = vmax.f32 %v2101, 0.0
      %v2532 = vmax.f32 %v2106, 0.0
      %v2533 = vmax.f32 %v2109, 0.0
      %v2534 = vmax.f32 %v2114, 0.0
      %v2535 = vmax.f32 %v2117, 0.0
      %v2536 = vmax.f32 %v2122, 0.0
      %v2537 = vmax.f32 %v2125, 0.0
      %v2538 = vmax.f32 %v2130, 0.0
      %v2539 = vmax.f32 %v2133, 0.0
      %v2540 = vmax.f32 %v2138, 0.0
      %v2541 = vmax.f32 %v2141, 0.0
      %v2542 = vmax.f32 %v2146, 0.0
      %v2543 = vmax.f32 %v2149, 0.0
      %v2544 = vmax.f32 %v2154, 0.0
      %v2545 = vmax.f32 %v2157, 0.0
      %v2546 = vmax.f32 %v2162, 0.0
      %v2547 = vmax.f32 %v2165, 0.0
      %v2548 = vmax.f32 %v2170, 0.0
      %v2549 = vmax.f32 %v2173, 0.0
      %v2550 = vmax.f32 %v2178, 0.0
      %v2551 = vmax.f32 %v2181, 0.0
      %v2552 = vmax.f32 %v2186, 0.0
      %v2553 = vmax.f32 %v2189, 0.0
      %v2554 = vmax.f32 %v2194, 0.0
      %v2555 = vmax.f32 %v2197, 0.0
      %v2556 = vmax.f32 %v2202, 0.0
      %v2557 = vmax.f32 %v2205, 0.0
      %v2558 = vmax.f32 %v2210, 0.0
      %v2559 = vmax.f32 %v2213, 0.0
      %v2560 = vmax.f32 %v2218, 0.0
      %v2561 = vmax.f32 %v2221, 0.0
      %v2562 = vmax.f32 %v2226, 0.0
      %v2563 = vmax.f32 %v2229, 0.0
      %v2564 = vmax.f32 %v2234, 0.0
      %v2565 = vmax.f32 %v2237, 0.0
      %v2566 = vmax.f32 %v2242, 0.0
      %v2567 = vmax.f32 %v2245, 0.0
      %v2568 = vmax.f32 %v2250, 0.0
      %v2569 = vmax.f32 %v2253, 0.0
      %v2570 = vmax.f32 %v2258, 0.0
      %v2571 = vmax.f32 %v2261, 0.0
      %v2572 = vmax.f32 %v2266, 0.0
      %v2573 = vmax.f32 %v2269, 0.0
      %v2574 = vmax.f32 %v2274, 0.0
      %v2575 = vmax.f32 %v2277, 0.0
      %v2576 = vmax.f32 %v2282, 0.0
      %v2577 = vmax.f32 %v2285, 0.0
      %v2578 = vmax.f32 %v2290, 0.0
      %v2579 = vmax.f32 %v2293, 0.0
      %v2580 = vmax.f32 %v2298, 0.0
      %v2581 = vmax.f32 %v2301, 0.0
      %v2582 = vmax.f32 %v2306, 0.0
      %v2583 = vmax.f32 %v2309, 0.0
      %v2584 = vmax.f32 %v2314, 0.0
      %v2585 = vmax.f32 %v2317, 0.0
      %v2586 = vmax.f32 %v2322, 0.0
      %v2587 = vmax.f32 %v2325, 0.0
      %v2588 = vmax.f32 %v2330, 0.0
      %v2589 = vmax.f32 %v2333, 0.0
      %v2590 = vmax.f32 %v2338, 0.0
      %v2591 = vmax.f32 %v2341, 0.0
      %v2592 = vmax.f32 %v2346, 0.0
      %v2593 = vmax.f32 %v2349, 0.0
      %v2594 = vmax.f32 %v2354, 0.0
      %v2595 = vmax.f32 %v2357, 0.0
      %v2596 = vmax.f32 %v2362, 0.0
      %v2597 = vmax.f32 %v2365, 0.0
      %v2598 = vmax.f32 %v2370, 0.0
      %v2599 = vmax.f32 %v2373, 0.0
      %v2600 = vmax.f32 %v2378, 0.0
      %v2601 = vmax.f32 %v2381, 0.0
      %v2602 = vmax.f32 %v2386, 0.0
      %v2603 = vmax.f32 %v2389, 0.0
      %v2604 = vmax.f32 %v2394, 0.0
      %v2605 = vmax.f32 %v2397, 0.0
      %v2606 = vmax.f32 %v2402, 0.0
      %v2607 = vmax.f32 %v2405, 0.0
      %v2608 = vmax.f32 %v2410, 0.0
      %v2609 = vmax.f32 %v2413, 0.0
      %v2610 = vmax.f32 %v2418, 0.0
      %v2611 = vmax.f32 %v2421, 0.0
      %v2612 = vmax.f32 %v2426, 0.0
      %v2613 = vmax.f32 %v2429, 0.0
      %v2614 = vmax.f32 %v2434, 0.0
      %v2615 = vmax.f32 %v2437, 0.0
      %v2616 = vmax.f32 %v2442, 0.0
      %v2617 = vmax.f32 %v2445, 0.0
      %v2618 = vmax.f32 %v2450, 0.0
      %v2619 = vmax.f32 %v2453, 0.0
      %v2620 = vmax.f32 %v2458, 0.0
      %v2621 = vmax.f32 %v2461, 0.0
      %v2622 = vmax.f32 %v2466, 0.0
      %v2623 = vmax.f32 %v2469, 0.0
      %v2624 = vmax.f32 %v2474, 0.0
      %v2625 = vmax.f32 %v2477, 0.0
      %v2626 = vmax.f32 %v2482, 0.0
      %v2627 = vmax.f32 %v2485, 0.0
      %v2628 = vmax.f32 %v2490, 0.0
      %v2629 = vmax.f32 %v2493, 0.0
      %v2630 = vmax.f32 %v2498, 0.0
      %v2631 = vmax.f32 %v2501, 0.0
      %v2632 = vpack.c.bf16 %v2505, %v2504
      %v2633 = vpack.c.bf16 %v2507, %v2506
      %v2634 = vpack.c.bf16 %v2509, %v2508
      %v2635 = vpack.c.bf16 %v2511, %v2510
      %v2636 = vpack.c.bf16 %v2513, %v2512
      %v2637 = vpack.c.bf16 %v2515, %v2514
      %v2638 = vpack.c.bf16 %v2517, %v2516
      %v2639 = vpack.c.bf16 %v2519, %v2518
      %v2640 = vpack.c.bf16 %v2521, %v2520
      %v2641 = vpack.c.bf16 %v2523, %v2522
      %v2642 = vpack.c.bf16 %v2525, %v2524
      %v2643 = vpack.c.bf16 %v2527, %v2526
      %v2644 = vpack.c.bf16 %v2529, %v2528
      %v2645 = vpack.c.bf16 %v2531, %v2530
      %v2646 = vpack.c.bf16 %v2533, %v2532
      %v2647 = vpack.c.bf16 %v2535, %v2534
      %v2648 = vpack.c.bf16 %v2537, %v2536
      %v2649 = vpack.c.bf16 %v2539, %v2538
      %v2650 = vpack.c.bf16 %v2541, %v2540
      %v2651 = vpack.c.bf16 %v2543, %v2542
      %v2652 = vpack.c.bf16 %v2545, %v2544
      %v2653 = vpack.c.bf16 %v2547, %v2546
      %v2654 = vpack.c.bf16 %v2549, %v2548
      %v2655 = vpack.c.bf16 %v2551, %v2550
      %v2656 = vpack.c.bf16 %v2553, %v2552
      %v2657 = vpack.c.bf16 %v2555, %v2554
      %v2658 = vpack.c.bf16 %v2557, %v2556
      %v2659 = vpack.c.bf16 %v2559, %v2558
      %v2660 = vpack.c.bf16 %v2561, %v2560
      %v2661 = vpack.c.bf16 %v2563, %v2562
      %v2662 = vpack.c.bf16 %v2565, %v2564
      %v2663 = vpack.c.bf16 %v2567, %v2566
      %v2664 = vpack.c.bf16 %v2569, %v2568
      %v2665 = vpack.c.bf16 %v2571, %v2570
      %v2666 = vpack.c.bf16 %v2573, %v2572
      %v2667 = vpack.c.bf16 %v2575, %v2574
      %v2668 = vpack.c.bf16 %v2577, %v2576
      %v2669 = vpack.c.bf16 %v2579, %v2578
      %v2670 = vpack.c.bf16 %v2581, %v2580
      %v2671 = vpack.c.bf16 %v2583, %v2582
      %v2672 = vpack.c.bf16 %v2585, %v2584
      %v2673 = vpack.c.bf16 %v2587, %v2586
      %v2674 = vpack.c.bf16 %v2589, %v2588
      %v2675 = vpack.c.bf16 %v2591, %v2590
      %v2676 = vpack.c.bf16 %v2593, %v2592
      %v2677 = vpack.c.bf16 %v2595, %v2594
      %v2678 = vpack.c.bf16 %v2597, %v2596
      %v2679 = vpack.c.bf16 %v2599, %v2598
      %v2680 = vpack.c.bf16 %v2601, %v2600
      %v2681 = vpack.c.bf16 %v2603, %v2602
      %v2682 = vpack.c.bf16 %v2605, %v2604
      %v2683 = vpack.c.bf16 %v2607, %v2606
      %v2684 = vpack.c.bf16 %v2609, %v2608
      %v2685 = vpack.c.bf16 %v2611, %v2610
      %v2686 = vpack.c.bf16 %v2613, %v2612
      %v2687 = vpack.c.bf16 %v2615, %v2614
      %v2688 = vpack.c.bf16 %v2617, %v2616
      %v2689 = vpack.c.bf16 %v2619, %v2618
      %v2690 = vpack.c.bf16 %v2621, %v2620
      %v2691 = vpack.c.bf16 %v2623, %v2622
      %v2692 = vpack.c.bf16 %v2625, %v2624
      %v2693 = vpack.c.bf16 %v2627, %v2626
      %v2694 = vpack.c.bf16 %v2629, %v2628
      %v2695 = vpack.c.bf16 %v2631, %v2630
      %v2696 = vld [vmem:[%s3] sm:$0xf]
      %v2697 = vld [vmem:[%s3 + $0x4] sm:$0xf]
      %v2698 = vld [vmem:[%s4 + $0x2] sm:$0x1]
      %v2699 = vlaneseq
      %v2700 = vshrl.u32 %v2699, 7
      %v2701 = vsub.s32 0, %v2700
      %v2702 = vrot.slane %v2698, %v2701
      %v2705 = vunpack.c.l.b16 %v2696
      %v2706 = vunpack.c.l.b16 %v2697
      %v2707 = vpack.c.b16 %v2706, %v2705
      %v2710 = vsel %vm815, %v2632, 0
      %v2713 = vsel %vm815, %v2633, 0
      %v2716 = vsel %vm815, %v2634, 0
      %v2719 = vsel %vm815, %v2635, 0
      %v2722 = vsel %vm815, %v2636, 0
      %v2725 = vsel %vm815, %v2637, 0
      %v2728 = vsel %vm815, %v2638, 0
      %v2731 = vsel %vm815, %v2639, 0
      %v2734 = vsel %vm815, %v2640, 0
      %v2737 = vsel %vm815, %v2641, 0
      %v2740 = vsel %vm815, %v2642, 0
      %v2743 = vsel %vm815, %v2643, 0
      %v2746 = vsel %vm815, %v2644, 0
      %v2749 = vsel %vm815, %v2645, 0
      %v2752 = vsel %vm815, %v2646, 0
      %v2755 = vsel %vm815, %v2647, 0
      %v2758 = vsel %vm815, %v2648, 0
      %v2761 = vsel %vm815, %v2649, 0
      %v2764 = vsel %vm815, %v2650, 0
      %v2767 = vsel %vm815, %v2651, 0
      %v2770 = vsel %vm815, %v2652, 0
      %v2773 = vsel %vm815, %v2653, 0
      %v2776 = vsel %vm815, %v2654, 0
      %v2779 = vsel %vm815, %v2655, 0
      %v2782 = vsel %vm815, %v2656, 0
      %v2785 = vsel %vm815, %v2657, 0
      %v2788 = vsel %vm815, %v2658, 0
      %v2791 = vsel %vm815, %v2659, 0
      %v2794 = vsel %vm815, %v2660, 0
      %v2797 = vsel %vm815, %v2661, 0
      %v2800 = vsel %vm815, %v2662, 0
      %v2803 = vsel %vm815, %v2663, 0
      %v2806 = vsel %vm815, %v2664, 0
      %v2809 = vsel %vm815, %v2665, 0
      %v2812 = vsel %vm815, %v2666, 0
      %v2815 = vsel %vm815, %v2667, 0
      %v2818 = vsel %vm815, %v2668, 0
      %v2821 = vsel %vm815, %v2669, 0
      %v2824 = vsel %vm815, %v2670, 0
      %v2827 = vsel %vm815, %v2671, 0
      %v2830 = vsel %vm815, %v2672, 0
      %v2833 = vsel %vm815, %v2673, 0
      %v2836 = vsel %vm815, %v2674, 0
      %v2839 = vsel %vm815, %v2675, 0
      %v2842 = vsel %vm815, %v2676, 0
      %v2845 = vsel %vm815, %v2677, 0
      %v2848 = vsel %vm815, %v2678, 0
      %v2851 = vsel %vm815, %v2679, 0
      %v2854 = vsel %vm815, %v2680, 0
      %v2857 = vsel %vm815, %v2681, 0
      %v2860 = vsel %vm815, %v2682, 0
      %v2863 = vsel %vm815, %v2683, 0
      %v2866 = vsel %vm815, %v2684, 0
      %v2869 = vsel %vm815, %v2685, 0
      %v2872 = vsel %vm815, %v2686, 0
      %v2875 = vsel %vm815, %v2687, 0
      %v2878 = vsel %vm815, %v2688, 0
      %v2881 = vsel %vm815, %v2689, 0
      %v2884 = vsel %vm815, %v2690, 0
      %v2887 = vsel %vm815, %v2691, 0
      %v2890 = vsel %vm815, %v2692, 0
      %v2893 = vsel %vm815, %v2693, 0
      %v2896 = vsel %vm815, %v2694, 0
      %v2899 = vsel %vm815, %v2695, 0
      %2901 = vmatprep.subr.bf16.mxu0 0
      %2902 = vmatpush1.bf16.msra.mxu0 %v2707
      %2903 = vmatprep.subr.bf16.mxu0 0
      %2904 = vmatpush1.bf16.msra.mxu0 0
      %2905 = vmatprep.subr.bf16.mxu0 0
      %2906 = vmatpush1.bf16.msra.mxu0 0
      %2907 = vmatprep.subr.bf16.mxu0 0
      %2908 = vmatpush1.bf16.msra.mxu0 0
      %2909 = vmatprep.subr.bf16.mxu0 0
      %2910 = vmatpush1.bf16.msra.mxu0 0
      %2911 = vmatprep.subr.bf16.mxu0 0
      %2912 = vmatpush1.bf16.msra.mxu0 0
      %2913 = vmatprep.subr.bf16.mxu0 0
      %2914 = vmatpush1.bf16.msra.mxu0 0
      %2915 = vmatprep.subr.bf16.mxu0 0
      %2916 = vmatpush1.bf16.msra.mxu0 0
      %2917 = vmatprep.subr.bf16.mxu0 0
      %2918 = vmatpush1.bf16.msra.mxu0 0
      %2919 = vmatprep.subr.bf16.mxu0 0
      %2920 = vmatpush1.bf16.msra.mxu0 0
      %2921 = vmatprep.subr.bf16.mxu0 0
      %2922 = vmatpush1.bf16.msra.mxu0 0
      %2923 = vmatprep.subr.bf16.mxu0 0
      %2924 = vmatpush1.bf16.msra.mxu0 0
      %2925 = vmatprep.subr.bf16.mxu0 0
      %2926 = vmatpush1.bf16.msra.mxu0 0
      %2927 = vmatprep.subr.bf16.mxu0 0
      %2928 = vmatpush1.bf16.msra.mxu0 0
      %2929 = vmatprep.subr.bf16.mxu0 0
      %2930 = vmatpush1.bf16.msra.mxu0 0
      %2931 = vmatprep.subr.bf16.mxu0 0
      %2932 = vmatpush1.bf16.msra.mxu0 0
      %2933 = vmatprep.mubr.bf16.mxu0 0
      %2934 = vmatmul.mubr.bf16.gmra.mrb[0].mxu0 %v2710
      %v2935 = vpop.f32.mrb[0].mxu0
      %v2936 = vadd.f32 %v2702, %v2935
      %v2937 = vpop.f32.mrb[0].mxu0
      %v2938 = vpop.f32.mrb[0].mxu0
      %v2939 = vadd.f32 %v2702, %v2938
      %v2940 = vpop.f32.mrb[0].mxu0
      %2941 = vmatprep.mubr.bf16.mxu0 0
      %2942 = vmatmul.mubr.bf16.gmra.mrb[0].mxu0 %v2713
      %v2943 = vpop.f32.mrb[0].mxu0
      %v2944 = vadd.f32 %v2702, %v2943
      %v2945 = vpop.f32.mrb[0].mxu0
      %v2946 = vpop.f32.mrb[0].mxu0
      %v2947 = vadd.f32 %v2702, %v2946
      %v2948 = vpop.f32.mrb[0].mxu0
      %2949 = vmatprep.mubr.bf16.mxu0 0
      %2950 = vmatmul.mubr.bf16.gmra.mrb[0].mxu0 %v2716
      %v2951 = vpop.f32.mrb[0].mxu0
      %v2952 = vadd.f32 %v2702, %v2951
      %v2953 = vpop.f32.mrb[0].mxu0
      %v2954 = vpop.f32.mrb[0].mxu0
      %v2955 = vadd.f32 %v2702, %v2954
      %v2956 = vpop.f32.mrb[0].mxu0
      %2957 = vmatprep.mubr.bf16.mxu0 0
      %2958 = vmatmul.mubr.bf16.gmra.mrb[0].mxu0 %v2719
      %v2959 = vpop.f32.mrb[0].mxu0
      %v2960 = vadd.f32 %v2702, %v2959
      %v2961 = vpop.f32.mrb[0].mxu0
      %v2962 = vpop.f32.mrb[0].mxu0
      %v2963 = vadd.f32 %v2702, %v2962
      %v2964 = vpop.f32.mrb[0].mxu0
      %2965 = vmatprep.mubr.bf16.mxu0 0
      %2966 = vmatmul.mubr.bf16.gmra.mrb[0].mxu0 %v2722
      %v2967 = vpop.f32.mrb[0].mxu0
      %v2968 = vadd.f32 %v2702, %v2967
      %v2969 = vpop.f32.mrb[0].mxu0
      %v2970 = vpop.f32.mrb[0].mxu0
      %v2971 = vadd.f32 %v2702, %v2970
      %v2972 = vpop.f32.mrb[0].mxu0
      %2973 = vmatprep.mubr.bf16.mxu0 0
      %2974 = vmatmul.mubr.bf16.gmra.mrb[0].mxu0 %v2725
      %v2975 = vpop.f32.mrb[0].mxu0
      %v2976 = vadd.f32 %v2702, %v2975
      %v2977 = vpop.f32.mrb[0].mxu0
      %v2978 = vpop.f32.mrb[0].mxu0
      %v2979 = vadd.f32 %v2702, %v2978
      %v2980 = vpop.f32.mrb[0].mxu0
      %2981 = vmatprep.mubr.bf16.mxu0 0
      %2982 = vmatmul.mubr.bf16.gmra.mrb[0].mxu0 %v2728
      %v2983 = vpop.f32.mrb[0].mxu0
      %v2984 = vadd.f32 %v2702, %v2983
      %v2985 = vpop.f32.mrb[0].mxu0
      %v2986 = vpop.f32.mrb[0].mxu0
      %v2987 = vadd.f32 %v2702, %v2986
      %v2988 = vpop.f32.mrb[0].mxu0
      %2989 = vmatprep.mubr.bf16.mxu0 0
      %2990 = vmatmul.mubr.bf16.gmra.mrb[0].mxu0 %v2731
      %v2991 = vpop.f32.mrb[0].mxu0
      %v2992 = vadd.f32 %v2702, %v2991
      %v2993 = vpop.f32.mrb[0].mxu0
      %v2994 = vpop.f32.mrb[0].mxu0
      %v2995 = vadd.f32 %v2702, %v2994
      %v2996 = vpop.f32.mrb[0].mxu0
      %2997 = vmatprep.mubr.bf16.mxu0 0
      %2998 = vmatmul.mubr.bf16.gmra.mrb[0].mxu0 %v2734
      %v2999 = vpop.f32.mrb[0].mxu0
      %v3000 = vadd.f32 %v2702, %v2999
      %v3001 = vpop.f32.mrb[0].mxu0
      %v3002 = vpop.f32.mrb[0].mxu0
      %v3003 = vadd.f32 %v2702, %v3002
      %v3004 = vpop.f32.mrb[0].mxu0
      %3005 = vmatprep.mubr.bf16.mxu0 0
      %3006 = vmatmul.mubr.bf16.gmra.mrb[0].mxu0 %v2737
      %v3007 = vpop.f32.mrb[0].mxu0
      %v3008 = vadd.f32 %v2702, %v3007
      %v3009 = vpop.f32.mrb[0].mxu0
      %v3010 = vpop.f32.mrb[0].mxu0
      %v3011 = vadd.f32 %v2702, %v3010
      %v3012 = vpop.f32.mrb[0].mxu0
      %3013 = vmatprep.mubr.bf16.mxu0 0
      %3014 = vmatmul.mubr.bf16.gmra.mrb[0].mxu0 %v2740
      %v3015 = vpop.f32.mrb[0].mxu0
      %v3016 = vadd.f32 %v2702, %v3015
      %v3017 = vpop.f32.mrb[0].mxu0
      %v3018 = vpop.f32.mrb[0].mxu0
      %v3019 = vadd.f32 %v2702, %v3018
      %v3020 = vpop.f32.mrb[0].mxu0
      %3021 = vmatprep.mubr.bf16.mxu0 0
      %3022 = vmatmul.mubr.bf16.gmra.mrb[0].mxu0 %v2743
      %v3023 = vpop.f32.mrb[0].mxu0
      %v3024 = vadd.f32 %v2702, %v3023
      %v3025 = vpop.f32.mrb[0].mxu0
      %v3026 = vpop.f32.mrb[0].mxu0
      %v3027 = vadd.f32 %v2702, %v3026
      %v3028 = vpop.f32.mrb[0].mxu0
      %3029 = vmatprep.mubr.bf16.mxu0 0
      %3030 = vmatmul.mubr.bf16.gmra.mrb[0].mxu0 %v2746
      %v3031 = vpop.f32.mrb[0].mxu0
      %v3032 = vadd.f32 %v2702, %v3031
      %v3033 = vpop.f32.mrb[0].mxu0
      %v3034 = vpop.f32.mrb[0].mxu0
      %v3035 = vadd.f32 %v2702, %v3034
      %v3036 = vpop.f32.mrb[0].mxu0
      %3037 = vmatprep.mubr.bf16.mxu0 0
      %3038 = vmatmul.mubr.bf16.gmra.mrb[0].mxu0 %v2749
      %v3039 = vpop.f32.mrb[0].mxu0
      %v3040 = vadd.f32 %v2702, %v3039
      %v3041 = vpop.f32.mrb[0].mxu0
      %v3042 = vpop.f32.mrb[0].mxu0
      %v3043 = vadd.f32 %v2702, %v3042
      %v3044 = vpop.f32.mrb[0].mxu0
      %3045 = vmatprep.mubr.bf16.mxu0 0
      %3046 = vmatmul.mubr.bf16.gmra.mrb[0].mxu0 %v2752
      %v3047 = vpop.f32.mrb[0].mxu0
      %v3048 = vadd.f32 %v2702, %v3047
      %v3049 = vpop.f32.mrb[0].mxu0
      %v3050 = vpop.f32.mrb[0].mxu0
      %v3051 = vadd.f32 %v2702, %v3050
      %v3052 = vpop.f32.mrb[0].mxu0
      %3053 = vmatprep.mubr.bf16.mxu0 0
      %3054 = vmatmul.mubr.bf16.gmra.mrb[0].mxu0 %v2755
      %v3055 = vpop.f32.mrb[0].mxu0
      %v3056 = vadd.f32 %v2702, %v3055
      %v3057 = vpop.f32.mrb[0].mxu0
      %v3058 = vpop.f32.mrb[0].mxu0
      %v3059 = vadd.f32 %v2702, %v3058
      %v3060 = vpop.f32.mrb[0].mxu0
      %3061 = vmatprep.mubr.bf16.mxu0 0
      %3062 = vmatmul.mubr.bf16.gmra.mrb[0].mxu0 %v2758
      %v3063 = vpop.f32.mrb[0].mxu0
      %v3064 = vadd.f32 %v2702, %v3063
      %v3065 = vpop.f32.mrb[0].mxu0
      %v3066 = vpop.f32.mrb[0].mxu0
      %v3067 = vadd.f32 %v2702, %v3066
      %v3068 = vpop.f32.mrb[0].mxu0
      %3069 = vmatprep.mubr.bf16.mxu0 0
      %3070 = vmatmul.mubr.bf16.gmra.mrb[0].mxu0 %v2761
      %v3071 = vpop.f32.mrb[0].mxu0
      %v3072 = vadd.f32 %v2702, %v3071
      %v3073 = vpop.f32.mrb[0].mxu0
      %v3074 = vpop.f32.mrb[0].mxu0
      %v3075 = vadd.f32 %v2702, %v3074
      %v3076 = vpop.f32.mrb[0].mxu0
      %3077 = vmatprep.mubr.bf16.mxu0 0
      %3078 = vmatmul.mubr.bf16.gmra.mrb[0].mxu0 %v2764
      %v3079 = vpop.f32.mrb[0].mxu0
      %v3080 = vadd.f32 %v2702, %v3079
      %v3081 = vpop.f32.mrb[0].mxu0
      %v3082 = vpop.f32.mrb[0].mxu0
      %v3083 = vadd.f32 %v2702, %v3082
      %v3084 = vpop.f32.mrb[0].mxu0
      %3085 = vmatprep.mubr.bf16.mxu0 0
      %3086 = vmatmul.mubr.bf16.gmra.mrb[0].mxu0 %v2767
      %v3087 = vpop.f32.mrb[0].mxu0
      %v3088 = vadd.f32 %v2702, %v3087
      %v3089 = vpop.f32.mrb[0].mxu0
      %v3090 = vpop.f32.mrb[0].mxu0
      %v3091 = vadd.f32 %v2702, %v3090
      %v3092 = vpop.f32.mrb[0].mxu0
      %3093 = vmatprep.mubr.bf16.mxu0 0
      %3094 = vmatmul.mubr.bf16.gmra.mrb[0].mxu0 %v2770
      %v3095 = vpop.f32.mrb[0].mxu0
      %v3096 = vadd.f32 %v2702, %v3095
      %v3097 = vpop.f32.mrb[0].mxu0
      %v3098 = vpop.f32.mrb[0].mxu0
      %v3099 = vadd.f32 %v2702, %v3098
      %v3100 = vpop.f32.mrb[0].mxu0
      %3101 = vmatprep.mubr.bf16.mxu0 0
      %3102 = vmatmul.mubr.bf16.gmra.mrb[0].mxu0 %v2773
      %v3103 = vpop.f32.mrb[0].mxu0
      %v3104 = vadd.f32 %v2702, %v3103
      %v3105 = vpop.f32.mrb[0].mxu0
      %v3106 = vpop.f32.mrb[0].mxu0
      %v3107 = vadd.f32 %v2702, %v3106
      %v3108 = vpop.f32.mrb[0].mxu0
      %3109 = vmatprep.mubr.bf16.mxu0 0
      %3110 = vmatmul.mubr.bf16.gmra.mrb[0].mxu0 %v2776
      %v3111 = vpop.f32.mrb[0].mxu0
      %v3112 = vadd.f32 %v2702, %v3111
      %v3113 = vpop.f32.mrb[0].mxu0
      %v3114 = vpop.f32.mrb[0].mxu0
      %v3115 = vadd.f32 %v2702, %v3114
      %v3116 = vpop.f32.mrb[0].mxu0
      %3117 = vmatprep.mubr.bf16.mxu0 0
      %3118 = vmatmul.mubr.bf16.gmra.mrb[0].mxu0 %v2779
      %v3119 = vpop.f32.mrb[0].mxu0
      %v3120 = vadd.f32 %v2702, %v3119
      %v3121 = vpop.f32.mrb[0].mxu0
      %v3122 = vpop.f32.mrb[0].mxu0
      %v3123 = vadd.f32 %v2702, %v3122
      %v3124 = vpop.f32.mrb[0].mxu0
      %3125 = vmatprep.mubr.bf16.mxu0 0
      %3126 = vmatmul.mubr.bf16.gmra.mrb[0].mxu0 %v2782
      %v3127 = vpop.f32.mrb[0].mxu0
      %v3128 = vadd.f32 %v2702, %v3127
      %v3129 = vpop.f32.mrb[0].mxu0
      %v3130 = vpop.f32.mrb[0].mxu0
      %v3131 = vadd.f32 %v2702, %v3130
      %v3132 = vpop.f32.mrb[0].mxu0
      %3133 = vmatprep.mubr.bf16.mxu0 0
      %3134 = vmatmul.mubr.bf16.gmra.mrb[0].mxu0 %v2785
      %v3135 = vpop.f32.mrb[0].mxu0
      %v3136 = vadd.f32 %v2702, %v3135
      %v3137 = vpop.f32.mrb[0].mxu0
      %v3138 = vpop.f32.mrb[0].mxu0
      %v3139 = vadd.f32 %v2702, %v3138
      %v3140 = vpop.f32.mrb[0].mxu0
      %3141 = vmatprep.mubr.bf16.mxu0 0
      %3142 = vmatmul.mubr.bf16.gmra.mrb[0].mxu0 %v2788
      %v3143 = vpop.f32.mrb[0].mxu0
      %v3144 = vadd.f32 %v2702, %v3143
      %v3145 = vpop.f32.mrb[0].mxu0
      %v3146 = vpop.f32.mrb[0].mxu0
      %v3147 = vadd.f32 %v2702, %v3146
      %v3148 = vpop.f32.mrb[0].mxu0
      %3149 = vmatprep.mubr.bf16.mxu0 0
      %3150 = vmatmul.mubr.bf16.gmra.mrb[0].mxu0 %v2791
      %v3151 = vpop.f32.mrb[0].mxu0
      %v3152 = vadd.f32 %v2702, %v3151
      %v3153 = vpop.f32.mrb[0].mxu0
      %v3154 = vpop.f32.mrb[0].mxu0
      %v3155 = vadd.f32 %v2702, %v3154
      %v3156 = vpop.f32.mrb[0].mxu0
      %3157 = vmatprep.mubr.bf16.mxu0 0
      %3158 = vmatmul.mubr.bf16.gmra.mrb[0].mxu0 %v2794
      %v3159 = vpop.f32.mrb[0].mxu0
      %v3160 = vadd.f32 %v2702, %v3159
      %v3161 = vpop.f32.mrb[0].mxu0
      %v3162 = vpop.f32.mrb[0].mxu0
      %v3163 = vadd.f32 %v2702, %v3162
      %v3164 = vpop.f32.mrb[0].mxu0
      %3165 = vmatprep.mubr.bf16.mxu0 0
      %3166 = vmatmul.mubr.bf16.gmra.mrb[0].mxu0 %v2797
      %v3167 = vpop.f32.mrb[0].mxu0
      %v3168 = vadd.f32 %v2702, %v3167
      %v3169 = vpop.f32.mrb[0].mxu0
      %v3170 = vpop.f32.mrb[0].mxu0
      %v3171 = vadd.f32 %v2702, %v3170
      %v3172 = vpop.f32.mrb[0].mxu0
      %3173 = vmatprep.mubr.bf16.mxu0 0
      %3174 = vmatmul.mubr.bf16.gmra.mrb[0].mxu0 %v2800
      %v3175 = vpop.f32.mrb[0].mxu0
      %v3176 = vadd.f32 %v2702, %v3175
      %v3177 = vpop.f32.mrb[0].mxu0
      %v3178 = vpop.f32.mrb[0].mxu0
      %v3179 = vadd.f32 %v2702, %v3178
      %v3180 = vpop.f32.mrb[0].mxu0
      %3181 = vmatprep.mubr.bf16.mxu0 0
      %3182 = vmatmul.mubr.bf16.gmra.mrb[0].mxu0 %v2803
      %v3183 = vpop.f32.mrb[0].mxu0
      %v3184 = vadd.f32 %v2702, %v3183
      %v3185 = vpop.f32.mrb[0].mxu0
      %v3186 = vpop.f32.mrb[0].mxu0
      %v3187 = vadd.f32 %v2702, %v3186
      %v3188 = vpop.f32.mrb[0].mxu0
      %3189 = vmatprep.mubr.bf16.mxu0 0
      %3190 = vmatmul.mubr.bf16.gmra.mrb[0].mxu0 %v2806
      %v3191 = vpop.f32.mrb[0].mxu0
      %v3192 = vadd.f32 %v2702, %v3191
      %v3193 = vpop.f32.mrb[0].mxu0
      %v3194 = vpop.f32.mrb[0].mxu0
      %v3195 = vadd.f32 %v2702, %v3194
      %v3196 = vpop.f32.mrb[0].mxu0
      %3197 = vmatprep.mubr.bf16.mxu0 0
      %3198 = vmatmul.mubr.bf16.gmra.mrb[0].mxu0 %v2809
      %v3199 = vpop.f32.mrb[0].mxu0
      %v3200 = vadd.f32 %v2702, %v3199
      %v3201 = vpop.f32.mrb[0].mxu0
      %v3202 = vpop.f32.mrb[0].mxu0
      %v3203 = vadd.f32 %v2702, %v3202
      %v3204 = vpop.f32.mrb[0].mxu0
      %3205 = vmatprep.mubr.bf16.mxu0 0
      %3206 = vmatmul.mubr.bf16.gmra.mrb[0].mxu0 %v2812
      %v3207 = vpop.f32.mrb[0].mxu0
      %v3208 = vadd.f32 %v2702, %v3207
      %v3209 = vpop.f32.mrb[0].mxu0
      %v3210 = vpop.f32.mrb[0].mxu0
      %v3211 = vadd.f32 %v2702, %v3210
      %v3212 = vpop.f32.mrb[0].mxu0
      %3213 = vmatprep.mubr.bf16.mxu0 0
      %3214 = vmatmul.mubr.bf16.gmra.mrb[0].mxu0 %v2815
      %v3215 = vpop.f32.mrb[0].mxu0
      %v3216 = vadd.f32 %v2702, %v3215
      %v3217 = vpop.f32.mrb[0].mxu0
      %v3218 = vpop.f32.mrb[0].mxu0
      %v3219 = vadd.f32 %v2702, %v3218
      %v3220 = vpop.f32.mrb[0].mxu0
      %3221 = vmatprep.mubr.bf16.mxu0 0
      %3222 = vmatmul.mubr.bf16.gmra.mrb[0].mxu0 %v2818
      %v3223 = vpop.f32.mrb[0].mxu0
      %v3224 = vadd.f32 %v2702, %v3223
      %v3225 = vpop.f32.mrb[0].mxu0
      %v3226 = vpop.f32.mrb[0].mxu0
      %v3227 = vadd.f32 %v2702, %v3226
      %v3228 = vpop.f32.mrb[0].mxu0
      %3229 = vmatprep.mubr.bf16.mxu0 0
      %3230 = vmatmul.mubr.bf16.gmra.mrb[0].mxu0 %v2821
      %v3231 = vpop.f32.mrb[0].mxu0
      %v3232 = vadd.f32 %v2702, %v3231
      %v3233 = vpop.f32.mrb[0].mxu0
      %v3234 = vpop.f32.mrb[0].mxu0
      %v3235 = vadd.f32 %v2702, %v3234
      %v3236 = vpop.f32.mrb[0].mxu0
      %3237 = vmatprep.mubr.bf16.mxu0 0
      %3238 = vmatmul.mubr.bf16.gmra.mrb[0].mxu0 %v2824
      %v3239 = vpop.f32.mrb[0].mxu0
      %v3240 = vadd.f32 %v2702, %v3239
      %v3241 = vpop.f32.mrb[0].mxu0
      %v3242 = vpop.f32.mrb[0].mxu0
      %v3243 = vadd.f32 %v2702, %v3242
      %v3244 = vpop.f32.mrb[0].mxu0
      %3245 = vmatprep.mubr.bf16.mxu0 0
      %3246 = vmatmul.mubr.bf16.gmra.mrb[0].mxu0 %v2827
      %v3247 = vpop.f32.mrb[0].mxu0
      %v3248 = vadd.f32 %v2702, %v3247
      %v3249 = vpop.f32.mrb[0].mxu0
      %v3250 = vpop.f32.mrb[0].mxu0
      %v3251 = vadd.f32 %v2702, %v3250
      %v3252 = vpop.f32.mrb[0].mxu0
      %3253 = vmatprep.mubr.bf16.mxu0 0
      %3254 = vmatmul.mubr.bf16.gmra.mrb[0].mxu0 %v2830
      %v3255 = vpop.f32.mrb[0].mxu0
      %v3256 = vadd.f32 %v2702, %v3255
      %v3257 = vpop.f32.mrb[0].mxu0
      %v3258 = vpop.f32.mrb[0].mxu0
      %v3259 = vadd.f32 %v2702, %v3258
      %v3260 = vpop.f32.mrb[0].mxu0
      %3261 = vmatprep.mubr.bf16.mxu0 0
      %3262 = vmatmul.mubr.bf16.gmra.mrb[0].mxu0 %v2833
      %v3263 = vpop.f32.mrb[0].mxu0
      %v3264 = vadd.f32 %v2702, %v3263
      %v3265 = vpop.f32.mrb[0].mxu0
      %v3266 = vpop.f32.mrb[0].mxu0
      %v3267 = vadd.f32 %v2702, %v3266
      %v3268 = vpop.f32.mrb[0].mxu0
      %3269 = vmatprep.mubr.bf16.mxu0 0
      %3270 = vmatmul.mubr.bf16.gmra.mrb[0].mxu0 %v2836
      %v3271 = vpop.f32.mrb[0].mxu0
      %v3272 = vadd.f32 %v2702, %v3271
      %v3273 = vpop.f32.mrb[0].mxu0
      %v3274 = vpop.f32.mrb[0].mxu0
      %v3275 = vadd.f32 %v2702, %v3274
      %v3276 = vpop.f32.mrb[0].mxu0
      %3277 = vmatprep.mubr.bf16.mxu0 0
      %3278 = vmatmul.mubr.bf16.gmra.mrb[0].mxu0 %v2839
      %v3279 = vpop.f32.mrb[0].mxu0
      %v3280 = vadd.f32 %v2702, %v3279
      %v3281 = vpop.f32.mrb[0].mxu0
      %v3282 = vpop.f32.mrb[0].mxu0
      %v3283 = vadd.f32 %v2702, %v3282
      %v3284 = vpop.f32.mrb[0].mxu0
      %3285 = vmatprep.mubr.bf16.mxu0 0
      %3286 = vmatmul.mubr.bf16.gmra.mrb[0].mxu0 %v2842
      %v3287 = vpop.f32.mrb[0].mxu0
      %v3288 = vadd.f32 %v2702, %v3287
      %v3289 = vpop.f32.mrb[0].mxu0
      %v3290 = vpop.f32.mrb[0].mxu0
      %v3291 = vadd.f32 %v2702, %v3290
      %v3292 = vpop.f32.mrb[0].mxu0
      %3293 = vmatprep.mubr.bf16.mxu0 0
      %3294 = vmatmul.mubr.bf16.gmra.mrb[0].mxu0 %v2845
      %v3295 = vpop.f32.mrb[0].mxu0
      %v3296 = vadd.f32 %v2702, %v3295
      %v3297 = vpop.f32.mrb[0].mxu0
      %v3298 = vpop.f32.mrb[0].mxu0
      %v3299 = vadd.f32 %v2702, %v3298
      %v3300 = vpop.f32.mrb[0].mxu0
      %3301 = vmatprep.mubr.bf16.mxu0 0
      %3302 = vmatmul.mubr.bf16.gmra.mrb[0].mxu0 %v2848
      %v3303 = vpop.f32.mrb[0].mxu0
      %v3304 = vadd.f32 %v2702, %v3303
      %v3305 = vpop.f32.mrb[0].mxu0
      %v3306 = vpop.f32.mrb[0].mxu0
      %v3307 = vadd.f32 %v2702, %v3306
      %v3308 = vpop.f32.mrb[0].mxu0
      %3309 = vmatprep.mubr.bf16.mxu0 0
      %3310 = vmatmul.mubr.bf16.gmra.mrb[0].mxu0 %v2851
      %v3311 = vpop.f32.mrb[0].mxu0
      %v3312 = vadd.f32 %v2702, %v3311
      %v3313 = vpop.f32.mrb[0].mxu0
      %v3314 = vpop.f32.mrb[0].mxu0
      %v3315 = vadd.f32 %v2702, %v3314
      %v3316 = vpop.f32.mrb[0].mxu0
      %3317 = vmatprep.mubr.bf16.mxu0 0
      %3318 = vmatmul.mubr.bf16.gmra.mrb[0].mxu0 %v2854
      %v3319 = vpop.f32.mrb[0].mxu0
      %v3320 = vadd.f32 %v2702, %v3319
      %v3321 = vpop.f32.mrb[0].mxu0
      %v3322 = vpop.f32.mrb[0].mxu0
      %v3323 = vadd.f32 %v2702, %v3322
      %v3324 = vpop.f32.mrb[0].mxu0
      %3325 = vmatprep.mubr.bf16.mxu0 0
      %3326 = vmatmul.mubr.bf16.gmra.mrb[0].mxu0 %v2857
      %v3327 = vpop.f32.mrb[0].mxu0
      %v3328 = vadd.f32 %v2702, %v3327
      %v3329 = vpop.f32.mrb[0].mxu0
      %v3330 = vpop.f32.mrb[0].mxu0
      %v3331 = vadd.f32 %v2702, %v3330
      %v3332 = vpop.f32.mrb[0].mxu0
      %3333 = vmatprep.mubr.bf16.mxu0 0
      %3334 = vmatmul.mubr.bf16.gmra.mrb[0].mxu0 %v2860
      %v3335 = vpop.f32.mrb[0].mxu0
      %v3336 = vadd.f32 %v2702, %v3335
      %v3337 = vpop.f32.mrb[0].mxu0
      %v3338 = vpop.f32.mrb[0].mxu0
      %v3339 = vadd.f32 %v2702, %v3338
      %v3340 = vpop.f32.mrb[0].mxu0
      %3341 = vmatprep.mubr.bf16.mxu0 0
      %3342 = vmatmul.mubr.bf16.gmra.mrb[0].mxu0 %v2863
      %v3343 = vpop.f32.mrb[0].mxu0
      %v3344 = vadd.f32 %v2702, %v3343
      %v3345 = vpop.f32.mrb[0].mxu0
      %v3346 = vpop.f32.mrb[0].mxu0
      %v3347 = vadd.f32 %v2702, %v3346
      %v3348 = vpop.f32.mrb[0].mxu0
      %3349 = vmatprep.mubr.bf16.mxu0 0
      %3350 = vmatmul.mubr.bf16.gmra.mrb[0].mxu0 %v2866
      %v3351 = vpop.f32.mrb[0].mxu0
      %v3352 = vadd.f32 %v2702, %v3351
      %v3353 = vpop.f32.mrb[0].mxu0
      %v3354 = vpop.f32.mrb[0].mxu0
      %v3355 = vadd.f32 %v2702, %v3354
      %v3356 = vpop.f32.mrb[0].mxu0
      %3357 = vmatprep.mubr.bf16.mxu0 0
      %3358 = vmatmul.mubr.bf16.gmra.mrb[0].mxu0 %v2869
      %v3359 = vpop.f32.mrb[0].mxu0
      %v3360 = vadd.f32 %v2702, %v3359
      %v3361 = vpop.f32.mrb[0].mxu0
      %v3362 = vpop.f32.mrb[0].mxu0
      %v3363 = vadd.f32 %v2702, %v3362
      %v3364 = vpop.f32.mrb[0].mxu0
      %3365 = vmatprep.mubr.bf16.mxu0 0
      %3366 = vmatmul.mubr.bf16.gmra.mrb[0].mxu0 %v2872
      %v3367 = vpop.f32.mrb[0].mxu0
      %v3368 = vadd.f32 %v2702, %v3367
      %v3369 = vpop.f32.mrb[0].mxu0
      %v3370 = vpop.f32.mrb[0].mxu0
      %v3371 = vadd.f32 %v2702, %v3370
      %v3372 = vpop.f32.mrb[0].mxu0
      %3373 = vmatprep.mubr.bf16.mxu0 0
      %3374 = vmatmul.mubr.bf16.gmra.mrb[0].mxu0 %v2875
      %v3375 = vpop.f32.mrb[0].mxu0
      %v3376 = vadd.f32 %v2702, %v3375
      %v3377 = vpop.f32.mrb[0].mxu0
      %v3378 = vpop.f32.mrb[0].mxu0
      %v3379 = vadd.f32 %v2702, %v3378
      %v3380 = vpop.f32.mrb[0].mxu0
      %3381 = vmatprep.mubr.bf16.mxu0 0
      %3382 = vmatmul.mubr.bf16.gmra.mrb[0].mxu0 %v2878
      %v3383 = vpop.f32.mrb[0].mxu0
      %v3384 = vadd.f32 %v2702, %v3383
      %v3385 = vpop.f32.mrb[0].mxu0
      %v3386 = vpop.f32.mrb[0].mxu0
      %v3387 = vadd.f32 %v2702, %v3386
      %v3388 = vpop.f32.mrb[0].mxu0
      %3389 = vmatprep.mubr.bf16.mxu0 0
      %3390 = vmatmul.mubr.bf16.gmra.mrb[0].mxu0 %v2881
      %v3391 = vpop.f32.mrb[0].mxu0
      %v3392 = vadd.f32 %v2702, %v3391
      %v3393 = vpop.f32.mrb[0].mxu0
      %v3394 = vpop.f32.mrb[0].mxu0
      %v3395 = vadd.f32 %v2702, %v3394
      %v3396 = vpop.f32.mrb[0].mxu0
      %3397 = vmatprep.mubr.bf16.mxu0 0
      %3398 = vmatmul.mubr.bf16.gmra.mrb[0].mxu0 %v2884
      %v3399 = vpop.f32.mrb[0].mxu0
      %v3400 = vadd.f32 %v2702, %v3399
      %v3401 = vpop.f32.mrb[0].mxu0
      %v3402 = vpop.f32.mrb[0].mxu0
      %v3403 = vadd.f32 %v2702, %v3402
      %v3404 = vpop.f32.mrb[0].mxu0
      %3405 = vmatprep.mubr.bf16.mxu0 0
      %3406 = vmatmul.mubr.bf16.gmra.mrb[0].mxu0 %v2887
      %v3407 = vpop.f32.mrb[0].mxu0
      %v3408 = vadd.f32 %v2702, %v3407
      %v3409 = vpop.f32.mrb[0].mxu0
      %v3410 = vpop.f32.mrb[0].mxu0
      %v3411 = vadd.f32 %v2702, %v3410
      %v3412 = vpop.f32.mrb[0].mxu0
      %3413 = vmatprep.mubr.bf16.mxu0 0
      %3414 = vmatmul.mubr.bf16.gmra.mrb[0].mxu0 %v2890
      %v3415 = vpop.f32.mrb[0].mxu0
      %v3416 = vadd.f32 %v2702, %v3415
      %v3417 = vpop.f32.mrb[0].mxu0
      %v3418 = vpop.f32.mrb[0].mxu0
      %v3419 = vadd.f32 %v2702, %v3418
      %v3420 = vpop.f32.mrb[0].mxu0
      %3421 = vmatprep.mubr.bf16.mxu0 0
      %3422 = vmatmul.mubr.bf16.gmra.mrb[0].mxu0 %v2893
      %v3423 = vpop.f32.mrb[0].mxu0
      %v3424 = vadd.f32 %v2702, %v3423
      %v3425 = vpop.f32.mrb[0].mxu0
      %v3426 = vpop.f32.mrb[0].mxu0
      %v3427 = vadd.f32 %v2702, %v3426
      %v3428 = vpop.f32.mrb[0].mxu0
      %3429 = vmatprep.mubr.bf16.mxu0 0
      %3430 = vmatmul.mubr.bf16.gmra.mrb[0].mxu0 %v2896
      %v3431 = vpop.f32.mrb[0].mxu0
      %v3432 = vadd.f32 %v2702, %v3431
      %v3433 = vpop.f32.mrb[0].mxu0
      %v3434 = vpop.f32.mrb[0].mxu0
      %v3435 = vadd.f32 %v2702, %v3434
      %v3436 = vpop.f32.mrb[0].mxu0
      %3437 = vmatprep.mubr.bf16.mxu0 0
      %3438 = vmatmul.mubr.bf16.gmra.mrb[0].mxu0 %v2899
      %v3439 = vpop.f32.mrb[0].mxu0
      %v3440 = vadd.f32 %v2702, %v3439
      %v3441 = vpop.f32.mrb[0].mxu0
      %v3442 = vpop.f32.mrb[0].mxu0
      %v3443 = vadd.f32 %v2702, %v3442
      %v3444 = vpop.f32.mrb[0].mxu0
      %3445 = vdwg.mxu0
      %v3446 = vmax.f32 %v2936, 0.0
      %v3447 = vmax.f32 %v2939, 0.0
      %v3448 = vmax.f32 %v2944, 0.0
      %v3449 = vmax.f32 %v2947, 0.0
      %v3450 = vmax.f32 %v2952, 0.0
      %v3451 = vmax.f32 %v2955, 0.0
      %v3452 = vmax.f32 %v2960, 0.0
      %v3453 = vmax.f32 %v2963, 0.0
      %v3454 = vmax.f32 %v2968, 0.0
      %v3455 = vmax.f32 %v2971, 0.0
      %v3456 = vmax.f32 %v2976, 0.0
      %v3457 = vmax.f32 %v2979, 0.0
      %v3458 = vmax.f32 %v2984, 0.0
      %v3459 = vmax.f32 %v2987, 0.0
      %v3460 = vmax.f32 %v2992, 0.0
      %v3461 = vmax.f32 %v2995, 0.0
      %v3462 = vmax.f32 %v3000, 0.0
      %v3463 = vmax.f32 %v3003, 0.0
      %v3464 = vmax.f32 %v3008, 0.0
      %v3465 = vmax.f32 %v3011, 0.0
      %v3466 = vmax.f32 %v3016, 0.0
      %v3467 = vmax.f32 %v3019, 0.0
      %v3468 = vmax.f32 %v3024, 0.0
      %v3469 = vmax.f32 %v3027, 0.0
      %v3470 = vmax.f32 %v3032, 0.0
      %v3471 = vmax.f32 %v3035, 0.0
      %v3472 = vmax.f32 %v3040, 0.0
      %v3473 = vmax.f32 %v3043, 0.0
      %v3474 = vmax.f32 %v3048, 0.0
      %v3475 = vmax.f32 %v3051, 0.0
      %v3476 = vmax.f32 %v3056, 0.0
      %v3477 = vmax.f32 %v3059, 0.0
      %v3478 = vmax.f32 %v3064, 0.0
      %v3479 = vmax.f32 %v3067, 0.0
      %v3480 = vmax.f32 %v3072, 0.0
      %v3481 = vmax.f32 %v3075, 0.0
      %v3482 = vmax.f32 %v3080, 0.0
      %v3483 = vmax.f32 %v3083, 0.0
      %v3484 = vmax.f32 %v3088, 0.0
      %v3485 = vmax.f32 %v3091, 0.0
      %v3486 = vmax.f32 %v3096, 0.0
      %v3487 = vmax.f32 %v3099, 0.0
      %v3488 = vmax.f32 %v3104, 0.0
      %v3489 = vmax.f32 %v3107, 0.0
      %v3490 = vmax.f32 %v3112, 0.0
      %v3491 = vmax.f32 %v3115, 0.0
      %v3492 = vmax.f32 %v3120, 0.0
      %v3493 = vmax.f32 %v3123, 0.0
      %v3494 = vmax.f32 %v3128, 0.0
      %v3495 = vmax.f32 %v3131, 0.0
      %v3496 = vmax.f32 %v3136, 0.0
      %v3497 = vmax.f32 %v3139, 0.0
      %v3498 = vmax.f32 %v3144, 0.0
      %v3499 = vmax.f32 %v3147, 0.0
      %v3500 = vmax.f32 %v3152, 0.0
      %v3501 = vmax.f32 %v3155, 0.0
      %v3502 = vmax.f32 %v3160, 0.0
      %v3503 = vmax.f32 %v3163, 0.0
      %v3504 = vmax.f32 %v3168, 0.0
      %v3505 = vmax.f32 %v3171, 0.0
      %v3506 = vmax.f32 %v3176, 0.0
      %v3507 = vmax.f32 %v3179, 0.0
      %v3508 = vmax.f32 %v3184, 0.0
      %v3509 = vmax.f32 %v3187, 0.0
      %v3510 = vmax.f32 %v3192, 0.0
      %v3511 = vmax.f32 %v3195, 0.0
      %v3512 = vmax.f32 %v3200, 0.0
      %v3513 = vmax.f32 %v3203, 0.0
      %v3514 = vmax.f32 %v3208, 0.0
      %v3515 = vmax.f32 %v3211, 0.0
      %v3516 = vmax.f32 %v3216, 0.0
      %v3517 = vmax.f32 %v3219, 0.0
      %v3518 = vmax.f32 %v3224, 0.0
      %v3519 = vmax.f32 %v3227, 0.0
      %v3520 = vmax.f32 %v3232, 0.0
      %v3521 = vmax.f32 %v3235, 0.0
      %v3522 = vmax.f32 %v3240, 0.0
      %v3523 = vmax.f32 %v3243, 0.0
      %v3524 = vmax.f32 %v3248, 0.0
      %v3525 = vmax.f32 %v3251, 0.0
      %v3526 = vmax.f32 %v3256, 0.0
      %v3527 = vmax.f32 %v3259, 0.0
      %v3528 = vmax.f32 %v3264, 0.0
      %v3529 = vmax.f32 %v3267, 0.0
      %v3530 = vmax.f32 %v3272, 0.0
      %v3531 = vmax.f32 %v3275, 0.0
      %v3532 = vmax.f32 %v3280, 0.0
      %v3533 = vmax.f32 %v3283, 0.0
      %v3534 = vmax.f32 %v3288, 0.0
      %v3535 = vmax.f32 %v3291, 0.0
      %v3536 = vmax.f32 %v3296, 0.0
      %v3537 = vmax.f32 %v3299, 0.0
      %v3538 = vmax.f32 %v3304, 0.0
      %v3539 = vmax.f32 %v3307, 0.0
      %v3540 = vmax.f32 %v3312, 0.0
      %v3541 = vmax.f32 %v3315, 0.0
      %v3542 = vmax.f32 %v3320, 0.0
      %v3543 = vmax.f32 %v3323, 0.0
      %v3544 = vmax.f32 %v3328, 0.0
      %v3545 = vmax.f32 %v3331, 0.0
      %v3546 = vmax.f32 %v3336, 0.0
      %v3547 = vmax.f32 %v3339, 0.0
      %v3548 = vmax.f32 %v3344, 0.0
      %v3549 = vmax.f32 %v3347, 0.0
      %v3550 = vmax.f32 %v3352, 0.0
      %v3551 = vmax.f32 %v3355, 0.0
      %v3552 = vmax.f32 %v3360, 0.0
      %v3553 = vmax.f32 %v3363, 0.0
      %v3554 = vmax.f32 %v3368, 0.0
      %v3555 = vmax.f32 %v3371, 0.0
      %v3556 = vmax.f32 %v3376, 0.0
      %v3557 = vmax.f32 %v3379, 0.0
      %v3558 = vmax.f32 %v3384, 0.0
      %v3559 = vmax.f32 %v3387, 0.0
      %v3560 = vmax.f32 %v3392, 0.0
      %v3561 = vmax.f32 %v3395, 0.0
      %v3562 = vmax.f32 %v3400, 0.0
      %v3563 = vmax.f32 %v3403, 0.0
      %v3564 = vmax.f32 %v3408, 0.0
      %v3565 = vmax.f32 %v3411, 0.0
      %v3566 = vmax.f32 %v3416, 0.0
      %v3567 = vmax.f32 %v3419, 0.0
      %v3568 = vmax.f32 %v3424, 0.0
      %v3569 = vmax.f32 %v3427, 0.0
      %v3570 = vmax.f32 %v3432, 0.0
      %v3571 = vmax.f32 %v3435, 0.0
      %v3572 = vmax.f32 %v3440, 0.0
      %v3573 = vmax.f32 %v3443, 0.0
      %3702 = vrot.lane.b32.xlu0 %v354, 120
      %v3703 = vpop.permute.xlu0 %3702
      %3704 = vrot.lane.b32.xlu0 %v355, 120
      %v3705 = vpop.permute.xlu0 %3704
      %3706 = vrot.lane.b32.xlu0 %v356, 120
      %v3707 = vpop.permute.xlu0 %3706
      %3708 = vrot.lane.b32.xlu0 %v357, 120
      %v3709 = vpop.permute.xlu0 %3708
      %3710 = vrot.lane.b32.xlu0 %v358, 120
      %v3711 = vpop.permute.xlu0 %3710
      %3712 = vrot.lane.b32.xlu0 %v359, 120
      %v3713 = vpop.permute.xlu0 %3712
      %3714 = vrot.lane.b32.xlu0 %v360, 120
      %v3715 = vpop.permute.xlu0 %3714
      %3716 = vrot.lane.b32.xlu0 %v361, 120
      %v3717 = vpop.permute.xlu0 %3716
      %3718 = vrot.lane.b32.xlu0 %v362, 120
      %v3719 = vpop.permute.xlu0 %3718
      %3720 = vrot.lane.b32.xlu0 %v363, 120
      %v3721 = vpop.permute.xlu0 %3720
      %3722 = vrot.lane.b32.xlu0 %v364, 120
      %v3723 = vpop.permute.xlu0 %3722
      %3724 = vrot.lane.b32.xlu0 %v365, 120
      %v3725 = vpop.permute.xlu0 %3724
      %3726 = vrot.lane.b32.xlu0 %v366, 120
      %v3727 = vpop.permute.xlu0 %3726
      %3728 = vrot.lane.b32.xlu0 %v367, 120
      %v3729 = vpop.permute.xlu0 %3728
      %3730 = vrot.lane.b32.xlu0 %v368, 120
      %v3731 = vpop.permute.xlu0 %3730
      %3732 = vrot.lane.b32.xlu0 %v369, 120
      %v3733 = vpop.permute.xlu0 %3732
      %3734 = vrot.lane.b32.xlu0 %v370, 120
      %v3735 = vpop.permute.xlu0 %3734
      %3736 = vrot.lane.b32.xlu0 %v371, 120
      %v3737 = vpop.permute.xlu0 %3736
      %3738 = vrot.lane.b32.xlu0 %v372, 120
      %v3739 = vpop.permute.xlu0 %3738
      %3740 = vrot.lane.b32.xlu0 %v373, 120
      %v3741 = vpop.permute.xlu0 %3740
      %3742 = vrot.lane.b32.xlu0 %v374, 120
      %v3743 = vpop.permute.xlu0 %3742
      %3744 = vrot.lane.b32.xlu0 %v375, 120
      %v3745 = vpop.permute.xlu0 %3744
      %3746 = vrot.lane.b32.xlu0 %v376, 120
      %v3747 = vpop.permute.xlu0 %3746
      %3748 = vrot.lane.b32.xlu0 %v377, 120
      %v3749 = vpop.permute.xlu0 %3748
      %3750 = vrot.lane.b32.xlu0 %v378, 120
      %v3751 = vpop.permute.xlu0 %3750
      %3752 = vrot.lane.b32.xlu0 %v379, 120
      %v3753 = vpop.permute.xlu0 %3752
      %3754 = vrot.lane.b32.xlu0 %v380, 120
      %v3755 = vpop.permute.xlu0 %3754
      %3756 = vrot.lane.b32.xlu0 %v381, 120
      %v3757 = vpop.permute.xlu0 %3756
      %3758 = vrot.lane.b32.xlu0 %v382, 120
      %v3759 = vpop.permute.xlu0 %3758
      %3760 = vrot.lane.b32.xlu0 %v383, 120
      %v3761 = vpop.permute.xlu0 %3760
      %3762 = vrot.lane.b32.xlu0 %v384, 120
      %v3763 = vpop.permute.xlu0 %3762
      %3764 = vrot.lane.b32.xlu0 %v385, 120
      %v3765 = vpop.permute.xlu0 %3764
      %3766 = vrot.lane.b32.xlu0 %v386, 120
      %v3767 = vpop.permute.xlu0 %3766
      %3768 = vrot.lane.b32.xlu0 %v387, 120
      %v3769 = vpop.permute.xlu0 %3768
      %3770 = vrot.lane.b32.xlu0 %v388, 120
      %v3771 = vpop.permute.xlu0 %3770
      %3772 = vrot.lane.b32.xlu0 %v389, 120
      %v3773 = vpop.permute.xlu0 %3772
      %3774 = vrot.lane.b32.xlu0 %v390, 120
      %v3775 = vpop.permute.xlu0 %3774
      %3776 = vrot.lane.b32.xlu0 %v391, 120
      %v3777 = vpop.permute.xlu0 %3776
      %3778 = vrot.lane.b32.xlu0 %v392, 120
      %v3779 = vpop.permute.xlu0 %3778
      %3780 = vrot.lane.b32.xlu0 %v393, 120
      %v3781 = vpop.permute.xlu0 %3780
      %3782 = vrot.lane.b32.xlu0 %v394, 120
      %v3783 = vpop.permute.xlu0 %3782
      %3784 = vrot.lane.b32.xlu0 %v395, 120
      %v3785 = vpop.permute.xlu0 %3784
      %3786 = vrot.lane.b32.xlu0 %v396, 120
      %v3787 = vpop.permute.xlu0 %3786
      %3788 = vrot.lane.b32.xlu0 %v397, 120
      %v3789 = vpop.permute.xlu0 %3788
      %3790 = vrot.lane.b32.xlu0 %v398, 120
      %v3791 = vpop.permute.xlu0 %3790
      %3792 = vrot.lane.b32.xlu0 %v399, 120
      %v3793 = vpop.permute.xlu0 %3792
      %3794 = vrot.lane.b32.xlu0 %v400, 120
      %v3795 = vpop.permute.xlu0 %3794
      %3796 = vrot.lane.b32.xlu0 %v401, 120
      %v3797 = vpop.permute.xlu0 %3796
      %3798 = vrot.lane.b32.xlu0 %v402, 120
      %v3799 = vpop.permute.xlu0 %3798
      %3800 = vrot.lane.b32.xlu0 %v403, 120
      %v3801 = vpop.permute.xlu0 %3800
      %3802 = vrot.lane.b32.xlu0 %v404, 120
      %v3803 = vpop.permute.xlu0 %3802
      %3804 = vrot.lane.b32.xlu0 %v405, 120
      %v3805 = vpop.permute.xlu0 %3804
      %3806 = vrot.lane.b32.xlu0 %v406, 120
      %v3807 = vpop.permute.xlu0 %3806
      %3808 = vrot.lane.b32.xlu0 %v407, 120
      %v3809 = vpop.permute.xlu0 %3808
      %3810 = vrot.lane.b32.xlu0 %v408, 120
      %v3811 = vpop.permute.xlu0 %3810
      %3812 = vrot.lane.b32.xlu0 %v409, 120
      %v3813 = vpop.permute.xlu0 %3812
      %3814 = vrot.lane.b32.xlu0 %v410, 120
      %v3815 = vpop.permute.xlu0 %3814
      %3816 = vrot.lane.b32.xlu0 %v411, 120
      %v3817 = vpop.permute.xlu0 %3816
      %3818 = vrot.lane.b32.xlu0 %v412, 120
      %v3819 = vpop.permute.xlu0 %3818
      %3820 = vrot.lane.b32.xlu0 %v413, 120
      %v3821 = vpop.permute.xlu0 %3820
      %3822 = vrot.lane.b32.xlu0 %v414, 120
      %v3823 = vpop.permute.xlu0 %3822
      %3824 = vrot.lane.b32.xlu0 %v415, 120
      %v3825 = vpop.permute.xlu0 %3824
      %3826 = vrot.lane.b32.xlu0 %v416, 120
      %v3827 = vpop.permute.xlu0 %3826
      %3828 = vrot.lane.b32.xlu0 %v417, 120
      %v3829 = vpop.permute.xlu0 %3828
      %3830 = vrot.lane.b32.xlu0 %v418, 120
      %v3831 = vpop.permute.xlu0 %3830
      %3832 = vrot.lane.b32.xlu0 %v419, 120
      %v3833 = vpop.permute.xlu0 %3832
      %3834 = vrot.lane.b32.xlu0 %v420, 120
      %v3835 = vpop.permute.xlu0 %3834
      %3836 = vrot.lane.b32.xlu0 %v421, 120
      %v3837 = vpop.permute.xlu0 %3836
      %3838 = vrot.lane.b32.xlu0 %v422, 120
      %v3839 = vpop.permute.xlu0 %3838
      %3840 = vrot.lane.b32.xlu0 %v423, 120
      %v3841 = vpop.permute.xlu0 %3840
      %3842 = vrot.lane.b32.xlu0 %v424, 120
      %v3843 = vpop.permute.xlu0 %3842
      %3844 = vrot.lane.b32.xlu0 %v425, 120
      %v3845 = vpop.permute.xlu0 %3844
      %3846 = vrot.lane.b32.xlu0 %v426, 120
      %v3847 = vpop.permute.xlu0 %3846
      %3848 = vrot.lane.b32.xlu0 %v427, 120
      %v3849 = vpop.permute.xlu0 %3848
      %3850 = vrot.lane.b32.xlu0 %v428, 120
      %v3851 = vpop.permute.xlu0 %3850
      %3852 = vrot.lane.b32.xlu0 %v429, 120
      %v3853 = vpop.permute.xlu0 %3852
      %3854 = vrot.lane.b32.xlu0 %v430, 120
      %v3855 = vpop.permute.xlu0 %3854
      %3856 = vrot.lane.b32.xlu0 %v431, 120
      %v3857 = vpop.permute.xlu0 %3856
      %3858 = vrot.lane.b32.xlu0 %v432, 120
      %v3859 = vpop.permute.xlu0 %3858
      %3860 = vrot.lane.b32.xlu0 %v433, 120
      %v3861 = vpop.permute.xlu0 %3860
      %3862 = vrot.lane.b32.xlu0 %v434, 120
      %v3863 = vpop.permute.xlu0 %3862
      %3864 = vrot.lane.b32.xlu0 %v435, 120
      %v3865 = vpop.permute.xlu0 %3864
      %3866 = vrot.lane.b32.xlu0 %v436, 120
      %v3867 = vpop.permute.xlu0 %3866
      %3868 = vrot.lane.b32.xlu0 %v437, 120
      %v3869 = vpop.permute.xlu0 %3868
      %3870 = vrot.lane.b32.xlu0 %v438, 120
      %v3871 = vpop.permute.xlu0 %3870
      %3872 = vrot.lane.b32.xlu0 %v439, 120
      %v3873 = vpop.permute.xlu0 %3872
      %3874 = vrot.lane.b32.xlu0 %v440, 120
      %v3875 = vpop.permute.xlu0 %3874
      %3876 = vrot.lane.b32.xlu0 %v441, 120
      %v3877 = vpop.permute.xlu0 %3876
      %3878 = vrot.lane.b32.xlu0 %v442, 120
      %v3879 = vpop.permute.xlu0 %3878
      %3880 = vrot.lane.b32.xlu0 %v443, 120
      %v3881 = vpop.permute.xlu0 %3880
      %3882 = vrot.lane.b32.xlu0 %v444, 120
      %v3883 = vpop.permute.xlu0 %3882
      %3884 = vrot.lane.b32.xlu0 %v445, 120
      %v3885 = vpop.permute.xlu0 %3884
      %3886 = vrot.lane.b32.xlu0 %v446, 120
      %v3887 = vpop.permute.xlu0 %3886
      %3888 = vrot.lane.b32.xlu0 %v447, 120
      %v3889 = vpop.permute.xlu0 %3888
      %3890 = vrot.lane.b32.xlu0 %v448, 120
      %v3891 = vpop.permute.xlu0 %3890
      %3892 = vrot.lane.b32.xlu0 %v449, 120
      %v3893 = vpop.permute.xlu0 %3892
      %3894 = vrot.lane.b32.xlu0 %v450, 120
      %v3895 = vpop.permute.xlu0 %3894
      %3896 = vrot.lane.b32.xlu0 %v451, 120
      %v3897 = vpop.permute.xlu0 %3896
      %3898 = vrot.lane.b32.xlu0 %v452, 120
      %v3899 = vpop.permute.xlu0 %3898
      %3900 = vrot.lane.b32.xlu0 %v453, 120
      %v3901 = vpop.permute.xlu0 %3900
      %3902 = vrot.lane.b32.xlu0 %v454, 120
      %v3903 = vpop.permute.xlu0 %3902
      %3904 = vrot.lane.b32.xlu0 %v455, 120
      %v3905 = vpop.permute.xlu0 %3904
      %3906 = vrot.lane.b32.xlu0 %v456, 120
      %v3907 = vpop.permute.xlu0 %3906
      %3908 = vrot.lane.b32.xlu0 %v457, 120
      %v3909 = vpop.permute.xlu0 %3908
      %3910 = vrot.lane.b32.xlu0 %v458, 120
      %v3911 = vpop.permute.xlu0 %3910
      %3912 = vrot.lane.b32.xlu0 %v459, 120
      %v3913 = vpop.permute.xlu0 %3912
      %3914 = vrot.lane.b32.xlu0 %v460, 120
      %v3915 = vpop.permute.xlu0 %3914
      %3916 = vrot.lane.b32.xlu0 %v461, 120
      %v3917 = vpop.permute.xlu0 %3916
      %3918 = vrot.lane.b32.xlu0 %v462, 120
      %v3919 = vpop.permute.xlu0 %3918
      %3920 = vrot.lane.b32.xlu0 %v463, 120
      %v3921 = vpop.permute.xlu0 %3920
      %3922 = vrot.lane.b32.xlu0 %v464, 120
      %v3923 = vpop.permute.xlu0 %3922
      %3924 = vrot.lane.b32.xlu0 %v465, 120
      %v3925 = vpop.permute.xlu0 %3924
      %3926 = vrot.lane.b32.xlu0 %v466, 120
      %v3927 = vpop.permute.xlu0 %3926
      %3928 = vrot.lane.b32.xlu0 %v467, 120
      %v3929 = vpop.permute.xlu0 %3928
      %3930 = vrot.lane.b32.xlu0 %v468, 120
      %v3931 = vpop.permute.xlu0 %3930
      %3932 = vrot.lane.b32.xlu0 %v469, 120
      %v3933 = vpop.permute.xlu0 %3932
      %3934 = vrot.lane.b32.xlu0 %v470, 120
      %v3935 = vpop.permute.xlu0 %3934
      %3936 = vrot.lane.b32.xlu0 %v471, 120
      %v3937 = vpop.permute.xlu0 %3936
      %3938 = vrot.lane.b32.xlu0 %v472, 120
      %v3939 = vpop.permute.xlu0 %3938
      %3940 = vrot.lane.b32.xlu0 %v473, 120
      %v3941 = vpop.permute.xlu0 %3940
      %3942 = vrot.lane.b32.xlu0 %v474, 120
      %v3943 = vpop.permute.xlu0 %3942
      %3944 = vrot.lane.b32.xlu0 %v475, 120
      %v3945 = vpop.permute.xlu0 %3944
      %3946 = vrot.lane.b32.xlu0 %v476, 120
      %v3947 = vpop.permute.xlu0 %3946
      %3948 = vrot.lane.b32.xlu0 %v477, 120
      %v3949 = vpop.permute.xlu0 %3948
      %3950 = vrot.lane.b32.xlu0 %v478, 120
      %v3951 = vpop.permute.xlu0 %3950
      %3952 = vrot.lane.b32.xlu0 %v479, 120
      %v3953 = vpop.permute.xlu0 %3952
      %3954 = vrot.lane.b32.xlu0 %v480, 120
      %v3955 = vpop.permute.xlu0 %3954
      %3956 = vrot.lane.b32.xlu0 %v481, 120
      %v3957 = vpop.permute.xlu0 %3956
      %v4086 = vmul.f32 %v354, %v3703
      %v4087 = vmul.f32 %v355, %v3705
      %v4088 = vmul.f32 %v356, %v3707
      %v4089 = vmul.f32 %v357, %v3709
      %v4090 = vmul.f32 %v358, %v3711
      %v4091 = vmul.f32 %v359, %v3713
      %v4092 = vmul.f32 %v360, %v3715
      %v4093 = vmul.f32 %v361, %v3717
      %v4094 = vmul.f32 %v362, %v3719
      %v4095 = vmul.f32 %v363, %v3721
      %v4096 = vmul.f32 %v364, %v3723
      %v4097 = vmul.f32 %v365, %v3725
      %v4098 = vmul.f32 %v366, %v3727
      %v4099 = vmul.f32 %v367, %v3729
      %v4100 = vmul.f32 %v368, %v3731
      %v4101 = vmul.f32 %v369, %v3733
      %v4102 = vmul.f32 %v370, %v3735
      %v4103 = vmul.f32 %v371, %v3737
      %v4104 = vmul.f32 %v372, %v3739
      %v4105 = vmul.f32 %v373, %v3741
      %v4106 = vmul.f32 %v374, %v3743
      %v4107 = vmul.f32 %v375, %v3745
      %v4108 = vmul.f32 %v376, %v3747
      %v4109 = vmul.f32 %v377, %v3749
      %v4110 = vmul.f32 %v378, %v3751
      %v4111 = vmul.f32 %v379, %v3753
      %v4112 = vmul.f32 %v380, %v3755
      %v4113 = vmul.f32 %v381, %v3757
      %v4114 = vmul.f32 %v382, %v3759
      %v4115 = vmul.f32 %v383, %v3761
      %v4116 = vmul.f32 %v384, %v3763
      %v4117 = vmul.f32 %v385, %v3765
      %v4118 = vmul.f32 %v386, %v3767
      %v4119 = vmul.f32 %v387, %v3769
      %v4120 = vmul.f32 %v388, %v3771
      %v4121 = vmul.f32 %v389, %v3773
      %v4122 = vmul.f32 %v390, %v3775
      %v4123 = vmul.f32 %v391, %v3777
      %v4124 = vmul.f32 %v392, %v3779
      %v4125 = vmul.f32 %v393, %v3781
      %v4126 = vmul.f32 %v394, %v3783
      %v4127 = vmul.f32 %v395, %v3785
      %v4128 = vmul.f32 %v396, %v3787
      %v4129 = vmul.f32 %v397, %v3789
      %v4130 = vmul.f32 %v398, %v3791
      %v4131 = vmul.f32 %v399, %v3793
      %v4132 = vmul.f32 %v400, %v3795
      %v4133 = vmul.f32 %v401, %v3797
      %v4134 = vmul.f32 %v402, %v3799
      %v4135 = vmul.f32 %v403, %v3801
      %v4136 = vmul.f32 %v404, %v3803
      %v4137 = vmul.f32 %v405, %v3805
      %v4138 = vmul.f32 %v406, %v3807
      %v4139 = vmul.f32 %v407, %v3809
      %v4140 = vmul.f32 %v408, %v3811
      %v4141 = vmul.f32 %v409, %v3813
      %v4142 = vmul.f32 %v410, %v3815
      %v4143 = vmul.f32 %v411, %v3817
      %v4144 = vmul.f32 %v412, %v3819
      %v4145 = vmul.f32 %v413, %v3821
      %v4146 = vmul.f32 %v414, %v3823
      %v4147 = vmul.f32 %v415, %v3825
      %v4148 = vmul.f32 %v416, %v3827
      %v4149 = vmul.f32 %v417, %v3829
      %v4150 = vmul.f32 %v418, %v3831
      %v4151 = vmul.f32 %v419, %v3833
      %v4152 = vmul.f32 %v420, %v3835
      %v4153 = vmul.f32 %v421, %v3837
      %v4154 = vmul.f32 %v422, %v3839
      %v4155 = vmul.f32 %v423, %v3841
      %v4156 = vmul.f32 %v424, %v3843
      %v4157 = vmul.f32 %v425, %v3845
      %v4158 = vmul.f32 %v426, %v3847
      %v4159 = vmul.f32 %v427, %v3849
      %v4160 = vmul.f32 %v428, %v3851
      %v4161 = vmul.f32 %v429, %v3853
      %v4162 = vmul.f32 %v430, %v3855
      %v4163 = vmul.f32 %v431, %v3857
      %v4164 = vmul.f32 %v432, %v3859
      %v4165 = vmul.f32 %v433, %v3861
      %v4166 = vmul.f32 %v434, %v3863
      %v4167 = vmul.f32 %v435, %v3865
      %v4168 = vmul.f32 %v436, %v3867
      %v4169 = vmul.f32 %v437, %v3869
      %v4170 = vmul.f32 %v438, %v3871
      %v4171 = vmul.f32 %v439, %v3873
      %v4172 = vmul.f32 %v440, %v3875
      %v4173 = vmul.f32 %v441, %v3877
      %v4174 = vmul.f32 %v442, %v3879
      %v4175 = vmul.f32 %v443, %v3881
      %v4176 = vmul.f32 %v444, %v3883
      %v4177 = vmul.f32 %v445, %v3885
      %v4178 = vmul.f32 %v446, %v3887
      %v4179 = vmul.f32 %v447, %v3889
      %v4180 = vmul.f32 %v448, %v3891
      %v4181 = vmul.f32 %v449, %v3893
      %v4182 = vmul.f32 %v450, %v3895
      %v4183 = vmul.f32 %v451, %v3897
      %v4184 = vmul.f32 %v452, %v3899
      %v4185 = vmul.f32 %v453, %v3901
      %v4186 = vmul.f32 %v454, %v3903
      %v4187 = vmul.f32 %v455, %v3905
      %v4188 = vmul.f32 %v456, %v3907
      %v4189 = vmul.f32 %v457, %v3909
      %v4190 = vmul.f32 %v458, %v3911
      %v4191 = vmul.f32 %v459, %v3913
      %v4192 = vmul.f32 %v460, %v3915
      %v4193 = vmul.f32 %v461, %v3917
      %v4194 = vmul.f32 %v462, %v3919
      %v4195 = vmul.f32 %v463, %v3921
      %v4196 = vmul.f32 %v464, %v3923
      %v4197 = vmul.f32 %v465, %v3925
      %v4198 = vmul.f32 %v466, %v3927
      %v4199 = vmul.f32 %v467, %v3929
      %v4200 = vmul.f32 %v468, %v3931
      %v4201 = vmul.f32 %v469, %v3933
      %v4202 = vmul.f32 %v470, %v3935
      %v4203 = vmul.f32 %v471, %v3937
      %v4204 = vmul.f32 %v472, %v3939
      %v4205 = vmul.f32 %v473, %v3941
      %v4206 = vmul.f32 %v474, %v3943
      %v4207 = vmul.f32 %v475, %v3945
      %v4208 = vmul.f32 %v476, %v3947
      %v4209 = vmul.f32 %v477, %v3949
      %v4210 = vmul.f32 %v478, %v3951
      %v4211 = vmul.f32 %v479, %v3953
      %v4212 = vmul.f32 %v480, %v3955
      %v4213 = vmul.f32 %v481, %v3957
      %v4214 = vld [vmem:[%s4 + $0x3] sm:$0x1]
      %v4215 = vld [vmem:[%s4 + $0x4] sm:$0x1]
      %v4216 = vld [vmem:[%s4 + $0x5] sm:$0x1]
      %v4217 = vlaneseq
      %v4218 = vshrl.u32 %v4217, 7
      %v4219 = vsub.s32 0, %v4218
      %v4220 = vrot.slane %v4214, %v4219
      %v4221 = vmul.f32 %v3446, %v4220
      %v4222 = vmul.f32 %v3447, %v4220
      %v4223 = vmul.f32 %v3448, %v4220
      %v4224 = vmul.f32 %v3449, %v4220
      %v4225 = vmul.f32 %v3450, %v4220
      %v4226 = vmul.f32 %v3451, %v4220
      %v4227 = vmul.f32 %v3452, %v4220
      %v4228 = vmul.f32 %v3453, %v4220
      %v4229 = vmul.f32 %v3454, %v4220
      %v4230 = vmul.f32 %v3455, %v4220
      %v4231 = vmul.f32 %v3456, %v4220
      %v4232 = vmul.f32 %v3457, %v4220
      %v4233 = vmul.f32 %v3458, %v4220
      %v4234 = vmul.f32 %v3459, %v4220
      %v4235 = vmul.f32 %v3460, %v4220
      %v4236 = vmul.f32 %v3461, %v4220
      %v4237 = vmul.f32 %v3462, %v4220
      %v4238 = vmul.f32 %v3463, %v4220
      %v4239 = vmul.f32 %v3464, %v4220
      %v4240 = vmul.f32 %v3465, %v4220
      %v4241 = vmul.f32 %v3466, %v4220
      %v4242 = vmul.f32 %v3467, %v4220
      %v4243 = vmul.f32 %v3468, %v4220
      %v4244 = vmul.f32 %v3469, %v4220
      %v4245 = vmul.f32 %v3470, %v4220
      %v4246 = vmul.f32 %v3471, %v4220
      %v4247 = vmul.f32 %v3472, %v4220
      %v4248 = vmul.f32 %v3473, %v4220
      %v4249 = vmul.f32 %v3474, %v4220
      %v4250 = vmul.f32 %v3475, %v4220
      %v4251 = vmul.f32 %v3476, %v4220
      %v4252 = vmul.f32 %v3477, %v4220
      %v4253 = vmul.f32 %v3478, %v4220
      %v4254 = vmul.f32 %v3479, %v4220
      %v4255 = vmul.f32 %v3480, %v4220
      %v4256 = vmul.f32 %v3481, %v4220
      %v4257 = vmul.f32 %v3482, %v4220
      %v4258 = vmul.f32 %v3483, %v4220
      %v4259 = vmul.f32 %v3484, %v4220
      %v4260 = vmul.f32 %v3485, %v4220
      %v4261 = vmul.f32 %v3486, %v4220
      %v4262 = vmul.f32 %v3487, %v4220
      %v4263 = vmul.f32 %v3488, %v4220
      %v4264 = vmul.f32 %v3489, %v4220
      %v4265 = vmul.f32 %v3490, %v4220
      %v4266 = vmul.f32 %v3491, %v4220
      %v4267 = vmul.f32 %v3492, %v4220
      %v4268 = vmul.f32 %v3493, %v4220
      %v4269 = vmul.f32 %v3494, %v4220
      %v4270 = vmul.f32 %v3495, %v4220
      %v4271 = vmul.f32 %v3496, %v4220
      %v4272 = vmul.f32 %v3497, %v4220
      %v4273 = vmul.f32 %v3498, %v4220
      %v4274 = vmul.f32 %v3499, %v4220
      %v4275 = vmul.f32 %v3500, %v4220
      %v4276 = vmul.f32 %v3501, %v4220
      %v4277 = vmul.f32 %v3502, %v4220
      %v4278 = vmul.f32 %v3503, %v4220
      %v4279 = vmul.f32 %v3504, %v4220
      %v4280 = vmul.f32 %v3505, %v4220
      %v4281 = vmul.f32 %v3506, %v4220
      %v4282 = vmul.f32 %v3507, %v4220
      %v4283 = vmul.f32 %v3508, %v4220
      %v4284 = vmul.f32 %v3509, %v4220
      %v4285 = vmul.f32 %v3510, %v4220
      %v4286 = vmul.f32 %v3511, %v4220
      %v4287 = vmul.f32 %v3512, %v4220
      %v4288 = vmul.f32 %v3513, %v4220
      %v4289 = vmul.f32 %v3514, %v4220
      %v4290 = vmul.f32 %v3515, %v4220
      %v4291 = vmul.f32 %v3516, %v4220
      %v4292 = vmul.f32 %v3517, %v4220
      %v4293 = vmul.f32 %v3518, %v4220
      %v4294 = vmul.f32 %v3519, %v4220
      %v4295 = vmul.f32 %v3520, %v4220
      %v4296 = vmul.f32 %v3521, %v4220
      %v4297 = vmul.f32 %v3522, %v4220
      %v4298 = vmul.f32 %v3523, %v4220
      %v4299 = vmul.f32 %v3524, %v4220
      %v4300 = vmul.f32 %v3525, %v4220
      %v4301 = vmul.f32 %v3526, %v4220
      %v4302 = vmul.f32 %v3527, %v4220
      %v4303 = vmul.f32 %v3528, %v4220
      %v4304 = vmul.f32 %v3529, %v4220
      %v4305 = vmul.f32 %v3530, %v4220
      %v4306 = vmul.f32 %v3531, %v4220
      %v4307 = vmul.f32 %v3532, %v4220
      %v4308 = vmul.f32 %v3533, %v4220
      %v4309 = vmul.f32 %v3534, %v4220
      %v4310 = vmul.f32 %v3535, %v4220
      %v4311 = vmul.f32 %v3536, %v4220
      %v4312 = vmul.f32 %v3537, %v4220
      %v4313 = vmul.f32 %v3538, %v4220
      %v4314 = vmul.f32 %v3539, %v4220
      %v4315 = vmul.f32 %v3540, %v4220
      %v4316 = vmul.f32 %v3541, %v4220
      %v4317 = vmul.f32 %v3542, %v4220
      %v4318 = vmul.f32 %v3543, %v4220
      %v4319 = vmul.f32 %v3544, %v4220
      %v4320 = vmul.f32 %v3545, %v4220
      %v4321 = vmul.f32 %v3546, %v4220
      %v4322 = vmul.f32 %v3547, %v4220
      %v4323 = vmul.f32 %v3548, %v4220
      %v4324 = vmul.f32 %v3549, %v4220
      %v4325 = vmul.f32 %v3550, %v4220
      %v4326 = vmul.f32 %v3551, %v4220
      %v4327 = vmul.f32 %v3552, %v4220
      %v4328 = vmul.f32 %v3553, %v4220
      %v4329 = vmul.f32 %v3554, %v4220
      %v4330 = vmul.f32 %v3555, %v4220
      %v4331 = vmul.f32 %v3556, %v4220
      %v4332 = vmul.f32 %v3557, %v4220
      %v4333 = vmul.f32 %v3558, %v4220
      %v4334 = vmul.f32 %v3559, %v4220
      %v4335 = vmul.f32 %v3560, %v4220
      %v4336 = vmul.f32 %v3561, %v4220
      %v4337 = vmul.f32 %v3562, %v4220
      %v4338 = vmul.f32 %v3563, %v4220
      %v4339 = vmul.f32 %v3564, %v4220
      %v4340 = vmul.f32 %v3565, %v4220
      %v4341 = vmul.f32 %v3566, %v4220
      %v4342 = vmul.f32 %v3567, %v4220
      %v4343 = vmul.f32 %v3568, %v4220
      %v4344 = vmul.f32 %v3569, %v4220
      %v4345 = vmul.f32 %v3570, %v4220
      %v4346 = vmul.f32 %v3571, %v4220
      %v4347 = vmul.f32 %v3572, %v4220
      %v4348 = vmul.f32 %v3573, %v4220
      %vm4349 = vcmask 64512
      %v4350 = vsel %vm4349, %v4221, 0.0
      %4351 = vadd.xlane.f32.xlu0 %v4350
      %v4352 = vpop.xlane.xlu0 %4351
      %v4353 = vsel %vm4349, %v4222, 0.0
      %4354 = vadd.xlane.f32.xlu0 %v4353
      %v4355 = vpop.xlane.xlu0 %4354
      %v4356 = vsel %vm4349, %v4223, 0.0
      %4357 = vadd.xlane.f32.xlu0 %v4356
      %v4358 = vpop.xlane.xlu0 %4357
      %v4359 = vsel %vm4349, %v4224, 0.0
      %4360 = vadd.xlane.f32.xlu0 %v4359
      %v4361 = vpop.xlane.xlu0 %4360
      %v4362 = vsel %vm4349, %v4225, 0.0
      %4363 = vadd.xlane.f32.xlu0 %v4362
      %v4364 = vpop.xlane.xlu0 %4363
      %v4365 = vsel %vm4349, %v4226, 0.0
      %4366 = vadd.xlane.f32.xlu0 %v4365
      %v4367 = vpop.xlane.xlu0 %4366
      %v4368 = vsel %vm4349, %v4227, 0.0
      %4369 = vadd.xlane.f32.xlu0 %v4368
      %v4370 = vpop.xlane.xlu0 %4369
      %v4371 = vsel %vm4349, %v4228, 0.0
      %4372 = vadd.xlane.f32.xlu0 %v4371
      %v4373 = vpop.xlane.xlu0 %4372
      %v4374 = vsel %vm4349, %v4229, 0.0
      %4375 = vadd.xlane.f32.xlu0 %v4374
      %v4376 = vpop.xlane.xlu0 %4375
      %v4377 = vsel %vm4349, %v4230, 0.0
      %4378 = vadd.xlane.f32.xlu0 %v4377
      %v4379 = vpop.xlane.xlu0 %4378
      %v4380 = vsel %vm4349, %v4231, 0.0
      %4381 = vadd.xlane.f32.xlu0 %v4380
      %v4382 = vpop.xlane.xlu0 %4381
      %v4383 = vsel %vm4349, %v4232, 0.0
      %4384 = vadd.xlane.f32.xlu0 %v4383
      %v4385 = vpop.xlane.xlu0 %4384
      %v4386 = vsel %vm4349, %v4233, 0.0
      %4387 = vadd.xlane.f32.xlu0 %v4386
      %v4388 = vpop.xlane.xlu0 %4387
      %v4389 = vsel %vm4349, %v4234, 0.0
      %4390 = vadd.xlane.f32.xlu0 %v4389
      %v4391 = vpop.xlane.xlu0 %4390
      %v4392 = vsel %vm4349, %v4235, 0.0
      %4393 = vadd.xlane.f32.xlu0 %v4392
      %v4394 = vpop.xlane.xlu0 %4393
      %v4395 = vsel %vm4349, %v4236, 0.0
      %4396 = vadd.xlane.f32.xlu0 %v4395
      %v4397 = vpop.xlane.xlu0 %4396
      %v4398 = vsel %vm4349, %v4237, 0.0
      %4399 = vadd.xlane.f32.xlu0 %v4398
      %v4400 = vpop.xlane.xlu0 %4399
      %v4401 = vsel %vm4349, %v4238, 0.0
      %4402 = vadd.xlane.f32.xlu0 %v4401
      %v4403 = vpop.xlane.xlu0 %4402
      %v4404 = vsel %vm4349, %v4239, 0.0
      %4405 = vadd.xlane.f32.xlu0 %v4404
      %v4406 = vpop.xlane.xlu0 %4405
      %v4407 = vsel %vm4349, %v4240, 0.0
      %4408 = vadd.xlane.f32.xlu0 %v4407
      %v4409 = vpop.xlane.xlu0 %4408
      %v4410 = vsel %vm4349, %v4241, 0.0
      %4411 = vadd.xlane.f32.xlu0 %v4410
      %v4412 = vpop.xlane.xlu0 %4411
      %v4413 = vsel %vm4349, %v4242, 0.0
      %4414 = vadd.xlane.f32.xlu0 %v4413
      %v4415 = vpop.xlane.xlu0 %4414
      %v4416 = vsel %vm4349, %v4243, 0.0
      %4417 = vadd.xlane.f32.xlu0 %v4416
      %v4418 = vpop.xlane.xlu0 %4417
      %v4419 = vsel %vm4349, %v4244, 0.0
      %4420 = vadd.xlane.f32.xlu0 %v4419
      %v4421 = vpop.xlane.xlu0 %4420
      %v4422 = vsel %vm4349, %v4245, 0.0
      %4423 = vadd.xlane.f32.xlu0 %v4422
      %v4424 = vpop.xlane.xlu0 %4423
      %v4425 = vsel %vm4349, %v4246, 0.0
      %4426 = vadd.xlane.f32.xlu0 %v4425
      %v4427 = vpop.xlane.xlu0 %4426
      %v4428 = vsel %vm4349, %v4247, 0.0
      %4429 = vadd.xlane.f32.xlu0 %v4428
      %v4430 = vpop.xlane.xlu0 %4429
      %v4431 = vsel %vm4349, %v4248, 0.0
      %4432 = vadd.xlane.f32.xlu0 %v4431
      %v4433 = vpop.xlane.xlu0 %4432
      %v4434 = vsel %vm4349, %v4249, 0.0
      %4435 = vadd.xlane.f32.xlu0 %v4434
      %v4436 = vpop.xlane.xlu0 %4435
      %v4437 = vsel %vm4349, %v4250, 0.0
      %4438 = vadd.xlane.f32.xlu0 %v4437
      %v4439 = vpop.xlane.xlu0 %4438
      %v4440 = vsel %vm4349, %v4251, 0.0
      %4441 = vadd.xlane.f32.xlu0 %v4440
      %v4442 = vpop.xlane.xlu0 %4441
      %v4443 = vsel %vm4349, %v4252, 0.0
      %4444 = vadd.xlane.f32.xlu0 %v4443
      %v4445 = vpop.xlane.xlu0 %4444
      %v4446 = vsel %vm4349, %v4253, 0.0
      %4447 = vadd.xlane.f32.xlu0 %v4446
      %v4448 = vpop.xlane.xlu0 %4447
      %v4449 = vsel %vm4349, %v4254, 0.0
      %4450 = vadd.xlane.f32.xlu0 %v4449
      %v4451 = vpop.xlane.xlu0 %4450
      %v4452 = vsel %vm4349, %v4255, 0.0
      %4453 = vadd.xlane.f32.xlu0 %v4452
      %v4454 = vpop.xlane.xlu0 %4453
      %v4455 = vsel %vm4349, %v4256, 0.0
      %4456 = vadd.xlane.f32.xlu0 %v4455
      %v4457 = vpop.xlane.xlu0 %4456
      %v4458 = vsel %vm4349, %v4257, 0.0
      %4459 = vadd.xlane.f32.xlu0 %v4458
      %v4460 = vpop.xlane.xlu0 %4459
      %v4461 = vsel %vm4349, %v4258, 0.0
      %4462 = vadd.xlane.f32.xlu0 %v4461
      %v4463 = vpop.xlane.xlu0 %4462
      %v4464 = vsel %vm4349, %v4259, 0.0
      %4465 = vadd.xlane.f32.xlu0 %v4464
      %v4466 = vpop.xlane.xlu0 %4465
      %v4467 = vsel %vm4349, %v4260, 0.0
      %4468 = vadd.xlane.f32.xlu0 %v4467
      %v4469 = vpop.xlane.xlu0 %4468
      %v4470 = vsel %vm4349, %v4261, 0.0
      %4471 = vadd.xlane.f32.xlu0 %v4470
      %v4472 = vpop.xlane.xlu0 %4471
      %v4473 = vsel %vm4349, %v4262, 0.0
      %4474 = vadd.xlane.f32.xlu0 %v4473
      %v4475 = vpop.xlane.xlu0 %4474
      %v4476 = vsel %vm4349, %v4263, 0.0
      %4477 = vadd.xlane.f32.xlu0 %v4476
      %v4478 = vpop.xlane.xlu0 %4477
      %v4479 = vsel %vm4349, %v4264, 0.0
      %4480 = vadd.xlane.f32.xlu0 %v4479
      %v4481 = vpop.xlane.xlu0 %4480
      %v4482 = vsel %vm4349, %v4265, 0.0
      %4483 = vadd.xlane.f32.xlu0 %v4482
      %v4484 = vpop.xlane.xlu0 %4483
      %v4485 = vsel %vm4349, %v4266, 0.0
      %4486 = vadd.xlane.f32.xlu0 %v4485
      %v4487 = vpop.xlane.xlu0 %4486
      %v4488 = vsel %vm4349, %v4267, 0.0
      %4489 = vadd.xlane.f32.xlu0 %v4488
      %v4490 = vpop.xlane.xlu0 %4489
      %v4491 = vsel %vm4349, %v4268, 0.0
      %4492 = vadd.xlane.f32.xlu0 %v4491
      %v4493 = vpop.xlane.xlu0 %4492
      %v4494 = vsel %vm4349, %v4269, 0.0
      %4495 = vadd.xlane.f32.xlu0 %v4494
      %v4496 = vpop.xlane.xlu0 %4495
      %v4497 = vsel %vm4349, %v4270, 0.0
      %4498 = vadd.xlane.f32.xlu0 %v4497
      %v4499 = vpop.xlane.xlu0 %4498
      %v4500 = vsel %vm4349, %v4271, 0.0
      %4501 = vadd.xlane.f32.xlu0 %v4500
      %v4502 = vpop.xlane.xlu0 %4501
      %v4503 = vsel %vm4349, %v4272, 0.0
      %4504 = vadd.xlane.f32.xlu0 %v4503
      %v4505 = vpop.xlane.xlu0 %4504
      %v4506 = vsel %vm4349, %v4273, 0.0
      %4507 = vadd.xlane.f32.xlu0 %v4506
      %v4508 = vpop.xlane.xlu0 %4507
      %v4509 = vsel %vm4349, %v4274, 0.0
      %4510 = vadd.xlane.f32.xlu0 %v4509
      %v4511 = vpop.xlane.xlu0 %4510
      %v4512 = vsel %vm4349, %v4275, 0.0
      %4513 = vadd.xlane.f32.xlu0 %v4512
      %v4514 = vpop.xlane.xlu0 %4513
      %v4515 = vsel %vm4349, %v4276, 0.0
      %4516 = vadd.xlane.f32.xlu0 %v4515
      %v4517 = vpop.xlane.xlu0 %4516
      %v4518 = vsel %vm4349, %v4277, 0.0
      %4519 = vadd.xlane.f32.xlu0 %v4518
      %v4520 = vpop.xlane.xlu0 %4519
      %v4521 = vsel %vm4349, %v4278, 0.0
      %4522 = vadd.xlane.f32.xlu0 %v4521
      %v4523 = vpop.xlane.xlu0 %4522
      %v4524 = vsel %vm4349, %v4279, 0.0
      %4525 = vadd.xlane.f32.xlu0 %v4524
      %v4526 = vpop.xlane.xlu0 %4525
      %v4527 = vsel %vm4349, %v4280, 0.0
      %4528 = vadd.xlane.f32.xlu0 %v4527
      %v4529 = vpop.xlane.xlu0 %4528
      %v4530 = vsel %vm4349, %v4281, 0.0
      %4531 = vadd.xlane.f32.xlu0 %v4530
      %v4532 = vpop.xlane.xlu0 %4531
      %v4533 = vsel %vm4349, %v4282, 0.0
      %4534 = vadd.xlane.f32.xlu0 %v4533
      %v4535 = vpop.xlane.xlu0 %4534
      %v4536 = vsel %vm4349, %v4283, 0.0
      %4537 = vadd.xlane.f32.xlu0 %v4536
      %v4538 = vpop.xlane.xlu0 %4537
      %v4539 = vsel %vm4349, %v4284, 0.0
      %4540 = vadd.xlane.f32.xlu0 %v4539
      %v4541 = vpop.xlane.xlu0 %4540
      %v4542 = vsel %vm4349, %v4285, 0.0
      %4543 = vadd.xlane.f32.xlu0 %v4542
      %v4544 = vpop.xlane.xlu0 %4543
      %v4545 = vsel %vm4349, %v4286, 0.0
      %4546 = vadd.xlane.f32.xlu0 %v4545
      %v4547 = vpop.xlane.xlu0 %4546
      %v4548 = vsel %vm4349, %v4287, 0.0
      %4549 = vadd.xlane.f32.xlu0 %v4548
      %v4550 = vpop.xlane.xlu0 %4549
      %v4551 = vsel %vm4349, %v4288, 0.0
      %4552 = vadd.xlane.f32.xlu0 %v4551
      %v4553 = vpop.xlane.xlu0 %4552
      %v4554 = vsel %vm4349, %v4289, 0.0
      %4555 = vadd.xlane.f32.xlu0 %v4554
      %v4556 = vpop.xlane.xlu0 %4555
      %v4557 = vsel %vm4349, %v4290, 0.0
      %4558 = vadd.xlane.f32.xlu0 %v4557
      %v4559 = vpop.xlane.xlu0 %4558
      %v4560 = vsel %vm4349, %v4291, 0.0
      %4561 = vadd.xlane.f32.xlu0 %v4560
      %v4562 = vpop.xlane.xlu0 %4561
      %v4563 = vsel %vm4349, %v4292, 0.0
      %4564 = vadd.xlane.f32.xlu0 %v4563
      %v4565 = vpop.xlane.xlu0 %4564
      %v4566 = vsel %vm4349, %v4293, 0.0
      %4567 = vadd.xlane.f32.xlu0 %v4566
      %v4568 = vpop.xlane.xlu0 %4567
      %v4569 = vsel %vm4349, %v4294, 0.0
      %4570 = vadd.xlane.f32.xlu0 %v4569
      %v4571 = vpop.xlane.xlu0 %4570
      %v4572 = vsel %vm4349, %v4295, 0.0
      %4573 = vadd.xlane.f32.xlu0 %v4572
      %v4574 = vpop.xlane.xlu0 %4573
      %v4575 = vsel %vm4349, %v4296, 0.0
      %4576 = vadd.xlane.f32.xlu0 %v4575
      %v4577 = vpop.xlane.xlu0 %4576
      %v4578 = vsel %vm4349, %v4297, 0.0
      %4579 = vadd.xlane.f32.xlu0 %v4578
      %v4580 = vpop.xlane.xlu0 %4579
      %v4581 = vsel %vm4349, %v4298, 0.0
      %4582 = vadd.xlane.f32.xlu0 %v4581
      %v4583 = vpop.xlane.xlu0 %4582
      %v4584 = vsel %vm4349, %v4299, 0.0
      %4585 = vadd.xlane.f32.xlu0 %v4584
      %v4586 = vpop.xlane.xlu0 %4585
      %v4587 = vsel %vm4349, %v4300, 0.0
      %4588 = vadd.xlane.f32.xlu0 %v4587
      %v4589 = vpop.xlane.xlu0 %4588
      %v4590 = vsel %vm4349, %v4301, 0.0
      %4591 = vadd.xlane.f32.xlu0 %v4590
      %v4592 = vpop.xlane.xlu0 %4591
      %v4593 = vsel %vm4349, %v4302, 0.0
      %4594 = vadd.xlane.f32.xlu0 %v4593
      %v4595 = vpop.xlane.xlu0 %4594
      %v4596 = vsel %vm4349, %v4303, 0.0
      %4597 = vadd.xlane.f32.xlu0 %v4596
      %v4598 = vpop.xlane.xlu0 %4597
      %v4599 = vsel %vm4349, %v4304, 0.0
      %4600 = vadd.xlane.f32.xlu0 %v4599
      %v4601 = vpop.xlane.xlu0 %4600
      %v4602 = vsel %vm4349, %v4305, 0.0
      %4603 = vadd.xlane.f32.xlu0 %v4602
      %v4604 = vpop.xlane.xlu0 %4603
      %v4605 = vsel %vm4349, %v4306, 0.0
      %4606 = vadd.xlane.f32.xlu0 %v4605
      %v4607 = vpop.xlane.xlu0 %4606
      %v4608 = vsel %vm4349, %v4307, 0.0
      %4609 = vadd.xlane.f32.xlu0 %v4608
      %v4610 = vpop.xlane.xlu0 %4609
      %v4611 = vsel %vm4349, %v4308, 0.0
      %4612 = vadd.xlane.f32.xlu0 %v4611
      %v4613 = vpop.xlane.xlu0 %4612
      %v4614 = vsel %vm4349, %v4309, 0.0
      %4615 = vadd.xlane.f32.xlu0 %v4614
      %v4616 = vpop.xlane.xlu0 %4615
      %v4617 = vsel %vm4349, %v4310, 0.0
      %4618 = vadd.xlane.f32.xlu0 %v4617
      %v4619 = vpop.xlane.xlu0 %4618
      %v4620 = vsel %vm4349, %v4311, 0.0
      %4621 = vadd.xlane.f32.xlu0 %v4620
      %v4622 = vpop.xlane.xlu0 %4621
      %v4623 = vsel %vm4349, %v4312, 0.0
      %4624 = vadd.xlane.f32.xlu0 %v4623
      %v4625 = vpop.xlane.xlu0 %4624
      %v4626 = vsel %vm4349, %v4313, 0.0
      %4627 = vadd.xlane.f32.xlu0 %v4626
      %v4628 = vpop.xlane.xlu0 %4627
      %v4629 = vsel %vm4349, %v4314, 0.0
      %4630 = vadd.xlane.f32.xlu0 %v4629
      %v4631 = vpop.xlane.xlu0 %4630
      %v4632 = vsel %vm4349, %v4315, 0.0
      %4633 = vadd.xlane.f32.xlu0 %v4632
      %v4634 = vpop.xlane.xlu0 %4633
      %v4635 = vsel %vm4349, %v4316, 0.0
      %4636 = vadd.xlane.f32.xlu0 %v4635
      %v4637 = vpop.xlane.xlu0 %4636
      %v4638 = vsel %vm4349, %v4317, 0.0
      %4639 = vadd.xlane.f32.xlu0 %v4638
      %v4640 = vpop.xlane.xlu0 %4639
      %v4641 = vsel %vm4349, %v4318, 0.0
      %4642 = vadd.xlane.f32.xlu0 %v4641
      %v4643 = vpop.xlane.xlu0 %4642
      %v4644 = vsel %vm4349, %v4319, 0.0
      %4645 = vadd.xlane.f32.xlu0 %v4644
      %v4646 = vpop.xlane.xlu0 %4645
      %v4647 = vsel %vm4349, %v4320, 0.0
      %4648 = vadd.xlane.f32.xlu0 %v4647
      %v4649 = vpop.xlane.xlu0 %4648
      %v4650 = vsel %vm4349, %v4321, 0.0
      %4651 = vadd.xlane.f32.xlu0 %v4650
      %v4652 = vpop.xlane.xlu0 %4651
      %v4653 = vsel %vm4349, %v4322, 0.0
      %4654 = vadd.xlane.f32.xlu0 %v4653
      %v4655 = vpop.xlane.xlu0 %4654
      %v4656 = vsel %vm4349, %v4323, 0.0
      %4657 = vadd.xlane.f32.xlu0 %v4656
      %v4658 = vpop.xlane.xlu0 %4657
      %v4659 = vsel %vm4349, %v4324, 0.0
      %4660 = vadd.xlane.f32.xlu0 %v4659
      %v4661 = vpop.xlane.xlu0 %4660
      %v4662 = vsel %vm4349, %v4325, 0.0
      %4663 = vadd.xlane.f32.xlu0 %v4662
      %v4664 = vpop.xlane.xlu0 %4663
      %v4665 = vsel %vm4349, %v4326, 0.0
      %4666 = vadd.xlane.f32.xlu0 %v4665
      %v4667 = vpop.xlane.xlu0 %4666
      %v4668 = vsel %vm4349, %v4327, 0.0
      %4669 = vadd.xlane.f32.xlu0 %v4668
      %v4670 = vpop.xlane.xlu0 %4669
      %v4671 = vsel %vm4349, %v4328, 0.0
      %4672 = vadd.xlane.f32.xlu0 %v4671
      %v4673 = vpop.xlane.xlu0 %4672
      %v4674 = vsel %vm4349, %v4329, 0.0
      %4675 = vadd.xlane.f32.xlu0 %v4674
      %v4676 = vpop.xlane.xlu0 %4675
      %v4677 = vsel %vm4349, %v4330, 0.0
      %4678 = vadd.xlane.f32.xlu0 %v4677
      %v4679 = vpop.xlane.xlu0 %4678
      %v4680 = vsel %vm4349, %v4331, 0.0
      %4681 = vadd.xlane.f32.xlu0 %v4680
      %v4682 = vpop.xlane.xlu0 %4681
      %v4683 = vsel %vm4349, %v4332, 0.0
      %4684 = vadd.xlane.f32.xlu0 %v4683
      %v4685 = vpop.xlane.xlu0 %4684
      %v4686 = vsel %vm4349, %v4333, 0.0
      %4687 = vadd.xlane.f32.xlu0 %v4686
      %v4688 = vpop.xlane.xlu0 %4687
      %v4689 = vsel %vm4349, %v4334, 0.0
      %4690 = vadd.xlane.f32.xlu0 %v4689
      %v4691 = vpop.xlane.xlu0 %4690
      %v4692 = vsel %vm4349, %v4335, 0.0
      %4693 = vadd.xlane.f32.xlu0 %v4692
      %v4694 = vpop.xlane.xlu0 %4693
      %v4695 = vsel %vm4349, %v4336, 0.0
      %4696 = vadd.xlane.f32.xlu0 %v4695
      %v4697 = vpop.xlane.xlu0 %4696
      %v4698 = vsel %vm4349, %v4337, 0.0
      %4699 = vadd.xlane.f32.xlu0 %v4698
      %v4700 = vpop.xlane.xlu0 %4699
      %v4701 = vsel %vm4349, %v4338, 0.0
      %4702 = vadd.xlane.f32.xlu0 %v4701
      %v4703 = vpop.xlane.xlu0 %4702
      %v4704 = vsel %vm4349, %v4339, 0.0
      %4705 = vadd.xlane.f32.xlu0 %v4704
      %v4706 = vpop.xlane.xlu0 %4705
      %v4707 = vsel %vm4349, %v4340, 0.0
      %4708 = vadd.xlane.f32.xlu0 %v4707
      %v4709 = vpop.xlane.xlu0 %4708
      %v4710 = vsel %vm4349, %v4341, 0.0
      %4711 = vadd.xlane.f32.xlu0 %v4710
      %v4712 = vpop.xlane.xlu0 %4711
      %v4713 = vsel %vm4349, %v4342, 0.0
      %4714 = vadd.xlane.f32.xlu0 %v4713
      %v4715 = vpop.xlane.xlu0 %4714
      %v4716 = vsel %vm4349, %v4343, 0.0
      %4717 = vadd.xlane.f32.xlu0 %v4716
      %v4718 = vpop.xlane.xlu0 %4717
      %v4719 = vsel %vm4349, %v4344, 0.0
      %4720 = vadd.xlane.f32.xlu0 %v4719
      %v4721 = vpop.xlane.xlu0 %4720
      %v4722 = vsel %vm4349, %v4345, 0.0
      %4723 = vadd.xlane.f32.xlu0 %v4722
      %v4724 = vpop.xlane.xlu0 %4723
      %v4725 = vsel %vm4349, %v4346, 0.0
      %4726 = vadd.xlane.f32.xlu0 %v4725
      %v4727 = vpop.xlane.xlu0 %4726
      %v4728 = vsel %vm4349, %v4347, 0.0
      %4729 = vadd.xlane.f32.xlu0 %v4728
      %v4730 = vpop.xlane.xlu0 %4729
      %v4731 = vsel %vm4349, %v4348, 0.0
      %4732 = vadd.xlane.f32.xlu0 %v4731
      %v4733 = vpop.xlane.xlu0 %4732
      %v4734 = vlaneseq
      %v4735 = vshrl.u32 %v4734, 7
      %v4736 = vsub.s32 0, %v4735
      %v4737 = vrot.slane %v4215, %v4736
      %4739 = vrot.lane.b32.xlu0 %v4737, 16
      %v4740 = vpop.permute.xlu0 %4739
      %v4742 = vmul.f32 %v4086, %v4740
      %v4743 = vmul.f32 %v4087, %v4740
      %v4744 = vmul.f32 %v4088, %v4740
      %v4745 = vmul.f32 %v4089, %v4740
      %v4746 = vmul.f32 %v4090, %v4740
      %v4747 = vmul.f32 %v4091, %v4740
      %v4748 = vmul.f32 %v4092, %v4740
      %v4749 = vmul.f32 %v4093, %v4740
      %v4750 = vmul.f32 %v4094, %v4740
      %v4751 = vmul.f32 %v4095, %v4740
      %v4752 = vmul.f32 %v4096, %v4740
      %v4753 = vmul.f32 %v4097, %v4740
      %v4754 = vmul.f32 %v4098, %v4740
      %v4755 = vmul.f32 %v4099, %v4740
      %v4756 = vmul.f32 %v4100, %v4740
      %v4757 = vmul.f32 %v4101, %v4740
      %v4758 = vmul.f32 %v4102, %v4740
      %v4759 = vmul.f32 %v4103, %v4740
      %v4760 = vmul.f32 %v4104, %v4740
      %v4761 = vmul.f32 %v4105, %v4740
      %v4762 = vmul.f32 %v4106, %v4740
      %v4763 = vmul.f32 %v4107, %v4740
      %v4764 = vmul.f32 %v4108, %v4740
      %v4765 = vmul.f32 %v4109, %v4740
      %v4766 = vmul.f32 %v4110, %v4740
      %v4767 = vmul.f32 %v4111, %v4740
      %v4768 = vmul.f32 %v4112, %v4740
      %v4769 = vmul.f32 %v4113, %v4740
      %v4770 = vmul.f32 %v4114, %v4740
      %v4771 = vmul.f32 %v4115, %v4740
      %v4772 = vmul.f32 %v4116, %v4740
      %v4773 = vmul.f32 %v4117, %v4740
      %v4774 = vmul.f32 %v4118, %v4740
      %v4775 = vmul.f32 %v4119, %v4740
      %v4776 = vmul.f32 %v4120, %v4740
      %v4777 = vmul.f32 %v4121, %v4740
      %v4778 = vmul.f32 %v4122, %v4740
      %v4779 = vmul.f32 %v4123, %v4740
      %v4780 = vmul.f32 %v4124, %v4740
      %v4781 = vmul.f32 %v4125, %v4740
      %v4782 = vmul.f32 %v4126, %v4740
      %v4783 = vmul.f32 %v4127, %v4740
      %v4784 = vmul.f32 %v4128, %v4740
      %v4785 = vmul.f32 %v4129, %v4740
      %v4786 = vmul.f32 %v4130, %v4740
      %v4787 = vmul.f32 %v4131, %v4740
      %v4788 = vmul.f32 %v4132, %v4740
      %v4789 = vmul.f32 %v4133, %v4740
      %v4790 = vmul.f32 %v4134, %v4740
      %v4791 = vmul.f32 %v4135, %v4740
      %v4792 = vmul.f32 %v4136, %v4740
      %v4793 = vmul.f32 %v4137, %v4740
      %v4794 = vmul.f32 %v4138, %v4740
      %v4795 = vmul.f32 %v4139, %v4740
      %v4796 = vmul.f32 %v4140, %v4740
      %v4797 = vmul.f32 %v4141, %v4740
      %v4798 = vmul.f32 %v4142, %v4740
      %v4799 = vmul.f32 %v4143, %v4740
      %v4800 = vmul.f32 %v4144, %v4740
      %v4801 = vmul.f32 %v4145, %v4740
      %v4802 = vmul.f32 %v4146, %v4740
      %v4803 = vmul.f32 %v4147, %v4740
      %v4804 = vmul.f32 %v4148, %v4740
      %v4805 = vmul.f32 %v4149, %v4740
      %v4806 = vmul.f32 %v4150, %v4740
      %v4807 = vmul.f32 %v4151, %v4740
      %v4808 = vmul.f32 %v4152, %v4740
      %v4809 = vmul.f32 %v4153, %v4740
      %v4810 = vmul.f32 %v4154, %v4740
      %v4811 = vmul.f32 %v4155, %v4740
      %v4812 = vmul.f32 %v4156, %v4740
      %v4813 = vmul.f32 %v4157, %v4740
      %v4814 = vmul.f32 %v4158, %v4740
      %v4815 = vmul.f32 %v4159, %v4740
      %v4816 = vmul.f32 %v4160, %v4740
      %v4817 = vmul.f32 %v4161, %v4740
      %v4818 = vmul.f32 %v4162, %v4740
      %v4819 = vmul.f32 %v4163, %v4740
      %v4820 = vmul.f32 %v4164, %v4740
      %v4821 = vmul.f32 %v4165, %v4740
      %v4822 = vmul.f32 %v4166, %v4740
      %v4823 = vmul.f32 %v4167, %v4740
      %v4824 = vmul.f32 %v4168, %v4740
      %v4825 = vmul.f32 %v4169, %v4740
      %v4826 = vmul.f32 %v4170, %v4740
      %v4827 = vmul.f32 %v4171, %v4740
      %v4828 = vmul.f32 %v4172, %v4740
      %v4829 = vmul.f32 %v4173, %v4740
      %v4830 = vmul.f32 %v4174, %v4740
      %v4831 = vmul.f32 %v4175, %v4740
      %v4832 = vmul.f32 %v4176, %v4740
      %v4833 = vmul.f32 %v4177, %v4740
      %v4834 = vmul.f32 %v4178, %v4740
      %v4835 = vmul.f32 %v4179, %v4740
      %v4836 = vmul.f32 %v4180, %v4740
      %v4837 = vmul.f32 %v4181, %v4740
      %v4838 = vmul.f32 %v4182, %v4740
      %v4839 = vmul.f32 %v4183, %v4740
      %v4840 = vmul.f32 %v4184, %v4740
      %v4841 = vmul.f32 %v4185, %v4740
      %v4842 = vmul.f32 %v4186, %v4740
      %v4843 = vmul.f32 %v4187, %v4740
      %v4844 = vmul.f32 %v4188, %v4740
      %v4845 = vmul.f32 %v4189, %v4740
      %v4846 = vmul.f32 %v4190, %v4740
      %v4847 = vmul.f32 %v4191, %v4740
      %v4848 = vmul.f32 %v4192, %v4740
      %v4849 = vmul.f32 %v4193, %v4740
      %v4850 = vmul.f32 %v4194, %v4740
      %v4851 = vmul.f32 %v4195, %v4740
      %v4852 = vmul.f32 %v4196, %v4740
      %v4853 = vmul.f32 %v4197, %v4740
      %v4854 = vmul.f32 %v4198, %v4740
      %v4855 = vmul.f32 %v4199, %v4740
      %v4856 = vmul.f32 %v4200, %v4740
      %v4857 = vmul.f32 %v4201, %v4740
      %v4858 = vmul.f32 %v4202, %v4740
      %v4859 = vmul.f32 %v4203, %v4740
      %v4860 = vmul.f32 %v4204, %v4740
      %v4861 = vmul.f32 %v4205, %v4740
      %v4862 = vmul.f32 %v4206, %v4740
      %v4863 = vmul.f32 %v4207, %v4740
      %v4864 = vmul.f32 %v4208, %v4740
      %v4865 = vmul.f32 %v4209, %v4740
      %v4866 = vmul.f32 %v4210, %v4740
      %v4867 = vmul.f32 %v4211, %v4740
      %v4868 = vmul.f32 %v4212, %v4740
      %v4869 = vmul.f32 %v4213, %v4740
      %4998 = vrot.lane.b32.xlu0 %v4742, 112
      %v4999 = vpop.permute.xlu0 %4998
      %5000 = vrot.lane.b32.xlu0 %v4743, 112
      %v5001 = vpop.permute.xlu0 %5000
      %5002 = vrot.lane.b32.xlu0 %v4744, 112
      %v5003 = vpop.permute.xlu0 %5002
      %5004 = vrot.lane.b32.xlu0 %v4745, 112
      %v5005 = vpop.permute.xlu0 %5004
      %5006 = vrot.lane.b32.xlu0 %v4746, 112
      %v5007 = vpop.permute.xlu0 %5006
      %5008 = vrot.lane.b32.xlu0 %v4747, 112
      %v5009 = vpop.permute.xlu0 %5008
      %5010 = vrot.lane.b32.xlu0 %v4748, 112
      %v5011 = vpop.permute.xlu0 %5010
      %5012 = vrot.lane.b32.xlu0 %v4749, 112
      %v5013 = vpop.permute.xlu0 %5012
      %5014 = vrot.lane.b32.xlu0 %v4750, 112
      %v5015 = vpop.permute.xlu0 %5014
      %5016 = vrot.lane.b32.xlu0 %v4751, 112
      %v5017 = vpop.permute.xlu0 %5016
      %5018 = vrot.lane.b32.xlu0 %v4752, 112
      %v5019 = vpop.permute.xlu0 %5018
      %5020 = vrot.lane.b32.xlu0 %v4753, 112
      %v5021 = vpop.permute.xlu0 %5020
      %5022 = vrot.lane.b32.xlu0 %v4754, 112
      %v5023 = vpop.permute.xlu0 %5022
      %5024 = vrot.lane.b32.xlu0 %v4755, 112
      %v5025 = vpop.permute.xlu0 %5024
      %5026 = vrot.lane.b32.xlu0 %v4756, 112
      %v5027 = vpop.permute.xlu0 %5026
      %5028 = vrot.lane.b32.xlu0 %v4757, 112
      %v5029 = vpop.permute.xlu0 %5028
      %5030 = vrot.lane.b32.xlu0 %v4758, 112
      %v5031 = vpop.permute.xlu0 %5030
      %5032 = vrot.lane.b32.xlu0 %v4759, 112
      %v5033 = vpop.permute.xlu0 %5032
      %5034 = vrot.lane.b32.xlu0 %v4760, 112
      %v5035 = vpop.permute.xlu0 %5034
      %5036 = vrot.lane.b32.xlu0 %v4761, 112
      %v5037 = vpop.permute.xlu0 %5036
      %5038 = vrot.lane.b32.xlu0 %v4762, 112
      %v5039 = vpop.permute.xlu0 %5038
      %5040 = vrot.lane.b32.xlu0 %v4763, 112
      %v5041 = vpop.permute.xlu0 %5040
      %5042 = vrot.lane.b32.xlu0 %v4764, 112
      %v5043 = vpop.permute.xlu0 %5042
      %5044 = vrot.lane.b32.xlu0 %v4765, 112
      %v5045 = vpop.permute.xlu0 %5044
      %5046 = vrot.lane.b32.xlu0 %v4766, 112
      %v5047 = vpop.permute.xlu0 %5046
      %5048 = vrot.lane.b32.xlu0 %v4767, 112
      %v5049 = vpop.permute.xlu0 %5048
      %5050 = vrot.lane.b32.xlu0 %v4768, 112
      %v5051 = vpop.permute.xlu0 %5050
      %5052 = vrot.lane.b32.xlu0 %v4769, 112
      %v5053 = vpop.permute.xlu0 %5052
      %5054 = vrot.lane.b32.xlu0 %v4770, 112
      %v5055 = vpop.permute.xlu0 %5054
      %5056 = vrot.lane.b32.xlu0 %v4771, 112
      %v5057 = vpop.permute.xlu0 %5056
      %5058 = vrot.lane.b32.xlu0 %v4772, 112
      %v5059 = vpop.permute.xlu0 %5058
      %5060 = vrot.lane.b32.xlu0 %v4773, 112
      %v5061 = vpop.permute.xlu0 %5060
      %5062 = vrot.lane.b32.xlu0 %v4774, 112
      %v5063 = vpop.permute.xlu0 %5062
      %5064 = vrot.lane.b32.xlu0 %v4775, 112
      %v5065 = vpop.permute.xlu0 %5064
      %5066 = vrot.lane.b32.xlu0 %v4776, 112
      %v5067 = vpop.permute.xlu0 %5066
      %5068 = vrot.lane.b32.xlu0 %v4777, 112
      %v5069 = vpop.permute.xlu0 %5068
      %5070 = vrot.lane.b32.xlu0 %v4778, 112
      %v5071 = vpop.permute.xlu0 %5070
      %5072 = vrot.lane.b32.xlu0 %v4779, 112
      %v5073 = vpop.permute.xlu0 %5072
      %5074 = vrot.lane.b32.xlu0 %v4780, 112
      %v5075 = vpop.permute.xlu0 %5074
      %5076 = vrot.lane.b32.xlu0 %v4781, 112
      %v5077 = vpop.permute.xlu0 %5076
      %5078 = vrot.lane.b32.xlu0 %v4782, 112
      %v5079 = vpop.permute.xlu0 %5078
      %5080 = vrot.lane.b32.xlu0 %v4783, 112
      %v5081 = vpop.permute.xlu0 %5080
      %5082 = vrot.lane.b32.xlu0 %v4784, 112
      %v5083 = vpop.permute.xlu0 %5082
      %5084 = vrot.lane.b32.xlu0 %v4785, 112
      %v5085 = vpop.permute.xlu0 %5084
      %5086 = vrot.lane.b32.xlu0 %v4786, 112
      %v5087 = vpop.permute.xlu0 %5086
      %5088 = vrot.lane.b32.xlu0 %v4787, 112
      %v5089 = vpop.permute.xlu0 %5088
      %5090 = vrot.lane.b32.xlu0 %v4788, 112
      %v5091 = vpop.permute.xlu0 %5090
      %5092 = vrot.lane.b32.xlu0 %v4789, 112
      %v5093 = vpop.permute.xlu0 %5092
      %5094 = vrot.lane.b32.xlu0 %v4790, 112
      %v5095 = vpop.permute.xlu0 %5094
      %5096 = vrot.lane.b32.xlu0 %v4791, 112
      %v5097 = vpop.permute.xlu0 %5096
      %5098 = vrot.lane.b32.xlu0 %v4792, 112
      %v5099 = vpop.permute.xlu0 %5098
      %5100 = vrot.lane.b32.xlu0 %v4793, 112
      %v5101 = vpop.permute.xlu0 %5100
      %5102 = vrot.lane.b32.xlu0 %v4794, 112
      %v5103 = vpop.permute.xlu0 %5102
      %5104 = vrot.lane.b32.xlu0 %v4795, 112
      %v5105 = vpop.permute.xlu0 %5104
      %5106 = vrot.lane.b32.xlu0 %v4796, 112
      %v5107 = vpop.permute.xlu0 %5106
      %5108 = vrot.lane.b32.xlu0 %v4797, 112
      %v5109 = vpop.permute.xlu0 %5108
      %5110 = vrot.lane.b32.xlu0 %v4798, 112
      %v5111 = vpop.permute.xlu0 %5110
      %5112 = vrot.lane.b32.xlu0 %v4799, 112
      %v5113 = vpop.permute.xlu0 %5112
      %5114 = vrot.lane.b32.xlu0 %v4800, 112
      %v5115 = vpop.permute.xlu0 %5114
      %5116 = vrot.lane.b32.xlu0 %v4801, 112
      %v5117 = vpop.permute.xlu0 %5116
      %5118 = vrot.lane.b32.xlu0 %v4802, 112
      %v5119 = vpop.permute.xlu0 %5118
      %5120 = vrot.lane.b32.xlu0 %v4803, 112
      %v5121 = vpop.permute.xlu0 %5120
      %5122 = vrot.lane.b32.xlu0 %v4804, 112
      %v5123 = vpop.permute.xlu0 %5122
      %5124 = vrot.lane.b32.xlu0 %v4805, 112
      %v5125 = vpop.permute.xlu0 %5124
      %5126 = vrot.lane.b32.xlu0 %v4806, 112
      %v5127 = vpop.permute.xlu0 %5126
      %5128 = vrot.lane.b32.xlu0 %v4807, 112
      %v5129 = vpop.permute.xlu0 %5128
      %5130 = vrot.lane.b32.xlu0 %v4808, 112
      %v5131 = vpop.permute.xlu0 %5130
      %5132 = vrot.lane.b32.xlu0 %v4809, 112
      %v5133 = vpop.permute.xlu0 %5132
      %5134 = vrot.lane.b32.xlu0 %v4810, 112
      %v5135 = vpop.permute.xlu0 %5134
      %5136 = vrot.lane.b32.xlu0 %v4811, 112
      %v5137 = vpop.permute.xlu0 %5136
      %5138 = vrot.lane.b32.xlu0 %v4812, 112
      %v5139 = vpop.permute.xlu0 %5138
      %5140 = vrot.lane.b32.xlu0 %v4813, 112
      %v5141 = vpop.permute.xlu0 %5140
      %5142 = vrot.lane.b32.xlu0 %v4814, 112
      %v5143 = vpop.permute.xlu0 %5142
      %5144 = vrot.lane.b32.xlu0 %v4815, 112
      %v5145 = vpop.permute.xlu0 %5144
      %5146 = vrot.lane.b32.xlu0 %v4816, 112
      %v5147 = vpop.permute.xlu0 %5146
      %5148 = vrot.lane.b32.xlu0 %v4817, 112
      %v5149 = vpop.permute.xlu0 %5148
      %5150 = vrot.lane.b32.xlu0 %v4818, 112
      %v5151 = vpop.permute.xlu0 %5150
      %5152 = vrot.lane.b32.xlu0 %v4819, 112
      %v5153 = vpop.permute.xlu0 %5152
      %5154 = vrot.lane.b32.xlu0 %v4820, 112
      %v5155 = vpop.permute.xlu0 %5154
      %5156 = vrot.lane.b32.xlu0 %v4821, 112
      %v5157 = vpop.permute.xlu0 %5156
      %5158 = vrot.lane.b32.xlu0 %v4822, 112
      %v5159 = vpop.permute.xlu0 %5158
      %5160 = vrot.lane.b32.xlu0 %v4823, 112
      %v5161 = vpop.permute.xlu0 %5160
      %5162 = vrot.lane.b32.xlu0 %v4824, 112
      %v5163 = vpop.permute.xlu0 %5162
      %5164 = vrot.lane.b32.xlu0 %v4825, 112
      %v5165 = vpop.permute.xlu0 %5164
      %5166 = vrot.lane.b32.xlu0 %v4826, 112
      %v5167 = vpop.permute.xlu0 %5166
      %5168 = vrot.lane.b32.xlu0 %v4827, 112
      %v5169 = vpop.permute.xlu0 %5168
      %5170 = vrot.lane.b32.xlu0 %v4828, 112
      %v5171 = vpop.permute.xlu0 %5170
      %5172 = vrot.lane.b32.xlu0 %v4829, 112
      %v5173 = vpop.permute.xlu0 %5172
      %5174 = vrot.lane.b32.xlu0 %v4830, 112
      %v5175 = vpop.permute.xlu0 %5174
      %5176 = vrot.lane.b32.xlu0 %v4831, 112
      %v5177 = vpop.permute.xlu0 %5176
      %5178 = vrot.lane.b32.xlu0 %v4832, 112
      %v5179 = vpop.permute.xlu0 %5178
      %5180 = vrot.lane.b32.xlu0 %v4833, 112
      %v5181 = vpop.permute.xlu0 %5180
      %5182 = vrot.lane.b32.xlu0 %v4834, 112
      %v5183 = vpop.permute.xlu0 %5182
      %5184 = vrot.lane.b32.xlu0 %v4835, 112
      %v5185 = vpop.permute.xlu0 %5184
      %5186 = vrot.lane.b32.xlu0 %v4836, 112
      %v5187 = vpop.permute.xlu0 %5186
      %5188 = vrot.lane.b32.xlu0 %v4837, 112
      %v5189 = vpop.permute.xlu0 %5188
      %5190 = vrot.lane.b32.xlu0 %v4838, 112
      %v5191 = vpop.permute.xlu0 %5190
      %5192 = vrot.lane.b32.xlu0 %v4839, 112
      %v5193 = vpop.permute.xlu0 %5192
      %5194 = vrot.lane.b32.xlu0 %v4840, 112
      %v5195 = vpop.permute.xlu0 %5194
      %5196 = vrot.lane.b32.xlu0 %v4841, 112
      %v5197 = vpop.permute.xlu0 %5196
      %5198 = vrot.lane.b32.xlu0 %v4842, 112
      %v5199 = vpop.permute.xlu0 %5198
      %5200 = vrot.lane.b32.xlu0 %v4843, 112
      %v5201 = vpop.permute.xlu0 %5200
      %5202 = vrot.lane.b32.xlu0 %v4844, 112
      %v5203 = vpop.permute.xlu0 %5202
      %5204 = vrot.lane.b32.xlu0 %v4845, 112
      %v5205 = vpop.permute.xlu0 %5204
      %5206 = vrot.lane.b32.xlu0 %v4846, 112
      %v5207 = vpop.permute.xlu0 %5206
      %5208 = vrot.lane.b32.xlu0 %v4847, 112
      %v5209 = vpop.permute.xlu0 %5208
      %5210 = vrot.lane.b32.xlu0 %v4848, 112
      %v5211 = vpop.permute.xlu0 %5210
      %5212 = vrot.lane.b32.xlu0 %v4849, 112
      %v5213 = vpop.permute.xlu0 %5212
      %5214 = vrot.lane.b32.xlu0 %v4850, 112
      %v5215 = vpop.permute.xlu0 %5214
      %5216 = vrot.lane.b32.xlu0 %v4851, 112
      %v5217 = vpop.permute.xlu0 %5216
      %5218 = vrot.lane.b32.xlu0 %v4852, 112
      %v5219 = vpop.permute.xlu0 %5218
      %5220 = vrot.lane.b32.xlu0 %v4853, 112
      %v5221 = vpop.permute.xlu0 %5220
      %5222 = vrot.lane.b32.xlu0 %v4854, 112
      %v5223 = vpop.permute.xlu0 %5222
      %5224 = vrot.lane.b32.xlu0 %v4855, 112
      %v5225 = vpop.permute.xlu0 %5224
      %5226 = vrot.lane.b32.xlu0 %v4856, 112
      %v5227 = vpop.permute.xlu0 %5226
      %5228 = vrot.lane.b32.xlu0 %v4857, 112
      %v5229 = vpop.permute.xlu0 %5228
      %5230 = vrot.lane.b32.xlu0 %v4858, 112
      %v5231 = vpop.permute.xlu0 %5230
      %5232 = vrot.lane.b32.xlu0 %v4859, 112
      %v5233 = vpop.permute.xlu0 %5232
      %5234 = vrot.lane.b32.xlu0 %v4860, 112
      %v5235 = vpop.permute.xlu0 %5234
      %5236 = vrot.lane.b32.xlu0 %v4861, 112
      %v5237 = vpop.permute.xlu0 %5236
      %5238 = vrot.lane.b32.xlu0 %v4862, 112
      %v5239 = vpop.permute.xlu0 %5238
      %5240 = vrot.lane.b32.xlu0 %v4863, 112
      %v5241 = vpop.permute.xlu0 %5240
      %5242 = vrot.lane.b32.xlu0 %v4864, 112
      %v5243 = vpop.permute.xlu0 %5242
      %5244 = vrot.lane.b32.xlu0 %v4865, 112
      %v5245 = vpop.permute.xlu0 %5244
      %5246 = vrot.lane.b32.xlu0 %v4866, 112
      %v5247 = vpop.permute.xlu0 %5246
      %5248 = vrot.lane.b32.xlu0 %v4867, 112
      %v5249 = vpop.permute.xlu0 %5248
      %5250 = vrot.lane.b32.xlu0 %v4868, 112
      %v5251 = vpop.permute.xlu0 %5250
      %5252 = vrot.lane.b32.xlu0 %v4869, 112
      %v5253 = vpop.permute.xlu0 %5252
      %v5382 = vsel %vm4349, %v4999, 0.0
      %5383 = vadd.xlane.f32.xlu0 %v5382
      %v5384 = vpop.xlane.xlu0 %5383
      %v5385 = vsel %vm4349, %v5001, 0.0
      %5386 = vadd.xlane.f32.xlu0 %v5385
      %v5387 = vpop.xlane.xlu0 %5386
      %v5388 = vsel %vm4349, %v5003, 0.0
      %5389 = vadd.xlane.f32.xlu0 %v5388
      %v5390 = vpop.xlane.xlu0 %5389
      %v5391 = vsel %vm4349, %v5005, 0.0
      %5392 = vadd.xlane.f32.xlu0 %v5391
      %v5393 = vpop.xlane.xlu0 %5392
      %v5394 = vsel %vm4349, %v5007, 0.0
      %5395 = vadd.xlane.f32.xlu0 %v5394
      %v5396 = vpop.xlane.xlu0 %5395
      %v5397 = vsel %vm4349, %v5009, 0.0
      %5398 = vadd.xlane.f32.xlu0 %v5397
      %v5399 = vpop.xlane.xlu0 %5398
      %v5400 = vsel %vm4349, %v5011, 0.0
      %5401 = vadd.xlane.f32.xlu0 %v5400
      %v5402 = vpop.xlane.xlu0 %5401
      %v5403 = vsel %vm4349, %v5013, 0.0
      %5404 = vadd.xlane.f32.xlu0 %v5403
      %v5405 = vpop.xlane.xlu0 %5404
      %v5406 = vsel %vm4349, %v5015, 0.0
      %5407 = vadd.xlane.f32.xlu0 %v5406
      %v5408 = vpop.xlane.xlu0 %5407
      %v5409 = vsel %vm4349, %v5017, 0.0
      %5410 = vadd.xlane.f32.xlu0 %v5409
      %v5411 = vpop.xlane.xlu0 %5410
      %v5412 = vsel %vm4349, %v5019, 0.0
      %5413 = vadd.xlane.f32.xlu0 %v5412
      %v5414 = vpop.xlane.xlu0 %5413
      %v5415 = vsel %vm4349, %v5021, 0.0
      %5416 = vadd.xlane.f32.xlu0 %v5415
      %v5417 = vpop.xlane.xlu0 %5416
      %v5418 = vsel %vm4349, %v5023, 0.0
      %5419 = vadd.xlane.f32.xlu0 %v5418
      %v5420 = vpop.xlane.xlu0 %5419
      %v5421 = vsel %vm4349, %v5025, 0.0
      %5422 = vadd.xlane.f32.xlu0 %v5421
      %v5423 = vpop.xlane.xlu0 %5422
      %v5424 = vsel %vm4349, %v5027, 0.0
      %5425 = vadd.xlane.f32.xlu0 %v5424
      %v5426 = vpop.xlane.xlu0 %5425
      %v5427 = vsel %vm4349, %v5029, 0.0
      %5428 = vadd.xlane.f32.xlu0 %v5427
      %v5429 = vpop.xlane.xlu0 %5428
      %v5430 = vsel %vm4349, %v5031, 0.0
      %5431 = vadd.xlane.f32.xlu0 %v5430
      %v5432 = vpop.xlane.xlu0 %5431
      %v5433 = vsel %vm4349, %v5033, 0.0
      %5434 = vadd.xlane.f32.xlu0 %v5433
      %v5435 = vpop.xlane.xlu0 %5434
      %v5436 = vsel %vm4349, %v5035, 0.0
      %5437 = vadd.xlane.f32.xlu0 %v5436
      %v5438 = vpop.xlane.xlu0 %5437
      %v5439 = vsel %vm4349, %v5037, 0.0
      %5440 = vadd.xlane.f32.xlu0 %v5439
      %v5441 = vpop.xlane.xlu0 %5440
      %v5442 = vsel %vm4349, %v5039, 0.0
      %5443 = vadd.xlane.f32.xlu0 %v5442
      %v5444 = vpop.xlane.xlu0 %5443
      %v5445 = vsel %vm4349, %v5041, 0.0
      %5446 = vadd.xlane.f32.xlu0 %v5445
      %v5447 = vpop.xlane.xlu0 %5446
      %v5448 = vsel %vm4349, %v5043, 0.0
      %5449 = vadd.xlane.f32.xlu0 %v5448
      %v5450 = vpop.xlane.xlu0 %5449
      %v5451 = vsel %vm4349, %v5045, 0.0
      %5452 = vadd.xlane.f32.xlu0 %v5451
      %v5453 = vpop.xlane.xlu0 %5452
      %v5454 = vsel %vm4349, %v5047, 0.0
      %5455 = vadd.xlane.f32.xlu0 %v5454
      %v5456 = vpop.xlane.xlu0 %5455
      %v5457 = vsel %vm4349, %v5049, 0.0
      %5458 = vadd.xlane.f32.xlu0 %v5457
      %v5459 = vpop.xlane.xlu0 %5458
      %v5460 = vsel %vm4349, %v5051, 0.0
      %5461 = vadd.xlane.f32.xlu0 %v5460
      %v5462 = vpop.xlane.xlu0 %5461
      %v5463 = vsel %vm4349, %v5053, 0.0
      %5464 = vadd.xlane.f32.xlu0 %v5463
      %v5465 = vpop.xlane.xlu0 %5464
      %v5466 = vsel %vm4349, %v5055, 0.0
      %5467 = vadd.xlane.f32.xlu0 %v5466
      %v5468 = vpop.xlane.xlu0 %5467
      %v5469 = vsel %vm4349, %v5057, 0.0
      %5470 = vadd.xlane.f32.xlu0 %v5469
      %v5471 = vpop.xlane.xlu0 %5470
      %v5472 = vsel %vm4349, %v5059, 0.0
      %5473 = vadd.xlane.f32.xlu0 %v5472
      %v5474 = vpop.xlane.xlu0 %5473
      %v5475 = vsel %vm4349, %v5061, 0.0
      %5476 = vadd.xlane.f32.xlu0 %v5475
      %v5477 = vpop.xlane.xlu0 %5476
      %v5478 = vsel %vm4349, %v5063, 0.0
      %5479 = vadd.xlane.f32.xlu0 %v5478
      %v5480 = vpop.xlane.xlu0 %5479
      %v5481 = vsel %vm4349, %v5065, 0.0
      %5482 = vadd.xlane.f32.xlu0 %v5481
      %v5483 = vpop.xlane.xlu0 %5482
      %v5484 = vsel %vm4349, %v5067, 0.0
      %5485 = vadd.xlane.f32.xlu0 %v5484
      %v5486 = vpop.xlane.xlu0 %5485
      %v5487 = vsel %vm4349, %v5069, 0.0
      %5488 = vadd.xlane.f32.xlu0 %v5487
      %v5489 = vpop.xlane.xlu0 %5488
      %v5490 = vsel %vm4349, %v5071, 0.0
      %5491 = vadd.xlane.f32.xlu0 %v5490
      %v5492 = vpop.xlane.xlu0 %5491
      %v5493 = vsel %vm4349, %v5073, 0.0
      %5494 = vadd.xlane.f32.xlu0 %v5493
      %v5495 = vpop.xlane.xlu0 %5494
      %v5496 = vsel %vm4349, %v5075, 0.0
      %5497 = vadd.xlane.f32.xlu0 %v5496
      %v5498 = vpop.xlane.xlu0 %5497
      %v5499 = vsel %vm4349, %v5077, 0.0
      %5500 = vadd.xlane.f32.xlu0 %v5499
      %v5501 = vpop.xlane.xlu0 %5500
      %v5502 = vsel %vm4349, %v5079, 0.0
      %5503 = vadd.xlane.f32.xlu0 %v5502
      %v5504 = vpop.xlane.xlu0 %5503
      %v5505 = vsel %vm4349, %v5081, 0.0
      %5506 = vadd.xlane.f32.xlu0 %v5505
      %v5507 = vpop.xlane.xlu0 %5506
      %v5508 = vsel %vm4349, %v5083, 0.0
      %5509 = vadd.xlane.f32.xlu0 %v5508
      %v5510 = vpop.xlane.xlu0 %5509
      %v5511 = vsel %vm4349, %v5085, 0.0
      %5512 = vadd.xlane.f32.xlu0 %v5511
      %v5513 = vpop.xlane.xlu0 %5512
      %v5514 = vsel %vm4349, %v5087, 0.0
      %5515 = vadd.xlane.f32.xlu0 %v5514
      %v5516 = vpop.xlane.xlu0 %5515
      %v5517 = vsel %vm4349, %v5089, 0.0
      %5518 = vadd.xlane.f32.xlu0 %v5517
      %v5519 = vpop.xlane.xlu0 %5518
      %v5520 = vsel %vm4349, %v5091, 0.0
      %5521 = vadd.xlane.f32.xlu0 %v5520
      %v5522 = vpop.xlane.xlu0 %5521
      %v5523 = vsel %vm4349, %v5093, 0.0
      %5524 = vadd.xlane.f32.xlu0 %v5523
      %v5525 = vpop.xlane.xlu0 %5524
      %v5526 = vsel %vm4349, %v5095, 0.0
      %5527 = vadd.xlane.f32.xlu0 %v5526
      %v5528 = vpop.xlane.xlu0 %5527
      %v5529 = vsel %vm4349, %v5097, 0.0
      %5530 = vadd.xlane.f32.xlu0 %v5529
      %v5531 = vpop.xlane.xlu0 %5530
      %v5532 = vsel %vm4349, %v5099, 0.0
      %5533 = vadd.xlane.f32.xlu0 %v5532
      %v5534 = vpop.xlane.xlu0 %5533
      %v5535 = vsel %vm4349, %v5101, 0.0
      %5536 = vadd.xlane.f32.xlu0 %v5535
      %v5537 = vpop.xlane.xlu0 %5536
      %v5538 = vsel %vm4349, %v5103, 0.0
      %5539 = vadd.xlane.f32.xlu0 %v5538
      %v5540 = vpop.xlane.xlu0 %5539
      %v5541 = vsel %vm4349, %v5105, 0.0
      %5542 = vadd.xlane.f32.xlu0 %v5541
      %v5543 = vpop.xlane.xlu0 %5542
      %v5544 = vsel %vm4349, %v5107, 0.0
      %5545 = vadd.xlane.f32.xlu0 %v5544
      %v5546 = vpop.xlane.xlu0 %5545
      %v5547 = vsel %vm4349, %v5109, 0.0
      %5548 = vadd.xlane.f32.xlu0 %v5547
      %v5549 = vpop.xlane.xlu0 %5548
      %v5550 = vsel %vm4349, %v5111, 0.0
      %5551 = vadd.xlane.f32.xlu0 %v5550
      %v5552 = vpop.xlane.xlu0 %5551
      %v5553 = vsel %vm4349, %v5113, 0.0
      %5554 = vadd.xlane.f32.xlu0 %v5553
      %v5555 = vpop.xlane.xlu0 %5554
      %v5556 = vsel %vm4349, %v5115, 0.0
      %5557 = vadd.xlane.f32.xlu0 %v5556
      %v5558 = vpop.xlane.xlu0 %5557
      %v5559 = vsel %vm4349, %v5117, 0.0
      %5560 = vadd.xlane.f32.xlu0 %v5559
      %v5561 = vpop.xlane.xlu0 %5560
      %v5562 = vsel %vm4349, %v5119, 0.0
      %5563 = vadd.xlane.f32.xlu0 %v5562
      %v5564 = vpop.xlane.xlu0 %5563
      %v5565 = vsel %vm4349, %v5121, 0.0
      %5566 = vadd.xlane.f32.xlu0 %v5565
      %v5567 = vpop.xlane.xlu0 %5566
      %v5568 = vsel %vm4349, %v5123, 0.0
      %5569 = vadd.xlane.f32.xlu0 %v5568
      %v5570 = vpop.xlane.xlu0 %5569
      %v5571 = vsel %vm4349, %v5125, 0.0
      %5572 = vadd.xlane.f32.xlu0 %v5571
      %v5573 = vpop.xlane.xlu0 %5572
      %v5574 = vsel %vm4349, %v5127, 0.0
      %5575 = vadd.xlane.f32.xlu0 %v5574
      %v5576 = vpop.xlane.xlu0 %5575
      %v5577 = vsel %vm4349, %v5129, 0.0
      %5578 = vadd.xlane.f32.xlu0 %v5577
      %v5579 = vpop.xlane.xlu0 %5578
      %v5580 = vsel %vm4349, %v5131, 0.0
      %5581 = vadd.xlane.f32.xlu0 %v5580
      %v5582 = vpop.xlane.xlu0 %5581
      %v5583 = vsel %vm4349, %v5133, 0.0
      %5584 = vadd.xlane.f32.xlu0 %v5583
      %v5585 = vpop.xlane.xlu0 %5584
      %v5586 = vsel %vm4349, %v5135, 0.0
      %5587 = vadd.xlane.f32.xlu0 %v5586
      %v5588 = vpop.xlane.xlu0 %5587
      %v5589 = vsel %vm4349, %v5137, 0.0
      %5590 = vadd.xlane.f32.xlu0 %v5589
      %v5591 = vpop.xlane.xlu0 %5590
      %v5592 = vsel %vm4349, %v5139, 0.0
      %5593 = vadd.xlane.f32.xlu0 %v5592
      %v5594 = vpop.xlane.xlu0 %5593
      %v5595 = vsel %vm4349, %v5141, 0.0
      %5596 = vadd.xlane.f32.xlu0 %v5595
      %v5597 = vpop.xlane.xlu0 %5596
      %v5598 = vsel %vm4349, %v5143, 0.0
      %5599 = vadd.xlane.f32.xlu0 %v5598
      %v5600 = vpop.xlane.xlu0 %5599
      %v5601 = vsel %vm4349, %v5145, 0.0
      %5602 = vadd.xlane.f32.xlu0 %v5601
      %v5603 = vpop.xlane.xlu0 %5602
      %v5604 = vsel %vm4349, %v5147, 0.0
      %5605 = vadd.xlane.f32.xlu0 %v5604
      %v5606 = vpop.xlane.xlu0 %5605
      %v5607 = vsel %vm4349, %v5149, 0.0
      %5608 = vadd.xlane.f32.xlu0 %v5607
      %v5609 = vpop.xlane.xlu0 %5608
      %v5610 = vsel %vm4349, %v5151, 0.0
      %5611 = vadd.xlane.f32.xlu0 %v5610
      %v5612 = vpop.xlane.xlu0 %5611
      %v5613 = vsel %vm4349, %v5153, 0.0
      %5614 = vadd.xlane.f32.xlu0 %v5613
      %v5615 = vpop.xlane.xlu0 %5614
      %v5616 = vsel %vm4349, %v5155, 0.0
      %5617 = vadd.xlane.f32.xlu0 %v5616
      %v5618 = vpop.xlane.xlu0 %5617
      %v5619 = vsel %vm4349, %v5157, 0.0
      %5620 = vadd.xlane.f32.xlu0 %v5619
      %v5621 = vpop.xlane.xlu0 %5620
      %v5622 = vsel %vm4349, %v5159, 0.0
      %5623 = vadd.xlane.f32.xlu0 %v5622
      %v5624 = vpop.xlane.xlu0 %5623
      %v5625 = vsel %vm4349, %v5161, 0.0
      %5626 = vadd.xlane.f32.xlu0 %v5625
      %v5627 = vpop.xlane.xlu0 %5626
      %v5628 = vsel %vm4349, %v5163, 0.0
      %5629 = vadd.xlane.f32.xlu0 %v5628
      %v5630 = vpop.xlane.xlu0 %5629
      %v5631 = vsel %vm4349, %v5165, 0.0
      %5632 = vadd.xlane.f32.xlu0 %v5631
      %v5633 = vpop.xlane.xlu0 %5632
      %v5634 = vsel %vm4349, %v5167, 0.0
      %5635 = vadd.xlane.f32.xlu0 %v5634
      %v5636 = vpop.xlane.xlu0 %5635
      %v5637 = vsel %vm4349, %v5169, 0.0
      %5638 = vadd.xlane.f32.xlu0 %v5637
      %v5639 = vpop.xlane.xlu0 %5638
      %v5640 = vsel %vm4349, %v5171, 0.0
      %5641 = vadd.xlane.f32.xlu0 %v5640
      %v5642 = vpop.xlane.xlu0 %5641
      %v5643 = vsel %vm4349, %v5173, 0.0
      %5644 = vadd.xlane.f32.xlu0 %v5643
      %v5645 = vpop.xlane.xlu0 %5644
      %v5646 = vsel %vm4349, %v5175, 0.0
      %5647 = vadd.xlane.f32.xlu0 %v5646
      %v5648 = vpop.xlane.xlu0 %5647
      %v5649 = vsel %vm4349, %v5177, 0.0
      %5650 = vadd.xlane.f32.xlu0 %v5649
      %v5651 = vpop.xlane.xlu0 %5650
      %v5652 = vsel %vm4349, %v5179, 0.0
      %5653 = vadd.xlane.f32.xlu0 %v5652
      %v5654 = vpop.xlane.xlu0 %5653
      %v5655 = vsel %vm4349, %v5181, 0.0
      %5656 = vadd.xlane.f32.xlu0 %v5655
      %v5657 = vpop.xlane.xlu0 %5656
      %v5658 = vsel %vm4349, %v5183, 0.0
      %5659 = vadd.xlane.f32.xlu0 %v5658
      %v5660 = vpop.xlane.xlu0 %5659
      %v5661 = vsel %vm4349, %v5185, 0.0
      %5662 = vadd.xlane.f32.xlu0 %v5661
      %v5663 = vpop.xlane.xlu0 %5662
      %v5664 = vsel %vm4349, %v5187, 0.0
      %5665 = vadd.xlane.f32.xlu0 %v5664
      %v5666 = vpop.xlane.xlu0 %5665
      %v5667 = vsel %vm4349, %v5189, 0.0
      %5668 = vadd.xlane.f32.xlu0 %v5667
      %v5669 = vpop.xlane.xlu0 %5668
      %v5670 = vsel %vm4349, %v5191, 0.0
      %5671 = vadd.xlane.f32.xlu0 %v5670
      %v5672 = vpop.xlane.xlu0 %5671
      %v5673 = vsel %vm4349, %v5193, 0.0
      %5674 = vadd.xlane.f32.xlu0 %v5673
      %v5675 = vpop.xlane.xlu0 %5674
      %v5676 = vsel %vm4349, %v5195, 0.0
      %5677 = vadd.xlane.f32.xlu0 %v5676
      %v5678 = vpop.xlane.xlu0 %5677
      %v5679 = vsel %vm4349, %v5197, 0.0
      %5680 = vadd.xlane.f32.xlu0 %v5679
      %v5681 = vpop.xlane.xlu0 %5680
      %v5682 = vsel %vm4349, %v5199, 0.0
      %5683 = vadd.xlane.f32.xlu0 %v5682
      %v5684 = vpop.xlane.xlu0 %5683
      %v5685 = vsel %vm4349, %v5201, 0.0
      %5686 = vadd.xlane.f32.xlu0 %v5685
      %v5687 = vpop.xlane.xlu0 %5686
      %v5688 = vsel %vm4349, %v5203, 0.0
      %5689 = vadd.xlane.f32.xlu0 %v5688
      %v5690 = vpop.xlane.xlu0 %5689
      %v5691 = vsel %vm4349, %v5205, 0.0
      %5692 = vadd.xlane.f32.xlu0 %v5691
      %v5693 = vpop.xlane.xlu0 %5692
      %v5694 = vsel %vm4349, %v5207, 0.0
      %5695 = vadd.xlane.f32.xlu0 %v5694
      %v5696 = vpop.xlane.xlu0 %5695
      %v5697 = vsel %vm4349, %v5209, 0.0
      %5698 = vadd.xlane.f32.xlu0 %v5697
      %v5699 = vpop.xlane.xlu0 %5698
      %v5700 = vsel %vm4349, %v5211, 0.0
      %5701 = vadd.xlane.f32.xlu0 %v5700
      %v5702 = vpop.xlane.xlu0 %5701
      %v5703 = vsel %vm4349, %v5213, 0.0
      %5704 = vadd.xlane.f32.xlu0 %v5703
      %v5705 = vpop.xlane.xlu0 %5704
      %v5706 = vsel %vm4349, %v5215, 0.0
      %5707 = vadd.xlane.f32.xlu0 %v5706
      %v5708 = vpop.xlane.xlu0 %5707
      %v5709 = vsel %vm4349, %v5217, 0.0
      %5710 = vadd.xlane.f32.xlu0 %v5709
      %v5711 = vpop.xlane.xlu0 %5710
      %v5712 = vsel %vm4349, %v5219, 0.0
      %5713 = vadd.xlane.f32.xlu0 %v5712
      %v5714 = vpop.xlane.xlu0 %5713
      %v5715 = vsel %vm4349, %v5221, 0.0
      %5716 = vadd.xlane.f32.xlu0 %v5715
      %v5717 = vpop.xlane.xlu0 %5716
      %v5718 = vsel %vm4349, %v5223, 0.0
      %5719 = vadd.xlane.f32.xlu0 %v5718
      %v5720 = vpop.xlane.xlu0 %5719
      %v5721 = vsel %vm4349, %v5225, 0.0
      %5722 = vadd.xlane.f32.xlu0 %v5721
      %v5723 = vpop.xlane.xlu0 %5722
      %v5724 = vsel %vm4349, %v5227, 0.0
      %5725 = vadd.xlane.f32.xlu0 %v5724
      %v5726 = vpop.xlane.xlu0 %5725
      %v5727 = vsel %vm4349, %v5229, 0.0
      %5728 = vadd.xlane.f32.xlu0 %v5727
      %v5729 = vpop.xlane.xlu0 %5728
      %v5730 = vsel %vm4349, %v5231, 0.0
      %5731 = vadd.xlane.f32.xlu0 %v5730
      %v5732 = vpop.xlane.xlu0 %5731
      %v5733 = vsel %vm4349, %v5233, 0.0
      %5734 = vadd.xlane.f32.xlu0 %v5733
      %v5735 = vpop.xlane.xlu0 %5734
      %v5736 = vsel %vm4349, %v5235, 0.0
      %5737 = vadd.xlane.f32.xlu0 %v5736
      %v5738 = vpop.xlane.xlu0 %5737
      %v5739 = vsel %vm4349, %v5237, 0.0
      %5740 = vadd.xlane.f32.xlu0 %v5739
      %v5741 = vpop.xlane.xlu0 %5740
      %v5742 = vsel %vm4349, %v5239, 0.0
      %5743 = vadd.xlane.f32.xlu0 %v5742
      %v5744 = vpop.xlane.xlu0 %5743
      %v5745 = vsel %vm4349, %v5241, 0.0
      %5746 = vadd.xlane.f32.xlu0 %v5745
      %v5747 = vpop.xlane.xlu0 %5746
      %v5748 = vsel %vm4349, %v5243, 0.0
      %5749 = vadd.xlane.f32.xlu0 %v5748
      %v5750 = vpop.xlane.xlu0 %5749
      %v5751 = vsel %vm4349, %v5245, 0.0
      %5752 = vadd.xlane.f32.xlu0 %v5751
      %v5753 = vpop.xlane.xlu0 %5752
      %v5754 = vsel %vm4349, %v5247, 0.0
      %5755 = vadd.xlane.f32.xlu0 %v5754
      %v5756 = vpop.xlane.xlu0 %5755
      %v5757 = vsel %vm4349, %v5249, 0.0
      %5758 = vadd.xlane.f32.xlu0 %v5757
      %v5759 = vpop.xlane.xlu0 %5758
      %v5760 = vsel %vm4349, %v5251, 0.0
      %5761 = vadd.xlane.f32.xlu0 %v5760
      %v5762 = vpop.xlane.xlu0 %5761
      %v5763 = vsel %vm4349, %v5253, 0.0
      %5764 = vadd.xlane.f32.xlu0 %v5763
      %v5765 = vpop.xlane.xlu0 %5764
      %v5766 = vadd.f32 %v4352, %v5384
      %v5767 = vadd.f32 %v4355, %v5387
      %v5768 = vadd.f32 %v4358, %v5390
      %v5769 = vadd.f32 %v4361, %v5393
      %v5770 = vadd.f32 %v4364, %v5396
      %v5771 = vadd.f32 %v4367, %v5399
      %v5772 = vadd.f32 %v4370, %v5402
      %v5773 = vadd.f32 %v4373, %v5405
      %v5774 = vadd.f32 %v4376, %v5408
      %v5775 = vadd.f32 %v4379, %v5411
      %v5776 = vadd.f32 %v4382, %v5414
      %v5777 = vadd.f32 %v4385, %v5417
      %v5778 = vadd.f32 %v4388, %v5420
      %v5779 = vadd.f32 %v4391, %v5423
      %v5780 = vadd.f32 %v4394, %v5426
      %v5781 = vadd.f32 %v4397, %v5429
      %v5782 = vadd.f32 %v4400, %v5432
      %v5783 = vadd.f32 %v4403, %v5435
      %v5784 = vadd.f32 %v4406, %v5438
      %v5785 = vadd.f32 %v4409, %v5441
      %v5786 = vadd.f32 %v4412, %v5444
      %v5787 = vadd.f32 %v4415, %v5447
      %v5788 = vadd.f32 %v4418, %v5450
      %v5789 = vadd.f32 %v4421, %v5453
      %v5790 = vadd.f32 %v4424, %v5456
      %v5791 = vadd.f32 %v4427, %v5459
      %v5792 = vadd.f32 %v4430, %v5462
      %v5793 = vadd.f32 %v4433, %v5465
      %v5794 = vadd.f32 %v4436, %v5468
      %v5795 = vadd.f32 %v4439, %v5471
      %v5796 = vadd.f32 %v4442, %v5474
      %v5797 = vadd.f32 %v4445, %v5477
      %v5798 = vadd.f32 %v4448, %v5480
      %v5799 = vadd.f32 %v4451, %v5483
      %v5800 = vadd.f32 %v4454, %v5486
      %v5801 = vadd.f32 %v4457, %v5489
      %v5802 = vadd.f32 %v4460, %v5492
      %v5803 = vadd.f32 %v4463, %v5495
      %v5804 = vadd.f32 %v4466, %v5498
      %v5805 = vadd.f32 %v4469, %v5501
      %v5806 = vadd.f32 %v4472, %v5504
      %v5807 = vadd.f32 %v4475, %v5507
      %v5808 = vadd.f32 %v4478, %v5510
      %v5809 = vadd.f32 %v4481, %v5513
      %v5810 = vadd.f32 %v4484, %v5516
      %v5811 = vadd.f32 %v4487, %v5519
      %v5812 = vadd.f32 %v4490, %v5522
      %v5813 = vadd.f32 %v4493, %v5525
      %v5814 = vadd.f32 %v4496, %v5528
      %v5815 = vadd.f32 %v4499, %v5531
      %v5816 = vadd.f32 %v4502, %v5534
      %v5817 = vadd.f32 %v4505, %v5537
      %v5818 = vadd.f32 %v4508, %v5540
      %v5819 = vadd.f32 %v4511, %v5543
      %v5820 = vadd.f32 %v4514, %v5546
      %v5821 = vadd.f32 %v4517, %v5549
      %v5822 = vadd.f32 %v4520, %v5552
      %v5823 = vadd.f32 %v4523, %v5555
      %v5824 = vadd.f32 %v4526, %v5558
      %v5825 = vadd.f32 %v4529, %v5561
      %v5826 = vadd.f32 %v4532, %v5564
      %v5827 = vadd.f32 %v4535, %v5567
      %v5828 = vadd.f32 %v4538, %v5570
      %v5829 = vadd.f32 %v4541, %v5573
      %v5830 = vadd.f32 %v4544, %v5576
      %v5831 = vadd.f32 %v4547, %v5579
      %v5832 = vadd.f32 %v4550, %v5582
      %v5833 = vadd.f32 %v4553, %v5585
      %v5834 = vadd.f32 %v4556, %v5588
      %v5835 = vadd.f32 %v4559, %v5591
      %v5836 = vadd.f32 %v4562, %v5594
      %v5837 = vadd.f32 %v4565, %v5597
      %v5838 = vadd.f32 %v4568, %v5600
      %v5839 = vadd.f32 %v4571, %v5603
      %v5840 = vadd.f32 %v4574, %v5606
      %v5841 = vadd.f32 %v4577, %v5609
      %v5842 = vadd.f32 %v4580, %v5612
      %v5843 = vadd.f32 %v4583, %v5615
      %v5844 = vadd.f32 %v4586, %v5618
      %v5845 = vadd.f32 %v4589, %v5621
      %v5846 = vadd.f32 %v4592, %v5624
      %v5847 = vadd.f32 %v4595, %v5627
      %v5848 = vadd.f32 %v4598, %v5630
      %v5849 = vadd.f32 %v4601, %v5633
      %v5850 = vadd.f32 %v4604, %v5636
      %v5851 = vadd.f32 %v4607, %v5639
      %v5852 = vadd.f32 %v4610, %v5642
      %v5853 = vadd.f32 %v4613, %v5645
      %v5854 = vadd.f32 %v4616, %v5648
      %v5855 = vadd.f32 %v4619, %v5651
      %v5856 = vadd.f32 %v4622, %v5654
      %v5857 = vadd.f32 %v4625, %v5657
      %v5858 = vadd.f32 %v4628, %v5660
      %v5859 = vadd.f32 %v4631, %v5663
      %v5860 = vadd.f32 %v4634, %v5666
      %v5861 = vadd.f32 %v4637, %v5669
      %v5862 = vadd.f32 %v4640, %v5672
      %v5863 = vadd.f32 %v4643, %v5675
      %v5864 = vadd.f32 %v4646, %v5678
      %v5865 = vadd.f32 %v4649, %v5681
      %v5866 = vadd.f32 %v4652, %v5684
      %v5867 = vadd.f32 %v4655, %v5687
      %v5868 = vadd.f32 %v4658, %v5690
      %v5869 = vadd.f32 %v4661, %v5693
      %v5870 = vadd.f32 %v4664, %v5696
      %v5871 = vadd.f32 %v4667, %v5699
      %v5872 = vadd.f32 %v4670, %v5702
      %v5873 = vadd.f32 %v4673, %v5705
      %v5874 = vadd.f32 %v4676, %v5708
      %v5875 = vadd.f32 %v4679, %v5711
      %v5876 = vadd.f32 %v4682, %v5714
      %v5877 = vadd.f32 %v4685, %v5717
      %v5878 = vadd.f32 %v4688, %v5720
      %v5879 = vadd.f32 %v4691, %v5723
      %v5880 = vadd.f32 %v4694, %v5726
      %v5881 = vadd.f32 %v4697, %v5729
      %v5882 = vadd.f32 %v4700, %v5732
      %v5883 = vadd.f32 %v4703, %v5735
      %v5884 = vadd.f32 %v4706, %v5738
      %v5885 = vadd.f32 %v4709, %v5741
      %v5886 = vadd.f32 %v4712, %v5744
      %v5887 = vadd.f32 %v4715, %v5747
      %v5888 = vadd.f32 %v4718, %v5750
      %v5889 = vadd.f32 %v4721, %v5753
      %v5890 = vadd.f32 %v4724, %v5756
      %v5891 = vadd.f32 %v4727, %v5759
      %v5892 = vadd.f32 %v4730, %v5762
      %v5893 = vadd.f32 %v4733, %v5765
      %v5894 = vlaneseq
      %v5895 = vshrl.u32 %v5894, 7
      %v5896 = vsub.s32 0, %v5895
      %v5897 = vrot.slane %v4216, %v5896
      %v5898 = vadd.f32 %v5766, %v5897
      %v5899 = vadd.f32 %v5767, %v5897
      %v5900 = vadd.f32 %v5768, %v5897
      %v5901 = vadd.f32 %v5769, %v5897
      %v5902 = vadd.f32 %v5770, %v5897
      %v5903 = vadd.f32 %v5771, %v5897
      %v5904 = vadd.f32 %v5772, %v5897
      %v5905 = vadd.f32 %v5773, %v5897
      %v5906 = vadd.f32 %v5774, %v5897
      %v5907 = vadd.f32 %v5775, %v5897
      %v5908 = vadd.f32 %v5776, %v5897
      %v5909 = vadd.f32 %v5777, %v5897
      %v5910 = vadd.f32 %v5778, %v5897
      %v5911 = vadd.f32 %v5779, %v5897
      %v5912 = vadd.f32 %v5780, %v5897
      %v5913 = vadd.f32 %v5781, %v5897
      %v5914 = vadd.f32 %v5782, %v5897
      %v5915 = vadd.f32 %v5783, %v5897
      %v5916 = vadd.f32 %v5784, %v5897
      %v5917 = vadd.f32 %v5785, %v5897
      %v5918 = vadd.f32 %v5786, %v5897
      %v5919 = vadd.f32 %v5787, %v5897
      %v5920 = vadd.f32 %v5788, %v5897
      %v5921 = vadd.f32 %v5789, %v5897
      %v5922 = vadd.f32 %v5790, %v5897
      %v5923 = vadd.f32 %v5791, %v5897
      %v5924 = vadd.f32 %v5792, %v5897
      %v5925 = vadd.f32 %v5793, %v5897
      %v5926 = vadd.f32 %v5794, %v5897
      %v5927 = vadd.f32 %v5795, %v5897
      %v5928 = vadd.f32 %v5796, %v5897
      %v5929 = vadd.f32 %v5797, %v5897
      %v5930 = vadd.f32 %v5798, %v5897
      %v5931 = vadd.f32 %v5799, %v5897
      %v5932 = vadd.f32 %v5800, %v5897
      %v5933 = vadd.f32 %v5801, %v5897
      %v5934 = vadd.f32 %v5802, %v5897
      %v5935 = vadd.f32 %v5803, %v5897
      %v5936 = vadd.f32 %v5804, %v5897
      %v5937 = vadd.f32 %v5805, %v5897
      %v5938 = vadd.f32 %v5806, %v5897
      %v5939 = vadd.f32 %v5807, %v5897
      %v5940 = vadd.f32 %v5808, %v5897
      %v5941 = vadd.f32 %v5809, %v5897
      %v5942 = vadd.f32 %v5810, %v5897
      %v5943 = vadd.f32 %v5811, %v5897
      %v5944 = vadd.f32 %v5812, %v5897
      %v5945 = vadd.f32 %v5813, %v5897
      %v5946 = vadd.f32 %v5814, %v5897
      %v5947 = vadd.f32 %v5815, %v5897
      %v5948 = vadd.f32 %v5816, %v5897
      %v5949 = vadd.f32 %v5817, %v5897
      %v5950 = vadd.f32 %v5818, %v5897
      %v5951 = vadd.f32 %v5819, %v5897
      %v5952 = vadd.f32 %v5820, %v5897
      %v5953 = vadd.f32 %v5821, %v5897
      %v5954 = vadd.f32 %v5822, %v5897
      %v5955 = vadd.f32 %v5823, %v5897
      %v5956 = vadd.f32 %v5824, %v5897
      %v5957 = vadd.f32 %v5825, %v5897
      %v5958 = vadd.f32 %v5826, %v5897
      %v5959 = vadd.f32 %v5827, %v5897
      %v5960 = vadd.f32 %v5828, %v5897
      %v5961 = vadd.f32 %v5829, %v5897
      %v5962 = vadd.f32 %v5830, %v5897
      %v5963 = vadd.f32 %v5831, %v5897
      %v5964 = vadd.f32 %v5832, %v5897
      %v5965 = vadd.f32 %v5833, %v5897
      %v5966 = vadd.f32 %v5834, %v5897
      %v5967 = vadd.f32 %v5835, %v5897
      %v5968 = vadd.f32 %v5836, %v5897
      %v5969 = vadd.f32 %v5837, %v5897
      %v5970 = vadd.f32 %v5838, %v5897
      %v5971 = vadd.f32 %v5839, %v5897
      %v5972 = vadd.f32 %v5840, %v5897
      %v5973 = vadd.f32 %v5841, %v5897
      %v5974 = vadd.f32 %v5842, %v5897
      %v5975 = vadd.f32 %v5843, %v5897
      %v5976 = vadd.f32 %v5844, %v5897
      %v5977 = vadd.f32 %v5845, %v5897
      %v5978 = vadd.f32 %v5846, %v5897
      %v5979 = vadd.f32 %v5847, %v5897
      %v5980 = vadd.f32 %v5848, %v5897
      %v5981 = vadd.f32 %v5849, %v5897
      %v5982 = vadd.f32 %v5850, %v5897
      %v5983 = vadd.f32 %v5851, %v5897
      %v5984 = vadd.f32 %v5852, %v5897
      %v5985 = vadd.f32 %v5853, %v5897
      %v5986 = vadd.f32 %v5854, %v5897
      %v5987 = vadd.f32 %v5855, %v5897
      %v5988 = vadd.f32 %v5856, %v5897
      %v5989 = vadd.f32 %v5857, %v5897
      %v5990 = vadd.f32 %v5858, %v5897
      %v5991 = vadd.f32 %v5859, %v5897
      %v5992 = vadd.f32 %v5860, %v5897
      %v5993 = vadd.f32 %v5861, %v5897
      %v5994 = vadd.f32 %v5862, %v5897
      %v5995 = vadd.f32 %v5863, %v5897
      %v5996 = vadd.f32 %v5864, %v5897
      %v5997 = vadd.f32 %v5865, %v5897
      %v5998 = vadd.f32 %v5866, %v5897
      %v5999 = vadd.f32 %v5867, %v5897
      %v6000 = vadd.f32 %v5868, %v5897
      %v6001 = vadd.f32 %v5869, %v5897
      %v6002 = vadd.f32 %v5870, %v5897
      %v6003 = vadd.f32 %v5871, %v5897
      %v6004 = vadd.f32 %v5872, %v5897
      %v6005 = vadd.f32 %v5873, %v5897
      %v6006 = vadd.f32 %v5874, %v5897
      %v6007 = vadd.f32 %v5875, %v5897
      %v6008 = vadd.f32 %v5876, %v5897
      %v6009 = vadd.f32 %v5877, %v5897
      %v6010 = vadd.f32 %v5878, %v5897
      %v6011 = vadd.f32 %v5879, %v5897
      %v6012 = vadd.f32 %v5880, %v5897
      %v6013 = vadd.f32 %v5881, %v5897
      %v6014 = vadd.f32 %v5882, %v5897
      %v6015 = vadd.f32 %v5883, %v5897
      %v6016 = vadd.f32 %v5884, %v5897
      %v6017 = vadd.f32 %v5885, %v5897
      %v6018 = vadd.f32 %v5886, %v5897
      %v6019 = vadd.f32 %v5887, %v5897
      %v6020 = vadd.f32 %v5888, %v5897
      %v6021 = vadd.f32 %v5889, %v5897
      %v6022 = vadd.f32 %v5890, %v5897
      %v6023 = vadd.f32 %v5891, %v5897
      %v6024 = vadd.f32 %v5892, %v5897
      %v6025 = vadd.f32 %v5893, %v5897
      %v6026 = vxor.u32 %v5898, 2147483648
      %v6027 = vxor.u32 %v5899, 2147483648
      %v6028 = vxor.u32 %v5900, 2147483648
      %v6029 = vxor.u32 %v5901, 2147483648
      %v6030 = vxor.u32 %v5902, 2147483648
      %v6031 = vxor.u32 %v5903, 2147483648
      %v6032 = vxor.u32 %v5904, 2147483648
      %v6033 = vxor.u32 %v5905, 2147483648
      %v6034 = vxor.u32 %v5906, 2147483648
      %v6035 = vxor.u32 %v5907, 2147483648
      %v6036 = vxor.u32 %v5908, 2147483648
      %v6037 = vxor.u32 %v5909, 2147483648
      %v6038 = vxor.u32 %v5910, 2147483648
      %v6039 = vxor.u32 %v5911, 2147483648
      %v6040 = vxor.u32 %v5912, 2147483648
      %v6041 = vxor.u32 %v5913, 2147483648
      %v6042 = vxor.u32 %v5914, 2147483648
      %v6043 = vxor.u32 %v5915, 2147483648
      %v6044 = vxor.u32 %v5916, 2147483648
      %v6045 = vxor.u32 %v5917, 2147483648
      %v6046 = vxor.u32 %v5918, 2147483648
      %v6047 = vxor.u32 %v5919, 2147483648
      %v6048 = vxor.u32 %v5920, 2147483648
      %v6049 = vxor.u32 %v5921, 2147483648
      %v6050 = vxor.u32 %v5922, 2147483648
      %v6051 = vxor.u32 %v5923, 2147483648
      %v6052 = vxor.u32 %v5924, 2147483648
      %v6053 = vxor.u32 %v5925, 2147483648
      %v6054 = vxor.u32 %v5926, 2147483648
      %v6055 = vxor.u32 %v5927, 2147483648
      %v6056 = vxor.u32 %v5928, 2147483648
      %v6057 = vxor.u32 %v5929, 2147483648
      %v6058 = vxor.u32 %v5930, 2147483648
      %v6059 = vxor.u32 %v5931, 2147483648
      %v6060 = vxor.u32 %v5932, 2147483648
      %v6061 = vxor.u32 %v5933, 2147483648
      %v6062 = vxor.u32 %v5934, 2147483648
      %v6063 = vxor.u32 %v5935, 2147483648
      %v6064 = vxor.u32 %v5936, 2147483648
      %v6065 = vxor.u32 %v5937, 2147483648
      %v6066 = vxor.u32 %v5938, 2147483648
      %v6067 = vxor.u32 %v5939, 2147483648
      %v6068 = vxor.u32 %v5940, 2147483648
      %v6069 = vxor.u32 %v5941, 2147483648
      %v6070 = vxor.u32 %v5942, 2147483648
      %v6071 = vxor.u32 %v5943, 2147483648
      %v6072 = vxor.u32 %v5944, 2147483648
      %v6073 = vxor.u32 %v5945, 2147483648
      %v6074 = vxor.u32 %v5946, 2147483648
      %v6075 = vxor.u32 %v5947, 2147483648
      %v6076 = vxor.u32 %v5948, 2147483648
      %v6077 = vxor.u32 %v5949, 2147483648
      %v6078 = vxor.u32 %v5950, 2147483648
      %v6079 = vxor.u32 %v5951, 2147483648
      %v6080 = vxor.u32 %v5952, 2147483648
      %v6081 = vxor.u32 %v5953, 2147483648
      %v6082 = vxor.u32 %v5954, 2147483648
      %v6083 = vxor.u32 %v5955, 2147483648
      %v6084 = vxor.u32 %v5956, 2147483648
      %v6085 = vxor.u32 %v5957, 2147483648
      %v6086 = vxor.u32 %v5958, 2147483648
      %v6087 = vxor.u32 %v5959, 2147483648
      %v6088 = vxor.u32 %v5960, 2147483648
      %v6089 = vxor.u32 %v5961, 2147483648
      %v6090 = vxor.u32 %v5962, 2147483648
      %v6091 = vxor.u32 %v5963, 2147483648
      %v6092 = vxor.u32 %v5964, 2147483648
      %v6093 = vxor.u32 %v5965, 2147483648
      %v6094 = vxor.u32 %v5966, 2147483648
      %v6095 = vxor.u32 %v5967, 2147483648
      %v6096 = vxor.u32 %v5968, 2147483648
      %v6097 = vxor.u32 %v5969, 2147483648
      %v6098 = vxor.u32 %v5970, 2147483648
      %v6099 = vxor.u32 %v5971, 2147483648
      %v6100 = vxor.u32 %v5972, 2147483648
      %v6101 = vxor.u32 %v5973, 2147483648
      %v6102 = vxor.u32 %v5974, 2147483648
      %v6103 = vxor.u32 %v5975, 2147483648
      %v6104 = vxor.u32 %v5976, 2147483648
      %v6105 = vxor.u32 %v5977, 2147483648
      %v6106 = vxor.u32 %v5978, 2147483648
      %v6107 = vxor.u32 %v5979, 2147483648
      %v6108 = vxor.u32 %v5980, 2147483648
      %v6109 = vxor.u32 %v5981, 2147483648
      %v6110 = vxor.u32 %v5982, 2147483648
      %v6111 = vxor.u32 %v5983, 2147483648
      %v6112 = vxor.u32 %v5984, 2147483648
      %v6113 = vxor.u32 %v5985, 2147483648
      %v6114 = vxor.u32 %v5986, 2147483648
      %v6115 = vxor.u32 %v5987, 2147483648
      %v6116 = vxor.u32 %v5988, 2147483648
      %v6117 = vxor.u32 %v5989, 2147483648
      %v6118 = vxor.u32 %v5990, 2147483648
      %v6119 = vxor.u32 %v5991, 2147483648
      %v6120 = vxor.u32 %v5992, 2147483648
      %v6121 = vxor.u32 %v5993, 2147483648
      %v6122 = vxor.u32 %v5994, 2147483648
      %v6123 = vxor.u32 %v5995, 2147483648
      %v6124 = vxor.u32 %v5996, 2147483648
      %v6125 = vxor.u32 %v5997, 2147483648
      %v6126 = vxor.u32 %v5998, 2147483648
      %v6127 = vxor.u32 %v5999, 2147483648
      %v6128 = vxor.u32 %v6000, 2147483648
      %v6129 = vxor.u32 %v6001, 2147483648
      %v6130 = vxor.u32 %v6002, 2147483648
      %v6131 = vxor.u32 %v6003, 2147483648
      %v6132 = vxor.u32 %v6004, 2147483648
      %v6133 = vxor.u32 %v6005, 2147483648
      %v6134 = vxor.u32 %v6006, 2147483648
      %v6135 = vxor.u32 %v6007, 2147483648
      %v6136 = vxor.u32 %v6008, 2147483648
      %v6137 = vxor.u32 %v6009, 2147483648
      %v6138 = vxor.u32 %v6010, 2147483648
      %v6139 = vxor.u32 %v6011, 2147483648
      %v6140 = vxor.u32 %v6012, 2147483648
      %v6141 = vxor.u32 %v6013, 2147483648
      %v6142 = vxor.u32 %v6014, 2147483648
      %v6143 = vxor.u32 %v6015, 2147483648
      %v6144 = vxor.u32 %v6016, 2147483648
      %v6145 = vxor.u32 %v6017, 2147483648
      %v6146 = vxor.u32 %v6018, 2147483648
      %v6147 = vxor.u32 %v6019, 2147483648
      %v6148 = vxor.u32 %v6020, 2147483648
      %v6149 = vxor.u32 %v6021, 2147483648
      %v6150 = vxor.u32 %v6022, 2147483648
      %v6151 = vxor.u32 %v6023, 2147483648
      %v6152 = vxor.u32 %v6024, 2147483648
      %v6153 = vxor.u32 %v6025, 2147483648
      %v6154 = vmul.f32 %v6026, 1.442695
      %v6155 = vpow.pop %v6154
      %v6156 = vmul.f32 %v6027, 1.442695
      %v6157 = vpow.pop %v6156
      %v6158 = vmul.f32 %v6028, 1.442695
      %v6159 = vpow.pop %v6158
      %v6160 = vmul.f32 %v6029, 1.442695
      %v6161 = vpow.pop %v6160
      %v6162 = vmul.f32 %v6030, 1.442695
      %v6163 = vpow.pop %v6162
      %v6164 = vmul.f32 %v6031, 1.442695
      %v6165 = vpow.pop %v6164
      %v6166 = vmul.f32 %v6032, 1.442695
      %v6167 = vpow.pop %v6166
      %v6168 = vmul.f32 %v6033, 1.442695
      %v6169 = vpow.pop %v6168
      %v6170 = vmul.f32 %v6034, 1.442695
      %v6171 = vpow.pop %v6170
      %v6172 = vmul.f32 %v6035, 1.442695
      %v6173 = vpow.pop %v6172
      %v6174 = vmul.f32 %v6036, 1.442695
      %v6175 = vpow.pop %v6174
      %v6176 = vmul.f32 %v6037, 1.442695
      %v6177 = vpow.pop %v6176
      %v6178 = vmul.f32 %v6038, 1.442695
      %v6179 = vpow.pop %v6178
      %v6180 = vmul.f32 %v6039, 1.442695
      %v6181 = vpow.pop %v6180
      %v6182 = vmul.f32 %v6040, 1.442695
      %v6183 = vpow.pop %v6182
      %v6184 = vmul.f32 %v6041, 1.442695
      %v6185 = vpow.pop %v6184
      %v6186 = vmul.f32 %v6042, 1.442695
      %v6187 = vpow.pop %v6186
      %v6188 = vmul.f32 %v6043, 1.442695
      %v6189 = vpow.pop %v6188
      %v6190 = vmul.f32 %v6044, 1.442695
      %v6191 = vpow.pop %v6190
      %v6192 = vmul.f32 %v6045, 1.442695
      %v6193 = vpow.pop %v6192
      %v6194 = vmul.f32 %v6046, 1.442695
      %v6195 = vpow.pop %v6194
      %v6196 = vmul.f32 %v6047, 1.442695
      %v6197 = vpow.pop %v6196
      %v6198 = vmul.f32 %v6048, 1.442695
      %v6199 = vpow.pop %v6198
      %v6200 = vmul.f32 %v6049, 1.442695
      %v6201 = vpow.pop %v6200
      %v6202 = vmul.f32 %v6050, 1.442695
      %v6203 = vpow.pop %v6202
      %v6204 = vmul.f32 %v6051, 1.442695
      %v6205 = vpow.pop %v6204
      %v6206 = vmul.f32 %v6052, 1.442695
      %v6207 = vpow.pop %v6206
      %v6208 = vmul.f32 %v6053, 1.442695
      %v6209 = vpow.pop %v6208
      %v6210 = vmul.f32 %v6054, 1.442695
      %v6211 = vpow.pop %v6210
      %v6212 = vmul.f32 %v6055, 1.442695
      %v6213 = vpow.pop %v6212
      %v6214 = vmul.f32 %v6056, 1.442695
      %v6215 = vpow.pop %v6214
      %v6216 = vmul.f32 %v6057, 1.442695
      %v6217 = vpow.pop %v6216
      %v6218 = vmul.f32 %v6058, 1.442695
      %v6219 = vpow.pop %v6218
      %v6220 = vmul.f32 %v6059, 1.442695
      %v6221 = vpow.pop %v6220
      %v6222 = vmul.f32 %v6060, 1.442695
      %v6223 = vpow.pop %v6222
      %v6224 = vmul.f32 %v6061, 1.442695
      %v6225 = vpow.pop %v6224
      %v6226 = vmul.f32 %v6062, 1.442695
      %v6227 = vpow.pop %v6226
      %v6228 = vmul.f32 %v6063, 1.442695
      %v6229 = vpow.pop %v6228
      %v6230 = vmul.f32 %v6064, 1.442695
      %v6231 = vpow.pop %v6230
      %v6232 = vmul.f32 %v6065, 1.442695
      %v6233 = vpow.pop %v6232
      %v6234 = vmul.f32 %v6066, 1.442695
      %v6235 = vpow.pop %v6234
      %v6236 = vmul.f32 %v6067, 1.442695
      %v6237 = vpow.pop %v6236
      %v6238 = vmul.f32 %v6068, 1.442695
      %v6239 = vpow.pop %v6238
      %v6240 = vmul.f32 %v6069, 1.442695
      %v6241 = vpow.pop %v6240
      %v6242 = vmul.f32 %v6070, 1.442695
      %v6243 = vpow.pop %v6242
      %v6244 = vmul.f32 %v6071, 1.442695
      %v6245 = vpow.pop %v6244
      %v6246 = vmul.f32 %v6072, 1.442695
      %v6247 = vpow.pop %v6246
      %v6248 = vmul.f32 %v6073, 1.442695
      %v6249 = vpow.pop %v6248
      %v6250 = vmul.f32 %v6074, 1.442695
      %v6251 = vpow.pop %v6250
      %v6252 = vmul.f32 %v6075, 1.442695
      %v6253 = vpow.pop %v6252
      %v6254 = vmul.f32 %v6076, 1.442695
      %v6255 = vpow.pop %v6254
      %v6256 = vmul.f32 %v6077, 1.442695
      %v6257 = vpow.pop %v6256
      %v6258 = vmul.f32 %v6078, 1.442695
      %v6259 = vpow.pop %v6258
      %v6260 = vmul.f32 %v6079, 1.442695
      %v6261 = vpow.pop %v6260
      %v6262 = vmul.f32 %v6080, 1.442695
      %v6263 = vpow.pop %v6262
      %v6264 = vmul.f32 %v6081, 1.442695
      %v6265 = vpow.pop %v6264
      %v6266 = vmul.f32 %v6082, 1.442695
      %v6267 = vpow.pop %v6266
      %v6268 = vmul.f32 %v6083, 1.442695
      %v6269 = vpow.pop %v6268
      %v6270 = vmul.f32 %v6084, 1.442695
      %v6271 = vpow.pop %v6270
      %v6272 = vmul.f32 %v6085, 1.442695
      %v6273 = vpow.pop %v6272
      %v6274 = vmul.f32 %v6086, 1.442695
      %v6275 = vpow.pop %v6274
      %v6276 = vmul.f32 %v6087, 1.442695
      %v6277 = vpow.pop %v6276
      %v6278 = vmul.f32 %v6088, 1.442695
      %v6279 = vpow.pop %v6278
      %v6280 = vmul.f32 %v6089, 1.442695
      %v6281 = vpow.pop %v6280
      %v6282 = vmul.f32 %v6090, 1.442695
      %v6283 = vpow.pop %v6282
      %v6284 = vmul.f32 %v6091, 1.442695
      %v6285 = vpow.pop %v6284
      %v6286 = vmul.f32 %v6092, 1.442695
      %v6287 = vpow.pop %v6286
      %v6288 = vmul.f32 %v6093, 1.442695
      %v6289 = vpow.pop %v6288
      %v6290 = vmul.f32 %v6094, 1.442695
      %v6291 = vpow.pop %v6290
      %v6292 = vmul.f32 %v6095, 1.442695
      %v6293 = vpow.pop %v6292
      %v6294 = vmul.f32 %v6096, 1.442695
      %v6295 = vpow.pop %v6294
      %v6296 = vmul.f32 %v6097, 1.442695
      %v6297 = vpow.pop %v6296
      %v6298 = vmul.f32 %v6098, 1.442695
      %v6299 = vpow.pop %v6298
      %v6300 = vmul.f32 %v6099, 1.442695
      %v6301 = vpow.pop %v6300
      %v6302 = vmul.f32 %v6100, 1.442695
      %v6303 = vpow.pop %v6302
      %v6304 = vmul.f32 %v6101, 1.442695
      %v6305 = vpow.pop %v6304
      %v6306 = vmul.f32 %v6102, 1.442695
      %v6307 = vpow.pop %v6306
      %v6308 = vmul.f32 %v6103, 1.442695
      %v6309 = vpow.pop %v6308
      %v6310 = vmul.f32 %v6104, 1.442695
      %v6311 = vpow.pop %v6310
      %v6312 = vmul.f32 %v6105, 1.442695
      %v6313 = vpow.pop %v6312
      %v6314 = vmul.f32 %v6106, 1.442695
      %v6315 = vpow.pop %v6314
      %v6316 = vmul.f32 %v6107, 1.442695
      %v6317 = vpow.pop %v6316
      %v6318 = vmul.f32 %v6108, 1.442695
      %v6319 = vpow.pop %v6318
      %v6320 = vmul.f32 %v6109, 1.442695
      %v6321 = vpow.pop %v6320
      %v6322 = vmul.f32 %v6110, 1.442695
      %v6323 = vpow.pop %v6322
      %v6324 = vmul.f32 %v6111, 1.442695
      %v6325 = vpow.pop %v6324
      %v6326 = vmul.f32 %v6112, 1.442695
      %v6327 = vpow.pop %v6326
      %v6328 = vmul.f32 %v6113, 1.442695
      %v6329 = vpow.pop %v6328
      %v6330 = vmul.f32 %v6114, 1.442695
      %v6331 = vpow.pop %v6330
      %v6332 = vmul.f32 %v6115, 1.442695
      %v6333 = vpow.pop %v6332
      %v6334 = vmul.f32 %v6116, 1.442695
      %v6335 = vpow.pop %v6334
      %v6336 = vmul.f32 %v6117, 1.442695
      %v6337 = vpow.pop %v6336
      %v6338 = vmul.f32 %v6118, 1.442695
      %v6339 = vpow.pop %v6338
      %v6340 = vmul.f32 %v6119, 1.442695
      %v6341 = vpow.pop %v6340
      %v6342 = vmul.f32 %v6120, 1.442695
      %v6343 = vpow.pop %v6342
      %v6344 = vmul.f32 %v6121, 1.442695
      %v6345 = vpow.pop %v6344
      %v6346 = vmul.f32 %v6122, 1.442695
      %v6347 = vpow.pop %v6346
      %v6348 = vmul.f32 %v6123, 1.442695
      %v6349 = vpow.pop %v6348
      %v6350 = vmul.f32 %v6124, 1.442695
      %v6351 = vpow.pop %v6350
      %v6352 = vmul.f32 %v6125, 1.442695
      %v6353 = vpow.pop %v6352
      %v6354 = vmul.f32 %v6126, 1.442695
      %v6355 = vpow.pop %v6354
      %v6356 = vmul.f32 %v6127, 1.442695
      %v6357 = vpow.pop %v6356
      %v6358 = vmul.f32 %v6128, 1.442695
      %v6359 = vpow.pop %v6358
      %v6360 = vmul.f32 %v6129, 1.442695
      %v6361 = vpow.pop %v6360
      %v6362 = vmul.f32 %v6130, 1.442695
      %v6363 = vpow.pop %v6362
      %v6364 = vmul.f32 %v6131, 1.442695
      %v6365 = vpow.pop %v6364
      %v6366 = vmul.f32 %v6132, 1.442695
      %v6367 = vpow.pop %v6366
      %v6368 = vmul.f32 %v6133, 1.442695
      %v6369 = vpow.pop %v6368
      %v6370 = vmul.f32 %v6134, 1.442695
      %v6371 = vpow.pop %v6370
      %v6372 = vmul.f32 %v6135, 1.442695
      %v6373 = vpow.pop %v6372
      %v6374 = vmul.f32 %v6136, 1.442695
      %v6375 = vpow.pop %v6374
      %v6376 = vmul.f32 %v6137, 1.442695
      %v6377 = vpow.pop %v6376
      %v6378 = vmul.f32 %v6138, 1.442695
      %v6379 = vpow.pop %v6378
      %v6380 = vmul.f32 %v6139, 1.442695
      %v6381 = vpow.pop %v6380
      %v6382 = vmul.f32 %v6140, 1.442695
      %v6383 = vpow.pop %v6382
      %v6384 = vmul.f32 %v6141, 1.442695
      %v6385 = vpow.pop %v6384
      %v6386 = vmul.f32 %v6142, 1.442695
      %v6387 = vpow.pop %v6386
      %v6388 = vmul.f32 %v6143, 1.442695
      %v6389 = vpow.pop %v6388
      %v6390 = vmul.f32 %v6144, 1.442695
      %v6391 = vpow.pop %v6390
      %v6392 = vmul.f32 %v6145, 1.442695
      %v6393 = vpow.pop %v6392
      %v6394 = vmul.f32 %v6146, 1.442695
      %v6395 = vpow.pop %v6394
      %v6396 = vmul.f32 %v6147, 1.442695
      %v6397 = vpow.pop %v6396
      %v6398 = vmul.f32 %v6148, 1.442695
      %v6399 = vpow.pop %v6398
      %v6400 = vmul.f32 %v6149, 1.442695
      %v6401 = vpow.pop %v6400
      %v6402 = vmul.f32 %v6150, 1.442695
      %v6403 = vpow.pop %v6402
      %v6404 = vmul.f32 %v6151, 1.442695
      %v6405 = vpow.pop %v6404
      %v6406 = vmul.f32 %v6152, 1.442695
      %v6407 = vpow.pop %v6406
      %v6408 = vmul.f32 %v6153, 1.442695
      %v6409 = vpow.pop %v6408
      %v6410 = vadd.f32 %v6155, 1.0
      %v6411 = vadd.f32 %v6157, 1.0
      %v6412 = vadd.f32 %v6159, 1.0
      %v6413 = vadd.f32 %v6161, 1.0
      %v6414 = vadd.f32 %v6163, 1.0
      %v6415 = vadd.f32 %v6165, 1.0
      %v6416 = vadd.f32 %v6167, 1.0
      %v6417 = vadd.f32 %v6169, 1.0
      %v6418 = vadd.f32 %v6171, 1.0
      %v6419 = vadd.f32 %v6173, 1.0
      %v6420 = vadd.f32 %v6175, 1.0
      %v6421 = vadd.f32 %v6177, 1.0
      %v6422 = vadd.f32 %v6179, 1.0
      %v6423 = vadd.f32 %v6181, 1.0
      %v6424 = vadd.f32 %v6183, 1.0
      %v6425 = vadd.f32 %v6185, 1.0
      %v6426 = vadd.f32 %v6187, 1.0
      %v6427 = vadd.f32 %v6189, 1.0
      %v6428 = vadd.f32 %v6191, 1.0
      %v6429 = vadd.f32 %v6193, 1.0
      %v6430 = vadd.f32 %v6195, 1.0
      %v6431 = vadd.f32 %v6197, 1.0
      %v6432 = vadd.f32 %v6199, 1.0
      %v6433 = vadd.f32 %v6201, 1.0
      %v6434 = vadd.f32 %v6203, 1.0
      %v6435 = vadd.f32 %v6205, 1.0
      %v6436 = vadd.f32 %v6207, 1.0
      %v6437 = vadd.f32 %v6209, 1.0
      %v6438 = vadd.f32 %v6211, 1.0
      %v6439 = vadd.f32 %v6213, 1.0
      %v6440 = vadd.f32 %v6215, 1.0
      %v6441 = vadd.f32 %v6217, 1.0
      %v6442 = vadd.f32 %v6219, 1.0
      %v6443 = vadd.f32 %v6221, 1.0
      %v6444 = vadd.f32 %v6223, 1.0
      %v6445 = vadd.f32 %v6225, 1.0
      %v6446 = vadd.f32 %v6227, 1.0
      %v6447 = vadd.f32 %v6229, 1.0
      %v6448 = vadd.f32 %v6231, 1.0
      %v6449 = vadd.f32 %v6233, 1.0
      %v6450 = vadd.f32 %v6235, 1.0
      %v6451 = vadd.f32 %v6237, 1.0
      %v6452 = vadd.f32 %v6239, 1.0
      %v6453 = vadd.f32 %v6241, 1.0
      %v6454 = vadd.f32 %v6243, 1.0
      %v6455 = vadd.f32 %v6245, 1.0
      %v6456 = vadd.f32 %v6247, 1.0
      %v6457 = vadd.f32 %v6249, 1.0
      %v6458 = vadd.f32 %v6251, 1.0
      %v6459 = vadd.f32 %v6253, 1.0
      %v6460 = vadd.f32 %v6255, 1.0
      %v6461 = vadd.f32 %v6257, 1.0
      %v6462 = vadd.f32 %v6259, 1.0
      %v6463 = vadd.f32 %v6261, 1.0
      %v6464 = vadd.f32 %v6263, 1.0
      %v6465 = vadd.f32 %v6265, 1.0
      %v6466 = vadd.f32 %v6267, 1.0
      %v6467 = vadd.f32 %v6269, 1.0
      %v6468 = vadd.f32 %v6271, 1.0
      %v6469 = vadd.f32 %v6273, 1.0
      %v6470 = vadd.f32 %v6275, 1.0
      %v6471 = vadd.f32 %v6277, 1.0
      %v6472 = vadd.f32 %v6279, 1.0
      %v6473 = vadd.f32 %v6281, 1.0
      %v6474 = vadd.f32 %v6283, 1.0
      %v6475 = vadd.f32 %v6285, 1.0
      %v6476 = vadd.f32 %v6287, 1.0
      %v6477 = vadd.f32 %v6289, 1.0
      %v6478 = vadd.f32 %v6291, 1.0
      %v6479 = vadd.f32 %v6293, 1.0
      %v6480 = vadd.f32 %v6295, 1.0
      %v6481 = vadd.f32 %v6297, 1.0
      %v6482 = vadd.f32 %v6299, 1.0
      %v6483 = vadd.f32 %v6301, 1.0
      %v6484 = vadd.f32 %v6303, 1.0
      %v6485 = vadd.f32 %v6305, 1.0
      %v6486 = vadd.f32 %v6307, 1.0
      %v6487 = vadd.f32 %v6309, 1.0
      %v6488 = vadd.f32 %v6311, 1.0
      %v6489 = vadd.f32 %v6313, 1.0
      %v6490 = vadd.f32 %v6315, 1.0
      %v6491 = vadd.f32 %v6317, 1.0
      %v6492 = vadd.f32 %v6319, 1.0
      %v6493 = vadd.f32 %v6321, 1.0
      %v6494 = vadd.f32 %v6323, 1.0
      %v6495 = vadd.f32 %v6325, 1.0
      %v6496 = vadd.f32 %v6327, 1.0
      %v6497 = vadd.f32 %v6329, 1.0
      %v6498 = vadd.f32 %v6331, 1.0
      %v6499 = vadd.f32 %v6333, 1.0
      %v6500 = vadd.f32 %v6335, 1.0
      %v6501 = vadd.f32 %v6337, 1.0
      %v6502 = vadd.f32 %v6339, 1.0
      %v6503 = vadd.f32 %v6341, 1.0
      %v6504 = vadd.f32 %v6343, 1.0
      %v6505 = vadd.f32 %v6345, 1.0
      %v6506 = vadd.f32 %v6347, 1.0
      %v6507 = vadd.f32 %v6349, 1.0
      %v6508 = vadd.f32 %v6351, 1.0
      %v6509 = vadd.f32 %v6353, 1.0
      %v6510 = vadd.f32 %v6355, 1.0
      %v6511 = vadd.f32 %v6357, 1.0
      %v6512 = vadd.f32 %v6359, 1.0
      %v6513 = vadd.f32 %v6361, 1.0
      %v6514 = vadd.f32 %v6363, 1.0
      %v6515 = vadd.f32 %v6365, 1.0
      %v6516 = vadd.f32 %v6367, 1.0
      %v6517 = vadd.f32 %v6369, 1.0
      %v6518 = vadd.f32 %v6371, 1.0
      %v6519 = vadd.f32 %v6373, 1.0
      %v6520 = vadd.f32 %v6375, 1.0
      %v6521 = vadd.f32 %v6377, 1.0
      %v6522 = vadd.f32 %v6379, 1.0
      %v6523 = vadd.f32 %v6381, 1.0
      %v6524 = vadd.f32 %v6383, 1.0
      %v6525 = vadd.f32 %v6385, 1.0
      %v6526 = vadd.f32 %v6387, 1.0
      %v6527 = vadd.f32 %v6389, 1.0
      %v6528 = vadd.f32 %v6391, 1.0
      %v6529 = vadd.f32 %v6393, 1.0
      %v6530 = vadd.f32 %v6395, 1.0
      %v6531 = vadd.f32 %v6397, 1.0
      %v6532 = vadd.f32 %v6399, 1.0
      %v6533 = vadd.f32 %v6401, 1.0
      %v6534 = vadd.f32 %v6403, 1.0
      %v6535 = vadd.f32 %v6405, 1.0
      %v6536 = vadd.f32 %v6407, 1.0
      %v6537 = vadd.f32 %v6409, 1.0
      %v6538 = vrcp.pop %v6410
      %v6539 = vmul.f32 1.0, %v6538
      %v6540 = vrcp.pop %v6411
      %v6541 = vmul.f32 1.0, %v6540
      %v6542 = vrcp.pop %v6412
      %v6543 = vmul.f32 1.0, %v6542
      %v6544 = vrcp.pop %v6413
      %v6545 = vmul.f32 1.0, %v6544
      %v6546 = vrcp.pop %v6414
      %v6547 = vmul.f32 1.0, %v6546
      %v6548 = vrcp.pop %v6415
      %v6549 = vmul.f32 1.0, %v6548
      %v6550 = vrcp.pop %v6416
      %v6551 = vmul.f32 1.0, %v6550
      %v6552 = vrcp.pop %v6417
      %v6553 = vmul.f32 1.0, %v6552
      %v6554 = vrcp.pop %v6418
      %v6555 = vmul.f32 1.0, %v6554
      %v6556 = vrcp.pop %v6419
      %v6557 = vmul.f32 1.0, %v6556
      %v6558 = vrcp.pop %v6420
      %v6559 = vmul.f32 1.0, %v6558
      %v6560 = vrcp.pop %v6421
      %v6561 = vmul.f32 1.0, %v6560
      %v6562 = vrcp.pop %v6422
      %v6563 = vmul.f32 1.0, %v6562
      %v6564 = vrcp.pop %v6423
      %v6565 = vmul.f32 1.0, %v6564
      %v6566 = vrcp.pop %v6424
      %v6567 = vmul.f32 1.0, %v6566
      %v6568 = vrcp.pop %v6425
      %v6569 = vmul.f32 1.0, %v6568
      %v6570 = vrcp.pop %v6426
      %v6571 = vmul.f32 1.0, %v6570
      %v6572 = vrcp.pop %v6427
      %v6573 = vmul.f32 1.0, %v6572
      %v6574 = vrcp.pop %v6428
      %v6575 = vmul.f32 1.0, %v6574
      %v6576 = vrcp.pop %v6429
      %v6577 = vmul.f32 1.0, %v6576
      %v6578 = vrcp.pop %v6430
      %v6579 = vmul.f32 1.0, %v6578
      %v6580 = vrcp.pop %v6431
      %v6581 = vmul.f32 1.0, %v6580
      %v6582 = vrcp.pop %v6432
      %v6583 = vmul.f32 1.0, %v6582
      %v6584 = vrcp.pop %v6433
      %v6585 = vmul.f32 1.0, %v6584
      %v6586 = vrcp.pop %v6434
      %v6587 = vmul.f32 1.0, %v6586
      %v6588 = vrcp.pop %v6435
      %v6589 = vmul.f32 1.0, %v6588
      %v6590 = vrcp.pop %v6436
      %v6591 = vmul.f32 1.0, %v6590
      %v6592 = vrcp.pop %v6437
      %v6593 = vmul.f32 1.0, %v6592
      %v6594 = vrcp.pop %v6438
      %v6595 = vmul.f32 1.0, %v6594
      %v6596 = vrcp.pop %v6439
      %v6597 = vmul.f32 1.0, %v6596
      %v6598 = vrcp.pop %v6440
      %v6599 = vmul.f32 1.0, %v6598
      %v6600 = vrcp.pop %v6441
      %v6601 = vmul.f32 1.0, %v6600
      %v6602 = vrcp.pop %v6442
      %v6603 = vmul.f32 1.0, %v6602
      %v6604 = vrcp.pop %v6443
      %v6605 = vmul.f32 1.0, %v6604
      %v6606 = vrcp.pop %v6444
      %v6607 = vmul.f32 1.0, %v6606
      %v6608 = vrcp.pop %v6445
      %v6609 = vmul.f32 1.0, %v6608
      %v6610 = vrcp.pop %v6446
      %v6611 = vmul.f32 1.0, %v6610
      %v6612 = vrcp.pop %v6447
      %v6613 = vmul.f32 1.0, %v6612
      %v6614 = vrcp.pop %v6448
      %v6615 = vmul.f32 1.0, %v6614
      %v6616 = vrcp.pop %v6449
      %v6617 = vmul.f32 1.0, %v6616
      %v6618 = vrcp.pop %v6450
      %v6619 = vmul.f32 1.0, %v6618
      %v6620 = vrcp.pop %v6451
      %v6621 = vmul.f32 1.0, %v6620
      %v6622 = vrcp.pop %v6452
      %v6623 = vmul.f32 1.0, %v6622
      %v6624 = vrcp.pop %v6453
      %v6625 = vmul.f32 1.0, %v6624
      %v6626 = vrcp.pop %v6454
      %v6627 = vmul.f32 1.0, %v6626
      %v6628 = vrcp.pop %v6455
      %v6629 = vmul.f32 1.0, %v6628
      %v6630 = vrcp.pop %v6456
      %v6631 = vmul.f32 1.0, %v6630
      %v6632 = vrcp.pop %v6457
      %v6633 = vmul.f32 1.0, %v6632
      %v6634 = vrcp.pop %v6458
      %v6635 = vmul.f32 1.0, %v6634
      %v6636 = vrcp.pop %v6459
      %v6637 = vmul.f32 1.0, %v6636
      %v6638 = vrcp.pop %v6460
      %v6639 = vmul.f32 1.0, %v6638
      %v6640 = vrcp.pop %v6461
      %v6641 = vmul.f32 1.0, %v6640
      %v6642 = vrcp.pop %v6462
      %v6643 = vmul.f32 1.0, %v6642
      %v6644 = vrcp.pop %v6463
      %v6645 = vmul.f32 1.0, %v6644
      %v6646 = vrcp.pop %v6464
      %v6647 = vmul.f32 1.0, %v6646
      %v6648 = vrcp.pop %v6465
      %v6649 = vmul.f32 1.0, %v6648
      %v6650 = vrcp.pop %v6466
      %v6651 = vmul.f32 1.0, %v6650
      %v6652 = vrcp.pop %v6467
      %v6653 = vmul.f32 1.0, %v6652
      %v6654 = vrcp.pop %v6468
      %v6655 = vmul.f32 1.0, %v6654
      %v6656 = vrcp.pop %v6469
      %v6657 = vmul.f32 1.0, %v6656
      %v6658 = vrcp.pop %v6470
      %v6659 = vmul.f32 1.0, %v6658
      %v6660 = vrcp.pop %v6471
      %v6661 = vmul.f32 1.0, %v6660
      %v6662 = vrcp.pop %v6472
      %v6663 = vmul.f32 1.0, %v6662
      %v6664 = vrcp.pop %v6473
      %v6665 = vmul.f32 1.0, %v6664
      %v6666 = vrcp.pop %v6474
      %v6667 = vmul.f32 1.0, %v6666
      %v6668 = vrcp.pop %v6475
      %v6669 = vmul.f32 1.0, %v6668
      %v6670 = vrcp.pop %v6476
      %v6671 = vmul.f32 1.0, %v6670
      %v6672 = vrcp.pop %v6477
      %v6673 = vmul.f32 1.0, %v6672
      %v6674 = vrcp.pop %v6478
      %v6675 = vmul.f32 1.0, %v6674
      %v6676 = vrcp.pop %v6479
      %v6677 = vmul.f32 1.0, %v6676
      %v6678 = vrcp.pop %v6480
      %v6679 = vmul.f32 1.0, %v6678
      %v6680 = vrcp.pop %v6481
      %v6681 = vmul.f32 1.0, %v6680
      %v6682 = vrcp.pop %v6482
      %v6683 = vmul.f32 1.0, %v6682
      %v6684 = vrcp.pop %v6483
      %v6685 = vmul.f32 1.0, %v6684
      %v6686 = vrcp.pop %v6484
      %v6687 = vmul.f32 1.0, %v6686
      %v6688 = vrcp.pop %v6485
      %v6689 = vmul.f32 1.0, %v6688
      %v6690 = vrcp.pop %v6486
      %v6691 = vmul.f32 1.0, %v6690
      %v6692 = vrcp.pop %v6487
      %v6693 = vmul.f32 1.0, %v6692
      %v6694 = vrcp.pop %v6488
      %v6695 = vmul.f32 1.0, %v6694
      %v6696 = vrcp.pop %v6489
      %v6697 = vmul.f32 1.0, %v6696
      %v6698 = vrcp.pop %v6490
      %v6699 = vmul.f32 1.0, %v6698
      %v6700 = vrcp.pop %v6491
      %v6701 = vmul.f32 1.0, %v6700
      %v6702 = vrcp.pop %v6492
      %v6703 = vmul.f32 1.0, %v6702
      %v6704 = vrcp.pop %v6493
      %v6705 = vmul.f32 1.0, %v6704
      %v6706 = vrcp.pop %v6494
      %v6707 = vmul.f32 1.0, %v6706
      %v6708 = vrcp.pop %v6495
      %v6709 = vmul.f32 1.0, %v6708
      %v6710 = vrcp.pop %v6496
      %v6711 = vmul.f32 1.0, %v6710
      %v6712 = vrcp.pop %v6497
      %v6713 = vmul.f32 1.0, %v6712
      %v6714 = vrcp.pop %v6498
      %v6715 = vmul.f32 1.0, %v6714
      %v6716 = vrcp.pop %v6499
      %v6717 = vmul.f32 1.0, %v6716
      %v6718 = vrcp.pop %v6500
      %v6719 = vmul.f32 1.0, %v6718
      %v6720 = vrcp.pop %v6501
      %v6721 = vmul.f32 1.0, %v6720
      %v6722 = vrcp.pop %v6502
      %v6723 = vmul.f32 1.0, %v6722
      %v6724 = vrcp.pop %v6503
      %v6725 = vmul.f32 1.0, %v6724
      %v6726 = vrcp.pop %v6504
      %v6727 = vmul.f32 1.0, %v6726
      %v6728 = vrcp.pop %v6505
      %v6729 = vmul.f32 1.0, %v6728
      %v6730 = vrcp.pop %v6506
      %v6731 = vmul.f32 1.0, %v6730
      %v6732 = vrcp.pop %v6507
      %v6733 = vmul.f32 1.0, %v6732
      %v6734 = vrcp.pop %v6508
      %v6735 = vmul.f32 1.0, %v6734
      %v6736 = vrcp.pop %v6509
      %v6737 = vmul.f32 1.0, %v6736
      %v6738 = vrcp.pop %v6510
      %v6739 = vmul.f32 1.0, %v6738
      %v6740 = vrcp.pop %v6511
      %v6741 = vmul.f32 1.0, %v6740
      %v6742 = vrcp.pop %v6512
      %v6743 = vmul.f32 1.0, %v6742
      %v6744 = vrcp.pop %v6513
      %v6745 = vmul.f32 1.0, %v6744
      %v6746 = vrcp.pop %v6514
      %v6747 = vmul.f32 1.0, %v6746
      %v6748 = vrcp.pop %v6515
      %v6749 = vmul.f32 1.0, %v6748
      %v6750 = vrcp.pop %v6516
      %v6751 = vmul.f32 1.0, %v6750
      %v6752 = vrcp.pop %v6517
      %v6753 = vmul.f32 1.0, %v6752
      %v6754 = vrcp.pop %v6518
      %v6755 = vmul.f32 1.0, %v6754
      %v6756 = vrcp.pop %v6519
      %v6757 = vmul.f32 1.0, %v6756
      %v6758 = vrcp.pop %v6520
      %v6759 = vmul.f32 1.0, %v6758
      %v6760 = vrcp.pop %v6521
      %v6761 = vmul.f32 1.0, %v6760
      %v6762 = vrcp.pop %v6522
      %v6763 = vmul.f32 1.0, %v6762
      %v6764 = vrcp.pop %v6523
      %v6765 = vmul.f32 1.0, %v6764
      %v6766 = vrcp.pop %v6524
      %v6767 = vmul.f32 1.0, %v6766
      %v6768 = vrcp.pop %v6525
      %v6769 = vmul.f32 1.0, %v6768
      %v6770 = vrcp.pop %v6526
      %v6771 = vmul.f32 1.0, %v6770
      %v6772 = vrcp.pop %v6527
      %v6773 = vmul.f32 1.0, %v6772
      %v6774 = vrcp.pop %v6528
      %v6775 = vmul.f32 1.0, %v6774
      %v6776 = vrcp.pop %v6529
      %v6777 = vmul.f32 1.0, %v6776
      %v6778 = vrcp.pop %v6530
      %v6779 = vmul.f32 1.0, %v6778
      %v6780 = vrcp.pop %v6531
      %v6781 = vmul.f32 1.0, %v6780
      %v6782 = vrcp.pop %v6532
      %v6783 = vmul.f32 1.0, %v6782
      %v6784 = vrcp.pop %v6533
      %v6785 = vmul.f32 1.0, %v6784
      %v6786 = vrcp.pop %v6534
      %v6787 = vmul.f32 1.0, %v6786
      %v6788 = vrcp.pop %v6535
      %v6789 = vmul.f32 1.0, %v6788
      %v6790 = vrcp.pop %v6536
      %v6791 = vmul.f32 1.0, %v6790
      %v6792 = vrcp.pop %v6537
      %v6793 = vmul.f32 1.0, %v6792
      %6922 = vset.pattern.permute.xlu0 0
      %6923 = vperm.xlu0 %6922, %v6539
      %v6924 = vpop.permute.xlu0 %6923
      %6925 = vset.pattern.permute.xlu0 0
      %6926 = vperm.xlu0 %6925, %v6541
      %v6927 = vpop.permute.xlu0 %6926
      %6928 = vset.pattern.permute.xlu0 0
      %6929 = vperm.xlu0 %6928, %v6543
      %v6930 = vpop.permute.xlu0 %6929
      %6931 = vset.pattern.permute.xlu0 0
      %6932 = vperm.xlu0 %6931, %v6545
      %v6933 = vpop.permute.xlu0 %6932
      %6934 = vset.pattern.permute.xlu0 0
      %6935 = vperm.xlu0 %6934, %v6547
      %v6936 = vpop.permute.xlu0 %6935
      %6937 = vset.pattern.permute.xlu0 0
      %6938 = vperm.xlu0 %6937, %v6549
      %v6939 = vpop.permute.xlu0 %6938
      %6940 = vset.pattern.permute.xlu0 0
      %6941 = vperm.xlu0 %6940, %v6551
      %v6942 = vpop.permute.xlu0 %6941
      %6943 = vset.pattern.permute.xlu0 0
      %6944 = vperm.xlu0 %6943, %v6553
      %v6945 = vpop.permute.xlu0 %6944
      %6946 = vset.pattern.permute.xlu0 0
      %6947 = vperm.xlu0 %6946, %v6555
      %v6948 = vpop.permute.xlu0 %6947
      %6949 = vset.pattern.permute.xlu0 0
      %6950 = vperm.xlu0 %6949, %v6557
      %v6951 = vpop.permute.xlu0 %6950
      %6952 = vset.pattern.permute.xlu0 0
      %6953 = vperm.xlu0 %6952, %v6559
      %v6954 = vpop.permute.xlu0 %6953
      %6955 = vset.pattern.permute.xlu0 0
      %6956 = vperm.xlu0 %6955, %v6561
      %v6957 = vpop.permute.xlu0 %6956
      %6958 = vset.pattern.permute.xlu0 0
      %6959 = vperm.xlu0 %6958, %v6563
      %v6960 = vpop.permute.xlu0 %6959
      %6961 = vset.pattern.permute.xlu0 0
      %6962 = vperm.xlu0 %6961, %v6565
      %v6963 = vpop.permute.xlu0 %6962
      %6964 = vset.pattern.permute.xlu0 0
      %6965 = vperm.xlu0 %6964, %v6567
      %v6966 = vpop.permute.xlu0 %6965
      %6967 = vset.pattern.permute.xlu0 0
      %6968 = vperm.xlu0 %6967, %v6569
      %v6969 = vpop.permute.xlu0 %6968
      %6970 = vset.pattern.permute.xlu0 0
      %6971 = vperm.xlu0 %6970, %v6571
      %v6972 = vpop.permute.xlu0 %6971
      %6973 = vset.pattern.permute.xlu0 0
      %6974 = vperm.xlu0 %6973, %v6573
      %v6975 = vpop.permute.xlu0 %6974
      %6976 = vset.pattern.permute.xlu0 0
      %6977 = vperm.xlu0 %6976, %v6575
      %v6978 = vpop.permute.xlu0 %6977
      %6979 = vset.pattern.permute.xlu0 0
      %6980 = vperm.xlu0 %6979, %v6577
      %v6981 = vpop.permute.xlu0 %6980
      %6982 = vset.pattern.permute.xlu0 0
      %6983 = vperm.xlu0 %6982, %v6579
      %v6984 = vpop.permute.xlu0 %6983
      %6985 = vset.pattern.permute.xlu0 0
      %6986 = vperm.xlu0 %6985, %v6581
      %v6987 = vpop.permute.xlu0 %6986
      %6988 = vset.pattern.permute.xlu0 0
      %6989 = vperm.xlu0 %6988, %v6583
      %v6990 = vpop.permute.xlu0 %6989
      %6991 = vset.pattern.permute.xlu0 0
      %6992 = vperm.xlu0 %6991, %v6585
      %v6993 = vpop.permute.xlu0 %6992
      %6994 = vset.pattern.permute.xlu0 0
      %6995 = vperm.xlu0 %6994, %v6587
      %v6996 = vpop.permute.xlu0 %6995
      %6997 = vset.pattern.permute.xlu0 0
      %6998 = vperm.xlu0 %6997, %v6589
      %v6999 = vpop.permute.xlu0 %6998
      %7000 = vset.pattern.permute.xlu0 0
      %7001 = vperm.xlu0 %7000, %v6591
      %v7002 = vpop.permute.xlu0 %7001
      %7003 = vset.pattern.permute.xlu0 0
      %7004 = vperm.xlu0 %7003, %v6593
      %v7005 = vpop.permute.xlu0 %7004
      %7006 = vset.pattern.permute.xlu0 0
      %7007 = vperm.xlu0 %7006, %v6595
      %v7008 = vpop.permute.xlu0 %7007
      %7009 = vset.pattern.permute.xlu0 0
      %7010 = vperm.xlu0 %7009, %v6597
      %v7011 = vpop.permute.xlu0 %7010
      %7012 = vset.pattern.permute.xlu0 0
      %7013 = vperm.xlu0 %7012, %v6599
      %v7014 = vpop.permute.xlu0 %7013
      %7015 = vset.pattern.permute.xlu0 0
      %7016 = vperm.xlu0 %7015, %v6601
      %v7017 = vpop.permute.xlu0 %7016
      %7018 = vset.pattern.permute.xlu0 0
      %7019 = vperm.xlu0 %7018, %v6603
      %v7020 = vpop.permute.xlu0 %7019
      %7021 = vset.pattern.permute.xlu0 0
      %7022 = vperm.xlu0 %7021, %v6605
      %v7023 = vpop.permute.xlu0 %7022
      %7024 = vset.pattern.permute.xlu0 0
      %7025 = vperm.xlu0 %7024, %v6607
      %v7026 = vpop.permute.xlu0 %7025
      %7027 = vset.pattern.permute.xlu0 0
      %7028 = vperm.xlu0 %7027, %v6609
      %v7029 = vpop.permute.xlu0 %7028
      %7030 = vset.pattern.permute.xlu0 0
      %7031 = vperm.xlu0 %7030, %v6611
      %v7032 = vpop.permute.xlu0 %7031
      %7033 = vset.pattern.permute.xlu0 0
      %7034 = vperm.xlu0 %7033, %v6613
      %v7035 = vpop.permute.xlu0 %7034
      %7036 = vset.pattern.permute.xlu0 0
      %7037 = vperm.xlu0 %7036, %v6615
      %v7038 = vpop.permute.xlu0 %7037
      %7039 = vset.pattern.permute.xlu0 0
      %7040 = vperm.xlu0 %7039, %v6617
      %v7041 = vpop.permute.xlu0 %7040
      %7042 = vset.pattern.permute.xlu0 0
      %7043 = vperm.xlu0 %7042, %v6619
      %v7044 = vpop.permute.xlu0 %7043
      %7045 = vset.pattern.permute.xlu0 0
      %7046 = vperm.xlu0 %7045, %v6621
      %v7047 = vpop.permute.xlu0 %7046
      %7048 = vset.pattern.permute.xlu0 0
      %7049 = vperm.xlu0 %7048, %v6623
      %v7050 = vpop.permute.xlu0 %7049
      %7051 = vset.pattern.permute.xlu0 0
      %7052 = vperm.xlu0 %7051, %v6625
      %v7053 = vpop.permute.xlu0 %7052
      %7054 = vset.pattern.permute.xlu0 0
      %7055 = vperm.xlu0 %7054, %v6627
      %v7056 = vpop.permute.xlu0 %7055
      %7057 = vset.pattern.permute.xlu0 0
      %7058 = vperm.xlu0 %7057, %v6629
      %v7059 = vpop.permute.xlu0 %7058
      %7060 = vset.pattern.permute.xlu0 0
      %7061 = vperm.xlu0 %7060, %v6631
      %v7062 = vpop.permute.xlu0 %7061
      %7063 = vset.pattern.permute.xlu0 0
      %7064 = vperm.xlu0 %7063, %v6633
      %v7065 = vpop.permute.xlu0 %7064
      %7066 = vset.pattern.permute.xlu0 0
      %7067 = vperm.xlu0 %7066, %v6635
      %v7068 = vpop.permute.xlu0 %7067
      %7069 = vset.pattern.permute.xlu0 0
      %7070 = vperm.xlu0 %7069, %v6637
      %v7071 = vpop.permute.xlu0 %7070
      %7072 = vset.pattern.permute.xlu0 0
      %7073 = vperm.xlu0 %7072, %v6639
      %v7074 = vpop.permute.xlu0 %7073
      %7075 = vset.pattern.permute.xlu0 0
      %7076 = vperm.xlu0 %7075, %v6641
      %v7077 = vpop.permute.xlu0 %7076
      %7078 = vset.pattern.permute.xlu0 0
      %7079 = vperm.xlu0 %7078, %v6643
      %v7080 = vpop.permute.xlu0 %7079
      %7081 = vset.pattern.permute.xlu0 0
      %7082 = vperm.xlu0 %7081, %v6645
      %v7083 = vpop.permute.xlu0 %7082
      %7084 = vset.pattern.permute.xlu0 0
      %7085 = vperm.xlu0 %7084, %v6647
      %v7086 = vpop.permute.xlu0 %7085
      %7087 = vset.pattern.permute.xlu0 0
      %7088 = vperm.xlu0 %7087, %v6649
      %v7089 = vpop.permute.xlu0 %7088
      %7090 = vset.pattern.permute.xlu0 0
      %7091 = vperm.xlu0 %7090, %v6651
      %v7092 = vpop.permute.xlu0 %7091
      %7093 = vset.pattern.permute.xlu0 0
      %7094 = vperm.xlu0 %7093, %v6653
      %v7095 = vpop.permute.xlu0 %7094
      %7096 = vset.pattern.permute.xlu0 0
      %7097 = vperm.xlu0 %7096, %v6655
      %v7098 = vpop.permute.xlu0 %7097
      %7099 = vset.pattern.permute.xlu0 0
      %7100 = vperm.xlu0 %7099, %v6657
      %v7101 = vpop.permute.xlu0 %7100
      %7102 = vset.pattern.permute.xlu0 0
      %7103 = vperm.xlu0 %7102, %v6659
      %v7104 = vpop.permute.xlu0 %7103
      %7105 = vset.pattern.permute.xlu0 0
      %7106 = vperm.xlu0 %7105, %v6661
      %v7107 = vpop.permute.xlu0 %7106
      %7108 = vset.pattern.permute.xlu0 0
      %7109 = vperm.xlu0 %7108, %v6663
      %v7110 = vpop.permute.xlu0 %7109
      %7111 = vset.pattern.permute.xlu0 0
      %7112 = vperm.xlu0 %7111, %v6665
      %v7113 = vpop.permute.xlu0 %7112
      %7114 = vset.pattern.permute.xlu0 0
      %7115 = vperm.xlu0 %7114, %v6667
      %v7116 = vpop.permute.xlu0 %7115
      %7117 = vset.pattern.permute.xlu0 0
      %7118 = vperm.xlu0 %7117, %v6669
      %v7119 = vpop.permute.xlu0 %7118
      %7120 = vset.pattern.permute.xlu0 0
      %7121 = vperm.xlu0 %7120, %v6671
      %v7122 = vpop.permute.xlu0 %7121
      %7123 = vset.pattern.permute.xlu0 0
      %7124 = vperm.xlu0 %7123, %v6673
      %v7125 = vpop.permute.xlu0 %7124
      %7126 = vset.pattern.permute.xlu0 0
      %7127 = vperm.xlu0 %7126, %v6675
      %v7128 = vpop.permute.xlu0 %7127
      %7129 = vset.pattern.permute.xlu0 0
      %7130 = vperm.xlu0 %7129, %v6677
      %v7131 = vpop.permute.xlu0 %7130
      %7132 = vset.pattern.permute.xlu0 0
      %7133 = vperm.xlu0 %7132, %v6679
      %v7134 = vpop.permute.xlu0 %7133
      %7135 = vset.pattern.permute.xlu0 0
      %7136 = vperm.xlu0 %7135, %v6681
      %v7137 = vpop.permute.xlu0 %7136
      %7138 = vset.pattern.permute.xlu0 0
      %7139 = vperm.xlu0 %7138, %v6683
      %v7140 = vpop.permute.xlu0 %7139
      %7141 = vset.pattern.permute.xlu0 0
      %7142 = vperm.xlu0 %7141, %v6685
      %v7143 = vpop.permute.xlu0 %7142
      %7144 = vset.pattern.permute.xlu0 0
      %7145 = vperm.xlu0 %7144, %v6687
      %v7146 = vpop.permute.xlu0 %7145
      %7147 = vset.pattern.permute.xlu0 0
      %7148 = vperm.xlu0 %7147, %v6689
      %v7149 = vpop.permute.xlu0 %7148
      %7150 = vset.pattern.permute.xlu0 0
      %7151 = vperm.xlu0 %7150, %v6691
      %v7152 = vpop.permute.xlu0 %7151
      %7153 = vset.pattern.permute.xlu0 0
      %7154 = vperm.xlu0 %7153, %v6693
      %v7155 = vpop.permute.xlu0 %7154
      %7156 = vset.pattern.permute.xlu0 0
      %7157 = vperm.xlu0 %7156, %v6695
      %v7158 = vpop.permute.xlu0 %7157
      %7159 = vset.pattern.permute.xlu0 0
      %7160 = vperm.xlu0 %7159, %v6697
      %v7161 = vpop.permute.xlu0 %7160
      %7162 = vset.pattern.permute.xlu0 0
      %7163 = vperm.xlu0 %7162, %v6699
      %v7164 = vpop.permute.xlu0 %7163
      %7165 = vset.pattern.permute.xlu0 0
      %7166 = vperm.xlu0 %7165, %v6701
      %v7167 = vpop.permute.xlu0 %7166
      %7168 = vset.pattern.permute.xlu0 0
      %7169 = vperm.xlu0 %7168, %v6703
      %v7170 = vpop.permute.xlu0 %7169
      %7171 = vset.pattern.permute.xlu0 0
      %7172 = vperm.xlu0 %7171, %v6705
      %v7173 = vpop.permute.xlu0 %7172
      %7174 = vset.pattern.permute.xlu0 0
      %7175 = vperm.xlu0 %7174, %v6707
      %v7176 = vpop.permute.xlu0 %7175
      %7177 = vset.pattern.permute.xlu0 0
      %7178 = vperm.xlu0 %7177, %v6709
      %v7179 = vpop.permute.xlu0 %7178
      %7180 = vset.pattern.permute.xlu0 0
      %7181 = vperm.xlu0 %7180, %v6711
      %v7182 = vpop.permute.xlu0 %7181
      %7183 = vset.pattern.permute.xlu0 0
      %7184 = vperm.xlu0 %7183, %v6713
      %v7185 = vpop.permute.xlu0 %7184
      %7186 = vset.pattern.permute.xlu0 0
      %7187 = vperm.xlu0 %7186, %v6715
      %v7188 = vpop.permute.xlu0 %7187
      %7189 = vset.pattern.permute.xlu0 0
      %7190 = vperm.xlu0 %7189, %v6717
      %v7191 = vpop.permute.xlu0 %7190
      %7192 = vset.pattern.permute.xlu0 0
      %7193 = vperm.xlu0 %7192, %v6719
      %v7194 = vpop.permute.xlu0 %7193
      %7195 = vset.pattern.permute.xlu0 0
      %7196 = vperm.xlu0 %7195, %v6721
      %v7197 = vpop.permute.xlu0 %7196
      %7198 = vset.pattern.permute.xlu0 0
      %7199 = vperm.xlu0 %7198, %v6723
      %v7200 = vpop.permute.xlu0 %7199
      %7201 = vset.pattern.permute.xlu0 0
      %7202 = vperm.xlu0 %7201, %v6725
      %v7203 = vpop.permute.xlu0 %7202
      %7204 = vset.pattern.permute.xlu0 0
      %7205 = vperm.xlu0 %7204, %v6727
      %v7206 = vpop.permute.xlu0 %7205
      %7207 = vset.pattern.permute.xlu0 0
      %7208 = vperm.xlu0 %7207, %v6729
      %v7209 = vpop.permute.xlu0 %7208
      %7210 = vset.pattern.permute.xlu0 0
      %7211 = vperm.xlu0 %7210, %v6731
      %v7212 = vpop.permute.xlu0 %7211
      %7213 = vset.pattern.permute.xlu0 0
      %7214 = vperm.xlu0 %7213, %v6733
      %v7215 = vpop.permute.xlu0 %7214
      %7216 = vset.pattern.permute.xlu0 0
      %7217 = vperm.xlu0 %7216, %v6735
      %v7218 = vpop.permute.xlu0 %7217
      %7219 = vset.pattern.permute.xlu0 0
      %7220 = vperm.xlu0 %7219, %v6737
      %v7221 = vpop.permute.xlu0 %7220
      %7222 = vset.pattern.permute.xlu0 0
      %7223 = vperm.xlu0 %7222, %v6739
      %v7224 = vpop.permute.xlu0 %7223
      %7225 = vset.pattern.permute.xlu0 0
      %7226 = vperm.xlu0 %7225, %v6741
      %v7227 = vpop.permute.xlu0 %7226
      %7228 = vset.pattern.permute.xlu0 0
      %7229 = vperm.xlu0 %7228, %v6743
      %v7230 = vpop.permute.xlu0 %7229
      %7231 = vset.pattern.permute.xlu0 0
      %7232 = vperm.xlu0 %7231, %v6745
      %v7233 = vpop.permute.xlu0 %7232
      %7234 = vset.pattern.permute.xlu0 0
      %7235 = vperm.xlu0 %7234, %v6747
      %v7236 = vpop.permute.xlu0 %7235
      %7237 = vset.pattern.permute.xlu0 0
      %7238 = vperm.xlu0 %7237, %v6749
      %v7239 = vpop.permute.xlu0 %7238
      %7240 = vset.pattern.permute.xlu0 0
      %7241 = vperm.xlu0 %7240, %v6751
      %v7242 = vpop.permute.xlu0 %7241
      %7243 = vset.pattern.permute.xlu0 0
      %7244 = vperm.xlu0 %7243, %v6753
      %v7245 = vpop.permute.xlu0 %7244
      %7246 = vset.pattern.permute.xlu0 0
      %7247 = vperm.xlu0 %7246, %v6755
      %v7248 = vpop.permute.xlu0 %7247
      %7249 = vset.pattern.permute.xlu0 0
      %7250 = vperm.xlu0 %7249, %v6757
      %v7251 = vpop.permute.xlu0 %7250
      %7252 = vset.pattern.permute.xlu0 0
      %7253 = vperm.xlu0 %7252, %v6759
      %v7254 = vpop.permute.xlu0 %7253
      %7255 = vset.pattern.permute.xlu0 0
      %7256 = vperm.xlu0 %7255, %v6761
      %v7257 = vpop.permute.xlu0 %7256
      %7258 = vset.pattern.permute.xlu0 0
      %7259 = vperm.xlu0 %7258, %v6763
      %v7260 = vpop.permute.xlu0 %7259
      %7261 = vset.pattern.permute.xlu0 0
      %7262 = vperm.xlu0 %7261, %v6765
      %v7263 = vpop.permute.xlu0 %7262
      %7264 = vset.pattern.permute.xlu0 0
      %7265 = vperm.xlu0 %7264, %v6767
      %v7266 = vpop.permute.xlu0 %7265
      %7267 = vset.pattern.permute.xlu0 0
      %7268 = vperm.xlu0 %7267, %v6769
      %v7269 = vpop.permute.xlu0 %7268
      %7270 = vset.pattern.permute.xlu0 0
      %7271 = vperm.xlu0 %7270, %v6771
      %v7272 = vpop.permute.xlu0 %7271
      %7273 = vset.pattern.permute.xlu0 0
      %7274 = vperm.xlu0 %7273, %v6773
      %v7275 = vpop.permute.xlu0 %7274
      %7276 = vset.pattern.permute.xlu0 0
      %7277 = vperm.xlu0 %7276, %v6775
      %v7278 = vpop.permute.xlu0 %7277
      %7279 = vset.pattern.permute.xlu0 0
      %7280 = vperm.xlu0 %7279, %v6777
      %v7281 = vpop.permute.xlu0 %7280
      %7282 = vset.pattern.permute.xlu0 0
      %7283 = vperm.xlu0 %7282, %v6779
      %v7284 = vpop.permute.xlu0 %7283
      %7285 = vset.pattern.permute.xlu0 0
      %7286 = vperm.xlu0 %7285, %v6781
      %v7287 = vpop.permute.xlu0 %7286
      %7288 = vset.pattern.permute.xlu0 0
      %7289 = vperm.xlu0 %7288, %v6783
      %v7290 = vpop.permute.xlu0 %7289
      %7291 = vset.pattern.permute.xlu0 0
      %7292 = vperm.xlu0 %7291, %v6785
      %v7293 = vpop.permute.xlu0 %7292
      %7294 = vset.pattern.permute.xlu0 0
      %7295 = vperm.xlu0 %7294, %v6787
      %v7296 = vpop.permute.xlu0 %7295
      %7297 = vset.pattern.permute.xlu0 0
      %7298 = vperm.xlu0 %7297, %v6789
      %v7299 = vpop.permute.xlu0 %7298
      %7300 = vset.pattern.permute.xlu0 0
      %7301 = vperm.xlu0 %7300, %v6791
      %v7302 = vpop.permute.xlu0 %7301
      %7303 = vset.pattern.permute.xlu0 0
      %7304 = vperm.xlu0 %7303, %v6793
      %v7305 = vpop.permute.xlu0 %7304
      %v7306 = vlaneseq
      %v7307 = vand.u32 %v7306, 127
      %v7308 = vlaneseq
      %v7309 = vshrl.u32 %v7308, 7
      %v7310 = vsub.s32 %v7307, %v7309
      %v7311 = vrot.slane %v6924, %v7310
      %v7312 = vadd.s32 %v7307, 4294967288
      %v7313 = vlaneseq
      %v7314 = vshrl.u32 %v7313, 7
      %v7315 = vsub.s32 %v7312, %v7314
      %v7316 = vrot.slane %v6927, %v7315
      %vm7317 = vcmask 130112
      %v7318 = vsel %vm7317, %v7316, %v7311
      %v7319 = vadd.s32 %v7307, 4294967280
      %v7320 = vlaneseq
      %v7321 = vshrl.u32 %v7320, 7
      %v7322 = vsub.s32 %v7319, %v7321
      %v7323 = vrot.slane %v6930, %v7322
      %vm7324 = vcmask 195712
      %v7325 = vsel %vm7324, %v7323, %v7318
      %v7326 = vadd.s32 %v7307, 4294967272
      %v7327 = vlaneseq
      %v7328 = vshrl.u32 %v7327, 7
      %v7329 = vsub.s32 %v7326, %v7328
      %v7330 = vrot.slane %v6933, %v7329
      %vm7331 = vcmask 261312
      %v7332 = vsel %vm7331, %v7330, %v7325
      %v7333 = vadd.s32 %v7307, 4294967264
      %v7334 = vlaneseq
      %v7335 = vshrl.u32 %v7334, 7
      %v7336 = vsub.s32 %v7333, %v7335
      %v7337 = vrot.slane %v6936, %v7336
      %vm7338 = vcmask 326912
      %v7339 = vsel %vm7338, %v7337, %v7332
      %v7340 = vadd.s32 %v7307, 4294967256
      %v7341 = vlaneseq
      %v7342 = vshrl.u32 %v7341, 7
      %v7343 = vsub.s32 %v7340, %v7342
      %v7344 = vrot.slane %v6939, %v7343
      %vm7345 = vcmask 392512
      %v7346 = vsel %vm7345, %v7344, %v7339
      %v7347 = vadd.s32 %v7307, 4294967248
      %v7348 = vlaneseq
      %v7349 = vshrl.u32 %v7348, 7
      %v7350 = vsub.s32 %v7347, %v7349
      %v7351 = vrot.slane %v6942, %v7350
      %vm7352 = vcmask 458112
      %v7353 = vsel %vm7352, %v7351, %v7346
      %v7354 = vadd.s32 %v7307, 4294967240
      %v7355 = vlaneseq
      %v7356 = vshrl.u32 %v7355, 7
      %v7357 = vsub.s32 %v7354, %v7356
      %v7358 = vrot.slane %v6945, %v7357
      %vm7359 = vcmask 523712
      %v7360 = vsel %vm7359, %v7358, %v7353
      %v7361 = vadd.s32 %v7307, 4294967232
      %v7362 = vlaneseq
      %v7363 = vshrl.u32 %v7362, 7
      %v7364 = vsub.s32 %v7361, %v7363
      %v7365 = vrot.slane %v6948, %v7364
      %vm7366 = vcmask 589312
      %v7367 = vsel %vm7366, %v7365, %v7360
      %v7368 = vadd.s32 %v7307, 4294967224
      %v7369 = vlaneseq
      %v7370 = vshrl.u32 %v7369, 7
      %v7371 = vsub.s32 %v7368, %v7370
      %v7372 = vrot.slane %v6951, %v7371
      %vm7373 = vcmask 654912
      %v7374 = vsel %vm7373, %v7372, %v7367
      %v7375 = vadd.s32 %v7307, 4294967216
      %v7376 = vlaneseq
      %v7377 = vshrl.u32 %v7376, 7
      %v7378 = vsub.s32 %v7375, %v7377
      %v7379 = vrot.slane %v6954, %v7378
      %vm7380 = vcmask 720512
      %v7381 = vsel %vm7380, %v7379, %v7374
      %v7382 = vadd.s32 %v7307, 4294967208
      %v7383 = vlaneseq
      %v7384 = vshrl.u32 %v7383, 7
      %v7385 = vsub.s32 %v7382, %v7384
      %v7386 = vrot.slane %v6957, %v7385
      %vm7387 = vcmask 786112
      %v7388 = vsel %vm7387, %v7386, %v7381
      %v7389 = vadd.s32 %v7307, 4294967200
      %v7390 = vlaneseq
      %v7391 = vshrl.u32 %v7390, 7
      %v7392 = vsub.s32 %v7389, %v7391
      %v7393 = vrot.slane %v6960, %v7392
      %vm7394 = vcmask 851712
      %v7395 = vsel %vm7394, %v7393, %v7388
      %v7396 = vadd.s32 %v7307, 4294967192
      %v7397 = vlaneseq
      %v7398 = vshrl.u32 %v7397, 7
      %v7399 = vsub.s32 %v7396, %v7398
      %v7400 = vrot.slane %v6963, %v7399
      %vm7401 = vcmask 917312
      %v7402 = vsel %vm7401, %v7400, %v7395
      %v7403 = vadd.s32 %v7307, 4294967184
      %v7404 = vlaneseq
      %v7405 = vshrl.u32 %v7404, 7
      %v7406 = vsub.s32 %v7403, %v7405
      %v7407 = vrot.slane %v6966, %v7406
      %vm7408 = vcmask 982912
      %v7409 = vsel %vm7408, %v7407, %v7402
      %v7410 = vadd.s32 %v7307, 4294967176
      %v7411 = vlaneseq
      %v7412 = vshrl.u32 %v7411, 7
      %v7413 = vsub.s32 %v7410, %v7412
      %v7414 = vrot.slane %v6969, %v7413
      %vm7415 = vcmask 1048512
      %v7416 = vsel %vm7415, %v7414, %v7409
      %v7417 = vlaneseq
      %v7418 = vshrl.u32 %v7417, 7
      %v7419 = vsub.s32 %v7307, %v7418
      %v7420 = vrot.slane %v6972, %v7419
      %v7421 = vlaneseq
      %v7422 = vshrl.u32 %v7421, 7
      %v7423 = vsub.s32 %v7312, %v7422
      %v7424 = vrot.slane %v6975, %v7423
      %v7425 = vsel %vm7317, %v7424, %v7420
      %v7426 = vlaneseq
      %v7427 = vshrl.u32 %v7426, 7
      %v7428 = vsub.s32 %v7319, %v7427
      %v7429 = vrot.slane %v6978, %v7428
      %v7430 = vsel %vm7324, %v7429, %v7425
      %v7431 = vlaneseq
      %v7432 = vshrl.u32 %v7431, 7
      %v7433 = vsub.s32 %v7326, %v7432
      %v7434 = vrot.slane %v6981, %v7433
      %v7435 = vsel %vm7331, %v7434, %v7430
      %v7436 = vlaneseq
      %v7437 = vshrl.u32 %v7436, 7
      %v7438 = vsub.s32 %v7333, %v7437
      %v7439 = vrot.slane %v6984, %v7438
      %v7440 = vsel %vm7338, %v7439, %v7435
      %v7441 = vlaneseq
      %v7442 = vshrl.u32 %v7441, 7
      %v7443 = vsub.s32 %v7340, %v7442
      %v7444 = vrot.slane %v6987, %v7443
      %v7445 = vsel %vm7345, %v7444, %v7440
      %v7446 = vlaneseq
      %v7447 = vshrl.u32 %v7446, 7
      %v7448 = vsub.s32 %v7347, %v7447
      %v7449 = vrot.slane %v6990, %v7448
      %v7450 = vsel %vm7352, %v7449, %v7445
      %v7451 = vlaneseq
      %v7452 = vshrl.u32 %v7451, 7
      %v7453 = vsub.s32 %v7354, %v7452
      %v7454 = vrot.slane %v6993, %v7453
      %v7455 = vsel %vm7359, %v7454, %v7450
      %v7456 = vlaneseq
      %v7457 = vshrl.u32 %v7456, 7
      %v7458 = vsub.s32 %v7361, %v7457
      %v7459 = vrot.slane %v6996, %v7458
      %v7460 = vsel %vm7366, %v7459, %v7455
      %v7461 = vlaneseq
      %v7462 = vshrl.u32 %v7461, 7
      %v7463 = vsub.s32 %v7368, %v7462
      %v7464 = vrot.slane %v6999, %v7463
      %v7465 = vsel %vm7373, %v7464, %v7460
      %v7466 = vlaneseq
      %v7467 = vshrl.u32 %v7466, 7
      %v7468 = vsub.s32 %v7375, %v7467
      %v7469 = vrot.slane %v7002, %v7468
      %v7470 = vsel %vm7380, %v7469, %v7465
      %v7471 = vlaneseq
      %v7472 = vshrl.u32 %v7471, 7
      %v7473 = vsub.s32 %v7382, %v7472
      %v7474 = vrot.slane %v7005, %v7473
      %v7475 = vsel %vm7387, %v7474, %v7470
      %v7476 = vlaneseq
      %v7477 = vshrl.u32 %v7476, 7
      %v7478 = vsub.s32 %v7389, %v7477
      %v7479 = vrot.slane %v7008, %v7478
      %v7480 = vsel %vm7394, %v7479, %v7475
      %v7481 = vlaneseq
      %v7482 = vshrl.u32 %v7481, 7
      %v7483 = vsub.s32 %v7396, %v7482
      %v7484 = vrot.slane %v7011, %v7483
      %v7485 = vsel %vm7401, %v7484, %v7480
      %v7486 = vlaneseq
      %v7487 = vshrl.u32 %v7486, 7
      %v7488 = vsub.s32 %v7403, %v7487
      %v7489 = vrot.slane %v7014, %v7488
      %v7490 = vsel %vm7408, %v7489, %v7485
      %v7491 = vlaneseq
      %v7492 = vshrl.u32 %v7491, 7
      %v7493 = vsub.s32 %v7410, %v7492
      %v7494 = vrot.slane %v7017, %v7493
      %v7495 = vsel %vm7415, %v7494, %v7490
      %v7496 = vlaneseq
      %v7497 = vshrl.u32 %v7496, 7
      %v7498 = vsub.s32 %v7307, %v7497
      %v7499 = vrot.slane %v7020, %v7498
      %v7500 = vlaneseq
      %v7501 = vshrl.u32 %v7500, 7
      %v7502 = vsub.s32 %v7312, %v7501
      %v7503 = vrot.slane %v7023, %v7502
      %v7504 = vsel %vm7317, %v7503, %v7499
      %v7505 = vlaneseq
      %v7506 = vshrl.u32 %v7505, 7
      %v7507 = vsub.s32 %v7319, %v7506
      %v7508 = vrot.slane %v7026, %v7507
      %v7509 = vsel %vm7324, %v7508, %v7504
      %v7510 = vlaneseq
      %v7511 = vshrl.u32 %v7510, 7
      %v7512 = vsub.s32 %v7326, %v7511
      %v7513 = vrot.slane %v7029, %v7512
      %v7514 = vsel %vm7331, %v7513, %v7509
      %v7515 = vlaneseq
      %v7516 = vshrl.u32 %v7515, 7
      %v7517 = vsub.s32 %v7333, %v7516
      %v7518 = vrot.slane %v7032, %v7517
      %v7519 = vsel %vm7338, %v7518, %v7514
      %v7520 = vlaneseq
      %v7521 = vshrl.u32 %v7520, 7
      %v7522 = vsub.s32 %v7340, %v7521
      %v7523 = vrot.slane %v7035, %v7522
      %v7524 = vsel %vm7345, %v7523, %v7519
      %v7525 = vlaneseq
      %v7526 = vshrl.u32 %v7525, 7
      %v7527 = vsub.s32 %v7347, %v7526
      %v7528 = vrot.slane %v7038, %v7527
      %v7529 = vsel %vm7352, %v7528, %v7524
      %v7530 = vlaneseq
      %v7531 = vshrl.u32 %v7530, 7
      %v7532 = vsub.s32 %v7354, %v7531
      %v7533 = vrot.slane %v7041, %v7532
      %v7534 = vsel %vm7359, %v7533, %v7529
      %v7535 = vlaneseq
      %v7536 = vshrl.u32 %v7535, 7
      %v7537 = vsub.s32 %v7361, %v7536
      %v7538 = vrot.slane %v7044, %v7537
      %v7539 = vsel %vm7366, %v7538, %v7534
      %v7540 = vlaneseq
      %v7541 = vshrl.u32 %v7540, 7
      %v7542 = vsub.s32 %v7368, %v7541
      %v7543 = vrot.slane %v7047, %v7542
      %v7544 = vsel %vm7373, %v7543, %v7539
      %v7545 = vlaneseq
      %v7546 = vshrl.u32 %v7545, 7
      %v7547 = vsub.s32 %v7375, %v7546
      %v7548 = vrot.slane %v7050, %v7547
      %v7549 = vsel %vm7380, %v7548, %v7544
      %v7550 = vlaneseq
      %v7551 = vshrl.u32 %v7550, 7
      %v7552 = vsub.s32 %v7382, %v7551
      %v7553 = vrot.slane %v7053, %v7552
      %v7554 = vsel %vm7387, %v7553, %v7549
      %v7555 = vlaneseq
      %v7556 = vshrl.u32 %v7555, 7
      %v7557 = vsub.s32 %v7389, %v7556
      %v7558 = vrot.slane %v7056, %v7557
      %v7559 = vsel %vm7394, %v7558, %v7554
      %v7560 = vlaneseq
      %v7561 = vshrl.u32 %v7560, 7
      %v7562 = vsub.s32 %v7396, %v7561
      %v7563 = vrot.slane %v7059, %v7562
      %v7564 = vsel %vm7401, %v7563, %v7559
      %v7565 = vlaneseq
      %v7566 = vshrl.u32 %v7565, 7
      %v7567 = vsub.s32 %v7403, %v7566
      %v7568 = vrot.slane %v7062, %v7567
      %v7569 = vsel %vm7408, %v7568, %v7564
      %v7570 = vlaneseq
      %v7571 = vshrl.u32 %v7570, 7
      %v7572 = vsub.s32 %v7410, %v7571
      %v7573 = vrot.slane %v7065, %v7572
      %v7574 = vsel %vm7415, %v7573, %v7569
      %v7575 = vlaneseq
      %v7576 = vshrl.u32 %v7575, 7
      %v7577 = vsub.s32 %v7307, %v7576
      %v7578 = vrot.slane %v7068, %v7577
      %v7579 = vlaneseq
      %v7580 = vshrl.u32 %v7579, 7
      %v7581 = vsub.s32 %v7312, %v7580
      %v7582 = vrot.slane %v7071, %v7581
      %v7583 = vsel %vm7317, %v7582, %v7578
      %v7584 = vlaneseq
      %v7585 = vshrl.u32 %v7584, 7
      %v7586 = vsub.s32 %v7319, %v7585
      %v7587 = vrot.slane %v7074, %v7586
      %v7588 = vsel %vm7324, %v7587, %v7583
      %v7589 = vlaneseq
      %v7590 = vshrl.u32 %v7589, 7
      %v7591 = vsub.s32 %v7326, %v7590
      %v7592 = vrot.slane %v7077, %v7591
      %v7593 = vsel %vm7331, %v7592, %v7588
      %v7594 = vlaneseq
      %v7595 = vshrl.u32 %v7594, 7
      %v7596 = vsub.s32 %v7333, %v7595
      %v7597 = vrot.slane %v7080, %v7596
      %v7598 = vsel %vm7338, %v7597, %v7593
      %v7599 = vlaneseq
      %v7600 = vshrl.u32 %v7599, 7
      %v7601 = vsub.s32 %v7340, %v7600
      %v7602 = vrot.slane %v7083, %v7601
      %v7603 = vsel %vm7345, %v7602, %v7598
      %v7604 = vlaneseq
      %v7605 = vshrl.u32 %v7604, 7
      %v7606 = vsub.s32 %v7347, %v7605
      %v7607 = vrot.slane %v7086, %v7606
      %v7608 = vsel %vm7352, %v7607, %v7603
      %v7609 = vlaneseq
      %v7610 = vshrl.u32 %v7609, 7
      %v7611 = vsub.s32 %v7354, %v7610
      %v7612 = vrot.slane %v7089, %v7611
      %v7613 = vsel %vm7359, %v7612, %v7608
      %v7614 = vlaneseq
      %v7615 = vshrl.u32 %v7614, 7
      %v7616 = vsub.s32 %v7361, %v7615
      %v7617 = vrot.slane %v7092, %v7616
      %v7618 = vsel %vm7366, %v7617, %v7613
      %v7619 = vlaneseq
      %v7620 = vshrl.u32 %v7619, 7
      %v7621 = vsub.s32 %v7368, %v7620
      %v7622 = vrot.slane %v7095, %v7621
      %v7623 = vsel %vm7373, %v7622, %v7618
      %v7624 = vlaneseq
      %v7625 = vshrl.u32 %v7624, 7
      %v7626 = vsub.s32 %v7375, %v7625
      %v7627 = vrot.slane %v7098, %v7626
      %v7628 = vsel %vm7380, %v7627, %v7623
      %v7629 = vlaneseq
      %v7630 = vshrl.u32 %v7629, 7
      %v7631 = vsub.s32 %v7382, %v7630
      %v7632 = vrot.slane %v7101, %v7631
      %v7633 = vsel %vm7387, %v7632, %v7628
      %v7634 = vlaneseq
      %v7635 = vshrl.u32 %v7634, 7
      %v7636 = vsub.s32 %v7389, %v7635
      %v7637 = vrot.slane %v7104, %v7636
      %v7638 = vsel %vm7394, %v7637, %v7633
      %v7639 = vlaneseq
      %v7640 = vshrl.u32 %v7639, 7
      %v7641 = vsub.s32 %v7396, %v7640
      %v7642 = vrot.slane %v7107, %v7641
      %v7643 = vsel %vm7401, %v7642, %v7638
      %v7644 = vlaneseq
      %v7645 = vshrl.u32 %v7644, 7
      %v7646 = vsub.s32 %v7403, %v7645
      %v7647 = vrot.slane %v7110, %v7646
      %v7648 = vsel %vm7408, %v7647, %v7643
      %v7649 = vlaneseq
      %v7650 = vshrl.u32 %v7649, 7
      %v7651 = vsub.s32 %v7410, %v7650
      %v7652 = vrot.slane %v7113, %v7651
      %v7653 = vsel %vm7415, %v7652, %v7648
      %v7654 = vlaneseq
      %v7655 = vshrl.u32 %v7654, 7
      %v7656 = vsub.s32 %v7307, %v7655
      %v7657 = vrot.slane %v7116, %v7656
      %v7658 = vlaneseq
      %v7659 = vshrl.u32 %v7658, 7
      %v7660 = vsub.s32 %v7312, %v7659
      %v7661 = vrot.slane %v7119, %v7660
      %v7662 = vsel %vm7317, %v7661, %v7657
      %v7663 = vlaneseq
      %v7664 = vshrl.u32 %v7663, 7
      %v7665 = vsub.s32 %v7319, %v7664
      %v7666 = vrot.slane %v7122, %v7665
      %v7667 = vsel %vm7324, %v7666, %v7662
      %v7668 = vlaneseq
      %v7669 = vshrl.u32 %v7668, 7
      %v7670 = vsub.s32 %v7326, %v7669
      %v7671 = vrot.slane %v7125, %v7670
      %v7672 = vsel %vm7331, %v7671, %v7667
      %v7673 = vlaneseq
      %v7674 = vshrl.u32 %v7673, 7
      %v7675 = vsub.s32 %v7333, %v7674
      %v7676 = vrot.slane %v7128, %v7675
      %v7677 = vsel %vm7338, %v7676, %v7672
      %v7678 = vlaneseq
      %v7679 = vshrl.u32 %v7678, 7
      %v7680 = vsub.s32 %v7340, %v7679
      %v7681 = vrot.slane %v7131, %v7680
      %v7682 = vsel %vm7345, %v7681, %v7677
      %v7683 = vlaneseq
      %v7684 = vshrl.u32 %v7683, 7
      %v7685 = vsub.s32 %v7347, %v7684
      %v7686 = vrot.slane %v7134, %v7685
      %v7687 = vsel %vm7352, %v7686, %v7682
      %v7688 = vlaneseq
      %v7689 = vshrl.u32 %v7688, 7
      %v7690 = vsub.s32 %v7354, %v7689
      %v7691 = vrot.slane %v7137, %v7690
      %v7692 = vsel %vm7359, %v7691, %v7687
      %v7693 = vlaneseq
      %v7694 = vshrl.u32 %v7693, 7
      %v7695 = vsub.s32 %v7361, %v7694
      %v7696 = vrot.slane %v7140, %v7695
      %v7697 = vsel %vm7366, %v7696, %v7692
      %v7698 = vlaneseq
      %v7699 = vshrl.u32 %v7698, 7
      %v7700 = vsub.s32 %v7368, %v7699
      %v7701 = vrot.slane %v7143, %v7700
      %v7702 = vsel %vm7373, %v7701, %v7697
      %v7703 = vlaneseq
      %v7704 = vshrl.u32 %v7703, 7
      %v7705 = vsub.s32 %v7375, %v7704
      %v7706 = vrot.slane %v7146, %v7705
      %v7707 = vsel %vm7380, %v7706, %v7702
      %v7708 = vlaneseq
      %v7709 = vshrl.u32 %v7708, 7
      %v7710 = vsub.s32 %v7382, %v7709
      %v7711 = vrot.slane %v7149, %v7710
      %v7712 = vsel %vm7387, %v7711, %v7707
      %v7713 = vlaneseq
      %v7714 = vshrl.u32 %v7713, 7
      %v7715 = vsub.s32 %v7389, %v7714
      %v7716 = vrot.slane %v7152, %v7715
      %v7717 = vsel %vm7394, %v7716, %v7712
      %v7718 = vlaneseq
      %v7719 = vshrl.u32 %v7718, 7
      %v7720 = vsub.s32 %v7396, %v7719
      %v7721 = vrot.slane %v7155, %v7720
      %v7722 = vsel %vm7401, %v7721, %v7717
      %v7723 = vlaneseq
      %v7724 = vshrl.u32 %v7723, 7
      %v7725 = vsub.s32 %v7403, %v7724
      %v7726 = vrot.slane %v7158, %v7725
      %v7727 = vsel %vm7408, %v7726, %v7722
      %v7728 = vlaneseq
      %v7729 = vshrl.u32 %v7728, 7
      %v7730 = vsub.s32 %v7410, %v7729
      %v7731 = vrot.slane %v7161, %v7730
      %v7732 = vsel %vm7415, %v7731, %v7727
      %v7733 = vlaneseq
      %v7734 = vshrl.u32 %v7733, 7
      %v7735 = vsub.s32 %v7307, %v7734
      %v7736 = vrot.slane %v7164, %v7735
      %v7737 = vlaneseq
      %v7738 = vshrl.u32 %v7737, 7
      %v7739 = vsub.s32 %v7312, %v7738
      %v7740 = vrot.slane %v7167, %v7739
      %v7741 = vsel %vm7317, %v7740, %v7736
      %v7742 = vlaneseq
      %v7743 = vshrl.u32 %v7742, 7
      %v7744 = vsub.s32 %v7319, %v7743
      %v7745 = vrot.slane %v7170, %v7744
      %v7746 = vsel %vm7324, %v7745, %v7741
      %v7747 = vlaneseq
      %v7748 = vshrl.u32 %v7747, 7
      %v7749 = vsub.s32 %v7326, %v7748
      %v7750 = vrot.slane %v7173, %v7749
      %v7751 = vsel %vm7331, %v7750, %v7746
      %v7752 = vlaneseq
      %v7753 = vshrl.u32 %v7752, 7
      %v7754 = vsub.s32 %v7333, %v7753
      %v7755 = vrot.slane %v7176, %v7754
      %v7756 = vsel %vm7338, %v7755, %v7751
      %v7757 = vlaneseq
      %v7758 = vshrl.u32 %v7757, 7
      %v7759 = vsub.s32 %v7340, %v7758
      %v7760 = vrot.slane %v7179, %v7759
      %v7761 = vsel %vm7345, %v7760, %v7756
      %v7762 = vlaneseq
      %v7763 = vshrl.u32 %v7762, 7
      %v7764 = vsub.s32 %v7347, %v7763
      %v7765 = vrot.slane %v7182, %v7764
      %v7766 = vsel %vm7352, %v7765, %v7761
      %v7767 = vlaneseq
      %v7768 = vshrl.u32 %v7767, 7
      %v7769 = vsub.s32 %v7354, %v7768
      %v7770 = vrot.slane %v7185, %v7769
      %v7771 = vsel %vm7359, %v7770, %v7766
      %v7772 = vlaneseq
      %v7773 = vshrl.u32 %v7772, 7
      %v7774 = vsub.s32 %v7361, %v7773
      %v7775 = vrot.slane %v7188, %v7774
      %v7776 = vsel %vm7366, %v7775, %v7771
      %v7777 = vlaneseq
      %v7778 = vshrl.u32 %v7777, 7
      %v7779 = vsub.s32 %v7368, %v7778
      %v7780 = vrot.slane %v7191, %v7779
      %v7781 = vsel %vm7373, %v7780, %v7776
      %v7782 = vlaneseq
      %v7783 = vshrl.u32 %v7782, 7
      %v7784 = vsub.s32 %v7375, %v7783
      %v7785 = vrot.slane %v7194, %v7784
      %v7786 = vsel %vm7380, %v7785, %v7781
      %v7787 = vlaneseq
      %v7788 = vshrl.u32 %v7787, 7
      %v7789 = vsub.s32 %v7382, %v7788
      %v7790 = vrot.slane %v7197, %v7789
      %v7791 = vsel %vm7387, %v7790, %v7786
      %v7792 = vlaneseq
      %v7793 = vshrl.u32 %v7792, 7
      %v7794 = vsub.s32 %v7389, %v7793
      %v7795 = vrot.slane %v7200, %v7794
      %v7796 = vsel %vm7394, %v7795, %v7791
      %v7797 = vlaneseq
      %v7798 = vshrl.u32 %v7797, 7
      %v7799 = vsub.s32 %v7396, %v7798
      %v7800 = vrot.slane %v7203, %v7799
      %v7801 = vsel %vm7401, %v7800, %v7796
      %v7802 = vlaneseq
      %v7803 = vshrl.u32 %v7802, 7
      %v7804 = vsub.s32 %v7403, %v7803
      %v7805 = vrot.slane %v7206, %v7804
      %v7806 = vsel %vm7408, %v7805, %v7801
      %v7807 = vlaneseq
      %v7808 = vshrl.u32 %v7807, 7
      %v7809 = vsub.s32 %v7410, %v7808
      %v7810 = vrot.slane %v7209, %v7809
      %v7811 = vsel %vm7415, %v7810, %v7806
      %v7812 = vlaneseq
      %v7813 = vshrl.u32 %v7812, 7
      %v7814 = vsub.s32 %v7307, %v7813
      %v7815 = vrot.slane %v7212, %v7814
      %v7816 = vlaneseq
      %v7817 = vshrl.u32 %v7816, 7
      %v7818 = vsub.s32 %v7312, %v7817
      %v7819 = vrot.slane %v7215, %v7818
      %v7820 = vsel %vm7317, %v7819, %v7815
      %v7821 = vlaneseq
      %v7822 = vshrl.u32 %v7821, 7
      %v7823 = vsub.s32 %v7319, %v7822
      %v7824 = vrot.slane %v7218, %v7823
      %v7825 = vsel %vm7324, %v7824, %v7820
      %v7826 = vlaneseq
      %v7827 = vshrl.u32 %v7826, 7
      %v7828 = vsub.s32 %v7326, %v7827
      %v7829 = vrot.slane %v7221, %v7828
      %v7830 = vsel %vm7331, %v7829, %v7825
      %v7831 = vlaneseq
      %v7832 = vshrl.u32 %v7831, 7
      %v7833 = vsub.s32 %v7333, %v7832
      %v7834 = vrot.slane %v7224, %v7833
      %v7835 = vsel %vm7338, %v7834, %v7830
      %v7836 = vlaneseq
      %v7837 = vshrl.u32 %v7836, 7
      %v7838 = vsub.s32 %v7340, %v7837
      %v7839 = vrot.slane %v7227, %v7838
      %v7840 = vsel %vm7345, %v7839, %v7835
      %v7841 = vlaneseq
      %v7842 = vshrl.u32 %v7841, 7
      %v7843 = vsub.s32 %v7347, %v7842
      %v7844 = vrot.slane %v7230, %v7843
      %v7845 = vsel %vm7352, %v7844, %v7840
      %v7846 = vlaneseq
      %v7847 = vshrl.u32 %v7846, 7
      %v7848 = vsub.s32 %v7354, %v7847
      %v7849 = vrot.slane %v7233, %v7848
      %v7850 = vsel %vm7359, %v7849, %v7845
      %v7851 = vlaneseq
      %v7852 = vshrl.u32 %v7851, 7
      %v7853 = vsub.s32 %v7361, %v7852
      %v7854 = vrot.slane %v7236, %v7853
      %v7855 = vsel %vm7366, %v7854, %v7850
      %v7856 = vlaneseq
      %v7857 = vshrl.u32 %v7856, 7
      %v7858 = vsub.s32 %v7368, %v7857
      %v7859 = vrot.slane %v7239, %v7858
      %v7860 = vsel %vm7373, %v7859, %v7855
      %v7861 = vlaneseq
      %v7862 = vshrl.u32 %v7861, 7
      %v7863 = vsub.s32 %v7375, %v7862
      %v7864 = vrot.slane %v7242, %v7863
      %v7865 = vsel %vm7380, %v7864, %v7860
      %v7866 = vlaneseq
      %v7867 = vshrl.u32 %v7866, 7
      %v7868 = vsub.s32 %v7382, %v7867
      %v7869 = vrot.slane %v7245, %v7868
      %v7870 = vsel %vm7387, %v7869, %v7865
      %v7871 = vlaneseq
      %v7872 = vshrl.u32 %v7871, 7
      %v7873 = vsub.s32 %v7389, %v7872
      %v7874 = vrot.slane %v7248, %v7873
      %v7875 = vsel %vm7394, %v7874, %v7870
      %v7876 = vlaneseq
      %v7877 = vshrl.u32 %v7876, 7
      %v7878 = vsub.s32 %v7396, %v7877
      %v7879 = vrot.slane %v7251, %v7878
      %v7880 = vsel %vm7401, %v7879, %v7875
      %v7881 = vlaneseq
      %v7882 = vshrl.u32 %v7881, 7
      %v7883 = vsub.s32 %v7403, %v7882
      %v7884 = vrot.slane %v7254, %v7883
      %v7885 = vsel %vm7408, %v7884, %v7880
      %v7886 = vlaneseq
      %v7887 = vshrl.u32 %v7886, 7
      %v7888 = vsub.s32 %v7410, %v7887
      %v7889 = vrot.slane %v7257, %v7888
      %v7890 = vsel %vm7415, %v7889, %v7885
      %v7891 = vlaneseq
      %v7892 = vshrl.u32 %v7891, 7
      %v7893 = vsub.s32 %v7307, %v7892
      %v7894 = vrot.slane %v7260, %v7893
      %v7895 = vlaneseq
      %v7896 = vshrl.u32 %v7895, 7
      %v7897 = vsub.s32 %v7312, %v7896
      %v7898 = vrot.slane %v7263, %v7897
      %v7899 = vsel %vm7317, %v7898, %v7894
      %v7900 = vlaneseq
      %v7901 = vshrl.u32 %v7900, 7
      %v7902 = vsub.s32 %v7319, %v7901
      %v7903 = vrot.slane %v7266, %v7902
      %v7904 = vsel %vm7324, %v7903, %v7899
      %v7905 = vlaneseq
      %v7906 = vshrl.u32 %v7905, 7
      %v7907 = vsub.s32 %v7326, %v7906
      %v7908 = vrot.slane %v7269, %v7907
      %v7909 = vsel %vm7331, %v7908, %v7904
      %v7910 = vlaneseq
      %v7911 = vshrl.u32 %v7910, 7
      %v7912 = vsub.s32 %v7333, %v7911
      %v7913 = vrot.slane %v7272, %v7912
      %v7914 = vsel %vm7338, %v7913, %v7909
      %v7915 = vlaneseq
      %v7916 = vshrl.u32 %v7915, 7
      %v7917 = vsub.s32 %v7340, %v7916
      %v7918 = vrot.slane %v7275, %v7917
      %v7919 = vsel %vm7345, %v7918, %v7914
      %v7920 = vlaneseq
      %v7921 = vshrl.u32 %v7920, 7
      %v7922 = vsub.s32 %v7347, %v7921
      %v7923 = vrot.slane %v7278, %v7922
      %v7924 = vsel %vm7352, %v7923, %v7919
      %v7925 = vlaneseq
      %v7926 = vshrl.u32 %v7925, 7
      %v7927 = vsub.s32 %v7354, %v7926
      %v7928 = vrot.slane %v7281, %v7927
      %v7929 = vsel %vm7359, %v7928, %v7924
      %v7930 = vlaneseq
      %v7931 = vshrl.u32 %v7930, 7
      %v7932 = vsub.s32 %v7361, %v7931
      %v7933 = vrot.slane %v7284, %v7932
      %v7934 = vsel %vm7366, %v7933, %v7929
      %v7935 = vlaneseq
      %v7936 = vshrl.u32 %v7935, 7
      %v7937 = vsub.s32 %v7368, %v7936
      %v7938 = vrot.slane %v7287, %v7937
      %v7939 = vsel %vm7373, %v7938, %v7934
      %v7940 = vlaneseq
      %v7941 = vshrl.u32 %v7940, 7
      %v7942 = vsub.s32 %v7375, %v7941
      %v7943 = vrot.slane %v7290, %v7942
      %v7944 = vsel %vm7380, %v7943, %v7939
      %v7945 = vlaneseq
      %v7946 = vshrl.u32 %v7945, 7
      %v7947 = vsub.s32 %v7382, %v7946
      %v7948 = vrot.slane %v7293, %v7947
      %v7949 = vsel %vm7387, %v7948, %v7944
      %v7950 = vlaneseq
      %v7951 = vshrl.u32 %v7950, 7
      %v7952 = vsub.s32 %v7389, %v7951
      %v7953 = vrot.slane %v7296, %v7952
      %v7954 = vsel %vm7394, %v7953, %v7949
      %v7955 = vlaneseq
      %v7956 = vshrl.u32 %v7955, 7
      %v7957 = vsub.s32 %v7396, %v7956
      %v7958 = vrot.slane %v7299, %v7957
      %v7959 = vsel %vm7401, %v7958, %v7954
      %v7960 = vlaneseq
      %v7961 = vshrl.u32 %v7960, 7
      %v7962 = vsub.s32 %v7403, %v7961
      %v7963 = vrot.slane %v7302, %v7962
      %v7964 = vsel %vm7408, %v7963, %v7959
      %v7965 = vlaneseq
      %v7966 = vshrl.u32 %v7965, 7
      %v7967 = vsub.s32 %v7410, %v7966
      %v7968 = vrot.slane %v7305, %v7967
      %v7969 = vsel %vm7415, %v7968, %v7964
      %vm7970 = vcmask 1041409
      %v7971 = vsel %vm7970, %v7495, %v7416
      %vm7972 = vcmask 1042434
      %v7973 = vsel %vm7972, %v7574, %v7971
      %vm7974 = vcmask 1043459
      %v7975 = vsel %vm7974, %v7653, %v7973
      %vm7976 = vcmask 1044484
      %v7977 = vsel %vm7976, %v7732, %v7975
      %vm7978 = vcmask 1045509
      %v7979 = vsel %vm7978, %v7811, %v7977
      %vm7980 = vcmask 1046534
      %v7981 = vsel %vm7980, %v7890, %v7979
      %vm7982 = vcmask 1047559
      %v7983 = vsel %vm7982, %v7969, %v7981
      %7985 = vst [vmem:[%s224] sm:$0xff] %v7983
      %p7986 = scmp.lt.s32.totalorder %s16, 2
      %s7987 = scalar_select %p7986, %s16, 2
      %s7988 = smul.addr %s7987, 8
      %s7989 = scalar_lea.vmem %s5, %s7988
      // Predicated region
      $region41: #{neumf_forward.1} parent=39 // pred_check
        %p7990 = pneg %p144
      $region42: #{neumf_forward.1} parent=39 // pred_check_branch
        %7992 = sbr.rel (%p7990) target = $region44
      $region43: #{neumf_forward.1} parent=39 // pred_region
        _
      $region44: #{neumf_forward.1} parent=39 // pred_fallthru
        _
    $region40: #{neumf_forward.1} parent=5 // pred_fallthru
      _
    %p7993 = scmp.le.s32.totalorder 2, %s11
    // Predicated region
    $region45: #{neumf_forward.1} parent=5 // pred_check
      %p7994 = pneg %p7993
    $region46: #{neumf_forward.1} parent=5 // pred_check_branch
      %7996 = sbr.rel (%p7994) target = $region48
    $region47: #{neumf_forward.1} parent=5 // pred_region
      %s7997 = ssub.s32 %s11, 2
      // Predicated region
      $region49: #{neumf_forward.1} parent=47 // pred_check
        %p7998 = pneg %p150
      $region50: #{neumf_forward.1} parent=47 // pred_check_branch
        %8000 = sbr.rel (%p7998) target = $region52
      $region51: #{neumf_forward.1} parent=47 // pred_region
        %p8001 = scmp.lt.s32.totalorder %s17, 2
        %s8002 = scalar_select %p8001, %s17, 2
        %s8003 = smul.addr %s8002, 8
        %s8004 = scalar_lea.vmem %s5, %s8003
      $region52: #{neumf_forward.1} parent=47 // pred_fallthru
        _
    $region48: #{neumf_forward.1} parent=5 // pred_fallthru
      _
  $region6: #{neumf_forward.1} parent=0 // loop_footer
    %s15 = sadd.s32 1, %s11
  $region7: #{neumf_forward.1} parent=0 // loop_footer_branch
    %10 = sbr.rel target = $region3
  $region8: #{neumf_forward.1} parent=0 // loop_exit
    _

</llo_original>
